<compile_context>
chip_gen: v7x
topology: tpu7x:2x2x1
jax: 0.10.0
libtpu: 0.0.40
codegen_flags: <defaults>
</compile_context>

<pallas_src>
import jax
import jax.numpy as jnp
from jax.experimental import pallas as pl
from jax.experimental.pallas import tpu as pltpu

# (in, out) per layer: raw PyTorch dims and the dims the kernel sees.
# Only fc6's output is padded (2 -> 8); zero padding keeps the math identical.
_RAW_DIMS = [(168, 1024), (1024, 1024), (1024, 256), (256, 64), (64, 16), (16, 2)]
_PAD_DIMS = [(168, 1024), (1024, 1024), (1024, 256), (256, 64), (64, 16), (16, 8)]


def _mlp_kernel(x_ref,
                w1_ref, b1_ref, w2_ref, b2_ref, w3_ref, b3_ref,
                w4_ref, b4_ref, w5_ref, b5_ref, w6_ref, b6_ref,
                out_ref):
    """Fused 6-layer MLP: bf16 operands on the MXU, f32 accumulation.

    seq1: fc1..fc4 each followed by ReLU (dropout = identity at inference);
    seq2: fc5 -> ReLU -> fc6 (no final activation).
    """

    def layer(h_bf16, w_ref, b_ref, relu):
        acc = jnp.dot(h_bf16, w_ref[...], preferred_element_type=jnp.float32)
        acc = acc + b_ref[...]
        if relu:
            acc = jnp.maximum(acc, 0.0)
        return acc

    h = x_ref[...]                                              # [TB, 168] bf16
    h = layer(h, w1_ref, b1_ref, True).astype(jnp.bfloat16)     # [TB, 1024]
    h = layer(h, w2_ref, b2_ref, True).astype(jnp.bfloat16)     # [TB, 1024]
    h = layer(h, w3_ref, b3_ref, True).astype(jnp.bfloat16)     # [TB, 256]
    h = layer(h, w4_ref, b4_ref, True).astype(jnp.bfloat16)     # [TB, 64]
    h = layer(h, w5_ref, b5_ref, True).astype(jnp.bfloat16)     # [TB, 16]
    out_ref[...] = layer(h, w6_ref, b6_ref, False)              # [TB, 8] f32


def pack_params(params):
    """Zero-pad each (W [in,out], b [1,out]) to _PAD_DIMS; weights -> bf16."""
    flat = []
    for (w, b), (pi, po) in zip(params, _PAD_DIMS):
        fi, fo = w.shape
        w_p = jnp.pad(w, ((0, pi - fi), (0, po - fo))).astype(jnp.bfloat16)
        b_p = jnp.pad(b, ((0, 0), (0, po - b.shape[1]))).astype(jnp.float32)
        flat.extend([w_p, b_p])
    return flat


def _round_up(n, m):
    return ((n + m - 1) // m) * m


def _pick_tiling(batch, tile_cap):
    """Balanced batch tiles: multiples of 16 rows, padding waste < 16 per tile."""
    b16 = _round_up(max(batch, 1), 16)
    if b16 <= tile_cap:
        return b16, b16, 1                       # b_pad, tb, nb (single tile)
    nb = -(-b16 // tile_cap)
    tb = _round_up(-(-b16 // nb), 16)
    return nb * tb, tb, nb


def _device_kind():
    try:
        return jax.devices()[0].device_kind.lower()
    except Exception:
        return ""


def _build_call(b_pad, tb, nb, *, conservative):
    kind = _device_kind()
    is_v7 = "v7" in kind

    if conservative:
        # Previously-validated safe configuration.
        pipeline_mode = None
        semantics = (pltpu.PARALLEL,)
        vmem_limit = 32 << 20
    else:
        # Weights/biases never change block -> fetch exactly once, single buffer.
        pipeline_mode = pl.Buffered(1)
        vmem_limit = (48 << 20) if is_v7 else (64 << 20)
        if is_v7 and nb >= 2 and nb % 2 == 0:
            semantics = (pltpu.CORE_PARALLEL,)   # shard batch tiles over both TCs
        else:
            semantics = (pltpu.PARALLEL,)

    wb_specs = []
    for (pi, po) in _PAD_DIMS:
        if pipeline_mode is None:
            wb_specs.append(pl.BlockSpec((pi, po), lambda i: (0, 0)))
            wb_specs.append(pl.BlockSpec((1, po), lambda i: (0, 0)))
        else:
            wb_specs.append(pl.BlockSpec((pi, po), lambda i: (0, 0),
                                         pipeline_mode=pipeline_mode))
            wb_specs.append(pl.BlockSpec((1, po), lambda i: (0, 0),
                                         pipeline_mode=pipeline_mode))

    in_pad = _PAD_DIMS[0][0]
    out_pad = _PAD_DIMS[-1][1]

    flops = 2 * b_pad * sum(pi * po for pi, po in _PAD_DIMS)
    weight_bytes = sum(pi * po * 2 + po * 4 for pi, po in _PAD_DIMS)
    bytes_accessed = weight_bytes + b_pad * in_pad * 2 + b_pad * out_pad * 4

    return pl.pallas_call(
        _mlp_kernel,
        out_shape=jax.ShapeDtypeStruct((b_pad, out_pad), jnp.float32),
        grid=(nb,),
        in_specs=[pl.BlockSpec((tb, in_pad), lambda i: (i, 0))] + wb_specs,
        out_specs=pl.BlockSpec((tb, out_pad), lambda i: (i, 0)),
        compiler_params=pltpu.CompilerParams(
            dimension_semantics=semantics,
            vmem_limit_bytes=vmem_limit,
        ),
        cost_estimate=pl.CostEstimate(
            flops=flops, transcendentals=0, bytes_accessed=bytes_accessed),
    )


def net2524_forward(x, packed_params, *, tile_b=1024):
    """x: [B, 168] float32. packed_params: output of pack_params. Returns [B, 2] f32."""
    B, F = x.shape
    assert F == _RAW_DIMS[0][0], f"expected {_RAW_DIMS[0][0]} input features, got {F}"
    in_pad = _PAD_DIMS[0][0]

    b_pad, tb, nb = _pick_tiling(B, tile_b)
    x_p = jnp.pad(x, ((0, b_pad - B), (0, in_pad - F))).astype(jnp.bfloat16)

    try:
        out = _build_call(b_pad, tb, nb, conservative=False)(x_p, *packed_params)
        out = jax.block_until_ready(out)
    except Exception:
        # Fall back to the previously-validated configuration if the tuned one
        # fails to lower on this backend.
        out = _build_call(b_pad, tb, nb, conservative=True)(x_p, *packed_params)
        out = jax.block_until_ready(out)

    return out[:B, :2]


def init_params(key):
    """Deterministic init matching PyTorch nn.Linear default (U[-1/sqrt(fan_in), +])."""
    params = []
    for (fan_in, fan_out) in _RAW_DIMS:
        key, kw, kb = jax.random.split(key, 3)
        bound = 1.0 / jnp.sqrt(jnp.float32(fan_in))
        w = jax.random.uniform(kw, (fan_in, fan_out), jnp.float32, -bound, bound)
        b = jax.random.uniform(kb, (1, fan_out), jnp.float32, -bound, bound)
        params.append((w, b))
    return params


def reference_forward(x, params):
    """Plain-JAX reference mirroring the kernel's bf16-weight / f32-accum numerics."""
    h = x.astype(jnp.bfloat16).astype(jnp.float32)
    for i, (w, b) in enumerate(params):
        wb = w.astype(jnp.bfloat16).astype(jnp.float32)
        h = h @ wb + b
        if i < len(params) - 1:  # ReLU after fc1..fc5, not after fc6
            h = jnp.maximum(h, 0.0)
            h = h.astype(jnp.bfloat16).astype(jnp.float32)
    return h


if __name__ == "__main__":
    key = jax.random.PRNGKey(0)
    k_params, k_x = jax.random.split(key)

    params = init_params(k_params)
    packed = pack_params(params)

    B = 8
    x = jax.random.normal(k_x, (B, 168), jnp.float32)

    out = net2524_forward(x, packed)
    out = jax.block_until_ready(out)

    ref = reference_forward(x, params)
    assert out.shape == (B, 2), out.shape
    max_diff = jnp.max(jnp.abs(out - ref))
    assert jnp.allclose(out, ref, atol=5e-3, rtol=5e-3), f"max abs diff {max_diff}"

    print("KERNEL_OK")
</pallas_src>

<mosaic_0001>
module attributes {stable_mosaic.version = 11 : i64} {
  func.func @_mlp_kernel(%arg0: i32, %arg1: memref<16x168xbf16, #tpu.memory_space<vmem>>, %arg2: memref<168x1024xbf16, #tpu.memory_space<vmem>>, %arg3: memref<1x1024xf32, #tpu.memory_space<vmem>>, %arg4: memref<1024x1024xbf16, #tpu.memory_space<vmem>>, %arg5: memref<1x1024xf32, #tpu.memory_space<vmem>>, %arg6: memref<1024x256xbf16, #tpu.memory_space<vmem>>, %arg7: memref<1x256xf32, #tpu.memory_space<vmem>>, %arg8: memref<256x64xbf16, #tpu.memory_space<vmem>>, %arg9: memref<1x64xf32, #tpu.memory_space<vmem>>, %arg10: memref<64x16xbf16, #tpu.memory_space<vmem>>, %arg11: memref<1x16xf32, #tpu.memory_space<vmem>>, %arg12: memref<16x8xbf16, #tpu.memory_space<vmem>>, %arg13: memref<1x8xf32, #tpu.memory_space<vmem>>, %arg14: memref<16x8xf32, #tpu.memory_space<vmem>>) attributes {dimension_semantics = [#tpu.dimension_semantics<parallel>], iteration_bounds = array<i64: 1>, scalar_prefetch = 0 : i64, scratch_operands = 0 : i64, tpu.core_type = #tpu.core_type<tc>, window_params = [{transform_indices = @transform_0, window_bounds = array<i64: 16, 168>}, {pipeline_mode = #tpu.pipeline_mode<synchronous>, transform_indices = @transform_1, window_bounds = array<i64: 168, 1024>}, {pipeline_mode = #tpu.pipeline_mode<synchronous>, transform_indices = @transform_2, window_bounds = array<i64: 1, 1024>}, {pipeline_mode = #tpu.pipeline_mode<synchronous>, transform_indices = @transform_3, window_bounds = array<i64: 1024, 1024>}, {pipeline_mode = #tpu.pipeline_mode<synchronous>, transform_indices = @transform_4, window_bounds = array<i64: 1, 1024>}, {pipeline_mode = #tpu.pipeline_mode<synchronous>, transform_indices = @transform_5, window_bounds = array<i64: 1024, 256>}, {pipeline_mode = #tpu.pipeline_mode<synchronous>, transform_indices = @transform_6, window_bounds = array<i64: 1, 256>}, {pipeline_mode = #tpu.pipeline_mode<synchronous>, transform_indices = @transform_7, window_bounds = array<i64: 256, 64>}, {pipeline_mode = #tpu.pipeline_mode<synchronous>, transform_indices = @transform_8, window_bounds = array<i64: 1, 64>}, {pipeline_mode = #tpu.pipeline_mode<synchronous>, transform_indices = @transform_9, window_bounds = array<i64: 64, 16>}, {pipeline_mode = #tpu.pipeline_mode<synchronous>, transform_indices = @transform_10, window_bounds = array<i64: 1, 16>}, {pipeline_mode = #tpu.pipeline_mode<synchronous>, transform_indices = @transform_11, window_bounds = array<i64: 16, 8>}, {pipeline_mode = #tpu.pipeline_mode<synchronous>, transform_indices = @transform_12, window_bounds = array<i64: 1, 8>}, {transform_indices = @transform_13, window_bounds = array<i64: 16, 8>}]} {
    %c0 = arith.constant 0 : index
    %c0_0 = arith.constant 0 : index
    %0 = vector.load %arg1[%c0, %c0_0] : memref<16x168xbf16, #tpu.memory_space<vmem>>, vector<16x168xbf16>
    %c0_1 = arith.constant 0 : index
    %c0_2 = arith.constant 0 : index
    %1 = vector.load %arg2[%c0_1, %c0_2] : memref<168x1024xbf16, #tpu.memory_space<vmem>>, vector<168x1024xbf16>
    %cst = arith.constant dense<0.000000e+00> : vector<16x1024xf32>
    %2 = tpu.matmul %0, %1, %cst {dimension_numbers = #tpu.dot_dimension_numbers<[1], [0], [0], [1], [0, 0, 1, 1], [], []>} : vector<16x168xbf16>, vector<168x1024xbf16>, vector<16x1024xf32> -> vector<16x1024xf32>
    %c0_3 = arith.constant 0 : index
    %c0_4 = arith.constant 0 : index
    %3 = vector.load %arg3[%c0_3, %c0_4] : memref<1x1024xf32, #tpu.memory_space<vmem>>, vector<1x1024xf32>
    %4 = vector.broadcast %3 : vector<1x1024xf32> to vector<16x1024xf32>
    %5 = arith.addf %2, %4 : vector<16x1024xf32>
    %cst_5 = arith.constant 0.000000e+00 : f32
    %6 = vector.broadcast %cst_5 : f32 to vector<16x1024xf32>
    %7 = arith.maximumf %5, %6 : vector<16x1024xf32>
    %8 = arith.truncf %7 : vector<16x1024xf32> to vector<16x1024xbf16>
    %c0_6 = arith.constant 0 : index
    %c0_7 = arith.constant 0 : index
    %9 = vector.load %arg4[%c0_6, %c0_7] : memref<1024x1024xbf16, #tpu.memory_space<vmem>>, vector<1024x1024xbf16>
    %cst_8 = arith.constant dense<0.000000e+00> : vector<16x1024xf32>
    %10 = tpu.matmul %8, %9, %cst_8 {dimension_numbers = #tpu.dot_dimension_numbers<[1], [0], [0], [1], [0, 0, 1, 1], [], []>} : vector<16x1024xbf16>, vector<1024x1024xbf16>, vector<16x1024xf32> -> vector<16x1024xf32>
    %c0_9 = arith.constant 0 : index
    %c0_10 = arith.constant 0 : index
    %11 = vector.load %arg5[%c0_9, %c0_10] : memref<1x1024xf32, #tpu.memory_space<vmem>>, vector<1x1024xf32>
    %12 = vector.broadcast %11 : vector<1x1024xf32> to vector<16x1024xf32>
    %13 = arith.addf %10, %12 : vector<16x1024xf32>
    %cst_11 = arith.constant 0.000000e+00 : f32
    %14 = vector.broadcast %cst_11 : f32 to vector<16x1024xf32>
    %15 = arith.maximumf %13, %14 : vector<16x1024xf32>
    %16 = arith.truncf %15 : vector<16x1024xf32> to vector<16x1024xbf16>
    %c0_12 = arith.constant 0 : index
    %c0_13 = arith.constant 0 : index
    %17 = vector.load %arg6[%c0_12, %c0_13] : memref<1024x256xbf16, #tpu.memory_space<vmem>>, vector<1024x256xbf16>
    %cst_14 = arith.constant dense<0.000000e+00> : vector<16x256xf32>
    %18 = tpu.matmul %16, %17, %cst_14 {dimension_numbers = #tpu.dot_dimension_numbers<[1], [0], [0], [1], [0, 0, 1, 1], [], []>} : vector<16x1024xbf16>, vector<1024x256xbf16>, vector<16x256xf32> -> vector<16x256xf32>
    %c0_15 = arith.constant 0 : index
    %c0_16 = arith.constant 0 : index
    %19 = vector.load %arg7[%c0_15, %c0_16] : memref<1x256xf32, #tpu.memory_space<vmem>>, vector<1x256xf32>
    %20 = vector.broadcast %19 : vector<1x256xf32> to vector<16x256xf32>
    %21 = arith.addf %18, %20 : vector<16x256xf32>
    %cst_17 = arith.constant 0.000000e+00 : f32
    %22 = vector.broadcast %cst_17 : f32 to vector<16x256xf32>
    %23 = arith.maximumf %21, %22 : vector<16x256xf32>
    %24 = arith.truncf %23 : vector<16x256xf32> to vector<16x256xbf16>
    %c0_18 = arith.constant 0 : index
    %c0_19 = arith.constant 0 : index
    %25 = vector.load %arg8[%c0_18, %c0_19] : memref<256x64xbf16, #tpu.memory_space<vmem>>, vector<256x64xbf16>
    %cst_20 = arith.constant dense<0.000000e+00> : vector<16x64xf32>
    %26 = tpu.matmul %24, %25, %cst_20 {dimension_numbers = #tpu.dot_dimension_numbers<[1], [0], [0], [1], [0, 0, 1, 1], [], []>} : vector<16x256xbf16>, vector<256x64xbf16>, vector<16x64xf32> -> vector<16x64xf32>
    %c0_21 = arith.constant 0 : index
    %c0_22 = arith.constant 0 : index
    %27 = vector.load %arg9[%c0_21, %c0_22] : memref<1x64xf32, #tpu.memory_space<vmem>>, vector<1x64xf32>
    %28 = vector.broadcast %27 : vector<1x64xf32> to vector<16x64xf32>
    %29 = arith.addf %26, %28 : vector<16x64xf32>
    %cst_23 = arith.constant 0.000000e+00 : f32
    %30 = vector.broadcast %cst_23 : f32 to vector<16x64xf32>
    %31 = arith.maximumf %29, %30 : vector<16x64xf32>
    %32 = arith.truncf %31 : vector<16x64xf32> to vector<16x64xbf16>
    %c0_24 = arith.constant 0 : index
    %c0_25 = arith.constant 0 : index
    %33 = vector.load %arg10[%c0_24, %c0_25] : memref<64x16xbf16, #tpu.memory_space<vmem>>, vector<64x16xbf16>
    %cst_26 = arith.constant dense<0.000000e+00> : vector<16x16xf32>
    %34 = tpu.matmul %32, %33, %cst_26 {dimension_numbers = #tpu.dot_dimension_numbers<[1], [0], [0], [1], [0, 0, 1, 1], [], []>} : vector<16x64xbf16>, vector<64x16xbf16>, vector<16x16xf32> -> vector<16x16xf32>
    %c0_27 = arith.constant 0 : index
    %c0_28 = arith.constant 0 : index
    %35 = vector.load %arg11[%c0_27, %c0_28] : memref<1x16xf32, #tpu.memory_space<vmem>>, vector<1x16xf32>
    %36 = vector.broadcast %35 : vector<1x16xf32> to vector<16x16xf32>
    %37 = arith.addf %34, %36 : vector<16x16xf32>
    %cst_29 = arith.constant 0.000000e+00 : f32
    %38 = vector.broadcast %cst_29 : f32 to vector<16x16xf32>
    %39 = arith.maximumf %37, %38 : vector<16x16xf32>
    %40 = arith.truncf %39 : vector<16x16xf32> to vector<16x16xbf16>
    %c0_30 = arith.constant 0 : index
    %c0_31 = arith.constant 0 : index
    %41 = vector.load %arg12[%c0_30, %c0_31] : memref<16x8xbf16, #tpu.memory_space<vmem>>, vector<16x8xbf16>
    %cst_32 = arith.constant dense<0.000000e+00> : vector<16x8xf32>
    %42 = tpu.matmul %40, %41, %cst_32 {dimension_numbers = #tpu.dot_dimension_numbers<[1], [0], [0], [1], [0, 0, 1, 1], [], []>} : vector<16x16xbf16>, vector<16x8xbf16>, vector<16x8xf32> -> vector<16x8xf32>
    %c0_33 = arith.constant 0 : index
    %c0_34 = arith.constant 0 : index
    %43 = vector.load %arg13[%c0_33, %c0_34] : memref<1x8xf32, #tpu.memory_space<vmem>>, vector<1x8xf32>
    %44 = vector.broadcast %43 : vector<1x8xf32> to vector<16x8xf32>
    %45 = arith.addf %42, %44 : vector<16x8xf32>
    %c0_35 = arith.constant 0 : index
    %c0_36 = arith.constant 0 : index
    %46 = vector.load %arg14[%c0_35, %c0_36] : memref<16x8xf32, #tpu.memory_space<vmem>>, vector<16x8xf32>
    tpu.vector_store %arg14[%c0_35, %c0_36], %45 {strides = array<i32>} : memref<16x8xf32, #tpu.memory_space<vmem>>, vector<16x8xf32>,
    return
  }
  func.func @transform_0(%arg0: i32) -> (i32, i32) {
    %c0_i32 = arith.constant 0 : i32
    %c0_i32_0 = arith.constant 0 : i32
    return %arg0, %c0_i32 : i32, i32
  }
  func.func @transform_1(%arg0: i32) -> (i32, i32) {
    %c0_i32 = arith.constant 0 : i32
    %c0_i32_0 = arith.constant 0 : i32
    %c0_i32_1 = arith.constant 0 : i32
    return %c0_i32, %c0_i32_0 : i32, i32
  }
  func.func @transform_2(%arg0: i32) -> (i32, i32) {
    %c0_i32 = arith.constant 0 : i32
    %c0_i32_0 = arith.constant 0 : i32
    %c0_i32_1 = arith.constant 0 : i32
    return %c0_i32, %c0_i32_0 : i32, i32
  }
  func.func @transform_3(%arg0: i32) -> (i32, i32) {
    %c0_i32 = arith.constant 0 : i32
    %c0_i32_0 = arith.constant 0 : i32
    %c0_i32_1 = arith.constant 0 : i32
    return %c0_i32, %c0_i32_0 : i32, i32
  }
  func.func @transform_4(%arg0: i32) -> (i32, i32) {
    %c0_i32 = arith.constant 0 : i32
    %c0_i32_0 = arith.constant 0 : i32
    %c0_i32_1 = arith.constant 0 : i32
    return %c0_i32, %c0_i32_0 : i32, i32
  }
  func.func @transform_5(%arg0: i32) -> (i32, i32) {
    %c0_i32 = arith.constant 0 : i32
    %c0_i32_0 = arith.constant 0 : i32
    %c0_i32_1 = arith.constant 0 : i32
    return %c0_i32, %c0_i32_0 : i32, i32
  }
  func.func @transform_6(%arg0: i32) -> (i32, i32) {
    %c0_i32 = arith.constant 0 : i32
    %c0_i32_0 = arith.constant 0 : i32
    %c0_i32_1 = arith.constant 0 : i32
    return %c0_i32, %c0_i32_0 : i32, i32
  }
  func.func @transform_7(%arg0: i32) -> (i32, i32) {
    %c0_i32 = arith.constant 0 : i32
    %c0_i32_0 = arith.constant 0 : i32
    %c0_i32_1 = arith.constant 0 : i32
    return %c0_i32, %c0_i32_0 : i32, i32
  }
  func.func @transform_8(%arg0: i32) -> (i32, i32) {
    %c0_i32 = arith.constant 0 : i32
    %c0_i32_0 = arith.constant 0 : i32
    %c0_i32_1 = arith.constant 0 : i32
    return %c0_i32, %c0_i32_0 : i32, i32
  }
  func.func @transform_9(%arg0: i32) -> (i32, i32) {
    %c0_i32 = arith.constant 0 : i32
    %c0_i32_0 = arith.constant 0 : i32
    %c0_i32_1 = arith.constant 0 : i32
    return %c0_i32, %c0_i32_0 : i32, i32
  }
  func.func @transform_10(%arg0: i32) -> (i32, i32) {
    %c0_i32 = arith.constant 0 : i32
    %c0_i32_0 = arith.constant 0 : i32
    %c0_i32_1 = arith.constant 0 : i32
    return %c0_i32, %c0_i32_0 : i32, i32
  }
  func.func @transform_11(%arg0: i32) -> (i32, i32) {
    %c0_i32 = arith.constant 0 : i32
    %c0_i32_0 = arith.constant 0 : i32
    %c0_i32_1 = arith.constant 0 : i32
    return %c0_i32, %c0_i32_0 : i32, i32
  }
  func.func @transform_12(%arg0: i32) -> (i32, i32) {
    %c0_i32 = arith.constant 0 : i32
    %c0_i32_0 = arith.constant 0 : i32
    %c0_i32_1 = arith.constant 0 : i32
    return %c0_i32, %c0_i32_0 : i32, i32
  }
  func.func @transform_13(%arg0: i32) -> (i32, i32) {
    %c0_i32 = arith.constant 0 : i32
    %c0_i32_0 = arith.constant 0 : i32
    return %arg0, %c0_i32 : i32, i32
  }
}

module attributes {stable_mosaic.version = 11 : i64} {
  func.func @_mlp_kernel(%arg0: i32, %arg1: memref<16x168xbf16, #tpu.memory_space<vmem>>, %arg2: memref<168x1024xbf16, #tpu.memory_space<vmem>>, %arg3: memref<1x1024xf32, #tpu.memory_space<vmem>>, %arg4: memref<1024x1024xbf16, #tpu.memory_space<vmem>>, %arg5: memref<1x1024xf32, #tpu.memory_space<vmem>>, %arg6: memref<1024x256xbf16, #tpu.memory_space<vmem>>, %arg7: memref<1x256xf32, #tpu.memory_space<vmem>>, %arg8: memref<256x64xbf16, #tpu.memory_space<vmem>>, %arg9: memref<1x64xf32, #tpu.memory_space<vmem>>, %arg10: memref<64x16xbf16, #tpu.memory_space<vmem>>, %arg11: memref<1x16xf32, #tpu.memory_space<vmem>>, %arg12: memref<16x8xbf16, #tpu.memory_space<vmem>>, %arg13: memref<1x8xf32, #tpu.memory_space<vmem>>, %arg14: memref<16x8xf32, #tpu.memory_space<vmem>>) attributes {dimension_semantics = [#tpu.dimension_semantics<parallel>], iteration_bounds = array<i64: 1>, scalar_prefetch = 0 : i64, scratch_operands = 0 : i64, tpu.core_type = #tpu.core_type<tc>, window_params = [{transform_indices = @transform_0, window_bounds = array<i64: 16, 168>}, {pipeline_mode = #tpu.pipeline_mode<synchronous>, transform_indices = @transform_1, window_bounds = array<i64: 168, 1024>}, {pipeline_mode = #tpu.pipeline_mode<synchronous>, transform_indices = @transform_2, window_bounds = array<i64: 1, 1024>}, {pipeline_mode = #tpu.pipeline_mode<synchronous>, transform_indices = @transform_3, window_bounds = array<i64: 1024, 1024>}, {pipeline_mode = #tpu.pipeline_mode<synchronous>, transform_indices = @transform_4, window_bounds = array<i64: 1, 1024>}, {pipeline_mode = #tpu.pipeline_mode<synchronous>, transform_indices = @transform_5, window_bounds = array<i64: 1024, 256>}, {pipeline_mode = #tpu.pipeline_mode<synchronous>, transform_indices = @transform_6, window_bounds = array<i64: 1, 256>}, {pipeline_mode = #tpu.pipeline_mode<synchronous>, transform_indices = @transform_7, window_bounds = array<i64: 256, 64>}, {pipeline_mode = #tpu.pipeline_mode<synchronous>, transform_indices = @transform_8, window_bounds = array<i64: 1, 64>}, {pipeline_mode = #tpu.pipeline_mode<synchronous>, transform_indices = @transform_9, window_bounds = array<i64: 64, 16>}, {pipeline_mode = #tpu.pipeline_mode<synchronous>, transform_indices = @transform_10, window_bounds = array<i64: 1, 16>}, {pipeline_mode = #tpu.pipeline_mode<synchronous>, transform_indices = @transform_11, window_bounds = array<i64: 16, 8>}, {pipeline_mode = #tpu.pipeline_mode<synchronous>, transform_indices = @transform_12, window_bounds = array<i64: 1, 8>}, {transform_indices = @transform_13, window_bounds = array<i64: 16, 8>}]} {
    %c0 = arith.constant 0 : index
    %c0_0 = arith.constant 0 : index
    %0 = vector.load %arg1[%c0, %c0_0] : memref<16x168xbf16, #tpu.memory_space<vmem>>, vector<16x168xbf16>
    %c0_1 = arith.constant 0 : index
    %c0_2 = arith.constant 0 : index
    %1 = vector.load %arg2[%c0_1, %c0_2] : memref<168x1024xbf16, #tpu.memory_space<vmem>>, vector<168x1024xbf16>
    %cst = arith.constant dense<0.000000e+00> : vector<16x1024xf32>
    %2 = tpu.matmul %0, %1, %cst {dimension_numbers = #tpu.dot_dimension_numbers<[1], [0], [0], [1], [0, 0, 1, 1], [], []>} : vector<16x168xbf16>, vector<168x1024xbf16>, vector<16x1024xf32> -> vector<16x1024xf32>
    %c0_3 = arith.constant 0 : index
    %c0_4 = arith.constant 0 : index
    %3 = vector.load %arg3[%c0_3, %c0_4] : memref<1x1024xf32, #tpu.memory_space<vmem>>, vector<1x1024xf32>
    %4 = vector.broadcast %3 : vector<1x1024xf32> to vector<16x1024xf32>
    %5 = arith.addf %2, %4 : vector<16x1024xf32>
    %cst_5 = arith.constant 0.000000e+00 : f32
    %6 = vector.broadcast %cst_5 : f32 to vector<16x1024xf32>
    %7 = arith.maximumf %5, %6 : vector<16x1024xf32>
    %8 = arith.truncf %7 : vector<16x1024xf32> to vector<16x1024xbf16>
    %c0_6 = arith.constant 0 : index
    %c0_7 = arith.constant 0 : index
    %9 = vector.load %arg4[%c0_6, %c0_7] : memref<1024x1024xbf16, #tpu.memory_space<vmem>>, vector<1024x1024xbf16>
    %cst_8 = arith.constant dense<0.000000e+00> : vector<16x1024xf32>
    %10 = tpu.matmul %8, %9, %cst_8 {dimension_numbers = #tpu.dot_dimension_numbers<[1], [0], [0], [1], [0, 0, 1, 1], [], []>} : vector<16x1024xbf16>, vector<1024x1024xbf16>, vector<16x1024xf32> -> vector<16x1024xf32>
    %c0_9 = arith.constant 0 : index
    %c0_10 = arith.constant 0 : index
    %11 = vector.load %arg5[%c0_9, %c0_10] : memref<1x1024xf32, #tpu.memory_space<vmem>>, vector<1x1024xf32>
    %12 = vector.broadcast %11 : vector<1x1024xf32> to vector<16x1024xf32>
    %13 = arith.addf %10, %12 : vector<16x1024xf32>
    %cst_11 = arith.constant 0.000000e+00 : f32
    %14 = vector.broadcast %cst_11 : f32 to vector<16x1024xf32>
    %15 = arith.maximumf %13, %14 : vector<16x1024xf32>
    %16 = arith.truncf %15 : vector<16x1024xf32> to vector<16x1024xbf16>
    %c0_12 = arith.constant 0 : index
    %c0_13 = arith.constant 0 : index
    %17 = vector.load %arg6[%c0_12, %c0_13] : memref<1024x256xbf16, #tpu.memory_space<vmem>>, vector<1024x256xbf16>
    %cst_14 = arith.constant dense<0.000000e+00> : vector<16x256xf32>
    %18 = tpu.matmul %16, %17, %cst_14 {dimension_numbers = #tpu.dot_dimension_numbers<[1], [0], [0], [1], [0, 0, 1, 1], [], []>} : vector<16x1024xbf16>, vector<1024x256xbf16>, vector<16x256xf32> -> vector<16x256xf32>
    %c0_15 = arith.constant 0 : index
    %c0_16 = arith.constant 0 : index
    %19 = vector.load %arg7[%c0_15, %c0_16] : memref<1x256xf32, #tpu.memory_space<vmem>>, vector<1x256xf32>
    %20 = vector.broadcast %19 : vector<1x256xf32> to vector<16x256xf32>
    %21 = arith.addf %18, %20 : vector<16x256xf32>
    %cst_17 = arith.constant 0.000000e+00 : f32
    %22 = vector.broadcast %cst_17 : f32 to vector<16x256xf32>
    %23 = arith.maximumf %21, %22 : vector<16x256xf32>
    %24 = arith.truncf %23 : vector<16x256xf32> to vector<16x256xbf16>
    %c0_18 = arith.constant 0 : index
    %c0_19 = arith.constant 0 : index
    %25 = vector.load %arg8[%c0_18, %c0_19] : memref<256x64xbf16, #tpu.memory_space<vmem>>, vector<256x64xbf16>
    %cst_20 = arith.constant dense<0.000000e+00> : vector<16x64xf32>
    %26 = tpu.matmul %24, %25, %cst_20 {dimension_numbers = #tpu.dot_dimension_numbers<[1], [0], [0], [1], [0, 0, 1, 1], [], []>} : vector<16x256xbf16>, vector<256x64xbf16>, vector<16x64xf32> -> vector<16x64xf32>
    %c0_21 = arith.constant 0 : index
    %c0_22 = arith.constant 0 : index
    %27 = vector.load %arg9[%c0_21, %c0_22] : memref<1x64xf32, #tpu.memory_space<vmem>>, vector<1x64xf32>
    %28 = vector.broadcast %27 : vector<1x64xf32> to vector<16x64xf32>
    %29 = arith.addf %26, %28 : vector<16x64xf32>
    %cst_23 = arith.constant 0.000000e+00 : f32
    %30 = vector.broadcast %cst_23 : f32 to vector<16x64xf32>
    %31 = arith.maximumf %29, %30 : vector<16x64xf32>
    %32 = arith.truncf %31 : vector<16x64xf32> to vector<16x64xbf16>
    %c0_24 = arith.constant 0 : index
    %c0_25 = arith.constant 0 : index
    %33 = vector.load %arg10[%c0_24, %c0_25] : memref<64x16xbf16, #tpu.memory_space<vmem>>, vector<64x16xbf16>
    %cst_26 = arith.constant dense<0.000000e+00> : vector<16x16xf32>
    %34 = tpu.matmul %32, %33, %cst_26 {dimension_numbers = #tpu.dot_dimension_numbers<[1], [0], [0], [1], [0, 0, 1, 1], [], []>} : vector<16x64xbf16>, vector<64x16xbf16>, vector<16x16xf32> -> vector<16x16xf32>
    %c0_27 = arith.constant 0 : index
    %c0_28 = arith.constant 0 : index
    %35 = vector.load %arg11[%c0_27, %c0_28] : memref<1x16xf32, #tpu.memory_space<vmem>>, vector<1x16xf32>
    %36 = vector.broadcast %35 : vector<1x16xf32> to vector<16x16xf32>
    %37 = arith.addf %34, %36 : vector<16x16xf32>
    %cst_29 = arith.constant 0.000000e+00 : f32
    %38 = vector.broadcast %cst_29 : f32 to vector<16x16xf32>
    %39 = arith.maximumf %37, %38 : vector<16x16xf32>
    %40 = arith.truncf %39 : vector<16x16xf32> to vector<16x16xbf16>
    %c0_30 = arith.constant 0 : index
    %c0_31 = arith.constant 0 : index
    %41 = vector.load %arg12[%c0_30, %c0_31] : memref<16x8xbf16, #tpu.memory_space<vmem>>, vector<16x8xbf16>
    %cst_32 = arith.constant dense<0.000000e+00> : vector<16x8xf32>
    %42 = tpu.matmul %40, %41, %cst_32 {dimension_numbers = #tpu.dot_dimension_numbers<[1], [0], [0], [1], [0, 0, 1, 1], [], []>} : vector<16x16xbf16>, vector<16x8xbf16>, vector<16x8xf32> -> vector<16x8xf32>
    %c0_33 = arith.constant 0 : index
    %c0_34 = arith.constant 0 : index
    %43 = vector.load %arg13[%c0_33, %c0_34] : memref<1x8xf32, #tpu.memory_space<vmem>>, vector<1x8xf32>
    %44 = vector.broadcast %43 : vector<1x8xf32> to vector<16x8xf32>
    %45 = arith.addf %42, %44 : vector<16x8xf32>
    %c0_35 = arith.constant 0 : index
    %c0_36 = arith.constant 0 : index
    %46 = vector.load %arg14[%c0_35, %c0_36] : memref<16x8xf32, #tpu.memory_space<vmem>>, vector<16x8xf32>
    tpu.vector_store %arg14[%c0_35, %c0_36], %45 {strides = array<i32>} : memref<16x8xf32, #tpu.memory_space<vmem>>, vector<16x8xf32>,
    return
  }
  func.func @transform_0(%arg0: i32) -> (i32, i32) {
    %c0_i32 = arith.constant 0 : i32
    %c0_i32_0 = arith.constant 0 : i32
    return %arg0, %c0_i32 : i32, i32
  }
  func.func @transform_1(%arg0: i32) -> (i32, i32) {
    %c0_i32 = arith.constant 0 : i32
    %c0_i32_0 = arith.constant 0 : i32
    %c0_i32_1 = arith.constant 0 : i32
    return %c0_i32, %c0_i32_0 : i32, i32
  }
  func.func @transform_2(%arg0: i32) -> (i32, i32) {
    %c0_i32 = arith.constant 0 : i32
    %c0_i32_0 = arith.constant 0 : i32
    %c0_i32_1 = arith.constant 0 : i32
    return %c0_i32, %c0_i32_0 : i32, i32
  }
  func.func @transform_3(%arg0: i32) -> (i32, i32) {
    %c0_i32 = arith.constant 0 : i32
    %c0_i32_0 = arith.constant 0 : i32
    %c0_i32_1 = arith.constant 0 : i32
    return %c0_i32, %c0_i32_0 : i32, i32
  }
  func.func @transform_4(%arg0: i32) -> (i32, i32) {
    %c0_i32 = arith.constant 0 : i32
    %c0_i32_0 = arith.constant 0 : i32
    %c0_i32_1 = arith.constant 0 : i32
    return %c0_i32, %c0_i32_0 : i32, i32
  }
  func.func @transform_5(%arg0: i32) -> (i32, i32) {
    %c0_i32 = arith.constant 0 : i32
    %c0_i32_0 = arith.constant 0 : i32
    %c0_i32_1 = arith.constant 0 : i32
    return %c0_i32, %c0_i32_0 : i32, i32
  }
  func.func @transform_6(%arg0: i32) -> (i32, i32) {
    %c0_i32 = arith.constant 0 : i32
    %c0_i32_0 = arith.constant 0 : i32
    %c0_i32_1 = arith.constant 0 : i32
    return %c0_i32, %c0_i32_0 : i32, i32
  }
  func.func @transform_7(%arg0: i32) -> (i32, i32) {
    %c0_i32 = arith.constant 0 : i32
    %c0_i32_0 = arith.constant 0 : i32
    %c0_i32_1 = arith.constant 0 : i32
    return %c0_i32, %c0_i32_0 : i32, i32
  }
  func.func @transform_8(%arg0: i32) -> (i32, i32) {
    %c0_i32 = arith.constant 0 : i32
    %c0_i32_0 = arith.constant 0 : i32
    %c0_i32_1 = arith.constant 0 : i32
    return %c0_i32, %c0_i32_0 : i32, i32
  }
  func.func @transform_9(%arg0: i32) -> (i32, i32) {
    %c0_i32 = arith.constant 0 : i32
    %c0_i32_0 = arith.constant 0 : i32
    %c0_i32_1 = arith.constant 0 : i32
    return %c0_i32, %c0_i32_0 : i32, i32
  }
  func.func @transform_10(%arg0: i32) -> (i32, i32) {
    %c0_i32 = arith.constant 0 : i32
    %c0_i32_0 = arith.constant 0 : i32
    %c0_i32_1 = arith.constant 0 : i32
    return %c0_i32, %c0_i32_0 : i32, i32
  }
  func.func @transform_11(%arg0: i32) -> (i32, i32) {
    %c0_i32 = arith.constant 0 : i32
    %c0_i32_0 = arith.constant 0 : i32
    %c0_i32_1 = arith.constant 0 : i32
    return %c0_i32, %c0_i32_0 : i32, i32
  }
  func.func @transform_12(%arg0: i32) -> (i32, i32) {
    %c0_i32 = arith.constant 0 : i32
    %c0_i32_0 = arith.constant 0 : i32
    %c0_i32_1 = arith.constant 0 : i32
    return %c0_i32, %c0_i32_0 : i32, i32
  }
  func.func @transform_13(%arg0: i32) -> (i32, i32) {
    %c0_i32 = arith.constant 0 : i32
    %c0_i32_0 = arith.constant 0 : i32
    return %arg0, %c0_i32 : i32, i32
  }
}

</mosaic_0001>

<llo_original>
// kernel: tpu_custom_call.1
$region0: #{tpu_custom_call.1}
  #allocation0 [shape = 'u32[]', space=smem, size = 0x4, offset = 0x4, fixed_abs, tag = 'smem constant byte address 0x4 - core index']
  #allocation1 [shape = 'u32[144,128]{1,0:T(1,128)}', space=vmem, size = 0x12000, scoped, tag = 'internal scratch']
  %s0 = inlined_call_operand.hbm [shape: bf16[16,168], index: 0, kind: input, shape index: {}]
  %s1 = inlined_call_operand.hbm [shape: bf16[168,1024], index: 1, kind: input, shape index: {}]
  %s2 = inlined_call_operand.hbm [shape: f32[1,1024], index: 2, kind: input, shape index: {}]
  %s3 = inlined_call_operand.hbm [shape: bf16[1024,1024], index: 3, kind: input, shape index: {}]
  %s4 = inlined_call_operand.hbm [shape: f32[1,1024], index: 4, kind: input, shape index: {}]
  %s5 = inlined_call_operand.hbm [shape: bf16[1024,256], index: 5, kind: input, shape index: {}]
  %s6 = inlined_call_operand.hbm [shape: f32[1,256], index: 6, kind: input, shape index: {}]
  %s7 = inlined_call_operand.hbm [shape: bf16[256,64], index: 7, kind: input, shape index: {}]
  %s8 = inlined_call_operand.hbm [shape: f32[1,64], index: 8, kind: input, shape index: {}]
  %s9 = inlined_call_operand.hbm [shape: bf16[64,16], index: 9, kind: input, shape index: {}]
  %s10 = inlined_call_operand.hbm [shape: f32[1,16], index: 10, kind: input, shape index: {}]
  %s11 = inlined_call_operand.hbm [shape: bf16[16,8], index: 11, kind: input, shape index: {}]
  %s12 = inlined_call_operand.hbm [shape: f32[1,8], index: 12, kind: input, shape index: {}]
  %s13 = inlined_call_operand.hbm [shape: f32[16,8], index: 13, kind: output, shape index: {}]
  %s14 = sld [smem:[#allocation0]]
  $region114: #{tpu_custom_call.1} parent=0
    _
  %s16 = ssub.s32 1, %s14
  %s17 = scalar_select 0, %s16, %s14
  $region1: #{tpu_custom_call.1} parent=0
    #allocation2 [shape = 'u8[8192]{0}', space=vmem, size = 0x2000, scoped, tag = 'input window, operand 0, single buffered']
    #allocation3 [shape = 's32[1]{0}', space=sflag, size = 0x4, scoped, tag = 'scoped memory for tpu_custom_call.1']
    #allocation4 [shape = 's32[1]{0}', space=sflag, size = 0x4, scoped, tag = 'scoped memory for tpu_custom_call.1']
    #allocation5 [shape = 'u8[344064]{0}', space=vmem, size = 0x54000, scoped, tag = 'input window, operand 1, single buffered']
    #allocation6 [shape = 's32[1]{0}', space=sflag, size = 0x4, scoped, tag = 'scoped memory for tpu_custom_call.1']
    #allocation7 [shape = 'u8[4096]{0}', space=vmem, size = 0x1000, scoped, tag = 'input window, operand 2, single buffered']
    #allocation8 [shape = 'u8[2097152]{0}', space=vmem, size = 0x200000, scoped, tag = 'input window, operand 3, single buffered']
    #allocation9 [shape = 's32[1]{0}', space=sflag, size = 0x4, scoped, tag = 'scoped memory for tpu_custom_call.1']
    #allocation10 [shape = 'u8[4096]{0}', space=vmem, size = 0x1000, scoped, tag = 'input window, operand 4, single buffered']
    #allocation11 [shape = 'u8[524288]{0}', space=vmem, size = 0x80000, scoped, tag = 'input window, operand 5, single buffered']
    #allocation12 [shape = 's32[1]{0}', space=sflag, size = 0x4, scoped, tag = 'scoped memory for tpu_custom_call.1']
    #allocation13 [shape = 'u8[1024]{0}', space=vmem, size = 0x400, scoped, tag = 'input window, operand 6, single buffered']
    #allocation14 [shape = 'u8[65536]{0}', space=vmem, size = 0x10000, scoped, tag = 'input window, operand 7, single buffered']
    #allocation15 [shape = 's32[1]{0}', space=sflag, size = 0x4, scoped, tag = 'scoped memory for tpu_custom_call.1']
    #allocation16 [shape = 'u8[512]{0}', space=vmem, size = 0x400, scoped, tag = 'input window, operand 8, single buffered']
    #allocation17 [shape = 'u8[16384]{0}', space=vmem, size = 0x4000, scoped, tag = 'input window, operand 9, single buffered']
    #allocation18 [shape = 's32[1]{0}', space=sflag, size = 0x4, scoped, tag = 'scoped memory for tpu_custom_call.1']
    #allocation19 [shape = 'u8[512]{0}', space=vmem, size = 0x400, scoped, tag = 'input window, operand 10, single buffered']
    #allocation20 [shape = 'u8[4096]{0}', space=vmem, size = 0x1000, scoped, tag = 'input window, operand 11, single buffered']
    #allocation21 [shape = 's32[1]{0}', space=sflag, size = 0x4, scoped, tag = 'scoped memory for tpu_custom_call.1']
    #allocation22 [shape = 'u8[512]{0}', space=vmem, size = 0x400, scoped, tag = 'input window, operand 12, single buffered']
    #allocation23 [shape = 'u8[8192]{0}', space=vmem, size = 0x2000, scoped, tag = 'output window, operand 0, single buffered']
    %18 = vsyncpa [#allocation3], 0
    %19 = vsyncpa [#allocation6], 0
    %20 = vsyncpa [#allocation9], 0
    %21 = vsyncpa [#allocation12], 0
    %22 = vsyncpa [#allocation15], 0
    %23 = vsyncpa [#allocation18], 0
    %24 = vsyncpa [#allocation21], 0
    %25 = vsyncpa [#allocation4], 0
    // Predicated region
    $region2: #{tpu_custom_call.1} parent=1 // pred_check
      _
    $region3: #{tpu_custom_call.1} parent=1 // pred_check_branch
      %27 = sbr.rel (0) target = $region5
    $region4: #{tpu_custom_call.1} parent=1 // pred_region
      %s29 = ssub.s32 256, 256
      %30 = vsyncadd [#allocation3], %s29
      %s31 = sshll.u32 [#allocation2], 4
      %s32 = int_to_ptr.vmem [resolvable:$true] %s31
      %37 = dma.hbm_to_vmem [thread:$0]  %s0, 256, %s32, [#allocation3], 128, 128, 8
    $region5: #{tpu_custom_call.1} parent=1 // pred_fallthru
      _
    // Predicated region
    $region6: #{tpu_custom_call.1} parent=1 // pred_check
      _
    $region7: #{tpu_custom_call.1} parent=1 // pred_check_branch
      %39 = sbr.rel (0) target = $region9
    $region8: #{tpu_custom_call.1} parent=1 // pred_region
      %s41 = ssub.s32 10752, 10752
      %42 = vsyncadd [#allocation6], %s41
      %s43 = sshll.u32 [#allocation5], 4
      %s44 = int_to_ptr.vmem [resolvable:$true] %s43
      %49 = dma.hbm_to_vmem [thread:$0]  %s1, 10752, %s44, [#allocation6], 512, 512, 32
    $region9: #{tpu_custom_call.1} parent=1 // pred_fallthru
      _
    // Predicated region
    $region10: #{tpu_custom_call.1} parent=1 // pred_check
      _
    $region11: #{tpu_custom_call.1} parent=1 // pred_check_branch
      %51 = sbr.rel (0) target = $region13
    $region12: #{tpu_custom_call.1} parent=1 // pred_region
      %s53 = ssub.s32 128, 128
      %54 = vsyncadd [#allocation6], %s53
      %s56 = sshll.u32 [#allocation7], 4
      %s57 = int_to_ptr.vmem [resolvable:$true] %s56
      %59 = dma.hbm_to_vmem [thread:$0]  %s2, 128, %s57, [#allocation6]
    $region13: #{tpu_custom_call.1} parent=1 // pred_fallthru
      _
    // Predicated region
    $region14: #{tpu_custom_call.1} parent=1 // pred_check
      _
    $region15: #{tpu_custom_call.1} parent=1 // pred_check_branch
      %61 = sbr.rel (0) target = $region17
    $region16: #{tpu_custom_call.1} parent=1 // pred_region
      %s63 = ssub.s32 65536, 65536
      %64 = vsyncadd [#allocation9], %s63
      %s65 = sshll.u32 [#allocation8], 4
      %s66 = int_to_ptr.vmem [resolvable:$true] %s65
      %71 = dma.hbm_to_vmem [thread:$0]  %s3, 65536, %s66, [#allocation9], 512, 512, 32
    $region17: #{tpu_custom_call.1} parent=1 // pred_fallthru
      _
    // Predicated region
    $region18: #{tpu_custom_call.1} parent=1 // pred_check
      _
    $region19: #{tpu_custom_call.1} parent=1 // pred_check_branch
      %73 = sbr.rel (0) target = $region21
    $region20: #{tpu_custom_call.1} parent=1 // pred_region
      %s75 = ssub.s32 128, 128
      %76 = vsyncadd [#allocation9], %s75
      %s78 = sshll.u32 [#allocation10], 4
      %s79 = int_to_ptr.vmem [resolvable:$true] %s78
      %81 = dma.hbm_to_vmem [thread:$0]  %s4, 128, %s79, [#allocation9]
    $region21: #{tpu_custom_call.1} parent=1 // pred_fallthru
      _
    // Predicated region
    $region22: #{tpu_custom_call.1} parent=1 // pred_check
      _
    $region23: #{tpu_custom_call.1} parent=1 // pred_check_branch
      %83 = sbr.rel (0) target = $region25
    $region24: #{tpu_custom_call.1} parent=1 // pred_region
      %s85 = ssub.s32 16384, 16384
      %86 = vsyncadd [#allocation12], %s85
      %s87 = sshll.u32 [#allocation11], 4
      %s88 = int_to_ptr.vmem [resolvable:$true] %s87
      %93 = dma.hbm_to_vmem [thread:$0]  %s5, 16384, %s88, [#allocation12], 128, 128, 8
    $region25: #{tpu_custom_call.1} parent=1 // pred_fallthru
      _
    // Predicated region
    $region26: #{tpu_custom_call.1} parent=1 // pred_check
      _
    $region27: #{tpu_custom_call.1} parent=1 // pred_check_branch
      %95 = sbr.rel (0) target = $region29
    $region28: #{tpu_custom_call.1} parent=1 // pred_region
      %s97 = ssub.s32 32, 32
      %98 = vsyncadd [#allocation12], %s97
      %s100 = sshll.u32 [#allocation13], 4
      %s101 = int_to_ptr.vmem [resolvable:$true] %s100
      %103 = dma.hbm_to_vmem [thread:$0]  %s6, 32, %s101, [#allocation12]
    $region29: #{tpu_custom_call.1} parent=1 // pred_fallthru
      _
    // Predicated region
    $region30: #{tpu_custom_call.1} parent=1 // pred_check
      _
    $region31: #{tpu_custom_call.1} parent=1 // pred_check_branch
      %105 = sbr.rel (0) target = $region33
    $region32: #{tpu_custom_call.1} parent=1 // pred_region
      %s107 = ssub.s32 2048, 2048
      %108 = vsyncadd [#allocation15], %s107
      %s109 = sshll.u32 [#allocation14], 4
      %s110 = int_to_ptr.vmem [resolvable:$true] %s109
      %115 = dma.hbm_to_vmem [thread:$0]  %s7, 2048, %s110, [#allocation15], 64, 64, 4
    $region33: #{tpu_custom_call.1} parent=1 // pred_fallthru
      _
    // Predicated region
    $region34: #{tpu_custom_call.1} parent=1 // pred_check
      _
    $region35: #{tpu_custom_call.1} parent=1 // pred_check_branch
      %117 = sbr.rel (0) target = $region37
    $region36: #{tpu_custom_call.1} parent=1 // pred_region
      %s119 = ssub.s32 16, 16
      %120 = vsyncadd [#allocation15], %s119
      %s122 = sshll.u32 [#allocation16], 4
      %s123 = int_to_ptr.vmem [resolvable:$true] %s122
      %125 = dma.hbm_to_vmem [thread:$0]  %s8, 16, %s123, [#allocation15]
    $region37: #{tpu_custom_call.1} parent=1 // pred_fallthru
      _
    // Predicated region
    $region38: #{tpu_custom_call.1} parent=1 // pred_check
      _
    $region39: #{tpu_custom_call.1} parent=1 // pred_check_branch
      %127 = sbr.rel (0) target = $region41
    $region40: #{tpu_custom_call.1} parent=1 // pred_region
      %s129 = ssub.s32 512, 512
      %130 = vsyncadd [#allocation18], %s129
      %s131 = sshll.u32 [#allocation17], 4
      %s132 = int_to_ptr.vmem [resolvable:$true] %s131
      %137 = dma.hbm_to_vmem [thread:$0]  %s9, 512, %s132, [#allocation18], 64, 64, 4
    $region41: #{tpu_custom_call.1} parent=1 // pred_fallthru
      _
    // Predicated region
    $region42: #{tpu_custom_call.1} parent=1 // pred_check
      _
    $region43: #{tpu_custom_call.1} parent=1 // pred_check_branch
      %139 = sbr.rel (0) target = $region45
    $region44: #{tpu_custom_call.1} parent=1 // pred_region
      %s141 = ssub.s32 16, 16
      %142 = vsyncadd [#allocation18], %s141
      %s144 = sshll.u32 [#allocation19], 4
      %s145 = int_to_ptr.vmem [resolvable:$true] %s144
      %147 = dma.hbm_to_vmem [thread:$0]  %s10, 16, %s145, [#allocation18]
    $region45: #{tpu_custom_call.1} parent=1 // pred_fallthru
      _
    // Predicated region
    $region46: #{tpu_custom_call.1} parent=1 // pred_check
      _
    $region47: #{tpu_custom_call.1} parent=1 // pred_check_branch
      %149 = sbr.rel (0) target = $region49
    $region48: #{tpu_custom_call.1} parent=1 // pred_region
      %s151 = ssub.s32 128, 128
      %152 = vsyncadd [#allocation21], %s151
      %s153 = sshll.u32 [#allocation20], 4
      %s154 = int_to_ptr.vmem [resolvable:$true] %s153
      %159 = dma.hbm_to_vmem [thread:$0]  %s11, 128, %s154, [#allocation21], 64, 64, 4
    $region49: #{tpu_custom_call.1} parent=1 // pred_fallthru
      _
    // Predicated region
    $region50: #{tpu_custom_call.1} parent=1 // pred_check
      _
    $region51: #{tpu_custom_call.1} parent=1 // pred_check_branch
      %161 = sbr.rel (0) target = $region53
    $region52: #{tpu_custom_call.1} parent=1 // pred_region
      %s163 = ssub.s32 16, 16
      %164 = vsyncadd [#allocation21], %s163
      %s166 = sshll.u32 [#allocation22], 4
      %s167 = int_to_ptr.vmem [resolvable:$true] %s166
      %169 = dma.hbm_to_vmem [thread:$0]  %s12, 16, %s167, [#allocation21]
    $region53: #{tpu_custom_call.1} parent=1 // pred_fallthru
      _
    // Predicated region
    $region54: #{tpu_custom_call.1} parent=1 // pred_check
      _
    $region55: #{tpu_custom_call.1} parent=1 // pred_check_branch
      %171 = sbr.rel (0) target = $region57
    $region56: #{tpu_custom_call.1} parent=1 // pred_region
      %172 = dma.done [#allocation3], 256
    $region57: #{tpu_custom_call.1} parent=1 // pred_fallthru
      _
    // Predicated region
    $region58: #{tpu_custom_call.1} parent=1 // pred_check
      _
    $region59: #{tpu_custom_call.1} parent=1 // pred_check_branch
      %174 = sbr.rel (0) target = $region61
    $region60: #{tpu_custom_call.1} parent=1 // pred_region
      %175 = dma.done [#allocation6], 10752
    $region61: #{tpu_custom_call.1} parent=1 // pred_fallthru
      _
    // Predicated region
    $region62: #{tpu_custom_call.1} parent=1 // pred_check
      _
    $region63: #{tpu_custom_call.1} parent=1 // pred_check_branch
      %177 = sbr.rel (0) target = $region65
    $region64: #{tpu_custom_call.1} parent=1 // pred_region
      %178 = dma.done [#allocation6], 128
    $region65: #{tpu_custom_call.1} parent=1 // pred_fallthru
      _
    // Predicated region
    $region66: #{tpu_custom_call.1} parent=1 // pred_check
      _
    $region67: #{tpu_custom_call.1} parent=1 // pred_check_branch
      %180 = sbr.rel (0) target = $region69
    $region68: #{tpu_custom_call.1} parent=1 // pred_region
      %181 = dma.done [#allocation9], 65536
    $region69: #{tpu_custom_call.1} parent=1 // pred_fallthru
      _
    // Predicated region
    $region70: #{tpu_custom_call.1} parent=1 // pred_check
      _
    $region71: #{tpu_custom_call.1} parent=1 // pred_check_branch
      %183 = sbr.rel (0) target = $region73
    $region72: #{tpu_custom_call.1} parent=1 // pred_region
      %184 = dma.done [#allocation9], 128
    $region73: #{tpu_custom_call.1} parent=1 // pred_fallthru
      _
    // Predicated region
    $region74: #{tpu_custom_call.1} parent=1 // pred_check
      _
    $region75: #{tpu_custom_call.1} parent=1 // pred_check_branch
      %186 = sbr.rel (0) target = $region77
    $region76: #{tpu_custom_call.1} parent=1 // pred_region
      %187 = dma.done [#allocation12], 16384
    $region77: #{tpu_custom_call.1} parent=1 // pred_fallthru
      _
    // Predicated region
    $region78: #{tpu_custom_call.1} parent=1 // pred_check
      _
    $region79: #{tpu_custom_call.1} parent=1 // pred_check_branch
      %189 = sbr.rel (0) target = $region81
    $region80: #{tpu_custom_call.1} parent=1 // pred_region
      %190 = dma.done [#allocation12], 32
    $region81: #{tpu_custom_call.1} parent=1 // pred_fallthru
      _
    // Predicated region
    $region82: #{tpu_custom_call.1} parent=1 // pred_check
      _
    $region83: #{tpu_custom_call.1} parent=1 // pred_check_branch
      %192 = sbr.rel (0) target = $region85
    $region84: #{tpu_custom_call.1} parent=1 // pred_region
      %193 = dma.done [#allocation15], 2048
    $region85: #{tpu_custom_call.1} parent=1 // pred_fallthru
      _
    // Predicated region
    $region86: #{tpu_custom_call.1} parent=1 // pred_check
      _
    $region87: #{tpu_custom_call.1} parent=1 // pred_check_branch
      %195 = sbr.rel (0) target = $region89
    $region88: #{tpu_custom_call.1} parent=1 // pred_region
      %196 = dma.done [#allocation15], 16
    $region89: #{tpu_custom_call.1} parent=1 // pred_fallthru
      _
    // Predicated region
    $region90: #{tpu_custom_call.1} parent=1 // pred_check
      _
    $region91: #{tpu_custom_call.1} parent=1 // pred_check_branch
      %198 = sbr.rel (0) target = $region93
    $region92: #{tpu_custom_call.1} parent=1 // pred_region
      %199 = dma.done [#allocation18], 512
    $region93: #{tpu_custom_call.1} parent=1 // pred_fallthru
      _
    // Predicated region
    $region94: #{tpu_custom_call.1} parent=1 // pred_check
      _
    $region95: #{tpu_custom_call.1} parent=1 // pred_check_branch
      %201 = sbr.rel (0) target = $region97
    $region96: #{tpu_custom_call.1} parent=1 // pred_region
      %202 = dma.done [#allocation18], 16
    $region97: #{tpu_custom_call.1} parent=1 // pred_fallthru
      _
    // Predicated region
    $region98: #{tpu_custom_call.1} parent=1 // pred_check
      _
    $region99: #{tpu_custom_call.1} parent=1 // pred_check_branch
      %204 = sbr.rel (0) target = $region101
    $region100: #{tpu_custom_call.1} parent=1 // pred_region
      %205 = dma.done [#allocation21], 128
    $region101: #{tpu_custom_call.1} parent=1 // pred_fallthru
      _
    // Predicated region
    $region102: #{tpu_custom_call.1} parent=1 // pred_check
      _
    $region103: #{tpu_custom_call.1} parent=1 // pred_check_branch
      %207 = sbr.rel (0) target = $region105
    $region104: #{tpu_custom_call.1} parent=1 // pred_region
      %208 = dma.done [#allocation21], 16
    $region105: #{tpu_custom_call.1} parent=1 // pred_fallthru
      _
    %v210 = vld [vmem:[#allocation2] sm:$0xff]
    %v211 = vld [vmem:[#allocation2 + $0x8] sm:$0xff]
    %v212 = vld [vmem:[#allocation5] sm:$0xff]
    %v213 = vld [vmem:[#allocation5 + $0x8] sm:$0xff]
    %v214 = vld [vmem:[#allocation5 + $0x10] sm:$0xff]
    %v215 = vld [vmem:[#allocation5 + $0x18] sm:$0xff]
    %v216 = vld [vmem:[#allocation5 + $0x20] sm:$0xff]
    %v217 = vld [vmem:[#allocation5 + $0x28] sm:$0xff]
    %v218 = vld [vmem:[#allocation5 + $0x30] sm:$0xff]
    %v219 = vld [vmem:[#allocation5 + $0x38] sm:$0xff]
    %v220 = vld [vmem:[#allocation5 + $0x40] sm:$0xff]
    %v221 = vld [vmem:[#allocation5 + $0x48] sm:$0xff]
    %v222 = vld [vmem:[#allocation5 + $0x50] sm:$0xff]
    %v223 = vld [vmem:[#allocation5 + $0x58] sm:$0xff]
    %v224 = vld [vmem:[#allocation5 + $0x60] sm:$0xff]
    %v225 = vld [vmem:[#allocation5 + $0x68] sm:$0xff]
    %v226 = vld [vmem:[#allocation5 + $0x70] sm:$0xff]
    %v227 = vld [vmem:[#allocation5 + $0x78] sm:$0xff]
    %v228 = vld [vmem:[#allocation5 + $0x80] sm:$0xff]
    %v229 = vld [vmem:[#allocation5 + $0x88] sm:$0xff]
    %v230 = vld [vmem:[#allocation5 + $0x90] sm:$0xff]
    %v231 = vld [vmem:[#allocation5 + $0x98] sm:$0xff]
    %v232 = vld [vmem:[#allocation5 + $0xa0] sm:$0xff]
    %v233 = vld [vmem:[#allocation5 + $0xa8] sm:$0xff]
    %v234 = vld [vmem:[#allocation5 + $0xb0] sm:$0xff]
    %v235 = vld [vmem:[#allocation5 + $0xb8] sm:$0xff]
    %v236 = vld [vmem:[#allocation5 + $0xc0] sm:$0xff]
    %v237 = vld [vmem:[#allocation5 + $0xc8] sm:$0xff]
    %v238 = vld [vmem:[#allocation5 + $0xd0] sm:$0xff]
    %v239 = vld [vmem:[#allocation5 + $0xd8] sm:$0xff]
    %v240 = vld [vmem:[#allocation5 + $0xe0] sm:$0xff]
    %v241 = vld [vmem:[#allocation5 + $0xe8] sm:$0xff]
    %v242 = vld [vmem:[#allocation5 + $0xf0] sm:$0xff]
    %v243 = vld [vmem:[#allocation5 + $0xf8] sm:$0xff]
    %v244 = vld [vmem:[#allocation5 + $0x100] sm:$0xff]
    %v245 = vld [vmem:[#allocation5 + $0x108] sm:$0xff]
    %v246 = vld [vmem:[#allocation5 + $0x110] sm:$0xff]
    %v247 = vld [vmem:[#allocation5 + $0x118] sm:$0xff]
    %v248 = vld [vmem:[#allocation5 + $0x120] sm:$0xff]
    %v249 = vld [vmem:[#allocation5 + $0x128] sm:$0xff]
    %v250 = vld [vmem:[#allocation5 + $0x130] sm:$0xff]
    %v251 = vld [vmem:[#allocation5 + $0x138] sm:$0xff]
    %v252 = vld [vmem:[#allocation5 + $0x140] sm:$0xff]
    %v253 = vld [vmem:[#allocation5 + $0x148] sm:$0xff]
    %v254 = vld [vmem:[#allocation5 + $0x150] sm:$0xff]
    %v255 = vld [vmem:[#allocation5 + $0x158] sm:$0xff]
    %v256 = vld [vmem:[#allocation5 + $0x160] sm:$0xff]
    %v257 = vld [vmem:[#allocation5 + $0x168] sm:$0xff]
    %v258 = vld [vmem:[#allocation5 + $0x170] sm:$0xff]
    %v259 = vld [vmem:[#allocation5 + $0x178] sm:$0xff]
    %v260 = vld [vmem:[#allocation5 + $0x180] sm:$0xff]
    %v261 = vld [vmem:[#allocation5 + $0x188] sm:$0xff]
    %v262 = vld [vmem:[#allocation5 + $0x190] sm:$0xff]
    %v263 = vld [vmem:[#allocation5 + $0x198] sm:$0xff]
    %v264 = vld [vmem:[#allocation5 + $0x1a0] sm:$0xff]
    %v265 = vld [vmem:[#allocation5 + $0x1a8] sm:$0xff]
    %v266 = vld [vmem:[#allocation5 + $0x1b0] sm:$0xff]
    %v267 = vld [vmem:[#allocation5 + $0x1b8] sm:$0xff]
    %v268 = vld [vmem:[#allocation5 + $0x1c0] sm:$0xff]
    %v269 = vld [vmem:[#allocation5 + $0x1c8] sm:$0xff]
    %v270 = vld [vmem:[#allocation5 + $0x1d0] sm:$0xff]
    %v271 = vld [vmem:[#allocation5 + $0x1d8] sm:$0xff]
    %v272 = vld [vmem:[#allocation5 + $0x1e0] sm:$0xff]
    %v273 = vld [vmem:[#allocation5 + $0x1e8] sm:$0xff]
    %v274 = vld [vmem:[#allocation5 + $0x1f0] sm:$0xff]
    %v275 = vld [vmem:[#allocation5 + $0x1f8] sm:$0xff]
    %v276 = vld [vmem:[#allocation5 + $0x200] sm:$0xff]
    %v277 = vld [vmem:[#allocation5 + $0x208] sm:$0xff]
    %v278 = vld [vmem:[#allocation5 + $0x210] sm:$0xff]
    %v279 = vld [vmem:[#allocation5 + $0x218] sm:$0xff]
    %v280 = vld [vmem:[#allocation5 + $0x220] sm:$0xff]
    %v281 = vld [vmem:[#allocation5 + $0x228] sm:$0xff]
    %v282 = vld [vmem:[#allocation5 + $0x230] sm:$0xff]
    %v283 = vld [vmem:[#allocation5 + $0x238] sm:$0xff]
    %v284 = vld [vmem:[#allocation5 + $0x240] sm:$0xff]
    %v285 = vld [vmem:[#allocation5 + $0x248] sm:$0xff]
    %v286 = vld [vmem:[#allocation5 + $0x250] sm:$0xff]
    %v287 = vld [vmem:[#allocation5 + $0x258] sm:$0xff]
    %v288 = vld [vmem:[#allocation5 + $0x260] sm:$0xff]
    %v289 = vld [vmem:[#allocation5 + $0x268] sm:$0xff]
    %v290 = vld [vmem:[#allocation5 + $0x270] sm:$0xff]
    %v291 = vld [vmem:[#allocation5 + $0x278] sm:$0xff]
    %v292 = vld [vmem:[#allocation5 + $0x280] sm:$0xff]
    %v293 = vld [vmem:[#allocation5 + $0x288] sm:$0xff]
    %v294 = vld [vmem:[#allocation5 + $0x290] sm:$0xff]
    %v295 = vld [vmem:[#allocation5 + $0x298] sm:$0xff]
    %v296 = vld [vmem:[#allocation7] sm:$0xff]
    %v298 = vlaneseq
    %v299 = vshrl.u32 %v298, 7
    %v300 = vsub.s32 0, %v299
    %v301 = vrot.slane %v296, %v300
    %v302 = vlaneseq
    %v303 = vshrl.u32 %v302, 7
    %v304 = vsub.s32 1, %v303
    %v305 = vrot.slane %v296, %v304
    %v306 = vlaneseq
    %v307 = vshrl.u32 %v306, 7
    %v308 = vsub.s32 2, %v307
    %v309 = vrot.slane %v296, %v308
    %v310 = vlaneseq
    %v311 = vshrl.u32 %v310, 7
    %v312 = vsub.s32 3, %v311
    %v313 = vrot.slane %v296, %v312
    %v314 = vlaneseq
    %v315 = vshrl.u32 %v314, 7
    %v316 = vsub.s32 4, %v315
    %v317 = vrot.slane %v296, %v316
    %v318 = vlaneseq
    %v319 = vshrl.u32 %v318, 7
    %v320 = vsub.s32 5, %v319
    %v321 = vrot.slane %v296, %v320
    %v322 = vlaneseq
    %v323 = vshrl.u32 %v322, 7
    %v324 = vsub.s32 6, %v323
    %v325 = vrot.slane %v296, %v324
    %v326 = vlaneseq
    %v327 = vshrl.u32 %v326, 7
    %v328 = vsub.s32 7, %v327
    %v329 = vrot.slane %v296, %v328
    %v340 = vunpack.c.l.b16 %v210
    %v341 = vunpack.c.h.b16 %v210
    %v342 = vunpack.c.l.b16 %v211
    %v343 = vunpack.c.h.b16 %v211
    %v344 = vpack.c.b16 %v342, %v340
    %v345 = vpack.c.b16 %v343, %v341
    %v431 = vunpack.c.l.b16 %v212
    %v432 = vunpack.c.h.b16 %v212
    %v433 = vunpack.c.l.b16 %v213
    %v434 = vunpack.c.h.b16 %v213
    %v435 = vunpack.c.l.b16 %v214
    %v436 = vunpack.c.h.b16 %v214
    %v437 = vunpack.c.l.b16 %v215
    %v438 = vunpack.c.h.b16 %v215
    %v439 = vunpack.c.l.b16 %v216
    %v440 = vunpack.c.h.b16 %v216
    %v441 = vunpack.c.l.b16 %v217
    %v442 = vunpack.c.h.b16 %v217
    %v443 = vunpack.c.l.b16 %v218
    %v444 = vunpack.c.h.b16 %v218
    %v445 = vunpack.c.l.b16 %v219
    %v446 = vunpack.c.h.b16 %v219
    %v447 = vunpack.c.l.b16 %v220
    %v448 = vunpack.c.h.b16 %v220
    %v449 = vunpack.c.l.b16 %v221
    %v450 = vunpack.c.h.b16 %v221
    %v451 = vunpack.c.l.b16 %v222
    %v452 = vunpack.c.h.b16 %v222
    %v453 = vunpack.c.l.b16 %v223
    %v454 = vunpack.c.h.b16 %v223
    %v455 = vunpack.c.l.b16 %v224
    %v456 = vunpack.c.h.b16 %v224
    %v457 = vunpack.c.l.b16 %v225
    %v458 = vunpack.c.h.b16 %v225
    %v459 = vunpack.c.l.b16 %v226
    %v460 = vunpack.c.h.b16 %v226
    %v461 = vunpack.c.l.b16 %v227
    %v462 = vunpack.c.h.b16 %v227
    %v463 = vunpack.c.l.b16 %v228
    %v464 = vunpack.c.h.b16 %v228
    %v465 = vunpack.c.l.b16 %v229
    %v466 = vunpack.c.h.b16 %v229
    %v467 = vunpack.c.l.b16 %v230
    %v468 = vunpack.c.h.b16 %v230
    %v469 = vunpack.c.l.b16 %v231
    %v470 = vunpack.c.h.b16 %v231
    %v471 = vunpack.c.l.b16 %v232
    %v472 = vunpack.c.h.b16 %v232
    %v473 = vunpack.c.l.b16 %v233
    %v474 = vunpack.c.h.b16 %v233
    %v475 = vunpack.c.l.b16 %v234
    %v476 = vunpack.c.h.b16 %v234
    %v477 = vunpack.c.l.b16 %v235
    %v478 = vunpack.c.h.b16 %v235
    %v479 = vunpack.c.l.b16 %v236
    %v480 = vunpack.c.h.b16 %v236
    %v481 = vunpack.c.l.b16 %v237
    %v482 = vunpack.c.h.b16 %v237
    %v483 = vunpack.c.l.b16 %v238
    %v484 = vunpack.c.h.b16 %v238
    %v485 = vunpack.c.l.b16 %v239
    %v486 = vunpack.c.h.b16 %v239
    %v487 = vunpack.c.l.b16 %v240
    %v488 = vunpack.c.h.b16 %v240
    %v489 = vunpack.c.l.b16 %v241
    %v490 = vunpack.c.h.b16 %v241
    %v491 = vunpack.c.l.b16 %v242
    %v492 = vunpack.c.h.b16 %v242
    %v493 = vunpack.c.l.b16 %v243
    %v494 = vunpack.c.h.b16 %v243
    %v495 = vunpack.c.l.b16 %v244
    %v496 = vunpack.c.h.b16 %v244
    %v497 = vunpack.c.l.b16 %v245
    %v498 = vunpack.c.h.b16 %v245
    %v499 = vunpack.c.l.b16 %v246
    %v500 = vunpack.c.h.b16 %v246
    %v501 = vunpack.c.l.b16 %v247
    %v502 = vunpack.c.h.b16 %v247
    %v503 = vunpack.c.l.b16 %v248
    %v504 = vunpack.c.h.b16 %v248
    %v505 = vunpack.c.l.b16 %v249
    %v506 = vunpack.c.h.b16 %v249
    %v507 = vunpack.c.l.b16 %v250
    %v508 = vunpack.c.h.b16 %v250
    %v509 = vunpack.c.l.b16 %v251
    %v510 = vunpack.c.h.b16 %v251
    %v511 = vunpack.c.l.b16 %v252
    %v512 = vunpack.c.h.b16 %v252
    %v513 = vunpack.c.l.b16 %v253
    %v514 = vunpack.c.h.b16 %v253
    %v515 = vunpack.c.l.b16 %v254
    %v516 = vunpack.c.h.b16 %v254
    %v517 = vunpack.c.l.b16 %v255
    %v518 = vunpack.c.h.b16 %v255
    %v519 = vunpack.c.l.b16 %v256
    %v520 = vunpack.c.h.b16 %v256
    %v521 = vunpack.c.l.b16 %v257
    %v522 = vunpack.c.h.b16 %v257
    %v523 = vunpack.c.l.b16 %v258
    %v524 = vunpack.c.h.b16 %v258
    %v525 = vunpack.c.l.b16 %v259
    %v526 = vunpack.c.h.b16 %v259
    %v527 = vunpack.c.l.b16 %v260
    %v528 = vunpack.c.h.b16 %v260
    %v529 = vunpack.c.l.b16 %v261
    %v530 = vunpack.c.h.b16 %v261
    %v531 = vunpack.c.l.b16 %v262
    %v532 = vunpack.c.h.b16 %v262
    %v533 = vunpack.c.l.b16 %v263
    %v534 = vunpack.c.h.b16 %v263
    %v535 = vunpack.c.l.b16 %v264
    %v536 = vunpack.c.h.b16 %v264
    %v537 = vunpack.c.l.b16 %v265
    %v538 = vunpack.c.h.b16 %v265
    %v539 = vunpack.c.l.b16 %v266
    %v540 = vunpack.c.h.b16 %v266
    %v541 = vunpack.c.l.b16 %v267
    %v542 = vunpack.c.h.b16 %v267
    %v543 = vunpack.c.l.b16 %v268
    %v544 = vunpack.c.h.b16 %v268
    %v545 = vunpack.c.l.b16 %v269
    %v546 = vunpack.c.h.b16 %v269
    %v547 = vunpack.c.l.b16 %v270
    %v548 = vunpack.c.h.b16 %v270
    %v549 = vunpack.c.l.b16 %v271
    %v550 = vunpack.c.h.b16 %v271
    %v551 = vunpack.c.l.b16 %v272
    %v552 = vunpack.c.h.b16 %v272
    %v553 = vunpack.c.l.b16 %v273
    %v554 = vunpack.c.h.b16 %v273
    %v555 = vunpack.c.l.b16 %v274
    %v556 = vunpack.c.h.b16 %v274
    %v557 = vunpack.c.l.b16 %v275
    %v558 = vunpack.c.h.b16 %v275
    %v559 = vunpack.c.l.b16 %v276
    %v560 = vunpack.c.h.b16 %v276
    %v561 = vunpack.c.l.b16 %v277
    %v562 = vunpack.c.h.b16 %v277
    %v563 = vunpack.c.l.b16 %v278
    %v564 = vunpack.c.h.b16 %v278
    %v565 = vunpack.c.l.b16 %v279
    %v566 = vunpack.c.h.b16 %v279
    %v567 = vunpack.c.l.b16 %v280
    %v568 = vunpack.c.h.b16 %v280
    %v569 = vunpack.c.l.b16 %v281
    %v570 = vunpack.c.h.b16 %v281
    %v571 = vunpack.c.l.b16 %v282
    %v572 = vunpack.c.h.b16 %v282
    %v573 = vunpack.c.l.b16 %v283
    %v574 = vunpack.c.h.b16 %v283
    %v575 = vunpack.c.l.b16 %v284
    %v576 = vunpack.c.h.b16 %v284
    %v577 = vunpack.c.l.b16 %v285
    %v578 = vunpack.c.h.b16 %v285
    %v579 = vunpack.c.l.b16 %v286
    %v580 = vunpack.c.h.b16 %v286
    %v581 = vunpack.c.l.b16 %v287
    %v582 = vunpack.c.h.b16 %v287
    %v583 = vunpack.c.l.b16 %v288
    %v584 = vunpack.c.h.b16 %v288
    %v585 = vunpack.c.l.b16 %v289
    %v586 = vunpack.c.h.b16 %v289
    %v587 = vunpack.c.l.b16 %v290
    %v588 = vunpack.c.h.b16 %v290
    %v589 = vunpack.c.l.b16 %v291
    %v590 = vunpack.c.h.b16 %v291
    %v591 = vunpack.c.l.b16 %v292
    %v592 = vunpack.c.h.b16 %v292
    %v593 = vunpack.c.l.b16 %v293
    %v594 = vunpack.c.h.b16 %v293
    %v595 = vunpack.c.l.b16 %v294
    %v596 = vunpack.c.h.b16 %v294
    %v597 = vunpack.c.l.b16 %v295
    %v598 = vunpack.c.h.b16 %v295
    %v599 = vpack.c.b16 %v439, %v431
    %v600 = vpack.c.b16 %v440, %v432
    %v601 = vpack.c.b16 %v441, %v433
    %v602 = vpack.c.b16 %v442, %v434
    %v603 = vpack.c.b16 %v443, %v435
    %v604 = vpack.c.b16 %v444, %v436
    %v605 = vpack.c.b16 %v445, %v437
    %v606 = vpack.c.b16 %v446, %v438
    %v607 = vpack.c.b16 %v455, %v447
    %v608 = vpack.c.b16 %v456, %v448
    %v609 = vpack.c.b16 %v457, %v449
    %v610 = vpack.c.b16 %v458, %v450
    %v611 = vpack.c.b16 %v459, %v451
    %v612 = vpack.c.b16 %v460, %v452
    %v613 = vpack.c.b16 %v461, %v453
    %v614 = vpack.c.b16 %v462, %v454
    %v615 = vpack.c.b16 %v471, %v463
    %v616 = vpack.c.b16 %v472, %v464
    %v617 = vpack.c.b16 %v473, %v465
    %v618 = vpack.c.b16 %v474, %v466
    %v619 = vpack.c.b16 %v475, %v467
    %v620 = vpack.c.b16 %v476, %v468
    %v621 = vpack.c.b16 %v477, %v469
    %v622 = vpack.c.b16 %v478, %v470
    %v623 = vpack.c.b16 %v487, %v479
    %v624 = vpack.c.b16 %v488, %v480
    %v625 = vpack.c.b16 %v489, %v481
    %v626 = vpack.c.b16 %v490, %v482
    %v627 = vpack.c.b16 %v491, %v483
    %v628 = vpack.c.b16 %v492, %v484
    %v629 = vpack.c.b16 %v493, %v485
    %v630 = vpack.c.b16 %v494, %v486
    %v631 = vpack.c.b16 %v503, %v495
    %v632 = vpack.c.b16 %v504, %v496
    %v633 = vpack.c.b16 %v505, %v497
    %v634 = vpack.c.b16 %v506, %v498
    %v635 = vpack.c.b16 %v507, %v499
    %v636 = vpack.c.b16 %v508, %v500
    %v637 = vpack.c.b16 %v509, %v501
    %v638 = vpack.c.b16 %v510, %v502
    %v639 = vpack.c.b16 %v519, %v511
    %v640 = vpack.c.b16 %v520, %v512
    %v641 = vpack.c.b16 %v521, %v513
    %v642 = vpack.c.b16 %v522, %v514
    %v643 = vpack.c.b16 %v523, %v515
    %v644 = vpack.c.b16 %v524, %v516
    %v645 = vpack.c.b16 %v525, %v517
    %v646 = vpack.c.b16 %v526, %v518
    %v647 = vpack.c.b16 %v535, %v527
    %v648 = vpack.c.b16 %v536, %v528
    %v649 = vpack.c.b16 %v537, %v529
    %v650 = vpack.c.b16 %v538, %v530
    %v651 = vpack.c.b16 %v539, %v531
    %v652 = vpack.c.b16 %v540, %v532
    %v653 = vpack.c.b16 %v541, %v533
    %v654 = vpack.c.b16 %v542, %v534
    %v655 = vpack.c.b16 %v551, %v543
    %v656 = vpack.c.b16 %v552, %v544
    %v657 = vpack.c.b16 %v553, %v545
    %v658 = vpack.c.b16 %v554, %v546
    %v659 = vpack.c.b16 %v555, %v547
    %v660 = vpack.c.b16 %v556, %v548
    %v661 = vpack.c.b16 %v557, %v549
    %v662 = vpack.c.b16 %v558, %v550
    %v663 = vpack.c.b16 %v567, %v559
    %v664 = vpack.c.b16 %v568, %v560
    %v665 = vpack.c.b16 %v569, %v561
    %v666 = vpack.c.b16 %v570, %v562
    %v667 = vpack.c.b16 %v571, %v563
    %v668 = vpack.c.b16 %v572, %v564
    %v669 = vpack.c.b16 %v573, %v565
    %v670 = vpack.c.b16 %v574, %v566
    %v671 = vpack.c.b16 %v583, %v575
    %v672 = vpack.c.b16 %v584, %v576
    %v673 = vpack.c.b16 %v585, %v577
    %v674 = vpack.c.b16 %v586, %v578
    %v675 = vpack.c.b16 %v587, %v579
    %v676 = vpack.c.b16 %v588, %v580
    %v677 = vpack.c.b16 %v589, %v581
    %v678 = vpack.c.b16 %v590, %v582
    %v679 = vpack.c.b16 %v591, %v591
    %v680 = vpack.c.b16 %v592, %v592
    %v681 = vpack.c.b16 %v593, %v593
    %v682 = vpack.c.b16 %v594, %v594
    %v683 = vpack.c.b16 %v595, %v595
    %v684 = vpack.c.b16 %v596, %v596
    %v685 = vpack.c.b16 %v597, %v597
    %v686 = vpack.c.b16 %v598, %v598
    %vm767 = vcmask 326656
    %v769 = vsel %vm767, %v345, 0
    %vm771 = vcmask 1043456
    %v773 = vsel %vm771, %v679, 0
    %v776 = vsel %vm771, %v680, 0
    %v779 = vsel %vm771, %v681, 0
    %v782 = vsel %vm771, %v682, 0
    %v785 = vsel %vm771, %v683, 0
    %v788 = vsel %vm771, %v684, 0
    %v791 = vsel %vm771, %v685, 0
    %v794 = vsel %vm771, %v686, 0
    %796 = vmatprep.subr.bf16.mxu0 %v600
    %797 = vmatpush1.bf16.msra.mxu0 %v599
    %798 = vmatprep.subr.bf16.mxu0 %v608
    %799 = vmatpush1.bf16.msra.mxu0 %v607
    %800 = vmatprep.subr.bf16.mxu0 %v616
    %801 = vmatpush1.bf16.msra.mxu0 %v615
    %802 = vmatprep.subr.bf16.mxu0 %v624
    %803 = vmatpush1.bf16.msra.mxu0 %v623
    %804 = vmatprep.subr.bf16.mxu0 %v632
    %805 = vmatpush1.bf16.msra.mxu0 %v631
    %806 = vmatprep.subr.bf16.mxu0 %v640
    %807 = vmatpush1.bf16.msra.mxu0 %v639
    %808 = vmatprep.subr.bf16.mxu0 %v648
    %809 = vmatpush1.bf16.msra.mxu0 %v647
    %810 = vmatprep.subr.bf16.mxu0 %v656
    %811 = vmatpush1.bf16.msra.mxu0 %v655
    %812 = vmatprep.subr.bf16.mxu0 %v664
    %813 = vmatpush1.bf16.msra.mxu0 %v663
    %814 = vmatprep.subr.bf16.mxu0 %v672
    %815 = vmatpush1.bf16.msra.mxu0 %v671
    %816 = vmatprep.subr.bf16.mxu0 %v776
    %817 = vmatpush1.bf16.msra.mxu0 %v773
    %818 = vmatprep.subr.bf16.mxu0 0
    %819 = vmatpush1.bf16.msra.mxu0 0
    %820 = vmatprep.subr.bf16.mxu0 0
    %821 = vmatpush1.bf16.msra.mxu0 0
    %822 = vmatprep.subr.bf16.mxu0 0
    %823 = vmatpush1.bf16.msra.mxu0 0
    %824 = vmatprep.subr.bf16.mxu0 0
    %825 = vmatpush1.bf16.msra.mxu0 0
    %826 = vmatprep.subr.bf16.mxu0 0
    %827 = vmatpush1.bf16.msra.mxu0 0
    %828 = vmatprep.mubr.bf16.mxu0 %v769
    %829 = vmatmul.mubr.bf16.gmra.mrb[0].mxu0 %v344
    %v830 = vpop.f32.mrb[0].mxu0
    %v831 = vadd.f32 %v301, %v830
    %v832 = vpop.f32.mrb[0].mxu0
    %v833 = vadd.f32 %v305, %v832
    %v834 = vpop.f32.mrb[0].mxu0
    %v835 = vadd.f32 %v301, %v834
    %v836 = vpop.f32.mrb[0].mxu0
    %v837 = vadd.f32 %v305, %v836
    %838 = vdwg.mxu0
    %839 = vmatprep.subr.bf16.mxu0 %v602
    %840 = vmatpush1.bf16.msra.mxu0 %v601
    %841 = vmatprep.subr.bf16.mxu0 %v610
    %842 = vmatpush1.bf16.msra.mxu0 %v609
    %843 = vmatprep.subr.bf16.mxu0 %v618
    %844 = vmatpush1.bf16.msra.mxu0 %v617
    %845 = vmatprep.subr.bf16.mxu0 %v626
    %846 = vmatpush1.bf16.msra.mxu0 %v625
    %847 = vmatprep.subr.bf16.mxu0 %v634
    %848 = vmatpush1.bf16.msra.mxu0 %v633
    %849 = vmatprep.subr.bf16.mxu0 %v642
    %850 = vmatpush1.bf16.msra.mxu0 %v641
    %851 = vmatprep.subr.bf16.mxu0 %v650
    %852 = vmatpush1.bf16.msra.mxu0 %v649
    %853 = vmatprep.subr.bf16.mxu0 %v658
    %854 = vmatpush1.bf16.msra.mxu0 %v657
    %855 = vmatprep.subr.bf16.mxu0 %v666
    %856 = vmatpush1.bf16.msra.mxu0 %v665
    %857 = vmatprep.subr.bf16.mxu0 %v674
    %858 = vmatpush1.bf16.msra.mxu0 %v673
    %859 = vmatprep.subr.bf16.mxu0 %v782
    %860 = vmatpush1.bf16.msra.mxu0 %v779
    %861 = vmatprep.subr.bf16.mxu0 0
    %862 = vmatpush1.bf16.msra.mxu0 0
    %863 = vmatprep.subr.bf16.mxu0 0
    %864 = vmatpush1.bf16.msra.mxu0 0
    %865 = vmatprep.subr.bf16.mxu0 0
    %866 = vmatpush1.bf16.msra.mxu0 0
    %867 = vmatprep.subr.bf16.mxu0 0
    %868 = vmatpush1.bf16.msra.mxu0 0
    %869 = vmatprep.subr.bf16.mxu0 0
    %870 = vmatpush1.bf16.msra.mxu0 0
    %871 = vmatprep.mubr.bf16.mxu0 %v769
    %872 = vmatmul.mubr.bf16.gmra.mrb[0].mxu0 %v344
    %v873 = vpop.f32.mrb[0].mxu0
    %v874 = vadd.f32 %v309, %v873
    %v875 = vpop.f32.mrb[0].mxu0
    %v876 = vadd.f32 %v313, %v875
    %v877 = vpop.f32.mrb[0].mxu0
    %v878 = vadd.f32 %v309, %v877
    %v879 = vpop.f32.mrb[0].mxu0
    %v880 = vadd.f32 %v313, %v879
    %881 = vdwg.mxu0
    %882 = vmatprep.subr.bf16.mxu0 %v604
    %883 = vmatpush1.bf16.msra.mxu0 %v603
    %884 = vmatprep.subr.bf16.mxu0 %v612
    %885 = vmatpush1.bf16.msra.mxu0 %v611
    %886 = vmatprep.subr.bf16.mxu0 %v620
    %887 = vmatpush1.bf16.msra.mxu0 %v619
    %888 = vmatprep.subr.bf16.mxu0 %v628
    %889 = vmatpush1.bf16.msra.mxu0 %v627
    %890 = vmatprep.subr.bf16.mxu0 %v636
    %891 = vmatpush1.bf16.msra.mxu0 %v635
    %892 = vmatprep.subr.bf16.mxu0 %v644
    %893 = vmatpush1.bf16.msra.mxu0 %v643
    %894 = vmatprep.subr.bf16.mxu0 %v652
    %895 = vmatpush1.bf16.msra.mxu0 %v651
    %896 = vmatprep.subr.bf16.mxu0 %v660
    %897 = vmatpush1.bf16.msra.mxu0 %v659
    %898 = vmatprep.subr.bf16.mxu0 %v668
    %899 = vmatpush1.bf16.msra.mxu0 %v667
    %900 = vmatprep.subr.bf16.mxu0 %v676
    %901 = vmatpush1.bf16.msra.mxu0 %v675
    %902 = vmatprep.subr.bf16.mxu0 %v788
    %903 = vmatpush1.bf16.msra.mxu0 %v785
    %904 = vmatprep.subr.bf16.mxu0 0
    %905 = vmatpush1.bf16.msra.mxu0 0
    %906 = vmatprep.subr.bf16.mxu0 0
    %907 = vmatpush1.bf16.msra.mxu0 0
    %908 = vmatprep.subr.bf16.mxu0 0
    %909 = vmatpush1.bf16.msra.mxu0 0
    %910 = vmatprep.subr.bf16.mxu0 0
    %911 = vmatpush1.bf16.msra.mxu0 0
    %912 = vmatprep.subr.bf16.mxu0 0
    %913 = vmatpush1.bf16.msra.mxu0 0
    %914 = vmatprep.mubr.bf16.mxu0 %v769
    %915 = vmatmul.mubr.bf16.gmra.mrb[0].mxu0 %v344
    %v916 = vpop.f32.mrb[0].mxu0
    %v917 = vadd.f32 %v317, %v916
    %v918 = vpop.f32.mrb[0].mxu0
    %v919 = vadd.f32 %v321, %v918
    %v920 = vpop.f32.mrb[0].mxu0
    %v921 = vadd.f32 %v317, %v920
    %v922 = vpop.f32.mrb[0].mxu0
    %v923 = vadd.f32 %v321, %v922
    %924 = vdwg.mxu0
    %925 = vmatprep.subr.bf16.mxu0 %v606
    %926 = vmatpush1.bf16.msra.mxu0 %v605
    %927 = vmatprep.subr.bf16.mxu0 %v614
    %928 = vmatpush1.bf16.msra.mxu0 %v613
    %929 = vmatprep.subr.bf16.mxu0 %v622
    %930 = vmatpush1.bf16.msra.mxu0 %v621
    %931 = vmatprep.subr.bf16.mxu0 %v630
    %932 = vmatpush1.bf16.msra.mxu0 %v629
    %933 = vmatprep.subr.bf16.mxu0 %v638
    %934 = vmatpush1.bf16.msra.mxu0 %v637
    %935 = vmatprep.subr.bf16.mxu0 %v646
    %936 = vmatpush1.bf16.msra.mxu0 %v645
    %937 = vmatprep.subr.bf16.mxu0 %v654
    %938 = vmatpush1.bf16.msra.mxu0 %v653
    %939 = vmatprep.subr.bf16.mxu0 %v662
    %940 = vmatpush1.bf16.msra.mxu0 %v661
    %941 = vmatprep.subr.bf16.mxu0 %v670
    %942 = vmatpush1.bf16.msra.mxu0 %v669
    %943 = vmatprep.subr.bf16.mxu0 %v678
    %944 = vmatpush1.bf16.msra.mxu0 %v677
    %945 = vmatprep.subr.bf16.mxu0 %v794
    %946 = vmatpush1.bf16.msra.mxu0 %v791
    %947 = vmatprep.subr.bf16.mxu0 0
    %948 = vmatpush1.bf16.msra.mxu0 0
    %949 = vmatprep.subr.bf16.mxu0 0
    %950 = vmatpush1.bf16.msra.mxu0 0
    %951 = vmatprep.subr.bf16.mxu0 0
    %952 = vmatpush1.bf16.msra.mxu0 0
    %953 = vmatprep.subr.bf16.mxu0 0
    %954 = vmatpush1.bf16.msra.mxu0 0
    %955 = vmatprep.subr.bf16.mxu0 0
    %956 = vmatpush1.bf16.msra.mxu0 0
    %957 = vmatprep.mubr.bf16.mxu0 %v769
    %958 = vmatmul.mubr.bf16.gmra.mrb[0].mxu0 %v344
    %v959 = vpop.f32.mrb[0].mxu0
    %v960 = vadd.f32 %v325, %v959
    %v961 = vpop.f32.mrb[0].mxu0
    %v962 = vadd.f32 %v329, %v961
    %v963 = vpop.f32.mrb[0].mxu0
    %v964 = vadd.f32 %v325, %v963
    %v965 = vpop.f32.mrb[0].mxu0
    %v966 = vadd.f32 %v329, %v965
    %967 = vdwg.mxu0
    %v968 = vmax.f32 %v831, 0.0
    %v969 = vmax.f32 %v833, 0.0
    %v970 = vmax.f32 %v874, 0.0
    %v971 = vmax.f32 %v876, 0.0
    %v972 = vmax.f32 %v917, 0.0
    %v973 = vmax.f32 %v919, 0.0
    %v974 = vmax.f32 %v960, 0.0
    %v975 = vmax.f32 %v962, 0.0
    %v976 = vmax.f32 %v835, 0.0
    %v977 = vmax.f32 %v837, 0.0
    %v978 = vmax.f32 %v878, 0.0
    %v979 = vmax.f32 %v880, 0.0
    %v980 = vmax.f32 %v921, 0.0
    %v981 = vmax.f32 %v923, 0.0
    %v982 = vmax.f32 %v964, 0.0
    %v983 = vmax.f32 %v966, 0.0
    %v984 = vpack.c.bf16 %v976, %v968
    %v985 = vpack.c.bf16 %v977, %v969
    %v986 = vpack.c.bf16 %v978, %v970
    %v987 = vpack.c.bf16 %v979, %v971
    %v988 = vpack.c.bf16 %v980, %v972
    %v989 = vpack.c.bf16 %v981, %v973
    %v990 = vpack.c.bf16 %v982, %v974
    %v991 = vpack.c.bf16 %v983, %v975
    %v992 = vld [vmem:[#allocation8] sm:$0xff]
    %v993 = vld [vmem:[#allocation8 + $0x8] sm:$0xff]
    %v994 = vld [vmem:[#allocation8 + $0x10] sm:$0xff]
    %v995 = vld [vmem:[#allocation8 + $0x18] sm:$0xff]
    %v996 = vld [vmem:[#allocation8 + $0x20] sm:$0xff]
    %v997 = vld [vmem:[#allocation8 + $0x28] sm:$0xff]
    %v998 = vld [vmem:[#allocation8 + $0x30] sm:$0xff]
    %v999 = vld [vmem:[#allocation8 + $0x38] sm:$0xff]
    %v1000 = vld [vmem:[#allocation8 + $0x40] sm:$0xff]
    %v1001 = vld [vmem:[#allocation8 + $0x48] sm:$0xff]
    %v1002 = vld [vmem:[#allocation8 + $0x50] sm:$0xff]
    %v1003 = vld [vmem:[#allocation8 + $0x58] sm:$0xff]
    %v1004 = vld [vmem:[#allocation8 + $0x60] sm:$0xff]
    %v1005 = vld [vmem:[#allocation8 + $0x68] sm:$0xff]
    %v1006 = vld [vmem:[#allocation8 + $0x70] sm:$0xff]
    %v1007 = vld [vmem:[#allocation8 + $0x78] sm:$0xff]
    %v1008 = vld [vmem:[#allocation8 + $0x80] sm:$0xff]
    %v1009 = vld [vmem:[#allocation8 + $0x88] sm:$0xff]
    %v1010 = vld [vmem:[#allocation8 + $0x90] sm:$0xff]
    %v1011 = vld [vmem:[#allocation8 + $0x98] sm:$0xff]
    %v1012 = vld [vmem:[#allocation8 + $0xa0] sm:$0xff]
    %v1013 = vld [vmem:[#allocation8 + $0xa8] sm:$0xff]
    %v1014 = vld [vmem:[#allocation8 + $0xb0] sm:$0xff]
    %v1015 = vld [vmem:[#allocation8 + $0xb8] sm:$0xff]
    %v1016 = vld [vmem:[#allocation8 + $0xc0] sm:$0xff]
    %v1017 = vld [vmem:[#allocation8 + $0xc8] sm:$0xff]
    %v1018 = vld [vmem:[#allocation8 + $0xd0] sm:$0xff]
    %v1019 = vld [vmem:[#allocation8 + $0xd8] sm:$0xff]
    %v1020 = vld [vmem:[#allocation8 + $0xe0] sm:$0xff]
    %v1021 = vld [vmem:[#allocation8 + $0xe8] sm:$0xff]
    %v1022 = vld [vmem:[#allocation8 + $0xf0] sm:$0xff]
    %v1023 = vld [vmem:[#allocation8 + $0xf8] sm:$0xff]
    %v1024 = vld [vmem:[#allocation8 + $0x100] sm:$0xff]
    %v1025 = vld [vmem:[#allocation8 + $0x108] sm:$0xff]
    %v1026 = vld [vmem:[#allocation8 + $0x110] sm:$0xff]
    %v1027 = vld [vmem:[#allocation8 + $0x118] sm:$0xff]
    %v1028 = vld [vmem:[#allocation8 + $0x120] sm:$0xff]
    %v1029 = vld [vmem:[#allocation8 + $0x128] sm:$0xff]
    %v1030 = vld [vmem:[#allocation8 + $0x130] sm:$0xff]
    %v1031 = vld [vmem:[#allocation8 + $0x138] sm:$0xff]
    %v1032 = vld [vmem:[#allocation8 + $0x140] sm:$0xff]
    %v1033 = vld [vmem:[#allocation8 + $0x148] sm:$0xff]
    %v1034 = vld [vmem:[#allocation8 + $0x150] sm:$0xff]
    %v1035 = vld [vmem:[#allocation8 + $0x158] sm:$0xff]
    %v1036 = vld [vmem:[#allocation8 + $0x160] sm:$0xff]
    %v1037 = vld [vmem:[#allocation8 + $0x168] sm:$0xff]
    %v1038 = vld [vmem:[#allocation8 + $0x170] sm:$0xff]
    %v1039 = vld [vmem:[#allocation8 + $0x178] sm:$0xff]
    %v1040 = vld [vmem:[#allocation8 + $0x180] sm:$0xff]
    %v1041 = vld [vmem:[#allocation8 + $0x188] sm:$0xff]
    %v1042 = vld [vmem:[#allocation8 + $0x190] sm:$0xff]
    %v1043 = vld [vmem:[#allocation8 + $0x198] sm:$0xff]
    %v1044 = vld [vmem:[#allocation8 + $0x1a0] sm:$0xff]
    %v1045 = vld [vmem:[#allocation8 + $0x1a8] sm:$0xff]
    %v1046 = vld [vmem:[#allocation8 + $0x1b0] sm:$0xff]
    %v1047 = vld [vmem:[#allocation8 + $0x1b8] sm:$0xff]
    %v1048 = vld [vmem:[#allocation8 + $0x1c0] sm:$0xff]
    %v1049 = vld [vmem:[#allocation8 + $0x1c8] sm:$0xff]
    %v1050 = vld [vmem:[#allocation8 + $0x1d0] sm:$0xff]
    %v1051 = vld [vmem:[#allocation8 + $0x1d8] sm:$0xff]
    %v1052 = vld [vmem:[#allocation8 + $0x1e0] sm:$0xff]
    %v1053 = vld [vmem:[#allocation8 + $0x1e8] sm:$0xff]
    %v1054 = vld [vmem:[#allocation8 + $0x1f0] sm:$0xff]
    %v1055 = vld [vmem:[#allocation8 + $0x1f8] sm:$0xff]
    %v1056 = vld [vmem:[#allocation8 + $0x200] sm:$0xff]
    %v1057 = vld [vmem:[#allocation8 + $0x208] sm:$0xff]
    %v1058 = vld [vmem:[#allocation8 + $0x210] sm:$0xff]
    %v1059 = vld [vmem:[#allocation8 + $0x218] sm:$0xff]
    %v1060 = vld [vmem:[#allocation8 + $0x220] sm:$0xff]
    %v1061 = vld [vmem:[#allocation8 + $0x228] sm:$0xff]
    %v1062 = vld [vmem:[#allocation8 + $0x230] sm:$0xff]
    %v1063 = vld [vmem:[#allocation8 + $0x238] sm:$0xff]
    %v1064 = vld [vmem:[#allocation8 + $0x240] sm:$0xff]
    %v1065 = vld [vmem:[#allocation8 + $0x248] sm:$0xff]
    %v1066 = vld [vmem:[#allocation8 + $0x250] sm:$0xff]
    %v1067 = vld [vmem:[#allocation8 + $0x258] sm:$0xff]
    %v1068 = vld [vmem:[#allocation8 + $0x260] sm:$0xff]
    %v1069 = vld [vmem:[#allocation8 + $0x268] sm:$0xff]
    %v1070 = vld [vmem:[#allocation8 + $0x270] sm:$0xff]
    %v1071 = vld [vmem:[#allocation8 + $0x278] sm:$0xff]
    %v1072 = vld [vmem:[#allocation8 + $0x280] sm:$0xff]
    %v1073 = vld [vmem:[#allocation8 + $0x288] sm:$0xff]
    %v1074 = vld [vmem:[#allocation8 + $0x290] sm:$0xff]
    %v1075 = vld [vmem:[#allocation8 + $0x298] sm:$0xff]
    %v1076 = vld [vmem:[#allocation8 + $0x2a0] sm:$0xff]
    %v1077 = vld [vmem:[#allocation8 + $0x2a8] sm:$0xff]
    %v1078 = vld [vmem:[#allocation8 + $0x2b0] sm:$0xff]
    %v1079 = vld [vmem:[#allocation8 + $0x2b8] sm:$0xff]
    %v1080 = vld [vmem:[#allocation8 + $0x2c0] sm:$0xff]
    %v1081 = vld [vmem:[#allocation8 + $0x2c8] sm:$0xff]
    %v1082 = vld [vmem:[#allocation8 + $0x2d0] sm:$0xff]
    %v1083 = vld [vmem:[#allocation8 + $0x2d8] sm:$0xff]
    %v1084 = vld [vmem:[#allocation8 + $0x2e0] sm:$0xff]
    %v1085 = vld [vmem:[#allocation8 + $0x2e8] sm:$0xff]
    %v1086 = vld [vmem:[#allocation8 + $0x2f0] sm:$0xff]
    %v1087 = vld [vmem:[#allocation8 + $0x2f8] sm:$0xff]
    %v1088 = vld [vmem:[#allocation8 + $0x300] sm:$0xff]
    %v1089 = vld [vmem:[#allocation8 + $0x308] sm:$0xff]
    %v1090 = vld [vmem:[#allocation8 + $0x310] sm:$0xff]
    %v1091 = vld [vmem:[#allocation8 + $0x318] sm:$0xff]
    %v1092 = vld [vmem:[#allocation8 + $0x320] sm:$0xff]
    %v1093 = vld [vmem:[#allocation8 + $0x328] sm:$0xff]
    %v1094 = vld [vmem:[#allocation8 + $0x330] sm:$0xff]
    %v1095 = vld [vmem:[#allocation8 + $0x338] sm:$0xff]
    %v1096 = vld [vmem:[#allocation8 + $0x340] sm:$0xff]
    %v1097 = vld [vmem:[#allocation8 + $0x348] sm:$0xff]
    %v1098 = vld [vmem:[#allocation8 + $0x350] sm:$0xff]
    %v1099 = vld [vmem:[#allocation8 + $0x358] sm:$0xff]
    %v1100 = vld [vmem:[#allocation8 + $0x360] sm:$0xff]
    %v1101 = vld [vmem:[#allocation8 + $0x368] sm:$0xff]
    %v1102 = vld [vmem:[#allocation8 + $0x370] sm:$0xff]
    %v1103 = vld [vmem:[#allocation8 + $0x378] sm:$0xff]
    %v1104 = vld [vmem:[#allocation8 + $0x380] sm:$0xff]
    %v1105 = vld [vmem:[#allocation8 + $0x388] sm:$0xff]
    %v1106 = vld [vmem:[#allocation8 + $0x390] sm:$0xff]
    %v1107 = vld [vmem:[#allocation8 + $0x398] sm:$0xff]
    %v1108 = vld [vmem:[#allocation8 + $0x3a0] sm:$0xff]
    %v1109 = vld [vmem:[#allocation8 + $0x3a8] sm:$0xff]
    %v1110 = vld [vmem:[#allocation8 + $0x3b0] sm:$0xff]
    %v1111 = vld [vmem:[#allocation8 + $0x3b8] sm:$0xff]
    %v1112 = vld [vmem:[#allocation8 + $0x3c0] sm:$0xff]
    %v1113 = vld [vmem:[#allocation8 + $0x3c8] sm:$0xff]
    %v1114 = vld [vmem:[#allocation8 + $0x3d0] sm:$0xff]
    %v1115 = vld [vmem:[#allocation8 + $0x3d8] sm:$0xff]
    %v1116 = vld [vmem:[#allocation8 + $0x3e0] sm:$0xff]
    %v1117 = vld [vmem:[#allocation8 + $0x3e8] sm:$0xff]
    %v1118 = vld [vmem:[#allocation8 + $0x3f0] sm:$0xff]
    %v1119 = vld [vmem:[#allocation8 + $0x3f8] sm:$0xff]
    %v1120 = vld [vmem:[#allocation8 + $0x400] sm:$0xff]
    %v1121 = vld [vmem:[#allocation8 + $0x408] sm:$0xff]
    %v1122 = vld [vmem:[#allocation8 + $0x410] sm:$0xff]
    %v1123 = vld [vmem:[#allocation8 + $0x418] sm:$0xff]
    %v1124 = vld [vmem:[#allocation8 + $0x420] sm:$0xff]
    %v1125 = vld [vmem:[#allocation8 + $0x428] sm:$0xff]
    %v1126 = vld [vmem:[#allocation8 + $0x430] sm:$0xff]
    %v1127 = vld [vmem:[#allocation8 + $0x438] sm:$0xff]
    %v1128 = vld [vmem:[#allocation8 + $0x440] sm:$0xff]
    %v1129 = vld [vmem:[#allocation8 + $0x448] sm:$0xff]
    %v1130 = vld [vmem:[#allocation8 + $0x450] sm:$0xff]
    %v1131 = vld [vmem:[#allocation8 + $0x458] sm:$0xff]
    %v1132 = vld [vmem:[#allocation8 + $0x460] sm:$0xff]
    %v1133 = vld [vmem:[#allocation8 + $0x468] sm:$0xff]
    %v1134 = vld [vmem:[#allocation8 + $0x470] sm:$0xff]
    %v1135 = vld [vmem:[#allocation8 + $0x478] sm:$0xff]
    %v1136 = vld [vmem:[#allocation8 + $0x480] sm:$0xff]
    %v1137 = vld [vmem:[#allocation8 + $0x488] sm:$0xff]
    %v1138 = vld [vmem:[#allocation8 + $0x490] sm:$0xff]
    %v1139 = vld [vmem:[#allocation8 + $0x498] sm:$0xff]
    %v1140 = vld [vmem:[#allocation8 + $0x4a0] sm:$0xff]
    %v1141 = vld [vmem:[#allocation8 + $0x4a8] sm:$0xff]
    %v1142 = vld [vmem:[#allocation8 + $0x4b0] sm:$0xff]
    %v1143 = vld [vmem:[#allocation8 + $0x4b8] sm:$0xff]
    %v1144 = vld [vmem:[#allocation8 + $0x4c0] sm:$0xff]
    %v1145 = vld [vmem:[#allocation8 + $0x4c8] sm:$0xff]
    %v1146 = vld [vmem:[#allocation8 + $0x4d0] sm:$0xff]
    %v1147 = vld [vmem:[#allocation8 + $0x4d8] sm:$0xff]
    %v1148 = vld [vmem:[#allocation8 + $0x4e0] sm:$0xff]
    %v1149 = vld [vmem:[#allocation8 + $0x4e8] sm:$0xff]
    %v1150 = vld [vmem:[#allocation8 + $0x4f0] sm:$0xff]
    %v1151 = vld [vmem:[#allocation8 + $0x4f8] sm:$0xff]
    %v1152 = vld [vmem:[#allocation8 + $0x500] sm:$0xff]
    %v1153 = vld [vmem:[#allocation8 + $0x508] sm:$0xff]
    %v1154 = vld [vmem:[#allocation8 + $0x510] sm:$0xff]
    %v1155 = vld [vmem:[#allocation8 + $0x518] sm:$0xff]
    %v1156 = vld [vmem:[#allocation8 + $0x520] sm:$0xff]
    %v1157 = vld [vmem:[#allocation8 + $0x528] sm:$0xff]
    %v1158 = vld [vmem:[#allocation8 + $0x530] sm:$0xff]
    %v1159 = vld [vmem:[#allocation8 + $0x538] sm:$0xff]
    %v1160 = vld [vmem:[#allocation8 + $0x540] sm:$0xff]
    %v1161 = vld [vmem:[#allocation8 + $0x548] sm:$0xff]
    %v1162 = vld [vmem:[#allocation8 + $0x550] sm:$0xff]
    %v1163 = vld [vmem:[#allocation8 + $0x558] sm:$0xff]
    %v1164 = vld [vmem:[#allocation8 + $0x560] sm:$0xff]
    %v1165 = vld [vmem:[#allocation8 + $0x568] sm:$0xff]
    %v1166 = vld [vmem:[#allocation8 + $0x570] sm:$0xff]
    %v1167 = vld [vmem:[#allocation8 + $0x578] sm:$0xff]
    %v1168 = vld [vmem:[#allocation8 + $0x580] sm:$0xff]
    %v1169 = vld [vmem:[#allocation8 + $0x588] sm:$0xff]
    %v1170 = vld [vmem:[#allocation8 + $0x590] sm:$0xff]
    %v1171 = vld [vmem:[#allocation8 + $0x598] sm:$0xff]
    %v1172 = vld [vmem:[#allocation8 + $0x5a0] sm:$0xff]
    %v1173 = vld [vmem:[#allocation8 + $0x5a8] sm:$0xff]
    %v1174 = vld [vmem:[#allocation8 + $0x5b0] sm:$0xff]
    %v1175 = vld [vmem:[#allocation8 + $0x5b8] sm:$0xff]
    %v1176 = vld [vmem:[#allocation8 + $0x5c0] sm:$0xff]
    %v1177 = vld [vmem:[#allocation8 + $0x5c8] sm:$0xff]
    %v1178 = vld [vmem:[#allocation8 + $0x5d0] sm:$0xff]
    %v1179 = vld [vmem:[#allocation8 + $0x5d8] sm:$0xff]
    %v1180 = vld [vmem:[#allocation8 + $0x5e0] sm:$0xff]
    %v1181 = vld [vmem:[#allocation8 + $0x5e8] sm:$0xff]
    %v1182 = vld [vmem:[#allocation8 + $0x5f0] sm:$0xff]
    %v1183 = vld [vmem:[#allocation8 + $0x5f8] sm:$0xff]
    %v1184 = vld [vmem:[#allocation8 + $0x600] sm:$0xff]
    %v1185 = vld [vmem:[#allocation8 + $0x608] sm:$0xff]
    %v1186 = vld [vmem:[#allocation8 + $0x610] sm:$0xff]
    %v1187 = vld [vmem:[#allocation8 + $0x618] sm:$0xff]
    %v1188 = vld [vmem:[#allocation8 + $0x620] sm:$0xff]
    %v1189 = vld [vmem:[#allocation8 + $0x628] sm:$0xff]
    %v1190 = vld [vmem:[#allocation8 + $0x630] sm:$0xff]
    %v1191 = vld [vmem:[#allocation8 + $0x638] sm:$0xff]
    %v1192 = vld [vmem:[#allocation8 + $0x640] sm:$0xff]
    %v1193 = vld [vmem:[#allocation8 + $0x648] sm:$0xff]
    %v1194 = vld [vmem:[#allocation8 + $0x650] sm:$0xff]
    %v1195 = vld [vmem:[#allocation8 + $0x658] sm:$0xff]
    %v1196 = vld [vmem:[#allocation8 + $0x660] sm:$0xff]
    %v1197 = vld [vmem:[#allocation8 + $0x668] sm:$0xff]
    %v1198 = vld [vmem:[#allocation8 + $0x670] sm:$0xff]
    %v1199 = vld [vmem:[#allocation8 + $0x678] sm:$0xff]
    %v1200 = vld [vmem:[#allocation8 + $0x680] sm:$0xff]
    %v1201 = vld [vmem:[#allocation8 + $0x688] sm:$0xff]
    %v1202 = vld [vmem:[#allocation8 + $0x690] sm:$0xff]
    %v1203 = vld [vmem:[#allocation8 + $0x698] sm:$0xff]
    %v1204 = vld [vmem:[#allocation8 + $0x6a0] sm:$0xff]
    %v1205 = vld [vmem:[#allocation8 + $0x6a8] sm:$0xff]
    %v1206 = vld [vmem:[#allocation8 + $0x6b0] sm:$0xff]
    %v1207 = vld [vmem:[#allocation8 + $0x6b8] sm:$0xff]
    %v1208 = vld [vmem:[#allocation8 + $0x6c0] sm:$0xff]
    %v1209 = vld [vmem:[#allocation8 + $0x6c8] sm:$0xff]
    %v1210 = vld [vmem:[#allocation8 + $0x6d0] sm:$0xff]
    %v1211 = vld [vmem:[#allocation8 + $0x6d8] sm:$0xff]
    %v1212 = vld [vmem:[#allocation8 + $0x6e0] sm:$0xff]
    %v1213 = vld [vmem:[#allocation8 + $0x6e8] sm:$0xff]
    %v1214 = vld [vmem:[#allocation8 + $0x6f0] sm:$0xff]
    %v1215 = vld [vmem:[#allocation8 + $0x6f8] sm:$0xff]
    %v1216 = vld [vmem:[#allocation8 + $0x700] sm:$0xff]
    %v1217 = vld [vmem:[#allocation8 + $0x708] sm:$0xff]
    %v1218 = vld [vmem:[#allocation8 + $0x710] sm:$0xff]
    %v1219 = vld [vmem:[#allocation8 + $0x718] sm:$0xff]
    %v1220 = vld [vmem:[#allocation8 + $0x720] sm:$0xff]
    %v1221 = vld [vmem:[#allocation8 + $0x728] sm:$0xff]
    %v1222 = vld [vmem:[#allocation8 + $0x730] sm:$0xff]
    %v1223 = vld [vmem:[#allocation8 + $0x738] sm:$0xff]
    %v1224 = vld [vmem:[#allocation8 + $0x740] sm:$0xff]
    %v1225 = vld [vmem:[#allocation8 + $0x748] sm:$0xff]
    %v1226 = vld [vmem:[#allocation8 + $0x750] sm:$0xff]
    %v1227 = vld [vmem:[#allocation8 + $0x758] sm:$0xff]
    %v1228 = vld [vmem:[#allocation8 + $0x760] sm:$0xff]
    %v1229 = vld [vmem:[#allocation8 + $0x768] sm:$0xff]
    %v1230 = vld [vmem:[#allocation8 + $0x770] sm:$0xff]
    %v1231 = vld [vmem:[#allocation8 + $0x778] sm:$0xff]
    %v1232 = vld [vmem:[#allocation8 + $0x780] sm:$0xff]
    %v1233 = vld [vmem:[#allocation8 + $0x788] sm:$0xff]
    %v1234 = vld [vmem:[#allocation8 + $0x790] sm:$0xff]
    %v1235 = vld [vmem:[#allocation8 + $0x798] sm:$0xff]
    %v1236 = vld [vmem:[#allocation8 + $0x7a0] sm:$0xff]
    %v1237 = vld [vmem:[#allocation8 + $0x7a8] sm:$0xff]
    %v1238 = vld [vmem:[#allocation8 + $0x7b0] sm:$0xff]
    %v1239 = vld [vmem:[#allocation8 + $0x7b8] sm:$0xff]
    %v1240 = vld [vmem:[#allocation8 + $0x7c0] sm:$0xff]
    %v1241 = vld [vmem:[#allocation8 + $0x7c8] sm:$0xff]
    %v1242 = vld [vmem:[#allocation8 + $0x7d0] sm:$0xff]
    %v1243 = vld [vmem:[#allocation8 + $0x7d8] sm:$0xff]
    %v1244 = vld [vmem:[#allocation8 + $0x7e0] sm:$0xff]
    %v1245 = vld [vmem:[#allocation8 + $0x7e8] sm:$0xff]
    %v1246 = vld [vmem:[#allocation8 + $0x7f0] sm:$0xff]
    %v1247 = vld [vmem:[#allocation8 + $0x7f8] sm:$0xff]
    %v1248 = vld [vmem:[#allocation8 + $0x800] sm:$0xff]
    %v1249 = vld [vmem:[#allocation8 + $0x808] sm:$0xff]
    %v1250 = vld [vmem:[#allocation8 + $0x810] sm:$0xff]
    %v1251 = vld [vmem:[#allocation8 + $0x818] sm:$0xff]
    %v1252 = vld [vmem:[#allocation8 + $0x820] sm:$0xff]
    %v1253 = vld [vmem:[#allocation8 + $0x828] sm:$0xff]
    %v1254 = vld [vmem:[#allocation8 + $0x830] sm:$0xff]
    %v1255 = vld [vmem:[#allocation8 + $0x838] sm:$0xff]
    %v1256 = vld [vmem:[#allocation8 + $0x840] sm:$0xff]
    %v1257 = vld [vmem:[#allocation8 + $0x848] sm:$0xff]
    %v1258 = vld [vmem:[#allocation8 + $0x850] sm:$0xff]
    %v1259 = vld [vmem:[#allocation8 + $0x858] sm:$0xff]
    %v1260 = vld [vmem:[#allocation8 + $0x860] sm:$0xff]
    %v1261 = vld [vmem:[#allocation8 + $0x868] sm:$0xff]
    %v1262 = vld [vmem:[#allocation8 + $0x870] sm:$0xff]
    %v1263 = vld [vmem:[#allocation8 + $0x878] sm:$0xff]
    %v1264 = vld [vmem:[#allocation8 + $0x880] sm:$0xff]
    %v1265 = vld [vmem:[#allocation8 + $0x888] sm:$0xff]
    %v1266 = vld [vmem:[#allocation8 + $0x890] sm:$0xff]
    %v1267 = vld [vmem:[#allocation8 + $0x898] sm:$0xff]
    %v1268 = vld [vmem:[#allocation8 + $0x8a0] sm:$0xff]
    %v1269 = vld [vmem:[#allocation8 + $0x8a8] sm:$0xff]
    %v1270 = vld [vmem:[#allocation8 + $0x8b0] sm:$0xff]
    %v1271 = vld [vmem:[#allocation8 + $0x8b8] sm:$0xff]
    %v1272 = vld [vmem:[#allocation8 + $0x8c0] sm:$0xff]
    %v1273 = vld [vmem:[#allocation8 + $0x8c8] sm:$0xff]
    %v1274 = vld [vmem:[#allocation8 + $0x8d0] sm:$0xff]
    %v1275 = vld [vmem:[#allocation8 + $0x8d8] sm:$0xff]
    %v1276 = vld [vmem:[#allocation8 + $0x8e0] sm:$0xff]
    %v1277 = vld [vmem:[#allocation8 + $0x8e8] sm:$0xff]
    %v1278 = vld [vmem:[#allocation8 + $0x8f0] sm:$0xff]
    %v1279 = vld [vmem:[#allocation8 + $0x8f8] sm:$0xff]
    %v1280 = vld [vmem:[#allocation8 + $0x900] sm:$0xff]
    %v1281 = vld [vmem:[#allocation8 + $0x908] sm:$0xff]
    %v1282 = vld [vmem:[#allocation8 + $0x910] sm:$0xff]
    %v1283 = vld [vmem:[#allocation8 + $0x918] sm:$0xff]
    %v1284 = vld [vmem:[#allocation8 + $0x920] sm:$0xff]
    %v1285 = vld [vmem:[#allocation8 + $0x928] sm:$0xff]
    %v1286 = vld [vmem:[#allocation8 + $0x930] sm:$0xff]
    %v1287 = vld [vmem:[#allocation8 + $0x938] sm:$0xff]
    %v1288 = vld [vmem:[#allocation8 + $0x940] sm:$0xff]
    %v1289 = vld [vmem:[#allocation8 + $0x948] sm:$0xff]
    %v1290 = vld [vmem:[#allocation8 + $0x950] sm:$0xff]
    %v1291 = vld [vmem:[#allocation8 + $0x958] sm:$0xff]
    %v1292 = vld [vmem:[#allocation8 + $0x960] sm:$0xff]
    %v1293 = vld [vmem:[#allocation8 + $0x968] sm:$0xff]
    %v1294 = vld [vmem:[#allocation8 + $0x970] sm:$0xff]
    %v1295 = vld [vmem:[#allocation8 + $0x978] sm:$0xff]
    %v1296 = vld [vmem:[#allocation8 + $0x980] sm:$0xff]
    %v1297 = vld [vmem:[#allocation8 + $0x988] sm:$0xff]
    %v1298 = vld [vmem:[#allocation8 + $0x990] sm:$0xff]
    %v1299 = vld [vmem:[#allocation8 + $0x998] sm:$0xff]
    %v1300 = vld [vmem:[#allocation8 + $0x9a0] sm:$0xff]
    %v1301 = vld [vmem:[#allocation8 + $0x9a8] sm:$0xff]
    %v1302 = vld [vmem:[#allocation8 + $0x9b0] sm:$0xff]
    %v1303 = vld [vmem:[#allocation8 + $0x9b8] sm:$0xff]
    %v1304 = vld [vmem:[#allocation8 + $0x9c0] sm:$0xff]
    %v1305 = vld [vmem:[#allocation8 + $0x9c8] sm:$0xff]
    %v1306 = vld [vmem:[#allocation8 + $0x9d0] sm:$0xff]
    %v1307 = vld [vmem:[#allocation8 + $0x9d8] sm:$0xff]
    %v1308 = vld [vmem:[#allocation8 + $0x9e0] sm:$0xff]
    %v1309 = vld [vmem:[#allocation8 + $0x9e8] sm:$0xff]
    %v1310 = vld [vmem:[#allocation8 + $0x9f0] sm:$0xff]
    %v1311 = vld [vmem:[#allocation8 + $0x9f8] sm:$0xff]
    %v1312 = vld [vmem:[#allocation8 + $0xa00] sm:$0xff]
    %v1313 = vld [vmem:[#allocation8 + $0xa08] sm:$0xff]
    %v1314 = vld [vmem:[#allocation8 + $0xa10] sm:$0xff]
    %v1315 = vld [vmem:[#allocation8 + $0xa18] sm:$0xff]
    %v1316 = vld [vmem:[#allocation8 + $0xa20] sm:$0xff]
    %v1317 = vld [vmem:[#allocation8 + $0xa28] sm:$0xff]
    %v1318 = vld [vmem:[#allocation8 + $0xa30] sm:$0xff]
    %v1319 = vld [vmem:[#allocation8 + $0xa38] sm:$0xff]
    %v1320 = vld [vmem:[#allocation8 + $0xa40] sm:$0xff]
    %v1321 = vld [vmem:[#allocation8 + $0xa48] sm:$0xff]
    %v1322 = vld [vmem:[#allocation8 + $0xa50] sm:$0xff]
    %v1323 = vld [vmem:[#allocation8 + $0xa58] sm:$0xff]
    %v1324 = vld [vmem:[#allocation8 + $0xa60] sm:$0xff]
    %v1325 = vld [vmem:[#allocation8 + $0xa68] sm:$0xff]
    %v1326 = vld [vmem:[#allocation8 + $0xa70] sm:$0xff]
    %v1327 = vld [vmem:[#allocation8 + $0xa78] sm:$0xff]
    %v1328 = vld [vmem:[#allocation8 + $0xa80] sm:$0xff]
    %v1329 = vld [vmem:[#allocation8 + $0xa88] sm:$0xff]
    %v1330 = vld [vmem:[#allocation8 + $0xa90] sm:$0xff]
    %v1331 = vld [vmem:[#allocation8 + $0xa98] sm:$0xff]
    %v1332 = vld [vmem:[#allocation8 + $0xaa0] sm:$0xff]
    %v1333 = vld [vmem:[#allocation8 + $0xaa8] sm:$0xff]
    %v1334 = vld [vmem:[#allocation8 + $0xab0] sm:$0xff]
    %v1335 = vld [vmem:[#allocation8 + $0xab8] sm:$0xff]
    %v1336 = vld [vmem:[#allocation8 + $0xac0] sm:$0xff]
    %v1337 = vld [vmem:[#allocation8 + $0xac8] sm:$0xff]
    %v1338 = vld [vmem:[#allocation8 + $0xad0] sm:$0xff]
    %v1339 = vld [vmem:[#allocation8 + $0xad8] sm:$0xff]
    %v1340 = vld [vmem:[#allocation8 + $0xae0] sm:$0xff]
    %v1341 = vld [vmem:[#allocation8 + $0xae8] sm:$0xff]
    %v1342 = vld [vmem:[#allocation8 + $0xaf0] sm:$0xff]
    %v1343 = vld [vmem:[#allocation8 + $0xaf8] sm:$0xff]
    %v1344 = vld [vmem:[#allocation8 + $0xb00] sm:$0xff]
    %v1345 = vld [vmem:[#allocation8 + $0xb08] sm:$0xff]
    %v1346 = vld [vmem:[#allocation8 + $0xb10] sm:$0xff]
    %v1347 = vld [vmem:[#allocation8 + $0xb18] sm:$0xff]
    %v1348 = vld [vmem:[#allocation8 + $0xb20] sm:$0xff]
    %v1349 = vld [vmem:[#allocation8 + $0xb28] sm:$0xff]
    %v1350 = vld [vmem:[#allocation8 + $0xb30] sm:$0xff]
    %v1351 = vld [vmem:[#allocation8 + $0xb38] sm:$0xff]
    %v1352 = vld [vmem:[#allocation8 + $0xb40] sm:$0xff]
    %v1353 = vld [vmem:[#allocation8 + $0xb48] sm:$0xff]
    %v1354 = vld [vmem:[#allocation8 + $0xb50] sm:$0xff]
    %v1355 = vld [vmem:[#allocation8 + $0xb58] sm:$0xff]
    %v1356 = vld [vmem:[#allocation8 + $0xb60] sm:$0xff]
    %v1357 = vld [vmem:[#allocation8 + $0xb68] sm:$0xff]
    %v1358 = vld [vmem:[#allocation8 + $0xb70] sm:$0xff]
    %v1359 = vld [vmem:[#allocation8 + $0xb78] sm:$0xff]
    %v1360 = vld [vmem:[#allocation8 + $0xb80] sm:$0xff]
    %v1361 = vld [vmem:[#allocation8 + $0xb88] sm:$0xff]
    %v1362 = vld [vmem:[#allocation8 + $0xb90] sm:$0xff]
    %v1363 = vld [vmem:[#allocation8 + $0xb98] sm:$0xff]
    %v1364 = vld [vmem:[#allocation8 + $0xba0] sm:$0xff]
    %v1365 = vld [vmem:[#allocation8 + $0xba8] sm:$0xff]
    %v1366 = vld [vmem:[#allocation8 + $0xbb0] sm:$0xff]
    %v1367 = vld [vmem:[#allocation8 + $0xbb8] sm:$0xff]
    %v1368 = vld [vmem:[#allocation8 + $0xbc0] sm:$0xff]
    %v1369 = vld [vmem:[#allocation8 + $0xbc8] sm:$0xff]
    %v1370 = vld [vmem:[#allocation8 + $0xbd0] sm:$0xff]
    %v1371 = vld [vmem:[#allocation8 + $0xbd8] sm:$0xff]
    %v1372 = vld [vmem:[#allocation8 + $0xbe0] sm:$0xff]
    %v1373 = vld [vmem:[#allocation8 + $0xbe8] sm:$0xff]
    %v1374 = vld [vmem:[#allocation8 + $0xbf0] sm:$0xff]
    %v1375 = vld [vmem:[#allocation8 + $0xbf8] sm:$0xff]
    %v1376 = vld [vmem:[#allocation8 + $0xc00] sm:$0xff]
    %v1377 = vld [vmem:[#allocation8 + $0xc08] sm:$0xff]
    %v1378 = vld [vmem:[#allocation8 + $0xc10] sm:$0xff]
    %v1379 = vld [vmem:[#allocation8 + $0xc18] sm:$0xff]
    %v1380 = vld [vmem:[#allocation8 + $0xc20] sm:$0xff]
    %v1381 = vld [vmem:[#allocation8 + $0xc28] sm:$0xff]
    %v1382 = vld [vmem:[#allocation8 + $0xc30] sm:$0xff]
    %v1383 = vld [vmem:[#allocation8 + $0xc38] sm:$0xff]
    %v1384 = vld [vmem:[#allocation8 + $0xc40] sm:$0xff]
    %v1385 = vld [vmem:[#allocation8 + $0xc48] sm:$0xff]
    %v1386 = vld [vmem:[#allocation8 + $0xc50] sm:$0xff]
    %v1387 = vld [vmem:[#allocation8 + $0xc58] sm:$0xff]
    %v1388 = vld [vmem:[#allocation8 + $0xc60] sm:$0xff]
    %v1389 = vld [vmem:[#allocation8 + $0xc68] sm:$0xff]
    %v1390 = vld [vmem:[#allocation8 + $0xc70] sm:$0xff]
    %v1391 = vld [vmem:[#allocation8 + $0xc78] sm:$0xff]
    %v1392 = vld [vmem:[#allocation8 + $0xc80] sm:$0xff]
    %v1393 = vld [vmem:[#allocation8 + $0xc88] sm:$0xff]
    %v1394 = vld [vmem:[#allocation8 + $0xc90] sm:$0xff]
    %v1395 = vld [vmem:[#allocation8 + $0xc98] sm:$0xff]
    %v1396 = vld [vmem:[#allocation8 + $0xca0] sm:$0xff]
    %v1397 = vld [vmem:[#allocation8 + $0xca8] sm:$0xff]
    %v1398 = vld [vmem:[#allocation8 + $0xcb0] sm:$0xff]
    %v1399 = vld [vmem:[#allocation8 + $0xcb8] sm:$0xff]
    %v1400 = vld [vmem:[#allocation8 + $0xcc0] sm:$0xff]
    %v1401 = vld [vmem:[#allocation8 + $0xcc8] sm:$0xff]
    %v1402 = vld [vmem:[#allocation8 + $0xcd0] sm:$0xff]
    %v1403 = vld [vmem:[#allocation8 + $0xcd8] sm:$0xff]
    %v1404 = vld [vmem:[#allocation8 + $0xce0] sm:$0xff]
    %v1405 = vld [vmem:[#allocation8 + $0xce8] sm:$0xff]
    %v1406 = vld [vmem:[#allocation8 + $0xcf0] sm:$0xff]
    %v1407 = vld [vmem:[#allocation8 + $0xcf8] sm:$0xff]
    %v1408 = vld [vmem:[#allocation8 + $0xd00] sm:$0xff]
    %v1409 = vld [vmem:[#allocation8 + $0xd08] sm:$0xff]
    %v1410 = vld [vmem:[#allocation8 + $0xd10] sm:$0xff]
    %v1411 = vld [vmem:[#allocation8 + $0xd18] sm:$0xff]
    %v1412 = vld [vmem:[#allocation8 + $0xd20] sm:$0xff]
    %v1413 = vld [vmem:[#allocation8 + $0xd28] sm:$0xff]
    %v1414 = vld [vmem:[#allocation8 + $0xd30] sm:$0xff]
    %v1415 = vld [vmem:[#allocation8 + $0xd38] sm:$0xff]
    %v1416 = vld [vmem:[#allocation8 + $0xd40] sm:$0xff]
    %v1417 = vld [vmem:[#allocation8 + $0xd48] sm:$0xff]
    %v1418 = vld [vmem:[#allocation8 + $0xd50] sm:$0xff]
    %v1419 = vld [vmem:[#allocation8 + $0xd58] sm:$0xff]
    %v1420 = vld [vmem:[#allocation8 + $0xd60] sm:$0xff]
    %v1421 = vld [vmem:[#allocation8 + $0xd68] sm:$0xff]
    %v1422 = vld [vmem:[#allocation8 + $0xd70] sm:$0xff]
    %v1423 = vld [vmem:[#allocation8 + $0xd78] sm:$0xff]
    %v1424 = vld [vmem:[#allocation8 + $0xd80] sm:$0xff]
    %v1425 = vld [vmem:[#allocation8 + $0xd88] sm:$0xff]
    %v1426 = vld [vmem:[#allocation8 + $0xd90] sm:$0xff]
    %v1427 = vld [vmem:[#allocation8 + $0xd98] sm:$0xff]
    %v1428 = vld [vmem:[#allocation8 + $0xda0] sm:$0xff]
    %v1429 = vld [vmem:[#allocation8 + $0xda8] sm:$0xff]
    %v1430 = vld [vmem:[#allocation8 + $0xdb0] sm:$0xff]
    %v1431 = vld [vmem:[#allocation8 + $0xdb8] sm:$0xff]
    %v1432 = vld [vmem:[#allocation8 + $0xdc0] sm:$0xff]
    %v1433 = vld [vmem:[#allocation8 + $0xdc8] sm:$0xff]
    %v1434 = vld [vmem:[#allocation8 + $0xdd0] sm:$0xff]
    %v1435 = vld [vmem:[#allocation8 + $0xdd8] sm:$0xff]
    %v1436 = vld [vmem:[#allocation8 + $0xde0] sm:$0xff]
    %v1437 = vld [vmem:[#allocation8 + $0xde8] sm:$0xff]
    %v1438 = vld [vmem:[#allocation8 + $0xdf0] sm:$0xff]
    %v1439 = vld [vmem:[#allocation8 + $0xdf8] sm:$0xff]
    %v1440 = vld [vmem:[#allocation8 + $0xe00] sm:$0xff]
    %v1441 = vld [vmem:[#allocation8 + $0xe08] sm:$0xff]
    %v1442 = vld [vmem:[#allocation8 + $0xe10] sm:$0xff]
    %v1443 = vld [vmem:[#allocation8 + $0xe18] sm:$0xff]
    %v1444 = vld [vmem:[#allocation8 + $0xe20] sm:$0xff]
    %v1445 = vld [vmem:[#allocation8 + $0xe28] sm:$0xff]
    %v1446 = vld [vmem:[#allocation8 + $0xe30] sm:$0xff]
    %v1447 = vld [vmem:[#allocation8 + $0xe38] sm:$0xff]
    %v1448 = vld [vmem:[#allocation8 + $0xe40] sm:$0xff]
    %v1449 = vld [vmem:[#allocation8 + $0xe48] sm:$0xff]
    %v1450 = vld [vmem:[#allocation8 + $0xe50] sm:$0xff]
    %v1451 = vld [vmem:[#allocation8 + $0xe58] sm:$0xff]
    %v1452 = vld [vmem:[#allocation8 + $0xe60] sm:$0xff]
    %v1453 = vld [vmem:[#allocation8 + $0xe68] sm:$0xff]
    %v1454 = vld [vmem:[#allocation8 + $0xe70] sm:$0xff]
    %v1455 = vld [vmem:[#allocation8 + $0xe78] sm:$0xff]
    %v1456 = vld [vmem:[#allocation8 + $0xe80] sm:$0xff]
    %v1457 = vld [vmem:[#allocation8 + $0xe88] sm:$0xff]
    %v1458 = vld [vmem:[#allocation8 + $0xe90] sm:$0xff]
    %v1459 = vld [vmem:[#allocation8 + $0xe98] sm:$0xff]
    %v1460 = vld [vmem:[#allocation8 + $0xea0] sm:$0xff]
    %v1461 = vld [vmem:[#allocation8 + $0xea8] sm:$0xff]
    %v1462 = vld [vmem:[#allocation8 + $0xeb0] sm:$0xff]
    %v1463 = vld [vmem:[#allocation8 + $0xeb8] sm:$0xff]
    %v1464 = vld [vmem:[#allocation8 + $0xec0] sm:$0xff]
    %v1465 = vld [vmem:[#allocation8 + $0xec8] sm:$0xff]
    %v1466 = vld [vmem:[#allocation8 + $0xed0] sm:$0xff]
    %v1467 = vld [vmem:[#allocation8 + $0xed8] sm:$0xff]
    %v1468 = vld [vmem:[#allocation8 + $0xee0] sm:$0xff]
    %v1469 = vld [vmem:[#allocation8 + $0xee8] sm:$0xff]
    %v1470 = vld [vmem:[#allocation8 + $0xef0] sm:$0xff]
    %v1471 = vld [vmem:[#allocation8 + $0xef8] sm:$0xff]
    %v1472 = vld [vmem:[#allocation8 + $0xf00] sm:$0xff]
    %v1473 = vld [vmem:[#allocation8 + $0xf08] sm:$0xff]
    %v1474 = vld [vmem:[#allocation8 + $0xf10] sm:$0xff]
    %v1475 = vld [vmem:[#allocation8 + $0xf18] sm:$0xff]
    %v1476 = vld [vmem:[#allocation8 + $0xf20] sm:$0xff]
    %v1477 = vld [vmem:[#allocation8 + $0xf28] sm:$0xff]
    %v1478 = vld [vmem:[#allocation8 + $0xf30] sm:$0xff]
    %v1479 = vld [vmem:[#allocation8 + $0xf38] sm:$0xff]
    %v1480 = vld [vmem:[#allocation8 + $0xf40] sm:$0xff]
    %v1481 = vld [vmem:[#allocation8 + $0xf48] sm:$0xff]
    %v1482 = vld [vmem:[#allocation8 + $0xf50] sm:$0xff]
    %v1483 = vld [vmem:[#allocation8 + $0xf58] sm:$0xff]
    %v1484 = vld [vmem:[#allocation8 + $0xf60] sm:$0xff]
    %v1485 = vld [vmem:[#allocation8 + $0xf68] sm:$0xff]
    %v1486 = vld [vmem:[#allocation8 + $0xf70] sm:$0xff]
    %v1487 = vld [vmem:[#allocation8 + $0xf78] sm:$0xff]
    %v1488 = vld [vmem:[#allocation8 + $0xf80] sm:$0xff]
    %v1489 = vld [vmem:[#allocation8 + $0xf88] sm:$0xff]
    %v1490 = vld [vmem:[#allocation8 + $0xf90] sm:$0xff]
    %v1491 = vld [vmem:[#allocation8 + $0xf98] sm:$0xff]
    %v1492 = vld [vmem:[#allocation8 + $0xfa0] sm:$0xff]
    %v1493 = vld [vmem:[#allocation8 + $0xfa8] sm:$0xff]
    %v1494 = vld [vmem:[#allocation8 + $0xfb0] sm:$0xff]
    %v1495 = vld [vmem:[#allocation8 + $0xfb8] sm:$0xff]
    %v1496 = vld [vmem:[#allocation8 + $0xfc0] sm:$0xff]
    %v1497 = vld [vmem:[#allocation8 + $0xfc8] sm:$0xff]
    %v1498 = vld [vmem:[#allocation8 + $0xfd0] sm:$0xff]
    %v1499 = vld [vmem:[#allocation8 + $0xfd8] sm:$0xff]
    %v1500 = vld [vmem:[#allocation8 + $0xfe0] sm:$0xff]
    %v1501 = vld [vmem:[#allocation8 + $0xfe8] sm:$0xff]
    %v1502 = vld [vmem:[#allocation8 + $0xff0] sm:$0xff]
    %v1503 = vld [vmem:[#allocation8 + $0xff8] sm:$0xff]
    %v1504 = vld [vmem:[#allocation10] sm:$0xff]
    %v1506 = vlaneseq
    %v1507 = vshrl.u32 %v1506, 7
    %v1508 = vsub.s32 0, %v1507
    %v1509 = vrot.slane %v1504, %v1508
    %v1510 = vlaneseq
    %v1511 = vshrl.u32 %v1510, 7
    %v1512 = vsub.s32 1, %v1511
    %v1513 = vrot.slane %v1504, %v1512
    %v1514 = vlaneseq
    %v1515 = vshrl.u32 %v1514, 7
    %v1516 = vsub.s32 2, %v1515
    %v1517 = vrot.slane %v1504, %v1516
    %v1518 = vlaneseq
    %v1519 = vshrl.u32 %v1518, 7
    %v1520 = vsub.s32 3, %v1519
    %v1521 = vrot.slane %v1504, %v1520
    %v1522 = vlaneseq
    %v1523 = vshrl.u32 %v1522, 7
    %v1524 = vsub.s32 4, %v1523
    %v1525 = vrot.slane %v1504, %v1524
    %v1526 = vlaneseq
    %v1527 = vshrl.u32 %v1526, 7
    %v1528 = vsub.s32 5, %v1527
    %v1529 = vrot.slane %v1504, %v1528
    %v1530 = vlaneseq
    %v1531 = vshrl.u32 %v1530, 7
    %v1532 = vsub.s32 6, %v1531
    %v1533 = vrot.slane %v1504, %v1532
    %v1534 = vlaneseq
    %v1535 = vshrl.u32 %v1534, 7
    %v1536 = vsub.s32 7, %v1535
    %v1537 = vrot.slane %v1504, %v1536
    %v2058 = vunpack.c.l.b16 %v992
    %v2059 = vunpack.c.h.b16 %v992
    %v2060 = vunpack.c.l.b16 %v993
    %v2061 = vunpack.c.h.b16 %v993
    %v2062 = vunpack.c.l.b16 %v994
    %v2063 = vunpack.c.h.b16 %v994
    %v2064 = vunpack.c.l.b16 %v995
    %v2065 = vunpack.c.h.b16 %v995
    %v2066 = vunpack.c.l.b16 %v996
    %v2067 = vunpack.c.h.b16 %v996
    %v2068 = vunpack.c.l.b16 %v997
    %v2069 = vunpack.c.h.b16 %v997
    %v2070 = vunpack.c.l.b16 %v998
    %v2071 = vunpack.c.h.b16 %v998
    %v2072 = vunpack.c.l.b16 %v999
    %v2073 = vunpack.c.h.b16 %v999
    %v2074 = vunpack.c.l.b16 %v1000
    %v2075 = vunpack.c.h.b16 %v1000
    %v2076 = vunpack.c.l.b16 %v1001
    %v2077 = vunpack.c.h.b16 %v1001
    %v2078 = vunpack.c.l.b16 %v1002
    %v2079 = vunpack.c.h.b16 %v1002
    %v2080 = vunpack.c.l.b16 %v1003
    %v2081 = vunpack.c.h.b16 %v1003
    %v2082 = vunpack.c.l.b16 %v1004
    %v2083 = vunpack.c.h.b16 %v1004
    %v2084 = vunpack.c.l.b16 %v1005
    %v2085 = vunpack.c.h.b16 %v1005
    %v2086 = vunpack.c.l.b16 %v1006
    %v2087 = vunpack.c.h.b16 %v1006
    %v2088 = vunpack.c.l.b16 %v1007
    %v2089 = vunpack.c.h.b16 %v1007
    %v2090 = vunpack.c.l.b16 %v1008
    %v2091 = vunpack.c.h.b16 %v1008
    %v2092 = vunpack.c.l.b16 %v1009
    %v2093 = vunpack.c.h.b16 %v1009
    %v2094 = vunpack.c.l.b16 %v1010
    %v2095 = vunpack.c.h.b16 %v1010
    %v2096 = vunpack.c.l.b16 %v1011
    %v2097 = vunpack.c.h.b16 %v1011
    %v2098 = vunpack.c.l.b16 %v1012
    %v2099 = vunpack.c.h.b16 %v1012
    %v2100 = vunpack.c.l.b16 %v1013
    %v2101 = vunpack.c.h.b16 %v1013
    %v2102 = vunpack.c.l.b16 %v1014
    %v2103 = vunpack.c.h.b16 %v1014
    %v2104 = vunpack.c.l.b16 %v1015
    %v2105 = vunpack.c.h.b16 %v1015
    %v2106 = vunpack.c.l.b16 %v1016
    %v2107 = vunpack.c.h.b16 %v1016
    %v2108 = vunpack.c.l.b16 %v1017
    %v2109 = vunpack.c.h.b16 %v1017
    %v2110 = vunpack.c.l.b16 %v1018
    %v2111 = vunpack.c.h.b16 %v1018
    %v2112 = vunpack.c.l.b16 %v1019
    %v2113 = vunpack.c.h.b16 %v1019
    %v2114 = vunpack.c.l.b16 %v1020
    %v2115 = vunpack.c.h.b16 %v1020
    %v2116 = vunpack.c.l.b16 %v1021
    %v2117 = vunpack.c.h.b16 %v1021
    %v2118 = vunpack.c.l.b16 %v1022
    %v2119 = vunpack.c.h.b16 %v1022
    %v2120 = vunpack.c.l.b16 %v1023
    %v2121 = vunpack.c.h.b16 %v1023
    %v2122 = vunpack.c.l.b16 %v1024
    %v2123 = vunpack.c.h.b16 %v1024
    %v2124 = vunpack.c.l.b16 %v1025
    %v2125 = vunpack.c.h.b16 %v1025
    %v2126 = vunpack.c.l.b16 %v1026
    %v2127 = vunpack.c.h.b16 %v1026
    %v2128 = vunpack.c.l.b16 %v1027
    %v2129 = vunpack.c.h.b16 %v1027
    %v2130 = vunpack.c.l.b16 %v1028
    %v2131 = vunpack.c.h.b16 %v1028
    %v2132 = vunpack.c.l.b16 %v1029
    %v2133 = vunpack.c.h.b16 %v1029
    %v2134 = vunpack.c.l.b16 %v1030
    %v2135 = vunpack.c.h.b16 %v1030
    %v2136 = vunpack.c.l.b16 %v1031
    %v2137 = vunpack.c.h.b16 %v1031
    %v2138 = vunpack.c.l.b16 %v1032
    %v2139 = vunpack.c.h.b16 %v1032
    %v2140 = vunpack.c.l.b16 %v1033
    %v2141 = vunpack.c.h.b16 %v1033
    %v2142 = vunpack.c.l.b16 %v1034
    %v2143 = vunpack.c.h.b16 %v1034
    %v2144 = vunpack.c.l.b16 %v1035
    %v2145 = vunpack.c.h.b16 %v1035
    %v2146 = vunpack.c.l.b16 %v1036
    %v2147 = vunpack.c.h.b16 %v1036
    %v2148 = vunpack.c.l.b16 %v1037
    %v2149 = vunpack.c.h.b16 %v1037
    %v2150 = vunpack.c.l.b16 %v1038
    %v2151 = vunpack.c.h.b16 %v1038
    %v2152 = vunpack.c.l.b16 %v1039
    %v2153 = vunpack.c.h.b16 %v1039
    %v2154 = vunpack.c.l.b16 %v1040
    %v2155 = vunpack.c.h.b16 %v1040
    %v2156 = vunpack.c.l.b16 %v1041
    %v2157 = vunpack.c.h.b16 %v1041
    %v2158 = vunpack.c.l.b16 %v1042
    %v2159 = vunpack.c.h.b16 %v1042
    %v2160 = vunpack.c.l.b16 %v1043
    %v2161 = vunpack.c.h.b16 %v1043
    %v2162 = vunpack.c.l.b16 %v1044
    %v2163 = vunpack.c.h.b16 %v1044
    %v2164 = vunpack.c.l.b16 %v1045
    %v2165 = vunpack.c.h.b16 %v1045
    %v2166 = vunpack.c.l.b16 %v1046
    %v2167 = vunpack.c.h.b16 %v1046
    %v2168 = vunpack.c.l.b16 %v1047
    %v2169 = vunpack.c.h.b16 %v1047
    %v2170 = vunpack.c.l.b16 %v1048
    %v2171 = vunpack.c.h.b16 %v1048
    %v2172 = vunpack.c.l.b16 %v1049
    %v2173 = vunpack.c.h.b16 %v1049
    %v2174 = vunpack.c.l.b16 %v1050
    %v2175 = vunpack.c.h.b16 %v1050
    %v2176 = vunpack.c.l.b16 %v1051
    %v2177 = vunpack.c.h.b16 %v1051
    %v2178 = vunpack.c.l.b16 %v1052
    %v2179 = vunpack.c.h.b16 %v1052
    %v2180 = vunpack.c.l.b16 %v1053
    %v2181 = vunpack.c.h.b16 %v1053
    %v2182 = vunpack.c.l.b16 %v1054
    %v2183 = vunpack.c.h.b16 %v1054
    %v2184 = vunpack.c.l.b16 %v1055
    %v2185 = vunpack.c.h.b16 %v1055
    %v2186 = vunpack.c.l.b16 %v1056
    %v2187 = vunpack.c.h.b16 %v1056
    %v2188 = vunpack.c.l.b16 %v1057
    %v2189 = vunpack.c.h.b16 %v1057
    %v2190 = vunpack.c.l.b16 %v1058
    %v2191 = vunpack.c.h.b16 %v1058
    %v2192 = vunpack.c.l.b16 %v1059
    %v2193 = vunpack.c.h.b16 %v1059
    %v2194 = vunpack.c.l.b16 %v1060
    %v2195 = vunpack.c.h.b16 %v1060
    %v2196 = vunpack.c.l.b16 %v1061
    %v2197 = vunpack.c.h.b16 %v1061
    %v2198 = vunpack.c.l.b16 %v1062
    %v2199 = vunpack.c.h.b16 %v1062
    %v2200 = vunpack.c.l.b16 %v1063
    %v2201 = vunpack.c.h.b16 %v1063
    %v2202 = vunpack.c.l.b16 %v1064
    %v2203 = vunpack.c.h.b16 %v1064
    %v2204 = vunpack.c.l.b16 %v1065
    %v2205 = vunpack.c.h.b16 %v1065
    %v2206 = vunpack.c.l.b16 %v1066
    %v2207 = vunpack.c.h.b16 %v1066
    %v2208 = vunpack.c.l.b16 %v1067
    %v2209 = vunpack.c.h.b16 %v1067
    %v2210 = vunpack.c.l.b16 %v1068
    %v2211 = vunpack.c.h.b16 %v1068
    %v2212 = vunpack.c.l.b16 %v1069
    %v2213 = vunpack.c.h.b16 %v1069
    %v2214 = vunpack.c.l.b16 %v1070
    %v2215 = vunpack.c.h.b16 %v1070
    %v2216 = vunpack.c.l.b16 %v1071
    %v2217 = vunpack.c.h.b16 %v1071
    %v2218 = vunpack.c.l.b16 %v1072
    %v2219 = vunpack.c.h.b16 %v1072
    %v2220 = vunpack.c.l.b16 %v1073
    %v2221 = vunpack.c.h.b16 %v1073
    %v2222 = vunpack.c.l.b16 %v1074
    %v2223 = vunpack.c.h.b16 %v1074
    %v2224 = vunpack.c.l.b16 %v1075
    %v2225 = vunpack.c.h.b16 %v1075
    %v2226 = vunpack.c.l.b16 %v1076
    %v2227 = vunpack.c.h.b16 %v1076
    %v2228 = vunpack.c.l.b16 %v1077
    %v2229 = vunpack.c.h.b16 %v1077
    %v2230 = vunpack.c.l.b16 %v1078
    %v2231 = vunpack.c.h.b16 %v1078
    %v2232 = vunpack.c.l.b16 %v1079
    %v2233 = vunpack.c.h.b16 %v1079
    %v2234 = vunpack.c.l.b16 %v1080
    %v2235 = vunpack.c.h.b16 %v1080
    %v2236 = vunpack.c.l.b16 %v1081
    %v2237 = vunpack.c.h.b16 %v1081
    %v2238 = vunpack.c.l.b16 %v1082
    %v2239 = vunpack.c.h.b16 %v1082
    %v2240 = vunpack.c.l.b16 %v1083
    %v2241 = vunpack.c.h.b16 %v1083
    %v2242 = vunpack.c.l.b16 %v1084
    %v2243 = vunpack.c.h.b16 %v1084
    %v2244 = vunpack.c.l.b16 %v1085
    %v2245 = vunpack.c.h.b16 %v1085
    %v2246 = vunpack.c.l.b16 %v1086
    %v2247 = vunpack.c.h.b16 %v1086
    %v2248 = vunpack.c.l.b16 %v1087
    %v2249 = vunpack.c.h.b16 %v1087
    %v2250 = vunpack.c.l.b16 %v1088
    %v2251 = vunpack.c.h.b16 %v1088
    %v2252 = vunpack.c.l.b16 %v1089
    %v2253 = vunpack.c.h.b16 %v1089
    %v2254 = vunpack.c.l.b16 %v1090
    %v2255 = vunpack.c.h.b16 %v1090
    %v2256 = vunpack.c.l.b16 %v1091
    %v2257 = vunpack.c.h.b16 %v1091
    %v2258 = vunpack.c.l.b16 %v1092
    %v2259 = vunpack.c.h.b16 %v1092
    %v2260 = vunpack.c.l.b16 %v1093
    %v2261 = vunpack.c.h.b16 %v1093
    %v2262 = vunpack.c.l.b16 %v1094
    %v2263 = vunpack.c.h.b16 %v1094
    %v2264 = vunpack.c.l.b16 %v1095
    %v2265 = vunpack.c.h.b16 %v1095
    %v2266 = vunpack.c.l.b16 %v1096
    %v2267 = vunpack.c.h.b16 %v1096
    %v2268 = vunpack.c.l.b16 %v1097
    %v2269 = vunpack.c.h.b16 %v1097
    %v2270 = vunpack.c.l.b16 %v1098
    %v2271 = vunpack.c.h.b16 %v1098
    %v2272 = vunpack.c.l.b16 %v1099
    %v2273 = vunpack.c.h.b16 %v1099
    %v2274 = vunpack.c.l.b16 %v1100
    %v2275 = vunpack.c.h.b16 %v1100
    %v2276 = vunpack.c.l.b16 %v1101
    %v2277 = vunpack.c.h.b16 %v1101
    %v2278 = vunpack.c.l.b16 %v1102
    %v2279 = vunpack.c.h.b16 %v1102
    %v2280 = vunpack.c.l.b16 %v1103
    %v2281 = vunpack.c.h.b16 %v1103
    %v2282 = vunpack.c.l.b16 %v1104
    %v2283 = vunpack.c.h.b16 %v1104
    %v2284 = vunpack.c.l.b16 %v1105
    %v2285 = vunpack.c.h.b16 %v1105
    %v2286 = vunpack.c.l.b16 %v1106
    %v2287 = vunpack.c.h.b16 %v1106
    %v2288 = vunpack.c.l.b16 %v1107
    %v2289 = vunpack.c.h.b16 %v1107
    %v2290 = vunpack.c.l.b16 %v1108
    %v2291 = vunpack.c.h.b16 %v1108
    %v2292 = vunpack.c.l.b16 %v1109
    %v2293 = vunpack.c.h.b16 %v1109
    %v2294 = vunpack.c.l.b16 %v1110
    %v2295 = vunpack.c.h.b16 %v1110
    %v2296 = vunpack.c.l.b16 %v1111
    %v2297 = vunpack.c.h.b16 %v1111
    %v2298 = vunpack.c.l.b16 %v1112
    %v2299 = vunpack.c.h.b16 %v1112
    %v2300 = vunpack.c.l.b16 %v1113
    %v2301 = vunpack.c.h.b16 %v1113
    %v2302 = vunpack.c.l.b16 %v1114
    %v2303 = vunpack.c.h.b16 %v1114
    %v2304 = vunpack.c.l.b16 %v1115
    %v2305 = vunpack.c.h.b16 %v1115
    %v2306 = vunpack.c.l.b16 %v1116
    %v2307 = vunpack.c.h.b16 %v1116
    %v2308 = vunpack.c.l.b16 %v1117
    %v2309 = vunpack.c.h.b16 %v1117
    %v2310 = vunpack.c.l.b16 %v1118
    %v2311 = vunpack.c.h.b16 %v1118
    %v2312 = vunpack.c.l.b16 %v1119
    %v2313 = vunpack.c.h.b16 %v1119
    %v2314 = vunpack.c.l.b16 %v1120
    %v2315 = vunpack.c.h.b16 %v1120
    %v2316 = vunpack.c.l.b16 %v1121
    %v2317 = vunpack.c.h.b16 %v1121
    %v2318 = vunpack.c.l.b16 %v1122
    %v2319 = vunpack.c.h.b16 %v1122
    %v2320 = vunpack.c.l.b16 %v1123
    %v2321 = vunpack.c.h.b16 %v1123
    %v2322 = vunpack.c.l.b16 %v1124
    %v2323 = vunpack.c.h.b16 %v1124
    %v2324 = vunpack.c.l.b16 %v1125
    %v2325 = vunpack.c.h.b16 %v1125
    %v2326 = vunpack.c.l.b16 %v1126
    %v2327 = vunpack.c.h.b16 %v1126
    %v2328 = vunpack.c.l.b16 %v1127
    %v2329 = vunpack.c.h.b16 %v1127
    %v2330 = vunpack.c.l.b16 %v1128
    %v2331 = vunpack.c.h.b16 %v1128
    %v2332 = vunpack.c.l.b16 %v1129
    %v2333 = vunpack.c.h.b16 %v1129
    %v2334 = vunpack.c.l.b16 %v1130
    %v2335 = vunpack.c.h.b16 %v1130
    %v2336 = vunpack.c.l.b16 %v1131
    %v2337 = vunpack.c.h.b16 %v1131
    %v2338 = vunpack.c.l.b16 %v1132
    %v2339 = vunpack.c.h.b16 %v1132
    %v2340 = vunpack.c.l.b16 %v1133
    %v2341 = vunpack.c.h.b16 %v1133
    %v2342 = vunpack.c.l.b16 %v1134
    %v2343 = vunpack.c.h.b16 %v1134
    %v2344 = vunpack.c.l.b16 %v1135
    %v2345 = vunpack.c.h.b16 %v1135
    %v2346 = vunpack.c.l.b16 %v1136
    %v2347 = vunpack.c.h.b16 %v1136
    %v2348 = vunpack.c.l.b16 %v1137
    %v2349 = vunpack.c.h.b16 %v1137
    %v2350 = vunpack.c.l.b16 %v1138
    %v2351 = vunpack.c.h.b16 %v1138
    %v2352 = vunpack.c.l.b16 %v1139
    %v2353 = vunpack.c.h.b16 %v1139
    %v2354 = vunpack.c.l.b16 %v1140
    %v2355 = vunpack.c.h.b16 %v1140
    %v2356 = vunpack.c.l.b16 %v1141
    %v2357 = vunpack.c.h.b16 %v1141
    %v2358 = vunpack.c.l.b16 %v1142
    %v2359 = vunpack.c.h.b16 %v1142
    %v2360 = vunpack.c.l.b16 %v1143
    %v2361 = vunpack.c.h.b16 %v1143
    %v2362 = vunpack.c.l.b16 %v1144
    %v2363 = vunpack.c.h.b16 %v1144
    %v2364 = vunpack.c.l.b16 %v1145
    %v2365 = vunpack.c.h.b16 %v1145
    %v2366 = vunpack.c.l.b16 %v1146
    %v2367 = vunpack.c.h.b16 %v1146
    %v2368 = vunpack.c.l.b16 %v1147
    %v2369 = vunpack.c.h.b16 %v1147
    %v2370 = vunpack.c.l.b16 %v1148
    %v2371 = vunpack.c.h.b16 %v1148
    %v2372 = vunpack.c.l.b16 %v1149
    %v2373 = vunpack.c.h.b16 %v1149
    %v2374 = vunpack.c.l.b16 %v1150
    %v2375 = vunpack.c.h.b16 %v1150
    %v2376 = vunpack.c.l.b16 %v1151
    %v2377 = vunpack.c.h.b16 %v1151
    %v2378 = vunpack.c.l.b16 %v1152
    %v2379 = vunpack.c.h.b16 %v1152
    %v2380 = vunpack.c.l.b16 %v1153
    %v2381 = vunpack.c.h.b16 %v1153
    %v2382 = vunpack.c.l.b16 %v1154
    %v2383 = vunpack.c.h.b16 %v1154
    %v2384 = vunpack.c.l.b16 %v1155
    %v2385 = vunpack.c.h.b16 %v1155
    %v2386 = vunpack.c.l.b16 %v1156
    %v2387 = vunpack.c.h.b16 %v1156
    %v2388 = vunpack.c.l.b16 %v1157
    %v2389 = vunpack.c.h.b16 %v1157
    %v2390 = vunpack.c.l.b16 %v1158
    %v2391 = vunpack.c.h.b16 %v1158
    %v2392 = vunpack.c.l.b16 %v1159
    %v2393 = vunpack.c.h.b16 %v1159
    %v2394 = vunpack.c.l.b16 %v1160
    %v2395 = vunpack.c.h.b16 %v1160
    %v2396 = vunpack.c.l.b16 %v1161
    %v2397 = vunpack.c.h.b16 %v1161
    %v2398 = vunpack.c.l.b16 %v1162
    %v2399 = vunpack.c.h.b16 %v1162
    %v2400 = vunpack.c.l.b16 %v1163
    %v2401 = vunpack.c.h.b16 %v1163
    %v2402 = vunpack.c.l.b16 %v1164
    %v2403 = vunpack.c.h.b16 %v1164
    %v2404 = vunpack.c.l.b16 %v1165
    %v2405 = vunpack.c.h.b16 %v1165
    %v2406 = vunpack.c.l.b16 %v1166
    %v2407 = vunpack.c.h.b16 %v1166
    %v2408 = vunpack.c.l.b16 %v1167
    %v2409 = vunpack.c.h.b16 %v1167
    %v2410 = vunpack.c.l.b16 %v1168
    %v2411 = vunpack.c.h.b16 %v1168
    %v2412 = vunpack.c.l.b16 %v1169
    %v2413 = vunpack.c.h.b16 %v1169
    %v2414 = vunpack.c.l.b16 %v1170
    %v2415 = vunpack.c.h.b16 %v1170
    %v2416 = vunpack.c.l.b16 %v1171
    %v2417 = vunpack.c.h.b16 %v1171
    %v2418 = vunpack.c.l.b16 %v1172
    %v2419 = vunpack.c.h.b16 %v1172
    %v2420 = vunpack.c.l.b16 %v1173
    %v2421 = vunpack.c.h.b16 %v1173
    %v2422 = vunpack.c.l.b16 %v1174
    %v2423 = vunpack.c.h.b16 %v1174
    %v2424 = vunpack.c.l.b16 %v1175
    %v2425 = vunpack.c.h.b16 %v1175
    %v2426 = vunpack.c.l.b16 %v1176
    %v2427 = vunpack.c.h.b16 %v1176
    %v2428 = vunpack.c.l.b16 %v1177
    %v2429 = vunpack.c.h.b16 %v1177
    %v2430 = vunpack.c.l.b16 %v1178
    %v2431 = vunpack.c.h.b16 %v1178
    %v2432 = vunpack.c.l.b16 %v1179
    %v2433 = vunpack.c.h.b16 %v1179
    %v2434 = vunpack.c.l.b16 %v1180
    %v2435 = vunpack.c.h.b16 %v1180
    %v2436 = vunpack.c.l.b16 %v1181
    %v2437 = vunpack.c.h.b16 %v1181
    %v2438 = vunpack.c.l.b16 %v1182
    %v2439 = vunpack.c.h.b16 %v1182
    %v2440 = vunpack.c.l.b16 %v1183
    %v2441 = vunpack.c.h.b16 %v1183
    %v2442 = vunpack.c.l.b16 %v1184
    %v2443 = vunpack.c.h.b16 %v1184
    %v2444 = vunpack.c.l.b16 %v1185
    %v2445 = vunpack.c.h.b16 %v1185
    %v2446 = vunpack.c.l.b16 %v1186
    %v2447 = vunpack.c.h.b16 %v1186
    %v2448 = vunpack.c.l.b16 %v1187
    %v2449 = vunpack.c.h.b16 %v1187
    %v2450 = vunpack.c.l.b16 %v1188
    %v2451 = vunpack.c.h.b16 %v1188
    %v2452 = vunpack.c.l.b16 %v1189
    %v2453 = vunpack.c.h.b16 %v1189
    %v2454 = vunpack.c.l.b16 %v1190
    %v2455 = vunpack.c.h.b16 %v1190
    %v2456 = vunpack.c.l.b16 %v1191
    %v2457 = vunpack.c.h.b16 %v1191
    %v2458 = vunpack.c.l.b16 %v1192
    %v2459 = vunpack.c.h.b16 %v1192
    %v2460 = vunpack.c.l.b16 %v1193
    %v2461 = vunpack.c.h.b16 %v1193
    %v2462 = vunpack.c.l.b16 %v1194
    %v2463 = vunpack.c.h.b16 %v1194
    %v2464 = vunpack.c.l.b16 %v1195
    %v2465 = vunpack.c.h.b16 %v1195
    %v2466 = vunpack.c.l.b16 %v1196
    %v2467 = vunpack.c.h.b16 %v1196
    %v2468 = vunpack.c.l.b16 %v1197
    %v2469 = vunpack.c.h.b16 %v1197
    %v2470 = vunpack.c.l.b16 %v1198
    %v2471 = vunpack.c.h.b16 %v1198
    %v2472 = vunpack.c.l.b16 %v1199
    %v2473 = vunpack.c.h.b16 %v1199
    %v2474 = vunpack.c.l.b16 %v1200
    %v2475 = vunpack.c.h.b16 %v1200
    %v2476 = vunpack.c.l.b16 %v1201
    %v2477 = vunpack.c.h.b16 %v1201
    %v2478 = vunpack.c.l.b16 %v1202
    %v2479 = vunpack.c.h.b16 %v1202
    %v2480 = vunpack.c.l.b16 %v1203
    %v2481 = vunpack.c.h.b16 %v1203
    %v2482 = vunpack.c.l.b16 %v1204
    %v2483 = vunpack.c.h.b16 %v1204
    %v2484 = vunpack.c.l.b16 %v1205
    %v2485 = vunpack.c.h.b16 %v1205
    %v2486 = vunpack.c.l.b16 %v1206
    %v2487 = vunpack.c.h.b16 %v1206
    %v2488 = vunpack.c.l.b16 %v1207
    %v2489 = vunpack.c.h.b16 %v1207
    %v2490 = vunpack.c.l.b16 %v1208
    %v2491 = vunpack.c.h.b16 %v1208
    %v2492 = vunpack.c.l.b16 %v1209
    %v2493 = vunpack.c.h.b16 %v1209
    %v2494 = vunpack.c.l.b16 %v1210
    %v2495 = vunpack.c.h.b16 %v1210
    %v2496 = vunpack.c.l.b16 %v1211
    %v2497 = vunpack.c.h.b16 %v1211
    %v2498 = vunpack.c.l.b16 %v1212
    %v2499 = vunpack.c.h.b16 %v1212
    %v2500 = vunpack.c.l.b16 %v1213
    %v2501 = vunpack.c.h.b16 %v1213
    %v2502 = vunpack.c.l.b16 %v1214
    %v2503 = vunpack.c.h.b16 %v1214
    %v2504 = vunpack.c.l.b16 %v1215
    %v2505 = vunpack.c.h.b16 %v1215
    %v2506 = vunpack.c.l.b16 %v1216
    %v2507 = vunpack.c.h.b16 %v1216
    %v2508 = vunpack.c.l.b16 %v1217
    %v2509 = vunpack.c.h.b16 %v1217
    %v2510 = vunpack.c.l.b16 %v1218
    %v2511 = vunpack.c.h.b16 %v1218
    %v2512 = vunpack.c.l.b16 %v1219
    %v2513 = vunpack.c.h.b16 %v1219
    %v2514 = vunpack.c.l.b16 %v1220
    %v2515 = vunpack.c.h.b16 %v1220
    %v2516 = vunpack.c.l.b16 %v1221
    %v2517 = vunpack.c.h.b16 %v1221
    %v2518 = vunpack.c.l.b16 %v1222
    %v2519 = vunpack.c.h.b16 %v1222
    %v2520 = vunpack.c.l.b16 %v1223
    %v2521 = vunpack.c.h.b16 %v1223
    %v2522 = vunpack.c.l.b16 %v1224
    %v2523 = vunpack.c.h.b16 %v1224
    %v2524 = vunpack.c.l.b16 %v1225
    %v2525 = vunpack.c.h.b16 %v1225
    %v2526 = vunpack.c.l.b16 %v1226
    %v2527 = vunpack.c.h.b16 %v1226
    %v2528 = vunpack.c.l.b16 %v1227
    %v2529 = vunpack.c.h.b16 %v1227
    %v2530 = vunpack.c.l.b16 %v1228
    %v2531 = vunpack.c.h.b16 %v1228
    %v2532 = vunpack.c.l.b16 %v1229
    %v2533 = vunpack.c.h.b16 %v1229
    %v2534 = vunpack.c.l.b16 %v1230
    %v2535 = vunpack.c.h.b16 %v1230
    %v2536 = vunpack.c.l.b16 %v1231
    %v2537 = vunpack.c.h.b16 %v1231
    %v2538 = vunpack.c.l.b16 %v1232
    %v2539 = vunpack.c.h.b16 %v1232
    %v2540 = vunpack.c.l.b16 %v1233
    %v2541 = vunpack.c.h.b16 %v1233
    %v2542 = vunpack.c.l.b16 %v1234
    %v2543 = vunpack.c.h.b16 %v1234
    %v2544 = vunpack.c.l.b16 %v1235
    %v2545 = vunpack.c.h.b16 %v1235
    %v2546 = vunpack.c.l.b16 %v1236
    %v2547 = vunpack.c.h.b16 %v1236
    %v2548 = vunpack.c.l.b16 %v1237
    %v2549 = vunpack.c.h.b16 %v1237
    %v2550 = vunpack.c.l.b16 %v1238
    %v2551 = vunpack.c.h.b16 %v1238
    %v2552 = vunpack.c.l.b16 %v1239
    %v2553 = vunpack.c.h.b16 %v1239
    %v2554 = vunpack.c.l.b16 %v1240
    %v2555 = vunpack.c.h.b16 %v1240
    %v2556 = vunpack.c.l.b16 %v1241
    %v2557 = vunpack.c.h.b16 %v1241
    %v2558 = vunpack.c.l.b16 %v1242
    %v2559 = vunpack.c.h.b16 %v1242
    %v2560 = vunpack.c.l.b16 %v1243
    %v2561 = vunpack.c.h.b16 %v1243
    %v2562 = vunpack.c.l.b16 %v1244
    %v2563 = vunpack.c.h.b16 %v1244
    %v2564 = vunpack.c.l.b16 %v1245
    %v2565 = vunpack.c.h.b16 %v1245
    %v2566 = vunpack.c.l.b16 %v1246
    %v2567 = vunpack.c.h.b16 %v1246
    %v2568 = vunpack.c.l.b16 %v1247
    %v2569 = vunpack.c.h.b16 %v1247
    %v2570 = vunpack.c.l.b16 %v1248
    %v2571 = vunpack.c.h.b16 %v1248
    %v2572 = vunpack.c.l.b16 %v1249
    %v2573 = vunpack.c.h.b16 %v1249
    %v2574 = vunpack.c.l.b16 %v1250
    %v2575 = vunpack.c.h.b16 %v1250
    %v2576 = vunpack.c.l.b16 %v1251
    %v2577 = vunpack.c.h.b16 %v1251
    %v2578 = vunpack.c.l.b16 %v1252
    %v2579 = vunpack.c.h.b16 %v1252
    %v2580 = vunpack.c.l.b16 %v1253
    %v2581 = vunpack.c.h.b16 %v1253
    %v2582 = vunpack.c.l.b16 %v1254
    %v2583 = vunpack.c.h.b16 %v1254
    %v2584 = vunpack.c.l.b16 %v1255
    %v2585 = vunpack.c.h.b16 %v1255
    %v2586 = vunpack.c.l.b16 %v1256
    %v2587 = vunpack.c.h.b16 %v1256
    %v2588 = vunpack.c.l.b16 %v1257
    %v2589 = vunpack.c.h.b16 %v1257
    %v2590 = vunpack.c.l.b16 %v1258
    %v2591 = vunpack.c.h.b16 %v1258
    %v2592 = vunpack.c.l.b16 %v1259
    %v2593 = vunpack.c.h.b16 %v1259
    %v2594 = vunpack.c.l.b16 %v1260
    %v2595 = vunpack.c.h.b16 %v1260
    %v2596 = vunpack.c.l.b16 %v1261
    %v2597 = vunpack.c.h.b16 %v1261
    %v2598 = vunpack.c.l.b16 %v1262
    %v2599 = vunpack.c.h.b16 %v1262
    %v2600 = vunpack.c.l.b16 %v1263
    %v2601 = vunpack.c.h.b16 %v1263
    %v2602 = vunpack.c.l.b16 %v1264
    %v2603 = vunpack.c.h.b16 %v1264
    %v2604 = vunpack.c.l.b16 %v1265
    %v2605 = vunpack.c.h.b16 %v1265
    %v2606 = vunpack.c.l.b16 %v1266
    %v2607 = vunpack.c.h.b16 %v1266
    %v2608 = vunpack.c.l.b16 %v1267
    %v2609 = vunpack.c.h.b16 %v1267
    %v2610 = vunpack.c.l.b16 %v1268
    %v2611 = vunpack.c.h.b16 %v1268
    %v2612 = vunpack.c.l.b16 %v1269
    %v2613 = vunpack.c.h.b16 %v1269
    %v2614 = vunpack.c.l.b16 %v1270
    %v2615 = vunpack.c.h.b16 %v1270
    %v2616 = vunpack.c.l.b16 %v1271
    %v2617 = vunpack.c.h.b16 %v1271
    %v2618 = vunpack.c.l.b16 %v1272
    %v2619 = vunpack.c.h.b16 %v1272
    %v2620 = vunpack.c.l.b16 %v1273
    %v2621 = vunpack.c.h.b16 %v1273
    %v2622 = vunpack.c.l.b16 %v1274
    %v2623 = vunpack.c.h.b16 %v1274
    %v2624 = vunpack.c.l.b16 %v1275
    %v2625 = vunpack.c.h.b16 %v1275
    %v2626 = vunpack.c.l.b16 %v1276
    %v2627 = vunpack.c.h.b16 %v1276
    %v2628 = vunpack.c.l.b16 %v1277
    %v2629 = vunpack.c.h.b16 %v1277
    %v2630 = vunpack.c.l.b16 %v1278
    %v2631 = vunpack.c.h.b16 %v1278
    %v2632 = vunpack.c.l.b16 %v1279
    %v2633 = vunpack.c.h.b16 %v1279
    %v2634 = vunpack.c.l.b16 %v1280
    %v2635 = vunpack.c.h.b16 %v1280
    %v2636 = vunpack.c.l.b16 %v1281
    %v2637 = vunpack.c.h.b16 %v1281
    %v2638 = vunpack.c.l.b16 %v1282
    %v2639 = vunpack.c.h.b16 %v1282
    %v2640 = vunpack.c.l.b16 %v1283
    %v2641 = vunpack.c.h.b16 %v1283
    %v2642 = vunpack.c.l.b16 %v1284
    %v2643 = vunpack.c.h.b16 %v1284
    %v2644 = vunpack.c.l.b16 %v1285
    %v2645 = vunpack.c.h.b16 %v1285
    %v2646 = vunpack.c.l.b16 %v1286
    %v2647 = vunpack.c.h.b16 %v1286
    %v2648 = vunpack.c.l.b16 %v1287
    %v2649 = vunpack.c.h.b16 %v1287
    %v2650 = vunpack.c.l.b16 %v1288
    %v2651 = vunpack.c.h.b16 %v1288
    %v2652 = vunpack.c.l.b16 %v1289
    %v2653 = vunpack.c.h.b16 %v1289
    %v2654 = vunpack.c.l.b16 %v1290
    %v2655 = vunpack.c.h.b16 %v1290
    %v2656 = vunpack.c.l.b16 %v1291
    %v2657 = vunpack.c.h.b16 %v1291
    %v2658 = vunpack.c.l.b16 %v1292
    %v2659 = vunpack.c.h.b16 %v1292
    %v2660 = vunpack.c.l.b16 %v1293
    %v2661 = vunpack.c.h.b16 %v1293
    %v2662 = vunpack.c.l.b16 %v1294
    %v2663 = vunpack.c.h.b16 %v1294
    %v2664 = vunpack.c.l.b16 %v1295
    %v2665 = vunpack.c.h.b16 %v1295
    %v2666 = vunpack.c.l.b16 %v1296
    %v2667 = vunpack.c.h.b16 %v1296
    %v2668 = vunpack.c.l.b16 %v1297
    %v2669 = vunpack.c.h.b16 %v1297
    %v2670 = vunpack.c.l.b16 %v1298
    %v2671 = vunpack.c.h.b16 %v1298
    %v2672 = vunpack.c.l.b16 %v1299
    %v2673 = vunpack.c.h.b16 %v1299
    %v2674 = vunpack.c.l.b16 %v1300
    %v2675 = vunpack.c.h.b16 %v1300
    %v2676 = vunpack.c.l.b16 %v1301
    %v2677 = vunpack.c.h.b16 %v1301
    %v2678 = vunpack.c.l.b16 %v1302
    %v2679 = vunpack.c.h.b16 %v1302
    %v2680 = vunpack.c.l.b16 %v1303
    %v2681 = vunpack.c.h.b16 %v1303
    %v2682 = vunpack.c.l.b16 %v1304
    %v2683 = vunpack.c.h.b16 %v1304
    %v2684 = vunpack.c.l.b16 %v1305
    %v2685 = vunpack.c.h.b16 %v1305
    %v2686 = vunpack.c.l.b16 %v1306
    %v2687 = vunpack.c.h.b16 %v1306
    %v2688 = vunpack.c.l.b16 %v1307
    %v2689 = vunpack.c.h.b16 %v1307
    %v2690 = vunpack.c.l.b16 %v1308
    %v2691 = vunpack.c.h.b16 %v1308
    %v2692 = vunpack.c.l.b16 %v1309
    %v2693 = vunpack.c.h.b16 %v1309
    %v2694 = vunpack.c.l.b16 %v1310
    %v2695 = vunpack.c.h.b16 %v1310
    %v2696 = vunpack.c.l.b16 %v1311
    %v2697 = vunpack.c.h.b16 %v1311
    %v2698 = vunpack.c.l.b16 %v1312
    %v2699 = vunpack.c.h.b16 %v1312
    %v2700 = vunpack.c.l.b16 %v1313
    %v2701 = vunpack.c.h.b16 %v1313
    %v2702 = vunpack.c.l.b16 %v1314
    %v2703 = vunpack.c.h.b16 %v1314
    %v2704 = vunpack.c.l.b16 %v1315
    %v2705 = vunpack.c.h.b16 %v1315
    %v2706 = vunpack.c.l.b16 %v1316
    %v2707 = vunpack.c.h.b16 %v1316
    %v2708 = vunpack.c.l.b16 %v1317
    %v2709 = vunpack.c.h.b16 %v1317
    %v2710 = vunpack.c.l.b16 %v1318
    %v2711 = vunpack.c.h.b16 %v1318
    %v2712 = vunpack.c.l.b16 %v1319
    %v2713 = vunpack.c.h.b16 %v1319
    %v2714 = vunpack.c.l.b16 %v1320
    %v2715 = vunpack.c.h.b16 %v1320
    %v2716 = vunpack.c.l.b16 %v1321
    %v2717 = vunpack.c.h.b16 %v1321
    %v2718 = vunpack.c.l.b16 %v1322
    %v2719 = vunpack.c.h.b16 %v1322
    %v2720 = vunpack.c.l.b16 %v1323
    %v2721 = vunpack.c.h.b16 %v1323
    %v2722 = vunpack.c.l.b16 %v1324
    %v2723 = vunpack.c.h.b16 %v1324
    %v2724 = vunpack.c.l.b16 %v1325
    %v2725 = vunpack.c.h.b16 %v1325
    %v2726 = vunpack.c.l.b16 %v1326
    %v2727 = vunpack.c.h.b16 %v1326
    %v2728 = vunpack.c.l.b16 %v1327
    %v2729 = vunpack.c.h.b16 %v1327
    %v2730 = vunpack.c.l.b16 %v1328
    %v2731 = vunpack.c.h.b16 %v1328
    %v2732 = vunpack.c.l.b16 %v1329
    %v2733 = vunpack.c.h.b16 %v1329
    %v2734 = vunpack.c.l.b16 %v1330
    %v2735 = vunpack.c.h.b16 %v1330
    %v2736 = vunpack.c.l.b16 %v1331
    %v2737 = vunpack.c.h.b16 %v1331
    %v2738 = vunpack.c.l.b16 %v1332
    %v2739 = vunpack.c.h.b16 %v1332
    %v2740 = vunpack.c.l.b16 %v1333
    %v2741 = vunpack.c.h.b16 %v1333
    %v2742 = vunpack.c.l.b16 %v1334
    %v2743 = vunpack.c.h.b16 %v1334
    %v2744 = vunpack.c.l.b16 %v1335
    %v2745 = vunpack.c.h.b16 %v1335
    %v2746 = vunpack.c.l.b16 %v1336
    %v2747 = vunpack.c.h.b16 %v1336
    %v2748 = vunpack.c.l.b16 %v1337
    %v2749 = vunpack.c.h.b16 %v1337
    %v2750 = vunpack.c.l.b16 %v1338
    %v2751 = vunpack.c.h.b16 %v1338
    %v2752 = vunpack.c.l.b16 %v1339
    %v2753 = vunpack.c.h.b16 %v1339
    %v2754 = vunpack.c.l.b16 %v1340
    %v2755 = vunpack.c.h.b16 %v1340
    %v2756 = vunpack.c.l.b16 %v1341
    %v2757 = vunpack.c.h.b16 %v1341
    %v2758 = vunpack.c.l.b16 %v1342
    %v2759 = vunpack.c.h.b16 %v1342
    %v2760 = vunpack.c.l.b16 %v1343
    %v2761 = vunpack.c.h.b16 %v1343
    %v2762 = vunpack.c.l.b16 %v1344
    %v2763 = vunpack.c.h.b16 %v1344
    %v2764 = vunpack.c.l.b16 %v1345
    %v2765 = vunpack.c.h.b16 %v1345
    %v2766 = vunpack.c.l.b16 %v1346
    %v2767 = vunpack.c.h.b16 %v1346
    %v2768 = vunpack.c.l.b16 %v1347
    %v2769 = vunpack.c.h.b16 %v1347
    %v2770 = vunpack.c.l.b16 %v1348
    %v2771 = vunpack.c.h.b16 %v1348
    %v2772 = vunpack.c.l.b16 %v1349
    %v2773 = vunpack.c.h.b16 %v1349
    %v2774 = vunpack.c.l.b16 %v1350
    %v2775 = vunpack.c.h.b16 %v1350
    %v2776 = vunpack.c.l.b16 %v1351
    %v2777 = vunpack.c.h.b16 %v1351
    %v2778 = vunpack.c.l.b16 %v1352
    %v2779 = vunpack.c.h.b16 %v1352
    %v2780 = vunpack.c.l.b16 %v1353
    %v2781 = vunpack.c.h.b16 %v1353
    %v2782 = vunpack.c.l.b16 %v1354
    %v2783 = vunpack.c.h.b16 %v1354
    %v2784 = vunpack.c.l.b16 %v1355
    %v2785 = vunpack.c.h.b16 %v1355
    %v2786 = vunpack.c.l.b16 %v1356
    %v2787 = vunpack.c.h.b16 %v1356
    %v2788 = vunpack.c.l.b16 %v1357
    %v2789 = vunpack.c.h.b16 %v1357
    %v2790 = vunpack.c.l.b16 %v1358
    %v2791 = vunpack.c.h.b16 %v1358
    %v2792 = vunpack.c.l.b16 %v1359
    %v2793 = vunpack.c.h.b16 %v1359
    %v2794 = vunpack.c.l.b16 %v1360
    %v2795 = vunpack.c.h.b16 %v1360
    %v2796 = vunpack.c.l.b16 %v1361
    %v2797 = vunpack.c.h.b16 %v1361
    %v2798 = vunpack.c.l.b16 %v1362
    %v2799 = vunpack.c.h.b16 %v1362
    %v2800 = vunpack.c.l.b16 %v1363
    %v2801 = vunpack.c.h.b16 %v1363
    %v2802 = vunpack.c.l.b16 %v1364
    %v2803 = vunpack.c.h.b16 %v1364
    %v2804 = vunpack.c.l.b16 %v1365
    %v2805 = vunpack.c.h.b16 %v1365
    %v2806 = vunpack.c.l.b16 %v1366
    %v2807 = vunpack.c.h.b16 %v1366
    %v2808 = vunpack.c.l.b16 %v1367
    %v2809 = vunpack.c.h.b16 %v1367
    %v2810 = vunpack.c.l.b16 %v1368
    %v2811 = vunpack.c.h.b16 %v1368
    %v2812 = vunpack.c.l.b16 %v1369
    %v2813 = vunpack.c.h.b16 %v1369
    %v2814 = vunpack.c.l.b16 %v1370
    %v2815 = vunpack.c.h.b16 %v1370
    %v2816 = vunpack.c.l.b16 %v1371
    %v2817 = vunpack.c.h.b16 %v1371
    %v2818 = vunpack.c.l.b16 %v1372
    %v2819 = vunpack.c.h.b16 %v1372
    %v2820 = vunpack.c.l.b16 %v1373
    %v2821 = vunpack.c.h.b16 %v1373
    %v2822 = vunpack.c.l.b16 %v1374
    %v2823 = vunpack.c.h.b16 %v1374
    %v2824 = vunpack.c.l.b16 %v1375
    %v2825 = vunpack.c.h.b16 %v1375
    %v2826 = vunpack.c.l.b16 %v1376
    %v2827 = vunpack.c.h.b16 %v1376
    %v2828 = vunpack.c.l.b16 %v1377
    %v2829 = vunpack.c.h.b16 %v1377
    %v2830 = vunpack.c.l.b16 %v1378
    %v2831 = vunpack.c.h.b16 %v1378
    %v2832 = vunpack.c.l.b16 %v1379
    %v2833 = vunpack.c.h.b16 %v1379
    %v2834 = vunpack.c.l.b16 %v1380
    %v2835 = vunpack.c.h.b16 %v1380
    %v2836 = vunpack.c.l.b16 %v1381
    %v2837 = vunpack.c.h.b16 %v1381
    %v2838 = vunpack.c.l.b16 %v1382
    %v2839 = vunpack.c.h.b16 %v1382
    %v2840 = vunpack.c.l.b16 %v1383
    %v2841 = vunpack.c.h.b16 %v1383
    %v2842 = vunpack.c.l.b16 %v1384
    %v2843 = vunpack.c.h.b16 %v1384
    %v2844 = vunpack.c.l.b16 %v1385
    %v2845 = vunpack.c.h.b16 %v1385
    %v2846 = vunpack.c.l.b16 %v1386
    %v2847 = vunpack.c.h.b16 %v1386
    %v2848 = vunpack.c.l.b16 %v1387
    %v2849 = vunpack.c.h.b16 %v1387
    %v2850 = vunpack.c.l.b16 %v1388
    %v2851 = vunpack.c.h.b16 %v1388
    %v2852 = vunpack.c.l.b16 %v1389
    %v2853 = vunpack.c.h.b16 %v1389
    %v2854 = vunpack.c.l.b16 %v1390
    %v2855 = vunpack.c.h.b16 %v1390
    %v2856 = vunpack.c.l.b16 %v1391
    %v2857 = vunpack.c.h.b16 %v1391
    %v2858 = vunpack.c.l.b16 %v1392
    %v2859 = vunpack.c.h.b16 %v1392
    %v2860 = vunpack.c.l.b16 %v1393
    %v2861 = vunpack.c.h.b16 %v1393
    %v2862 = vunpack.c.l.b16 %v1394
    %v2863 = vunpack.c.h.b16 %v1394
    %v2864 = vunpack.c.l.b16 %v1395
    %v2865 = vunpack.c.h.b16 %v1395
    %v2866 = vunpack.c.l.b16 %v1396
    %v2867 = vunpack.c.h.b16 %v1396
    %v2868 = vunpack.c.l.b16 %v1397
    %v2869 = vunpack.c.h.b16 %v1397
    %v2870 = vunpack.c.l.b16 %v1398
    %v2871 = vunpack.c.h.b16 %v1398
    %v2872 = vunpack.c.l.b16 %v1399
    %v2873 = vunpack.c.h.b16 %v1399
    %v2874 = vunpack.c.l.b16 %v1400
    %v2875 = vunpack.c.h.b16 %v1400
    %v2876 = vunpack.c.l.b16 %v1401
    %v2877 = vunpack.c.h.b16 %v1401
    %v2878 = vunpack.c.l.b16 %v1402
    %v2879 = vunpack.c.h.b16 %v1402
    %v2880 = vunpack.c.l.b16 %v1403
    %v2881 = vunpack.c.h.b16 %v1403
    %v2882 = vunpack.c.l.b16 %v1404
    %v2883 = vunpack.c.h.b16 %v1404
    %v2884 = vunpack.c.l.b16 %v1405
    %v2885 = vunpack.c.h.b16 %v1405
    %v2886 = vunpack.c.l.b16 %v1406
    %v2887 = vunpack.c.h.b16 %v1406
    %v2888 = vunpack.c.l.b16 %v1407
    %v2889 = vunpack.c.h.b16 %v1407
    %v2890 = vunpack.c.l.b16 %v1408
    %v2891 = vunpack.c.h.b16 %v1408
    %v2892 = vunpack.c.l.b16 %v1409
    %v2893 = vunpack.c.h.b16 %v1409
    %v2894 = vunpack.c.l.b16 %v1410
    %v2895 = vunpack.c.h.b16 %v1410
    %v2896 = vunpack.c.l.b16 %v1411
    %v2897 = vunpack.c.h.b16 %v1411
    %v2898 = vunpack.c.l.b16 %v1412
    %v2899 = vunpack.c.h.b16 %v1412
    %v2900 = vunpack.c.l.b16 %v1413
    %v2901 = vunpack.c.h.b16 %v1413
    %v2902 = vunpack.c.l.b16 %v1414
    %v2903 = vunpack.c.h.b16 %v1414
    %v2904 = vunpack.c.l.b16 %v1415
    %v2905 = vunpack.c.h.b16 %v1415
    %v2906 = vunpack.c.l.b16 %v1416
    %v2907 = vunpack.c.h.b16 %v1416
    %v2908 = vunpack.c.l.b16 %v1417
    %v2909 = vunpack.c.h.b16 %v1417
    %v2910 = vunpack.c.l.b16 %v1418
    %v2911 = vunpack.c.h.b16 %v1418
    %v2912 = vunpack.c.l.b16 %v1419
    %v2913 = vunpack.c.h.b16 %v1419
    %v2914 = vunpack.c.l.b16 %v1420
    %v2915 = vunpack.c.h.b16 %v1420
    %v2916 = vunpack.c.l.b16 %v1421
    %v2917 = vunpack.c.h.b16 %v1421
    %v2918 = vunpack.c.l.b16 %v1422
    %v2919 = vunpack.c.h.b16 %v1422
    %v2920 = vunpack.c.l.b16 %v1423
    %v2921 = vunpack.c.h.b16 %v1423
    %v2922 = vunpack.c.l.b16 %v1424
    %v2923 = vunpack.c.h.b16 %v1424
    %v2924 = vunpack.c.l.b16 %v1425
    %v2925 = vunpack.c.h.b16 %v1425
    %v2926 = vunpack.c.l.b16 %v1426
    %v2927 = vunpack.c.h.b16 %v1426
    %v2928 = vunpack.c.l.b16 %v1427
    %v2929 = vunpack.c.h.b16 %v1427
    %v2930 = vunpack.c.l.b16 %v1428
    %v2931 = vunpack.c.h.b16 %v1428
    %v2932 = vunpack.c.l.b16 %v1429
    %v2933 = vunpack.c.h.b16 %v1429
    %v2934 = vunpack.c.l.b16 %v1430
    %v2935 = vunpack.c.h.b16 %v1430
    %v2936 = vunpack.c.l.b16 %v1431
    %v2937 = vunpack.c.h.b16 %v1431
    %v2938 = vunpack.c.l.b16 %v1432
    %v2939 = vunpack.c.h.b16 %v1432
    %v2940 = vunpack.c.l.b16 %v1433
    %v2941 = vunpack.c.h.b16 %v1433
    %v2942 = vunpack.c.l.b16 %v1434
    %v2943 = vunpack.c.h.b16 %v1434
    %v2944 = vunpack.c.l.b16 %v1435
    %v2945 = vunpack.c.h.b16 %v1435
    %v2946 = vunpack.c.l.b16 %v1436
    %v2947 = vunpack.c.h.b16 %v1436
    %v2948 = vunpack.c.l.b16 %v1437
    %v2949 = vunpack.c.h.b16 %v1437
    %v2950 = vunpack.c.l.b16 %v1438
    %v2951 = vunpack.c.h.b16 %v1438
    %v2952 = vunpack.c.l.b16 %v1439
    %v2953 = vunpack.c.h.b16 %v1439
    %v2954 = vunpack.c.l.b16 %v1440
    %v2955 = vunpack.c.h.b16 %v1440
    %v2956 = vunpack.c.l.b16 %v1441
    %v2957 = vunpack.c.h.b16 %v1441
    %v2958 = vunpack.c.l.b16 %v1442
    %v2959 = vunpack.c.h.b16 %v1442
    %v2960 = vunpack.c.l.b16 %v1443
    %v2961 = vunpack.c.h.b16 %v1443
    %v2962 = vunpack.c.l.b16 %v1444
    %v2963 = vunpack.c.h.b16 %v1444
    %v2964 = vunpack.c.l.b16 %v1445
    %v2965 = vunpack.c.h.b16 %v1445
    %v2966 = vunpack.c.l.b16 %v1446
    %v2967 = vunpack.c.h.b16 %v1446
    %v2968 = vunpack.c.l.b16 %v1447
    %v2969 = vunpack.c.h.b16 %v1447
    %v2970 = vunpack.c.l.b16 %v1448
    %v2971 = vunpack.c.h.b16 %v1448
    %v2972 = vunpack.c.l.b16 %v1449
    %v2973 = vunpack.c.h.b16 %v1449
    %v2974 = vunpack.c.l.b16 %v1450
    %v2975 = vunpack.c.h.b16 %v1450
    %v2976 = vunpack.c.l.b16 %v1451
    %v2977 = vunpack.c.h.b16 %v1451
    %v2978 = vunpack.c.l.b16 %v1452
    %v2979 = vunpack.c.h.b16 %v1452
    %v2980 = vunpack.c.l.b16 %v1453
    %v2981 = vunpack.c.h.b16 %v1453
    %v2982 = vunpack.c.l.b16 %v1454
    %v2983 = vunpack.c.h.b16 %v1454
    %v2984 = vunpack.c.l.b16 %v1455
    %v2985 = vunpack.c.h.b16 %v1455
    %v2986 = vunpack.c.l.b16 %v1456
    %v2987 = vunpack.c.h.b16 %v1456
    %v2988 = vunpack.c.l.b16 %v1457
    %v2989 = vunpack.c.h.b16 %v1457
    %v2990 = vunpack.c.l.b16 %v1458
    %v2991 = vunpack.c.h.b16 %v1458
    %v2992 = vunpack.c.l.b16 %v1459
    %v2993 = vunpack.c.h.b16 %v1459
    %v2994 = vunpack.c.l.b16 %v1460
    %v2995 = vunpack.c.h.b16 %v1460
    %v2996 = vunpack.c.l.b16 %v1461
    %v2997 = vunpack.c.h.b16 %v1461
    %v2998 = vunpack.c.l.b16 %v1462
    %v2999 = vunpack.c.h.b16 %v1462
    %v3000 = vunpack.c.l.b16 %v1463
    %v3001 = vunpack.c.h.b16 %v1463
    %v3002 = vunpack.c.l.b16 %v1464
    %v3003 = vunpack.c.h.b16 %v1464
    %v3004 = vunpack.c.l.b16 %v1465
    %v3005 = vunpack.c.h.b16 %v1465
    %v3006 = vunpack.c.l.b16 %v1466
    %v3007 = vunpack.c.h.b16 %v1466
    %v3008 = vunpack.c.l.b16 %v1467
    %v3009 = vunpack.c.h.b16 %v1467
    %v3010 = vunpack.c.l.b16 %v1468
    %v3011 = vunpack.c.h.b16 %v1468
    %v3012 = vunpack.c.l.b16 %v1469
    %v3013 = vunpack.c.h.b16 %v1469
    %v3014 = vunpack.c.l.b16 %v1470
    %v3015 = vunpack.c.h.b16 %v1470
    %v3016 = vunpack.c.l.b16 %v1471
    %v3017 = vunpack.c.h.b16 %v1471
    %v3018 = vunpack.c.l.b16 %v1472
    %v3019 = vunpack.c.h.b16 %v1472
    %v3020 = vunpack.c.l.b16 %v1473
    %v3021 = vunpack.c.h.b16 %v1473
    %v3022 = vunpack.c.l.b16 %v1474
    %v3023 = vunpack.c.h.b16 %v1474
    %v3024 = vunpack.c.l.b16 %v1475
    %v3025 = vunpack.c.h.b16 %v1475
    %v3026 = vunpack.c.l.b16 %v1476
    %v3027 = vunpack.c.h.b16 %v1476
    %v3028 = vunpack.c.l.b16 %v1477
    %v3029 = vunpack.c.h.b16 %v1477
    %v3030 = vunpack.c.l.b16 %v1478
    %v3031 = vunpack.c.h.b16 %v1478
    %v3032 = vunpack.c.l.b16 %v1479
    %v3033 = vunpack.c.h.b16 %v1479
    %v3034 = vunpack.c.l.b16 %v1480
    %v3035 = vunpack.c.h.b16 %v1480
    %v3036 = vunpack.c.l.b16 %v1481
    %v3037 = vunpack.c.h.b16 %v1481
    %v3038 = vunpack.c.l.b16 %v1482
    %v3039 = vunpack.c.h.b16 %v1482
    %v3040 = vunpack.c.l.b16 %v1483
    %v3041 = vunpack.c.h.b16 %v1483
    %v3042 = vunpack.c.l.b16 %v1484
    %v3043 = vunpack.c.h.b16 %v1484
    %v3044 = vunpack.c.l.b16 %v1485
    %v3045 = vunpack.c.h.b16 %v1485
    %v3046 = vunpack.c.l.b16 %v1486
    %v3047 = vunpack.c.h.b16 %v1486
    %v3048 = vunpack.c.l.b16 %v1487
    %v3049 = vunpack.c.h.b16 %v1487
    %v3050 = vunpack.c.l.b16 %v1488
    %v3051 = vunpack.c.h.b16 %v1488
    %v3052 = vunpack.c.l.b16 %v1489
    %v3053 = vunpack.c.h.b16 %v1489
    %v3054 = vunpack.c.l.b16 %v1490
    %v3055 = vunpack.c.h.b16 %v1490
    %v3056 = vunpack.c.l.b16 %v1491
    %v3057 = vunpack.c.h.b16 %v1491
    %v3058 = vunpack.c.l.b16 %v1492
    %v3059 = vunpack.c.h.b16 %v1492
    %v3060 = vunpack.c.l.b16 %v1493
    %v3061 = vunpack.c.h.b16 %v1493
    %v3062 = vunpack.c.l.b16 %v1494
    %v3063 = vunpack.c.h.b16 %v1494
    %v3064 = vunpack.c.l.b16 %v1495
    %v3065 = vunpack.c.h.b16 %v1495
    %v3066 = vunpack.c.l.b16 %v1496
    %v3067 = vunpack.c.h.b16 %v1496
    %v3068 = vunpack.c.l.b16 %v1497
    %v3069 = vunpack.c.h.b16 %v1497
    %v3070 = vunpack.c.l.b16 %v1498
    %v3071 = vunpack.c.h.b16 %v1498
    %v3072 = vunpack.c.l.b16 %v1499
    %v3073 = vunpack.c.h.b16 %v1499
    %v3074 = vunpack.c.l.b16 %v1500
    %v3075 = vunpack.c.h.b16 %v1500
    %v3076 = vunpack.c.l.b16 %v1501
    %v3077 = vunpack.c.h.b16 %v1501
    %v3078 = vunpack.c.l.b16 %v1502
    %v3079 = vunpack.c.h.b16 %v1502
    %v3080 = vunpack.c.l.b16 %v1503
    %v3081 = vunpack.c.h.b16 %v1503
    %v3082 = vpack.c.b16 %v2066, %v2058
    %v3083 = vpack.c.b16 %v2067, %v2059
    %v3084 = vpack.c.b16 %v2068, %v2060
    %v3085 = vpack.c.b16 %v2069, %v2061
    %v3086 = vpack.c.b16 %v2070, %v2062
    %v3087 = vpack.c.b16 %v2071, %v2063
    %v3088 = vpack.c.b16 %v2072, %v2064
    %v3089 = vpack.c.b16 %v2073, %v2065
    %v3090 = vpack.c.b16 %v2082, %v2074
    %v3091 = vpack.c.b16 %v2083, %v2075
    %v3092 = vpack.c.b16 %v2084, %v2076
    %v3093 = vpack.c.b16 %v2085, %v2077
    %v3094 = vpack.c.b16 %v2086, %v2078
    %v3095 = vpack.c.b16 %v2087, %v2079
    %v3096 = vpack.c.b16 %v2088, %v2080
    %v3097 = vpack.c.b16 %v2089, %v2081
    %v3098 = vpack.c.b16 %v2098, %v2090
    %v3099 = vpack.c.b16 %v2099, %v2091
    %v3100 = vpack.c.b16 %v2100, %v2092
    %v3101 = vpack.c.b16 %v2101, %v2093
    %v3102 = vpack.c.b16 %v2102, %v2094
    %v3103 = vpack.c.b16 %v2103, %v2095
    %v3104 = vpack.c.b16 %v2104, %v2096
    %v3105 = vpack.c.b16 %v2105, %v2097
    %v3106 = vpack.c.b16 %v2114, %v2106
    %v3107 = vpack.c.b16 %v2115, %v2107
    %v3108 = vpack.c.b16 %v2116, %v2108
    %v3109 = vpack.c.b16 %v2117, %v2109
    %v3110 = vpack.c.b16 %v2118, %v2110
    %v3111 = vpack.c.b16 %v2119, %v2111
    %v3112 = vpack.c.b16 %v2120, %v2112
    %v3113 = vpack.c.b16 %v2121, %v2113
    %v3114 = vpack.c.b16 %v2130, %v2122
    %v3115 = vpack.c.b16 %v2131, %v2123
    %v3116 = vpack.c.b16 %v2132, %v2124
    %v3117 = vpack.c.b16 %v2133, %v2125
    %v3118 = vpack.c.b16 %v2134, %v2126
    %v3119 = vpack.c.b16 %v2135, %v2127
    %v3120 = vpack.c.b16 %v2136, %v2128
    %v3121 = vpack.c.b16 %v2137, %v2129
    %v3122 = vpack.c.b16 %v2146, %v2138
    %v3123 = vpack.c.b16 %v2147, %v2139
    %v3124 = vpack.c.b16 %v2148, %v2140
    %v3125 = vpack.c.b16 %v2149, %v2141
    %v3126 = vpack.c.b16 %v2150, %v2142
    %v3127 = vpack.c.b16 %v2151, %v2143
    %v3128 = vpack.c.b16 %v2152, %v2144
    %v3129 = vpack.c.b16 %v2153, %v2145
    %v3130 = vpack.c.b16 %v2162, %v2154
    %v3131 = vpack.c.b16 %v2163, %v2155
    %v3132 = vpack.c.b16 %v2164, %v2156
    %v3133 = vpack.c.b16 %v2165, %v2157
    %v3134 = vpack.c.b16 %v2166, %v2158
    %v3135 = vpack.c.b16 %v2167, %v2159
    %v3136 = vpack.c.b16 %v2168, %v2160
    %v3137 = vpack.c.b16 %v2169, %v2161
    %v3138 = vpack.c.b16 %v2178, %v2170
    %v3139 = vpack.c.b16 %v2179, %v2171
    %v3140 = vpack.c.b16 %v2180, %v2172
    %v3141 = vpack.c.b16 %v2181, %v2173
    %v3142 = vpack.c.b16 %v2182, %v2174
    %v3143 = vpack.c.b16 %v2183, %v2175
    %v3144 = vpack.c.b16 %v2184, %v2176
    %v3145 = vpack.c.b16 %v2185, %v2177
    %v3146 = vpack.c.b16 %v2194, %v2186
    %v3147 = vpack.c.b16 %v2195, %v2187
    %v3148 = vpack.c.b16 %v2196, %v2188
    %v3149 = vpack.c.b16 %v2197, %v2189
    %v3150 = vpack.c.b16 %v2198, %v2190
    %v3151 = vpack.c.b16 %v2199, %v2191
    %v3152 = vpack.c.b16 %v2200, %v2192
    %v3153 = vpack.c.b16 %v2201, %v2193
    %v3154 = vpack.c.b16 %v2210, %v2202
    %v3155 = vpack.c.b16 %v2211, %v2203
    %v3156 = vpack.c.b16 %v2212, %v2204
    %v3157 = vpack.c.b16 %v2213, %v2205
    %v3158 = vpack.c.b16 %v2214, %v2206
    %v3159 = vpack.c.b16 %v2215, %v2207
    %v3160 = vpack.c.b16 %v2216, %v2208
    %v3161 = vpack.c.b16 %v2217, %v2209
    %v3162 = vpack.c.b16 %v2226, %v2218
    %v3163 = vpack.c.b16 %v2227, %v2219
    %v3164 = vpack.c.b16 %v2228, %v2220
    %v3165 = vpack.c.b16 %v2229, %v2221
    %v3166 = vpack.c.b16 %v2230, %v2222
    %v3167 = vpack.c.b16 %v2231, %v2223
    %v3168 = vpack.c.b16 %v2232, %v2224
    %v3169 = vpack.c.b16 %v2233, %v2225
    %v3170 = vpack.c.b16 %v2242, %v2234
    %v3171 = vpack.c.b16 %v2243, %v2235
    %v3172 = vpack.c.b16 %v2244, %v2236
    %v3173 = vpack.c.b16 %v2245, %v2237
    %v3174 = vpack.c.b16 %v2246, %v2238
    %v3175 = vpack.c.b16 %v2247, %v2239
    %v3176 = vpack.c.b16 %v2248, %v2240
    %v3177 = vpack.c.b16 %v2249, %v2241
    %v3178 = vpack.c.b16 %v2258, %v2250
    %v3179 = vpack.c.b16 %v2259, %v2251
    %v3180 = vpack.c.b16 %v2260, %v2252
    %v3181 = vpack.c.b16 %v2261, %v2253
    %v3182 = vpack.c.b16 %v2262, %v2254
    %v3183 = vpack.c.b16 %v2263, %v2255
    %v3184 = vpack.c.b16 %v2264, %v2256
    %v3185 = vpack.c.b16 %v2265, %v2257
    %v3186 = vpack.c.b16 %v2274, %v2266
    %v3187 = vpack.c.b16 %v2275, %v2267
    %v3188 = vpack.c.b16 %v2276, %v2268
    %v3189 = vpack.c.b16 %v2277, %v2269
    %v3190 = vpack.c.b16 %v2278, %v2270
    %v3191 = vpack.c.b16 %v2279, %v2271
    %v3192 = vpack.c.b16 %v2280, %v2272
    %v3193 = vpack.c.b16 %v2281, %v2273
    %v3194 = vpack.c.b16 %v2290, %v2282
    %v3195 = vpack.c.b16 %v2291, %v2283
    %v3196 = vpack.c.b16 %v2292, %v2284
    %v3197 = vpack.c.b16 %v2293, %v2285
    %v3198 = vpack.c.b16 %v2294, %v2286
    %v3199 = vpack.c.b16 %v2295, %v2287
    %v3200 = vpack.c.b16 %v2296, %v2288
    %v3201 = vpack.c.b16 %v2297, %v2289
    %v3202 = vpack.c.b16 %v2306, %v2298
    %v3203 = vpack.c.b16 %v2307, %v2299
    %v3204 = vpack.c.b16 %v2308, %v2300
    %v3205 = vpack.c.b16 %v2309, %v2301
    %v3206 = vpack.c.b16 %v2310, %v2302
    %v3207 = vpack.c.b16 %v2311, %v2303
    %v3208 = vpack.c.b16 %v2312, %v2304
    %v3209 = vpack.c.b16 %v2313, %v2305
    %v3210 = vpack.c.b16 %v2322, %v2314
    %v3211 = vpack.c.b16 %v2323, %v2315
    %v3212 = vpack.c.b16 %v2324, %v2316
    %v3213 = vpack.c.b16 %v2325, %v2317
    %v3214 = vpack.c.b16 %v2326, %v2318
    %v3215 = vpack.c.b16 %v2327, %v2319
    %v3216 = vpack.c.b16 %v2328, %v2320
    %v3217 = vpack.c.b16 %v2329, %v2321
    %v3218 = vpack.c.b16 %v2338, %v2330
    %v3219 = vpack.c.b16 %v2339, %v2331
    %v3220 = vpack.c.b16 %v2340, %v2332
    %v3221 = vpack.c.b16 %v2341, %v2333
    %v3222 = vpack.c.b16 %v2342, %v2334
    %v3223 = vpack.c.b16 %v2343, %v2335
    %v3224 = vpack.c.b16 %v2344, %v2336
    %v3225 = vpack.c.b16 %v2345, %v2337
    %v3226 = vpack.c.b16 %v2354, %v2346
    %v3227 = vpack.c.b16 %v2355, %v2347
    %v3228 = vpack.c.b16 %v2356, %v2348
    %v3229 = vpack.c.b16 %v2357, %v2349
    %v3230 = vpack.c.b16 %v2358, %v2350
    %v3231 = vpack.c.b16 %v2359, %v2351
    %v3232 = vpack.c.b16 %v2360, %v2352
    %v3233 = vpack.c.b16 %v2361, %v2353
    %v3234 = vpack.c.b16 %v2370, %v2362
    %v3235 = vpack.c.b16 %v2371, %v2363
    %v3236 = vpack.c.b16 %v2372, %v2364
    %v3237 = vpack.c.b16 %v2373, %v2365
    %v3238 = vpack.c.b16 %v2374, %v2366
    %v3239 = vpack.c.b16 %v2375, %v2367
    %v3240 = vpack.c.b16 %v2376, %v2368
    %v3241 = vpack.c.b16 %v2377, %v2369
    %v3242 = vpack.c.b16 %v2386, %v2378
    %v3243 = vpack.c.b16 %v2387, %v2379
    %v3244 = vpack.c.b16 %v2388, %v2380
    %v3245 = vpack.c.b16 %v2389, %v2381
    %v3246 = vpack.c.b16 %v2390, %v2382
    %v3247 = vpack.c.b16 %v2391, %v2383
    %v3248 = vpack.c.b16 %v2392, %v2384
    %v3249 = vpack.c.b16 %v2393, %v2385
    %v3250 = vpack.c.b16 %v2402, %v2394
    %v3251 = vpack.c.b16 %v2403, %v2395
    %v3252 = vpack.c.b16 %v2404, %v2396
    %v3253 = vpack.c.b16 %v2405, %v2397
    %v3254 = vpack.c.b16 %v2406, %v2398
    %v3255 = vpack.c.b16 %v2407, %v2399
    %v3256 = vpack.c.b16 %v2408, %v2400
    %v3257 = vpack.c.b16 %v2409, %v2401
    %v3258 = vpack.c.b16 %v2418, %v2410
    %v3259 = vpack.c.b16 %v2419, %v2411
    %v3260 = vpack.c.b16 %v2420, %v2412
    %v3261 = vpack.c.b16 %v2421, %v2413
    %v3262 = vpack.c.b16 %v2422, %v2414
    %v3263 = vpack.c.b16 %v2423, %v2415
    %v3264 = vpack.c.b16 %v2424, %v2416
    %v3265 = vpack.c.b16 %v2425, %v2417
    %v3266 = vpack.c.b16 %v2434, %v2426
    %v3267 = vpack.c.b16 %v2435, %v2427
    %v3268 = vpack.c.b16 %v2436, %v2428
    %v3269 = vpack.c.b16 %v2437, %v2429
    %v3270 = vpack.c.b16 %v2438, %v2430
    %v3271 = vpack.c.b16 %v2439, %v2431
    %v3272 = vpack.c.b16 %v2440, %v2432
    %v3273 = vpack.c.b16 %v2441, %v2433
    %v3274 = vpack.c.b16 %v2450, %v2442
    %v3275 = vpack.c.b16 %v2451, %v2443
    %v3276 = vpack.c.b16 %v2452, %v2444
    %v3277 = vpack.c.b16 %v2453, %v2445
    %v3278 = vpack.c.b16 %v2454, %v2446
    %v3279 = vpack.c.b16 %v2455, %v2447
    %v3280 = vpack.c.b16 %v2456, %v2448
    %v3281 = vpack.c.b16 %v2457, %v2449
    %v3282 = vpack.c.b16 %v2466, %v2458
    %v3283 = vpack.c.b16 %v2467, %v2459
    %v3284 = vpack.c.b16 %v2468, %v2460
    %v3285 = vpack.c.b16 %v2469, %v2461
    %v3286 = vpack.c.b16 %v2470, %v2462
    %v3287 = vpack.c.b16 %v2471, %v2463
    %v3288 = vpack.c.b16 %v2472, %v2464
    %v3289 = vpack.c.b16 %v2473, %v2465
    %v3290 = vpack.c.b16 %v2482, %v2474
    %v3291 = vpack.c.b16 %v2483, %v2475
    %v3292 = vpack.c.b16 %v2484, %v2476
    %v3293 = vpack.c.b16 %v2485, %v2477
    %v3294 = vpack.c.b16 %v2486, %v2478
    %v3295 = vpack.c.b16 %v2487, %v2479
    %v3296 = vpack.c.b16 %v2488, %v2480
    %v3297 = vpack.c.b16 %v2489, %v2481
    %v3298 = vpack.c.b16 %v2498, %v2490
    %v3299 = vpack.c.b16 %v2499, %v2491
    %v3300 = vpack.c.b16 %v2500, %v2492
    %v3301 = vpack.c.b16 %v2501, %v2493
    %v3302 = vpack.c.b16 %v2502, %v2494
    %v3303 = vpack.c.b16 %v2503, %v2495
    %v3304 = vpack.c.b16 %v2504, %v2496
    %v3305 = vpack.c.b16 %v2505, %v2497
    %v3306 = vpack.c.b16 %v2514, %v2506
    %v3307 = vpack.c.b16 %v2515, %v2507
    %v3308 = vpack.c.b16 %v2516, %v2508
    %v3309 = vpack.c.b16 %v2517, %v2509
    %v3310 = vpack.c.b16 %v2518, %v2510
    %v3311 = vpack.c.b16 %v2519, %v2511
    %v3312 = vpack.c.b16 %v2520, %v2512
    %v3313 = vpack.c.b16 %v2521, %v2513
    %v3314 = vpack.c.b16 %v2530, %v2522
    %v3315 = vpack.c.b16 %v2531, %v2523
    %v3316 = vpack.c.b16 %v2532, %v2524
    %v3317 = vpack.c.b16 %v2533, %v2525
    %v3318 = vpack.c.b16 %v2534, %v2526
    %v3319 = vpack.c.b16 %v2535, %v2527
    %v3320 = vpack.c.b16 %v2536, %v2528
    %v3321 = vpack.c.b16 %v2537, %v2529
    %v3322 = vpack.c.b16 %v2546, %v2538
    %v3323 = vpack.c.b16 %v2547, %v2539
    %v3324 = vpack.c.b16 %v2548, %v2540
    %v3325 = vpack.c.b16 %v2549, %v2541
    %v3326 = vpack.c.b16 %v2550, %v2542
    %v3327 = vpack.c.b16 %v2551, %v2543
    %v3328 = vpack.c.b16 %v2552, %v2544
    %v3329 = vpack.c.b16 %v2553, %v2545
    %v3330 = vpack.c.b16 %v2562, %v2554
    %v3331 = vpack.c.b16 %v2563, %v2555
    %v3332 = vpack.c.b16 %v2564, %v2556
    %v3333 = vpack.c.b16 %v2565, %v2557
    %v3334 = vpack.c.b16 %v2566, %v2558
    %v3335 = vpack.c.b16 %v2567, %v2559
    %v3336 = vpack.c.b16 %v2568, %v2560
    %v3337 = vpack.c.b16 %v2569, %v2561
    %v3338 = vpack.c.b16 %v2578, %v2570
    %v3339 = vpack.c.b16 %v2579, %v2571
    %v3340 = vpack.c.b16 %v2580, %v2572
    %v3341 = vpack.c.b16 %v2581, %v2573
    %v3342 = vpack.c.b16 %v2582, %v2574
    %v3343 = vpack.c.b16 %v2583, %v2575
    %v3344 = vpack.c.b16 %v2584, %v2576
    %v3345 = vpack.c.b16 %v2585, %v2577
    %v3346 = vpack.c.b16 %v2594, %v2586
    %v3347 = vpack.c.b16 %v2595, %v2587
    %v3348 = vpack.c.b16 %v2596, %v2588
    %v3349 = vpack.c.b16 %v2597, %v2589
    %v3350 = vpack.c.b16 %v2598, %v2590
    %v3351 = vpack.c.b16 %v2599, %v2591
    %v3352 = vpack.c.b16 %v2600, %v2592
    %v3353 = vpack.c.b16 %v2601, %v2593
    %v3354 = vpack.c.b16 %v2610, %v2602
    %v3355 = vpack.c.b16 %v2611, %v2603
    %v3356 = vpack.c.b16 %v2612, %v2604
    %v3357 = vpack.c.b16 %v2613, %v2605
    %v3358 = vpack.c.b16 %v2614, %v2606
    %v3359 = vpack.c.b16 %v2615, %v2607
    %v3360 = vpack.c.b16 %v2616, %v2608
    %v3361 = vpack.c.b16 %v2617, %v2609
    %v3362 = vpack.c.b16 %v2626, %v2618
    %v3363 = vpack.c.b16 %v2627, %v2619
    %v3364 = vpack.c.b16 %v2628, %v2620
    %v3365 = vpack.c.b16 %v2629, %v2621
    %v3366 = vpack.c.b16 %v2630, %v2622
    %v3367 = vpack.c.b16 %v2631, %v2623
    %v3368 = vpack.c.b16 %v2632, %v2624
    %v3369 = vpack.c.b16 %v2633, %v2625
    %v3370 = vpack.c.b16 %v2642, %v2634
    %v3371 = vpack.c.b16 %v2643, %v2635
    %v3372 = vpack.c.b16 %v2644, %v2636
    %v3373 = vpack.c.b16 %v2645, %v2637
    %v3374 = vpack.c.b16 %v2646, %v2638
    %v3375 = vpack.c.b16 %v2647, %v2639
    %v3376 = vpack.c.b16 %v2648, %v2640
    %v3377 = vpack.c.b16 %v2649, %v2641
    %v3378 = vpack.c.b16 %v2658, %v2650
    %v3379 = vpack.c.b16 %v2659, %v2651
    %v3380 = vpack.c.b16 %v2660, %v2652
    %v3381 = vpack.c.b16 %v2661, %v2653
    %v3382 = vpack.c.b16 %v2662, %v2654
    %v3383 = vpack.c.b16 %v2663, %v2655
    %v3384 = vpack.c.b16 %v2664, %v2656
    %v3385 = vpack.c.b16 %v2665, %v2657
    %v3386 = vpack.c.b16 %v2674, %v2666
    %v3387 = vpack.c.b16 %v2675, %v2667
    %v3388 = vpack.c.b16 %v2676, %v2668
    %v3389 = vpack.c.b16 %v2677, %v2669
    %v3390 = vpack.c.b16 %v2678, %v2670
    %v3391 = vpack.c.b16 %v2679, %v2671
    %v3392 = vpack.c.b16 %v2680, %v2672
    %v3393 = vpack.c.b16 %v2681, %v2673
    %v3394 = vpack.c.b16 %v2690, %v2682
    %v3395 = vpack.c.b16 %v2691, %v2683
    %v3396 = vpack.c.b16 %v2692, %v2684
    %v3397 = vpack.c.b16 %v2693, %v2685
    %v3398 = vpack.c.b16 %v2694, %v2686
    %v3399 = vpack.c.b16 %v2695, %v2687
    %v3400 = vpack.c.b16 %v2696, %v2688
    %v3401 = vpack.c.b16 %v2697, %v2689
    %v3402 = vpack.c.b16 %v2706, %v2698
    %v3403 = vpack.c.b16 %v2707, %v2699
    %v3404 = vpack.c.b16 %v2708, %v2700
    %v3405 = vpack.c.b16 %v2709, %v2701
    %v3406 = vpack.c.b16 %v2710, %v2702
    %v3407 = vpack.c.b16 %v2711, %v2703
    %v3408 = vpack.c.b16 %v2712, %v2704
    %v3409 = vpack.c.b16 %v2713, %v2705
    %v3410 = vpack.c.b16 %v2722, %v2714
    %v3411 = vpack.c.b16 %v2723, %v2715
    %v3412 = vpack.c.b16 %v2724, %v2716
    %v3413 = vpack.c.b16 %v2725, %v2717
    %v3414 = vpack.c.b16 %v2726, %v2718
    %v3415 = vpack.c.b16 %v2727, %v2719
    %v3416 = vpack.c.b16 %v2728, %v2720
    %v3417 = vpack.c.b16 %v2729, %v2721
    %v3418 = vpack.c.b16 %v2738, %v2730
    %v3419 = vpack.c.b16 %v2739, %v2731
    %v3420 = vpack.c.b16 %v2740, %v2732
    %v3421 = vpack.c.b16 %v2741, %v2733
    %v3422 = vpack.c.b16 %v2742, %v2734
    %v3423 = vpack.c.b16 %v2743, %v2735
    %v3424 = vpack.c.b16 %v2744, %v2736
    %v3425 = vpack.c.b16 %v2745, %v2737
    %v3426 = vpack.c.b16 %v2754, %v2746
    %v3427 = vpack.c.b16 %v2755, %v2747
    %v3428 = vpack.c.b16 %v2756, %v2748
    %v3429 = vpack.c.b16 %v2757, %v2749
    %v3430 = vpack.c.b16 %v2758, %v2750
    %v3431 = vpack.c.b16 %v2759, %v2751
    %v3432 = vpack.c.b16 %v2760, %v2752
    %v3433 = vpack.c.b16 %v2761, %v2753
    %v3434 = vpack.c.b16 %v2770, %v2762
    %v3435 = vpack.c.b16 %v2771, %v2763
    %v3436 = vpack.c.b16 %v2772, %v2764
    %v3437 = vpack.c.b16 %v2773, %v2765
    %v3438 = vpack.c.b16 %v2774, %v2766
    %v3439 = vpack.c.b16 %v2775, %v2767
    %v3440 = vpack.c.b16 %v2776, %v2768
    %v3441 = vpack.c.b16 %v2777, %v2769
    %v3442 = vpack.c.b16 %v2786, %v2778
    %v3443 = vpack.c.b16 %v2787, %v2779
    %v3444 = vpack.c.b16 %v2788, %v2780
    %v3445 = vpack.c.b16 %v2789, %v2781
    %v3446 = vpack.c.b16 %v2790, %v2782
    %v3447 = vpack.c.b16 %v2791, %v2783
    %v3448 = vpack.c.b16 %v2792, %v2784
    %v3449 = vpack.c.b16 %v2793, %v2785
    %v3450 = vpack.c.b16 %v2802, %v2794
    %v3451 = vpack.c.b16 %v2803, %v2795
    %v3452 = vpack.c.b16 %v2804, %v2796
    %v3453 = vpack.c.b16 %v2805, %v2797
    %v3454 = vpack.c.b16 %v2806, %v2798
    %v3455 = vpack.c.b16 %v2807, %v2799
    %v3456 = vpack.c.b16 %v2808, %v2800
    %v3457 = vpack.c.b16 %v2809, %v2801
    %v3458 = vpack.c.b16 %v2818, %v2810
    %v3459 = vpack.c.b16 %v2819, %v2811
    %v3460 = vpack.c.b16 %v2820, %v2812
    %v3461 = vpack.c.b16 %v2821, %v2813
    %v3462 = vpack.c.b16 %v2822, %v2814
    %v3463 = vpack.c.b16 %v2823, %v2815
    %v3464 = vpack.c.b16 %v2824, %v2816
    %v3465 = vpack.c.b16 %v2825, %v2817
    %v3466 = vpack.c.b16 %v2834, %v2826
    %v3467 = vpack.c.b16 %v2835, %v2827
    %v3468 = vpack.c.b16 %v2836, %v2828
    %v3469 = vpack.c.b16 %v2837, %v2829
    %v3470 = vpack.c.b16 %v2838, %v2830
    %v3471 = vpack.c.b16 %v2839, %v2831
    %v3472 = vpack.c.b16 %v2840, %v2832
    %v3473 = vpack.c.b16 %v2841, %v2833
    %v3474 = vpack.c.b16 %v2850, %v2842
    %v3475 = vpack.c.b16 %v2851, %v2843
    %v3476 = vpack.c.b16 %v2852, %v2844
    %v3477 = vpack.c.b16 %v2853, %v2845
    %v3478 = vpack.c.b16 %v2854, %v2846
    %v3479 = vpack.c.b16 %v2855, %v2847
    %v3480 = vpack.c.b16 %v2856, %v2848
    %v3481 = vpack.c.b16 %v2857, %v2849
    %v3482 = vpack.c.b16 %v2866, %v2858
    %v3483 = vpack.c.b16 %v2867, %v2859
    %v3484 = vpack.c.b16 %v2868, %v2860
    %v3485 = vpack.c.b16 %v2869, %v2861
    %v3486 = vpack.c.b16 %v2870, %v2862
    %v3487 = vpack.c.b16 %v2871, %v2863
    %v3488 = vpack.c.b16 %v2872, %v2864
    %v3489 = vpack.c.b16 %v2873, %v2865
    %v3490 = vpack.c.b16 %v2882, %v2874
    %v3491 = vpack.c.b16 %v2883, %v2875
    %v3492 = vpack.c.b16 %v2884, %v2876
    %v3493 = vpack.c.b16 %v2885, %v2877
    %v3494 = vpack.c.b16 %v2886, %v2878
    %v3495 = vpack.c.b16 %v2887, %v2879
    %v3496 = vpack.c.b16 %v2888, %v2880
    %v3497 = vpack.c.b16 %v2889, %v2881
    %v3498 = vpack.c.b16 %v2898, %v2890
    %v3499 = vpack.c.b16 %v2899, %v2891
    %v3500 = vpack.c.b16 %v2900, %v2892
    %v3501 = vpack.c.b16 %v2901, %v2893
    %v3502 = vpack.c.b16 %v2902, %v2894
    %v3503 = vpack.c.b16 %v2903, %v2895
    %v3504 = vpack.c.b16 %v2904, %v2896
    %v3505 = vpack.c.b16 %v2905, %v2897
    %v3506 = vpack.c.b16 %v2914, %v2906
    %v3507 = vpack.c.b16 %v2915, %v2907
    %v3508 = vpack.c.b16 %v2916, %v2908
    %v3509 = vpack.c.b16 %v2917, %v2909
    %v3510 = vpack.c.b16 %v2918, %v2910
    %v3511 = vpack.c.b16 %v2919, %v2911
    %v3512 = vpack.c.b16 %v2920, %v2912
    %v3513 = vpack.c.b16 %v2921, %v2913
    %v3514 = vpack.c.b16 %v2930, %v2922
    %v3515 = vpack.c.b16 %v2931, %v2923
    %v3516 = vpack.c.b16 %v2932, %v2924
    %v3517 = vpack.c.b16 %v2933, %v2925
    %v3518 = vpack.c.b16 %v2934, %v2926
    %v3519 = vpack.c.b16 %v2935, %v2927
    %v3520 = vpack.c.b16 %v2936, %v2928
    %v3521 = vpack.c.b16 %v2937, %v2929
    %v3522 = vpack.c.b16 %v2946, %v2938
    %v3523 = vpack.c.b16 %v2947, %v2939
    %v3524 = vpack.c.b16 %v2948, %v2940
    %v3525 = vpack.c.b16 %v2949, %v2941
    %v3526 = vpack.c.b16 %v2950, %v2942
    %v3527 = vpack.c.b16 %v2951, %v2943
    %v3528 = vpack.c.b16 %v2952, %v2944
    %v3529 = vpack.c.b16 %v2953, %v2945
    %v3530 = vpack.c.b16 %v2962, %v2954
    %v3531 = vpack.c.b16 %v2963, %v2955
    %v3532 = vpack.c.b16 %v2964, %v2956
    %v3533 = vpack.c.b16 %v2965, %v2957
    %v3534 = vpack.c.b16 %v2966, %v2958
    %v3535 = vpack.c.b16 %v2967, %v2959
    %v3536 = vpack.c.b16 %v2968, %v2960
    %v3537 = vpack.c.b16 %v2969, %v2961
    %v3538 = vpack.c.b16 %v2978, %v2970
    %v3539 = vpack.c.b16 %v2979, %v2971
    %v3540 = vpack.c.b16 %v2980, %v2972
    %v3541 = vpack.c.b16 %v2981, %v2973
    %v3542 = vpack.c.b16 %v2982, %v2974
    %v3543 = vpack.c.b16 %v2983, %v2975
    %v3544 = vpack.c.b16 %v2984, %v2976
    %v3545 = vpack.c.b16 %v2985, %v2977
    %v3546 = vpack.c.b16 %v2994, %v2986
    %v3547 = vpack.c.b16 %v2995, %v2987
    %v3548 = vpack.c.b16 %v2996, %v2988
    %v3549 = vpack.c.b16 %v2997, %v2989
    %v3550 = vpack.c.b16 %v2998, %v2990
    %v3551 = vpack.c.b16 %v2999, %v2991
    %v3552 = vpack.c.b16 %v3000, %v2992
    %v3553 = vpack.c.b16 %v3001, %v2993
    %v3554 = vpack.c.b16 %v3010, %v3002
    %v3555 = vpack.c.b16 %v3011, %v3003
    %v3556 = vpack.c.b16 %v3012, %v3004
    %v3557 = vpack.c.b16 %v3013, %v3005
    %v3558 = vpack.c.b16 %v3014, %v3006
    %v3559 = vpack.c.b16 %v3015, %v3007
    %v3560 = vpack.c.b16 %v3016, %v3008
    %v3561 = vpack.c.b16 %v3017, %v3009
    %v3562 = vpack.c.b16 %v3026, %v3018
    %v3563 = vpack.c.b16 %v3027, %v3019
    %v3564 = vpack.c.b16 %v3028, %v3020
    %v3565 = vpack.c.b16 %v3029, %v3021
    %v3566 = vpack.c.b16 %v3030, %v3022
    %v3567 = vpack.c.b16 %v3031, %v3023
    %v3568 = vpack.c.b16 %v3032, %v3024
    %v3569 = vpack.c.b16 %v3033, %v3025
    %v3570 = vpack.c.b16 %v3042, %v3034
    %v3571 = vpack.c.b16 %v3043, %v3035
    %v3572 = vpack.c.b16 %v3044, %v3036
    %v3573 = vpack.c.b16 %v3045, %v3037
    %v3574 = vpack.c.b16 %v3046, %v3038
    %v3575 = vpack.c.b16 %v3047, %v3039
    %v3576 = vpack.c.b16 %v3048, %v3040
    %v3577 = vpack.c.b16 %v3049, %v3041
    %v3578 = vpack.c.b16 %v3058, %v3050
    %v3579 = vpack.c.b16 %v3059, %v3051
    %v3580 = vpack.c.b16 %v3060, %v3052
    %v3581 = vpack.c.b16 %v3061, %v3053
    %v3582 = vpack.c.b16 %v3062, %v3054
    %v3583 = vpack.c.b16 %v3063, %v3055
    %v3584 = vpack.c.b16 %v3064, %v3056
    %v3585 = vpack.c.b16 %v3065, %v3057
    %v3586 = vpack.c.b16 %v3074, %v3066
    %v3587 = vpack.c.b16 %v3075, %v3067
    %v3588 = vpack.c.b16 %v3076, %v3068
    %v3589 = vpack.c.b16 %v3077, %v3069
    %v3590 = vpack.c.b16 %v3078, %v3070
    %v3591 = vpack.c.b16 %v3079, %v3071
    %v3592 = vpack.c.b16 %v3080, %v3072
    %v3593 = vpack.c.b16 %v3081, %v3073
    %4106 = vmatprep.subr.bf16.mxu0 %v3083
    %4107 = vmatpush1.bf16.msra.mxu0 %v3082
    %4108 = vmatprep.subr.bf16.mxu0 %v3091
    %4109 = vmatpush1.bf16.msra.mxu0 %v3090
    %4110 = vmatprep.subr.bf16.mxu0 %v3099
    %4111 = vmatpush1.bf16.msra.mxu0 %v3098
    %4112 = vmatprep.subr.bf16.mxu0 %v3107
    %4113 = vmatpush1.bf16.msra.mxu0 %v3106
    %4114 = vmatprep.subr.bf16.mxu0 %v3115
    %4115 = vmatpush1.bf16.msra.mxu0 %v3114
    %4116 = vmatprep.subr.bf16.mxu0 %v3123
    %4117 = vmatpush1.bf16.msra.mxu0 %v3122
    %4118 = vmatprep.subr.bf16.mxu0 %v3131
    %4119 = vmatpush1.bf16.msra.mxu0 %v3130
    %4120 = vmatprep.subr.bf16.mxu0 %v3139
    %4121 = vmatpush1.bf16.msra.mxu0 %v3138
    %4122 = vmatprep.subr.bf16.mxu0 %v3147
    %4123 = vmatpush1.bf16.msra.mxu0 %v3146
    %4124 = vmatprep.subr.bf16.mxu0 %v3155
    %4125 = vmatpush1.bf16.msra.mxu0 %v3154
    %4126 = vmatprep.subr.bf16.mxu0 %v3163
    %4127 = vmatpush1.bf16.msra.mxu0 %v3162
    %4128 = vmatprep.subr.bf16.mxu0 %v3171
    %4129 = vmatpush1.bf16.msra.mxu0 %v3170
    %4130 = vmatprep.subr.bf16.mxu0 %v3179
    %4131 = vmatpush1.bf16.msra.mxu0 %v3178
    %4132 = vmatprep.subr.bf16.mxu0 %v3187
    %4133 = vmatpush1.bf16.msra.mxu0 %v3186
    %4134 = vmatprep.subr.bf16.mxu0 %v3195
    %4135 = vmatpush1.bf16.msra.mxu0 %v3194
    %4136 = vmatprep.subr.bf16.mxu0 %v3203
    %4137 = vmatpush1.bf16.msra.mxu0 %v3202
    %4138 = vmatprep.mubr.bf16.mxu0 %v985
    %4139 = vmatmul.mubr.bf16.gmra.mrb[0].mxu0 %v984
    %v4140 = vpop.f32.mrb[0].mxu0
    %v4141 = vadd.f32 %v1509, %v4140
    %v4142 = vpop.f32.mrb[0].mxu0
    %v4143 = vadd.f32 %v1513, %v4142
    %v4144 = vpop.f32.mrb[0].mxu0
    %v4145 = vadd.f32 %v1509, %v4144
    %v4146 = vpop.f32.mrb[0].mxu0
    %v4147 = vadd.f32 %v1513, %v4146
    %4148 = vdwg.mxu0
    %4149 = vmatprep.subr.bf16.mxu0 %v3211
    %4150 = vmatpush1.bf16.msra.mxu0 %v3210
    %4151 = vmatprep.subr.bf16.mxu0 %v3219
    %4152 = vmatpush1.bf16.msra.mxu0 %v3218
    %4153 = vmatprep.subr.bf16.mxu0 %v3227
    %4154 = vmatpush1.bf16.msra.mxu0 %v3226
    %4155 = vmatprep.subr.bf16.mxu0 %v3235
    %4156 = vmatpush1.bf16.msra.mxu0 %v3234
    %4157 = vmatprep.subr.bf16.mxu0 %v3243
    %4158 = vmatpush1.bf16.msra.mxu0 %v3242
    %4159 = vmatprep.subr.bf16.mxu0 %v3251
    %4160 = vmatpush1.bf16.msra.mxu0 %v3250
    %4161 = vmatprep.subr.bf16.mxu0 %v3259
    %4162 = vmatpush1.bf16.msra.mxu0 %v3258
    %4163 = vmatprep.subr.bf16.mxu0 %v3267
    %4164 = vmatpush1.bf16.msra.mxu0 %v3266
    %4165 = vmatprep.subr.bf16.mxu0 %v3275
    %4166 = vmatpush1.bf16.msra.mxu0 %v3274
    %4167 = vmatprep.subr.bf16.mxu0 %v3283
    %4168 = vmatpush1.bf16.msra.mxu0 %v3282
    %4169 = vmatprep.subr.bf16.mxu0 %v3291
    %4170 = vmatpush1.bf16.msra.mxu0 %v3290
    %4171 = vmatprep.subr.bf16.mxu0 %v3299
    %4172 = vmatpush1.bf16.msra.mxu0 %v3298
    %4173 = vmatprep.subr.bf16.mxu0 %v3307
    %4174 = vmatpush1.bf16.msra.mxu0 %v3306
    %4175 = vmatprep.subr.bf16.mxu0 %v3315
    %4176 = vmatpush1.bf16.msra.mxu0 %v3314
    %4177 = vmatprep.subr.bf16.mxu0 %v3323
    %4178 = vmatpush1.bf16.msra.mxu0 %v3322
    %4179 = vmatprep.subr.bf16.mxu0 %v3331
    %4180 = vmatpush1.bf16.msra.mxu0 %v3330
    %4181 = vmatprep.mubr.bf16.mxu0 %v987
    %4182 = vmatmul.mubr.bf16.gmra.mrb[0].mxu0 %v986
    %v4183 = vpop.f32.mrb[0].mxu0
    %v4184 = vadd.f32 %v4141, %v4183
    %v4185 = vpop.f32.mrb[0].mxu0
    %v4186 = vadd.f32 %v4143, %v4185
    %v4187 = vpop.f32.mrb[0].mxu0
    %v4188 = vadd.f32 %v4145, %v4187
    %v4189 = vpop.f32.mrb[0].mxu0
    %v4190 = vadd.f32 %v4147, %v4189
    %4191 = vdwg.mxu0
    %4192 = vmatprep.subr.bf16.mxu0 %v3339
    %4193 = vmatpush1.bf16.msra.mxu0 %v3338
    %4194 = vmatprep.subr.bf16.mxu0 %v3347
    %4195 = vmatpush1.bf16.msra.mxu0 %v3346
    %4196 = vmatprep.subr.bf16.mxu0 %v3355
    %4197 = vmatpush1.bf16.msra.mxu0 %v3354
    %4198 = vmatprep.subr.bf16.mxu0 %v3363
    %4199 = vmatpush1.bf16.msra.mxu0 %v3362
    %4200 = vmatprep.subr.bf16.mxu0 %v3371
    %4201 = vmatpush1.bf16.msra.mxu0 %v3370
    %4202 = vmatprep.subr.bf16.mxu0 %v3379
    %4203 = vmatpush1.bf16.msra.mxu0 %v3378
    %4204 = vmatprep.subr.bf16.mxu0 %v3387
    %4205 = vmatpush1.bf16.msra.mxu0 %v3386
    %4206 = vmatprep.subr.bf16.mxu0 %v3395
    %4207 = vmatpush1.bf16.msra.mxu0 %v3394
    %4208 = vmatprep.subr.bf16.mxu0 %v3403
    %4209 = vmatpush1.bf16.msra.mxu0 %v3402
    %4210 = vmatprep.subr.bf16.mxu0 %v3411
    %4211 = vmatpush1.bf16.msra.mxu0 %v3410
    %4212 = vmatprep.subr.bf16.mxu0 %v3419
    %4213 = vmatpush1.bf16.msra.mxu0 %v3418
    %4214 = vmatprep.subr.bf16.mxu0 %v3427
    %4215 = vmatpush1.bf16.msra.mxu0 %v3426
    %4216 = vmatprep.subr.bf16.mxu0 %v3435
    %4217 = vmatpush1.bf16.msra.mxu0 %v3434
    %4218 = vmatprep.subr.bf16.mxu0 %v3443
    %4219 = vmatpush1.bf16.msra.mxu0 %v3442
    %4220 = vmatprep.subr.bf16.mxu0 %v3451
    %4221 = vmatpush1.bf16.msra.mxu0 %v3450
    %4222 = vmatprep.subr.bf16.mxu0 %v3459
    %4223 = vmatpush1.bf16.msra.mxu0 %v3458
    %4224 = vmatprep.mubr.bf16.mxu0 %v989
    %4225 = vmatmul.mubr.bf16.gmra.mrb[0].mxu0 %v988
    %v4226 = vpop.f32.mrb[0].mxu0
    %v4227 = vadd.f32 %v4184, %v4226
    %v4228 = vpop.f32.mrb[0].mxu0
    %v4229 = vadd.f32 %v4186, %v4228
    %v4230 = vpop.f32.mrb[0].mxu0
    %v4231 = vadd.f32 %v4188, %v4230
    %v4232 = vpop.f32.mrb[0].mxu0
    %v4233 = vadd.f32 %v4190, %v4232
    %4234 = vdwg.mxu0
    %4235 = vmatprep.subr.bf16.mxu0 %v3467
    %4236 = vmatpush1.bf16.msra.mxu0 %v3466
    %4237 = vmatprep.subr.bf16.mxu0 %v3475
    %4238 = vmatpush1.bf16.msra.mxu0 %v3474
    %4239 = vmatprep.subr.bf16.mxu0 %v3483
    %4240 = vmatpush1.bf16.msra.mxu0 %v3482
    %4241 = vmatprep.subr.bf16.mxu0 %v3491
    %4242 = vmatpush1.bf16.msra.mxu0 %v3490
    %4243 = vmatprep.subr.bf16.mxu0 %v3499
    %4244 = vmatpush1.bf16.msra.mxu0 %v3498
    %4245 = vmatprep.subr.bf16.mxu0 %v3507
    %4246 = vmatpush1.bf16.msra.mxu0 %v3506
    %4247 = vmatprep.subr.bf16.mxu0 %v3515
    %4248 = vmatpush1.bf16.msra.mxu0 %v3514
    %4249 = vmatprep.subr.bf16.mxu0 %v3523
    %4250 = vmatpush1.bf16.msra.mxu0 %v3522
    %4251 = vmatprep.subr.bf16.mxu0 %v3531
    %4252 = vmatpush1.bf16.msra.mxu0 %v3530
    %4253 = vmatprep.subr.bf16.mxu0 %v3539
    %4254 = vmatpush1.bf16.msra.mxu0 %v3538
    %4255 = vmatprep.subr.bf16.mxu0 %v3547
    %4256 = vmatpush1.bf16.msra.mxu0 %v3546
    %4257 = vmatprep.subr.bf16.mxu0 %v3555
    %4258 = vmatpush1.bf16.msra.mxu0 %v3554
    %4259 = vmatprep.subr.bf16.mxu0 %v3563
    %4260 = vmatpush1.bf16.msra.mxu0 %v3562
    %4261 = vmatprep.subr.bf16.mxu0 %v3571
    %4262 = vmatpush1.bf16.msra.mxu0 %v3570
    %4263 = vmatprep.subr.bf16.mxu0 %v3579
    %4264 = vmatpush1.bf16.msra.mxu0 %v3578
    %4265 = vmatprep.subr.bf16.mxu0 %v3587
    %4266 = vmatpush1.bf16.msra.mxu0 %v3586
    %4267 = vmatprep.mubr.bf16.mxu0 %v991
    %4268 = vmatmul.mubr.bf16.gmra.mrb[0].mxu0 %v990
    %v4269 = vpop.f32.mrb[0].mxu0
    %v4270 = vadd.f32 %v4227, %v4269
    %v4271 = vpop.f32.mrb[0].mxu0
    %v4272 = vadd.f32 %v4229, %v4271
    %v4273 = vpop.f32.mrb[0].mxu0
    %v4274 = vadd.f32 %v4231, %v4273
    %v4275 = vpop.f32.mrb[0].mxu0
    %v4276 = vadd.f32 %v4233, %v4275
    %4277 = vdwg.mxu0
    %4278 = vmatprep.subr.bf16.mxu0 %v3085
    %4279 = vmatpush1.bf16.msra.mxu0 %v3084
    %4280 = vmatprep.subr.bf16.mxu0 %v3093
    %4281 = vmatpush1.bf16.msra.mxu0 %v3092
    %4282 = vmatprep.subr.bf16.mxu0 %v3101
    %4283 = vmatpush1.bf16.msra.mxu0 %v3100
    %4284 = vmatprep.subr.bf16.mxu0 %v3109
    %4285 = vmatpush1.bf16.msra.mxu0 %v3108
    %4286 = vmatprep.subr.bf16.mxu0 %v3117
    %4287 = vmatpush1.bf16.msra.mxu0 %v3116
    %4288 = vmatprep.subr.bf16.mxu0 %v3125
    %4289 = vmatpush1.bf16.msra.mxu0 %v3124
    %4290 = vmatprep.subr.bf16.mxu0 %v3133
    %4291 = vmatpush1.bf16.msra.mxu0 %v3132
    %4292 = vmatprep.subr.bf16.mxu0 %v3141
    %4293 = vmatpush1.bf16.msra.mxu0 %v3140
    %4294 = vmatprep.subr.bf16.mxu0 %v3149
    %4295 = vmatpush1.bf16.msra.mxu0 %v3148
    %4296 = vmatprep.subr.bf16.mxu0 %v3157
    %4297 = vmatpush1.bf16.msra.mxu0 %v3156
    %4298 = vmatprep.subr.bf16.mxu0 %v3165
    %4299 = vmatpush1.bf16.msra.mxu0 %v3164
    %4300 = vmatprep.subr.bf16.mxu0 %v3173
    %4301 = vmatpush1.bf16.msra.mxu0 %v3172
    %4302 = vmatprep.subr.bf16.mxu0 %v3181
    %4303 = vmatpush1.bf16.msra.mxu0 %v3180
    %4304 = vmatprep.subr.bf16.mxu0 %v3189
    %4305 = vmatpush1.bf16.msra.mxu0 %v3188
    %4306 = vmatprep.subr.bf16.mxu0 %v3197
    %4307 = vmatpush1.bf16.msra.mxu0 %v3196
    %4308 = vmatprep.subr.bf16.mxu0 %v3205
    %4309 = vmatpush1.bf16.msra.mxu0 %v3204
    %4310 = vmatprep.mubr.bf16.mxu0 %v985
    %4311 = vmatmul.mubr.bf16.gmra.mrb[0].mxu0 %v984
    %v4312 = vpop.f32.mrb[0].mxu0
    %v4313 = vadd.f32 %v1517, %v4312
    %v4314 = vpop.f32.mrb[0].mxu0
    %v4315 = vadd.f32 %v1521, %v4314
    %v4316 = vpop.f32.mrb[0].mxu0
    %v4317 = vadd.f32 %v1517, %v4316
    %v4318 = vpop.f32.mrb[0].mxu0
    %v4319 = vadd.f32 %v1521, %v4318
    %4320 = vdwg.mxu0
    %4321 = vmatprep.subr.bf16.mxu0 %v3213
    %4322 = vmatpush1.bf16.msra.mxu0 %v3212
    %4323 = vmatprep.subr.bf16.mxu0 %v3221
    %4324 = vmatpush1.bf16.msra.mxu0 %v3220
    %4325 = vmatprep.subr.bf16.mxu0 %v3229
    %4326 = vmatpush1.bf16.msra.mxu0 %v3228
    %4327 = vmatprep.subr.bf16.mxu0 %v3237
    %4328 = vmatpush1.bf16.msra.mxu0 %v3236
    %4329 = vmatprep.subr.bf16.mxu0 %v3245
    %4330 = vmatpush1.bf16.msra.mxu0 %v3244
    %4331 = vmatprep.subr.bf16.mxu0 %v3253
    %4332 = vmatpush1.bf16.msra.mxu0 %v3252
    %4333 = vmatprep.subr.bf16.mxu0 %v3261
    %4334 = vmatpush1.bf16.msra.mxu0 %v3260
    %4335 = vmatprep.subr.bf16.mxu0 %v3269
    %4336 = vmatpush1.bf16.msra.mxu0 %v3268
    %4337 = vmatprep.subr.bf16.mxu0 %v3277
    %4338 = vmatpush1.bf16.msra.mxu0 %v3276
    %4339 = vmatprep.subr.bf16.mxu0 %v3285
    %4340 = vmatpush1.bf16.msra.mxu0 %v3284
    %4341 = vmatprep.subr.bf16.mxu0 %v3293
    %4342 = vmatpush1.bf16.msra.mxu0 %v3292
    %4343 = vmatprep.subr.bf16.mxu0 %v3301
    %4344 = vmatpush1.bf16.msra.mxu0 %v3300
    %4345 = vmatprep.subr.bf16.mxu0 %v3309
    %4346 = vmatpush1.bf16.msra.mxu0 %v3308
    %4347 = vmatprep.subr.bf16.mxu0 %v3317
    %4348 = vmatpush1.bf16.msra.mxu0 %v3316
    %4349 = vmatprep.subr.bf16.mxu0 %v3325
    %4350 = vmatpush1.bf16.msra.mxu0 %v3324
    %4351 = vmatprep.subr.bf16.mxu0 %v3333
    %4352 = vmatpush1.bf16.msra.mxu0 %v3332
    %4353 = vmatprep.mubr.bf16.mxu0 %v987
    %4354 = vmatmul.mubr.bf16.gmra.mrb[0].mxu0 %v986
    %v4355 = vpop.f32.mrb[0].mxu0
    %v4356 = vadd.f32 %v4313, %v4355
    %v4357 = vpop.f32.mrb[0].mxu0
    %v4358 = vadd.f32 %v4315, %v4357
    %v4359 = vpop.f32.mrb[0].mxu0
    %v4360 = vadd.f32 %v4317, %v4359
    %v4361 = vpop.f32.mrb[0].mxu0
    %v4362 = vadd.f32 %v4319, %v4361
    %4363 = vdwg.mxu0
    %4364 = vmatprep.subr.bf16.mxu0 %v3341
    %4365 = vmatpush1.bf16.msra.mxu0 %v3340
    %4366 = vmatprep.subr.bf16.mxu0 %v3349
    %4367 = vmatpush1.bf16.msra.mxu0 %v3348
    %4368 = vmatprep.subr.bf16.mxu0 %v3357
    %4369 = vmatpush1.bf16.msra.mxu0 %v3356
    %4370 = vmatprep.subr.bf16.mxu0 %v3365
    %4371 = vmatpush1.bf16.msra.mxu0 %v3364
    %4372 = vmatprep.subr.bf16.mxu0 %v3373
    %4373 = vmatpush1.bf16.msra.mxu0 %v3372
    %4374 = vmatprep.subr.bf16.mxu0 %v3381
    %4375 = vmatpush1.bf16.msra.mxu0 %v3380
    %4376 = vmatprep.subr.bf16.mxu0 %v3389
    %4377 = vmatpush1.bf16.msra.mxu0 %v3388
    %4378 = vmatprep.subr.bf16.mxu0 %v3397
    %4379 = vmatpush1.bf16.msra.mxu0 %v3396
    %4380 = vmatprep.subr.bf16.mxu0 %v3405
    %4381 = vmatpush1.bf16.msra.mxu0 %v3404
    %4382 = vmatprep.subr.bf16.mxu0 %v3413
    %4383 = vmatpush1.bf16.msra.mxu0 %v3412
    %4384 = vmatprep.subr.bf16.mxu0 %v3421
    %4385 = vmatpush1.bf16.msra.mxu0 %v3420
    %4386 = vmatprep.subr.bf16.mxu0 %v3429
    %4387 = vmatpush1.bf16.msra.mxu0 %v3428
    %4388 = vmatprep.subr.bf16.mxu0 %v3437
    %4389 = vmatpush1.bf16.msra.mxu0 %v3436
    %4390 = vmatprep.subr.bf16.mxu0 %v3445
    %4391 = vmatpush1.bf16.msra.mxu0 %v3444
    %4392 = vmatprep.subr.bf16.mxu0 %v3453
    %4393 = vmatpush1.bf16.msra.mxu0 %v3452
    %4394 = vmatprep.subr.bf16.mxu0 %v3461
    %4395 = vmatpush1.bf16.msra.mxu0 %v3460
    %4396 = vmatprep.mubr.bf16.mxu0 %v989
    %4397 = vmatmul.mubr.bf16.gmra.mrb[0].mxu0 %v988
    %v4398 = vpop.f32.mrb[0].mxu0
    %v4399 = vadd.f32 %v4356, %v4398
    %v4400 = vpop.f32.mrb[0].mxu0
    %v4401 = vadd.f32 %v4358, %v4400
    %v4402 = vpop.f32.mrb[0].mxu0
    %v4403 = vadd.f32 %v4360, %v4402
    %v4404 = vpop.f32.mrb[0].mxu0
    %v4405 = vadd.f32 %v4362, %v4404
    %4406 = vdwg.mxu0
    %4407 = vmatprep.subr.bf16.mxu0 %v3469
    %4408 = vmatpush1.bf16.msra.mxu0 %v3468
    %4409 = vmatprep.subr.bf16.mxu0 %v3477
    %4410 = vmatpush1.bf16.msra.mxu0 %v3476
    %4411 = vmatprep.subr.bf16.mxu0 %v3485
    %4412 = vmatpush1.bf16.msra.mxu0 %v3484
    %4413 = vmatprep.subr.bf16.mxu0 %v3493
    %4414 = vmatpush1.bf16.msra.mxu0 %v3492
    %4415 = vmatprep.subr.bf16.mxu0 %v3501
    %4416 = vmatpush1.bf16.msra.mxu0 %v3500
    %4417 = vmatprep.subr.bf16.mxu0 %v3509
    %4418 = vmatpush1.bf16.msra.mxu0 %v3508
    %4419 = vmatprep.subr.bf16.mxu0 %v3517
    %4420 = vmatpush1.bf16.msra.mxu0 %v3516
    %4421 = vmatprep.subr.bf16.mxu0 %v3525
    %4422 = vmatpush1.bf16.msra.mxu0 %v3524
    %4423 = vmatprep.subr.bf16.mxu0 %v3533
    %4424 = vmatpush1.bf16.msra.mxu0 %v3532
    %4425 = vmatprep.subr.bf16.mxu0 %v3541
    %4426 = vmatpush1.bf16.msra.mxu0 %v3540
    %4427 = vmatprep.subr.bf16.mxu0 %v3549
    %4428 = vmatpush1.bf16.msra.mxu0 %v3548
    %4429 = vmatprep.subr.bf16.mxu0 %v3557
    %4430 = vmatpush1.bf16.msra.mxu0 %v3556
    %4431 = vmatprep.subr.bf16.mxu0 %v3565
    %4432 = vmatpush1.bf16.msra.mxu0 %v3564
    %4433 = vmatprep.subr.bf16.mxu0 %v3573
    %4434 = vmatpush1.bf16.msra.mxu0 %v3572
    %4435 = vmatprep.subr.bf16.mxu0 %v3581
    %4436 = vmatpush1.bf16.msra.mxu0 %v3580
    %4437 = vmatprep.subr.bf16.mxu0 %v3589
    %4438 = vmatpush1.bf16.msra.mxu0 %v3588
    %4439 = vmatprep.mubr.bf16.mxu0 %v991
    %4440 = vmatmul.mubr.bf16.gmra.mrb[0].mxu0 %v990
    %v4441 = vpop.f32.mrb[0].mxu0
    %v4442 = vadd.f32 %v4399, %v4441
    %v4443 = vpop.f32.mrb[0].mxu0
    %v4444 = vadd.f32 %v4401, %v4443
    %v4445 = vpop.f32.mrb[0].mxu0
    %v4446 = vadd.f32 %v4403, %v4445
    %v4447 = vpop.f32.mrb[0].mxu0
    %v4448 = vadd.f32 %v4405, %v4447
    %4449 = vdwg.mxu0
    %4450 = vmatprep.subr.bf16.mxu0 %v3087
    %4451 = vmatpush1.bf16.msra.mxu0 %v3086
    %4452 = vmatprep.subr.bf16.mxu0 %v3095
    %4453 = vmatpush1.bf16.msra.mxu0 %v3094
    %4454 = vmatprep.subr.bf16.mxu0 %v3103
    %4455 = vmatpush1.bf16.msra.mxu0 %v3102
    %4456 = vmatprep.subr.bf16.mxu0 %v3111
    %4457 = vmatpush1.bf16.msra.mxu0 %v3110
    %4458 = vmatprep.subr.bf16.mxu0 %v3119
    %4459 = vmatpush1.bf16.msra.mxu0 %v3118
    %4460 = vmatprep.subr.bf16.mxu0 %v3127
    %4461 = vmatpush1.bf16.msra.mxu0 %v3126
    %4462 = vmatprep.subr.bf16.mxu0 %v3135
    %4463 = vmatpush1.bf16.msra.mxu0 %v3134
    %4464 = vmatprep.subr.bf16.mxu0 %v3143
    %4465 = vmatpush1.bf16.msra.mxu0 %v3142
    %4466 = vmatprep.subr.bf16.mxu0 %v3151
    %4467 = vmatpush1.bf16.msra.mxu0 %v3150
    %4468 = vmatprep.subr.bf16.mxu0 %v3159
    %4469 = vmatpush1.bf16.msra.mxu0 %v3158
    %4470 = vmatprep.subr.bf16.mxu0 %v3167
    %4471 = vmatpush1.bf16.msra.mxu0 %v3166
    %4472 = vmatprep.subr.bf16.mxu0 %v3175
    %4473 = vmatpush1.bf16.msra.mxu0 %v3174
    %4474 = vmatprep.subr.bf16.mxu0 %v3183
    %4475 = vmatpush1.bf16.msra.mxu0 %v3182
    %4476 = vmatprep.subr.bf16.mxu0 %v3191
    %4477 = vmatpush1.bf16.msra.mxu0 %v3190
    %4478 = vmatprep.subr.bf16.mxu0 %v3199
    %4479 = vmatpush1.bf16.msra.mxu0 %v3198
    %4480 = vmatprep.subr.bf16.mxu0 %v3207
    %4481 = vmatpush1.bf16.msra.mxu0 %v3206
    %4482 = vmatprep.mubr.bf16.mxu0 %v985
    %4483 = vmatmul.mubr.bf16.gmra.mrb[0].mxu0 %v984
    %v4484 = vpop.f32.mrb[0].mxu0
    %v4485 = vadd.f32 %v1525, %v4484
    %v4486 = vpop.f32.mrb[0].mxu0
    %v4487 = vadd.f32 %v1529, %v4486
    %v4488 = vpop.f32.mrb[0].mxu0
    %v4489 = vadd.f32 %v1525, %v4488
    %v4490 = vpop.f32.mrb[0].mxu0
    %v4491 = vadd.f32 %v1529, %v4490
    %4492 = vdwg.mxu0
    %4493 = vmatprep.subr.bf16.mxu0 %v3215
    %4494 = vmatpush1.bf16.msra.mxu0 %v3214
    %4495 = vmatprep.subr.bf16.mxu0 %v3223
    %4496 = vmatpush1.bf16.msra.mxu0 %v3222
    %4497 = vmatprep.subr.bf16.mxu0 %v3231
    %4498 = vmatpush1.bf16.msra.mxu0 %v3230
    %4499 = vmatprep.subr.bf16.mxu0 %v3239
    %4500 = vmatpush1.bf16.msra.mxu0 %v3238
    %4501 = vmatprep.subr.bf16.mxu0 %v3247
    %4502 = vmatpush1.bf16.msra.mxu0 %v3246
    %4503 = vmatprep.subr.bf16.mxu0 %v3255
    %4504 = vmatpush1.bf16.msra.mxu0 %v3254
    %4505 = vmatprep.subr.bf16.mxu0 %v3263
    %4506 = vmatpush1.bf16.msra.mxu0 %v3262
    %4507 = vmatprep.subr.bf16.mxu0 %v3271
    %4508 = vmatpush1.bf16.msra.mxu0 %v3270
    %4509 = vmatprep.subr.bf16.mxu0 %v3279
    %4510 = vmatpush1.bf16.msra.mxu0 %v3278
    %4511 = vmatprep.subr.bf16.mxu0 %v3287
    %4512 = vmatpush1.bf16.msra.mxu0 %v3286
    %4513 = vmatprep.subr.bf16.mxu0 %v3295
    %4514 = vmatpush1.bf16.msra.mxu0 %v3294
    %4515 = vmatprep.subr.bf16.mxu0 %v3303
    %4516 = vmatpush1.bf16.msra.mxu0 %v3302
    %4517 = vmatprep.subr.bf16.mxu0 %v3311
    %4518 = vmatpush1.bf16.msra.mxu0 %v3310
    %4519 = vmatprep.subr.bf16.mxu0 %v3319
    %4520 = vmatpush1.bf16.msra.mxu0 %v3318
    %4521 = vmatprep.subr.bf16.mxu0 %v3327
    %4522 = vmatpush1.bf16.msra.mxu0 %v3326
    %4523 = vmatprep.subr.bf16.mxu0 %v3335
    %4524 = vmatpush1.bf16.msra.mxu0 %v3334
    %4525 = vmatprep.mubr.bf16.mxu0 %v987
    %4526 = vmatmul.mubr.bf16.gmra.mrb[0].mxu0 %v986
    %v4527 = vpop.f32.mrb[0].mxu0
    %v4528 = vadd.f32 %v4485, %v4527
    %v4529 = vpop.f32.mrb[0].mxu0
    %v4530 = vadd.f32 %v4487, %v4529
    %v4531 = vpop.f32.mrb[0].mxu0
    %v4532 = vadd.f32 %v4489, %v4531
    %v4533 = vpop.f32.mrb[0].mxu0
    %v4534 = vadd.f32 %v4491, %v4533
    %4535 = vdwg.mxu0
    %4536 = vmatprep.subr.bf16.mxu0 %v3343
    %4537 = vmatpush1.bf16.msra.mxu0 %v3342
    %4538 = vmatprep.subr.bf16.mxu0 %v3351
    %4539 = vmatpush1.bf16.msra.mxu0 %v3350
    %4540 = vmatprep.subr.bf16.mxu0 %v3359
    %4541 = vmatpush1.bf16.msra.mxu0 %v3358
    %4542 = vmatprep.subr.bf16.mxu0 %v3367
    %4543 = vmatpush1.bf16.msra.mxu0 %v3366
    %4544 = vmatprep.subr.bf16.mxu0 %v3375
    %4545 = vmatpush1.bf16.msra.mxu0 %v3374
    %4546 = vmatprep.subr.bf16.mxu0 %v3383
    %4547 = vmatpush1.bf16.msra.mxu0 %v3382
    %4548 = vmatprep.subr.bf16.mxu0 %v3391
    %4549 = vmatpush1.bf16.msra.mxu0 %v3390
    %4550 = vmatprep.subr.bf16.mxu0 %v3399
    %4551 = vmatpush1.bf16.msra.mxu0 %v3398
    %4552 = vmatprep.subr.bf16.mxu0 %v3407
    %4553 = vmatpush1.bf16.msra.mxu0 %v3406
    %4554 = vmatprep.subr.bf16.mxu0 %v3415
    %4555 = vmatpush1.bf16.msra.mxu0 %v3414
    %4556 = vmatprep.subr.bf16.mxu0 %v3423
    %4557 = vmatpush1.bf16.msra.mxu0 %v3422
    %4558 = vmatprep.subr.bf16.mxu0 %v3431
    %4559 = vmatpush1.bf16.msra.mxu0 %v3430
    %4560 = vmatprep.subr.bf16.mxu0 %v3439
    %4561 = vmatpush1.bf16.msra.mxu0 %v3438
    %4562 = vmatprep.subr.bf16.mxu0 %v3447
    %4563 = vmatpush1.bf16.msra.mxu0 %v3446
    %4564 = vmatprep.subr.bf16.mxu0 %v3455
    %4565 = vmatpush1.bf16.msra.mxu0 %v3454
    %4566 = vmatprep.subr.bf16.mxu0 %v3463
    %4567 = vmatpush1.bf16.msra.mxu0 %v3462
    %4568 = vmatprep.mubr.bf16.mxu0 %v989
    %4569 = vmatmul.mubr.bf16.gmra.mrb[0].mxu0 %v988
    %v4570 = vpop.f32.mrb[0].mxu0
    %v4571 = vadd.f32 %v4528, %v4570
    %v4572 = vpop.f32.mrb[0].mxu0
    %v4573 = vadd.f32 %v4530, %v4572
    %v4574 = vpop.f32.mrb[0].mxu0
    %v4575 = vadd.f32 %v4532, %v4574
    %v4576 = vpop.f32.mrb[0].mxu0
    %v4577 = vadd.f32 %v4534, %v4576
    %4578 = vdwg.mxu0
    %4579 = vmatprep.subr.bf16.mxu0 %v3471
    %4580 = vmatpush1.bf16.msra.mxu0 %v3470
    %4581 = vmatprep.subr.bf16.mxu0 %v3479
    %4582 = vmatpush1.bf16.msra.mxu0 %v3478
    %4583 = vmatprep.subr.bf16.mxu0 %v3487
    %4584 = vmatpush1.bf16.msra.mxu0 %v3486
    %4585 = vmatprep.subr.bf16.mxu0 %v3495
    %4586 = vmatpush1.bf16.msra.mxu0 %v3494
    %4587 = vmatprep.subr.bf16.mxu0 %v3503
    %4588 = vmatpush1.bf16.msra.mxu0 %v3502
    %4589 = vmatprep.subr.bf16.mxu0 %v3511
    %4590 = vmatpush1.bf16.msra.mxu0 %v3510
    %4591 = vmatprep.subr.bf16.mxu0 %v3519
    %4592 = vmatpush1.bf16.msra.mxu0 %v3518
    %4593 = vmatprep.subr.bf16.mxu0 %v3527
    %4594 = vmatpush1.bf16.msra.mxu0 %v3526
    %4595 = vmatprep.subr.bf16.mxu0 %v3535
    %4596 = vmatpush1.bf16.msra.mxu0 %v3534
    %4597 = vmatprep.subr.bf16.mxu0 %v3543
    %4598 = vmatpush1.bf16.msra.mxu0 %v3542
    %4599 = vmatprep.subr.bf16.mxu0 %v3551
    %4600 = vmatpush1.bf16.msra.mxu0 %v3550
    %4601 = vmatprep.subr.bf16.mxu0 %v3559
    %4602 = vmatpush1.bf16.msra.mxu0 %v3558
    %4603 = vmatprep.subr.bf16.mxu0 %v3567
    %4604 = vmatpush1.bf16.msra.mxu0 %v3566
    %4605 = vmatprep.subr.bf16.mxu0 %v3575
    %4606 = vmatpush1.bf16.msra.mxu0 %v3574
    %4607 = vmatprep.subr.bf16.mxu0 %v3583
    %4608 = vmatpush1.bf16.msra.mxu0 %v3582
    %4609 = vmatprep.subr.bf16.mxu0 %v3591
    %4610 = vmatpush1.bf16.msra.mxu0 %v3590
    %4611 = vmatprep.mubr.bf16.mxu0 %v991
    %4612 = vmatmul.mubr.bf16.gmra.mrb[0].mxu0 %v990
    %v4613 = vpop.f32.mrb[0].mxu0
    %v4614 = vadd.f32 %v4571, %v4613
    %v4615 = vpop.f32.mrb[0].mxu0
    %v4616 = vadd.f32 %v4573, %v4615
    %v4617 = vpop.f32.mrb[0].mxu0
    %v4618 = vadd.f32 %v4575, %v4617
    %v4619 = vpop.f32.mrb[0].mxu0
    %v4620 = vadd.f32 %v4577, %v4619
    %4621 = vdwg.mxu0
    %4622 = vmatprep.subr.bf16.mxu0 %v3089
    %4623 = vmatpush1.bf16.msra.mxu0 %v3088
    %4624 = vmatprep.subr.bf16.mxu0 %v3097
    %4625 = vmatpush1.bf16.msra.mxu0 %v3096
    %4626 = vmatprep.subr.bf16.mxu0 %v3105
    %4627 = vmatpush1.bf16.msra.mxu0 %v3104
    %4628 = vmatprep.subr.bf16.mxu0 %v3113
    %4629 = vmatpush1.bf16.msra.mxu0 %v3112
    %4630 = vmatprep.subr.bf16.mxu0 %v3121
    %4631 = vmatpush1.bf16.msra.mxu0 %v3120
    %4632 = vmatprep.subr.bf16.mxu0 %v3129
    %4633 = vmatpush1.bf16.msra.mxu0 %v3128
    %4634 = vmatprep.subr.bf16.mxu0 %v3137
    %4635 = vmatpush1.bf16.msra.mxu0 %v3136
    %4636 = vmatprep.subr.bf16.mxu0 %v3145
    %4637 = vmatpush1.bf16.msra.mxu0 %v3144
    %4638 = vmatprep.subr.bf16.mxu0 %v3153
    %4639 = vmatpush1.bf16.msra.mxu0 %v3152
    %4640 = vmatprep.subr.bf16.mxu0 %v3161
    %4641 = vmatpush1.bf16.msra.mxu0 %v3160
    %4642 = vmatprep.subr.bf16.mxu0 %v3169
    %4643 = vmatpush1.bf16.msra.mxu0 %v3168
    %4644 = vmatprep.subr.bf16.mxu0 %v3177
    %4645 = vmatpush1.bf16.msra.mxu0 %v3176
    %4646 = vmatprep.subr.bf16.mxu0 %v3185
    %4647 = vmatpush1.bf16.msra.mxu0 %v3184
    %4648 = vmatprep.subr.bf16.mxu0 %v3193
    %4649 = vmatpush1.bf16.msra.mxu0 %v3192
    %4650 = vmatprep.subr.bf16.mxu0 %v3201
    %4651 = vmatpush1.bf16.msra.mxu0 %v3200
    %4652 = vmatprep.subr.bf16.mxu0 %v3209
    %4653 = vmatpush1.bf16.msra.mxu0 %v3208
    %4654 = vmatprep.mubr.bf16.mxu0 %v985
    %4655 = vmatmul.mubr.bf16.gmra.mrb[0].mxu0 %v984
    %v4656 = vpop.f32.mrb[0].mxu0
    %v4657 = vadd.f32 %v1533, %v4656
    %v4658 = vpop.f32.mrb[0].mxu0
    %v4659 = vadd.f32 %v1537, %v4658
    %v4660 = vpop.f32.mrb[0].mxu0
    %v4661 = vadd.f32 %v1533, %v4660
    %v4662 = vpop.f32.mrb[0].mxu0
    %v4663 = vadd.f32 %v1537, %v4662
    %4664 = vdwg.mxu0
    %4665 = vmatprep.subr.bf16.mxu0 %v3217
    %4666 = vmatpush1.bf16.msra.mxu0 %v3216
    %4667 = vmatprep.subr.bf16.mxu0 %v3225
    %4668 = vmatpush1.bf16.msra.mxu0 %v3224
    %4669 = vmatprep.subr.bf16.mxu0 %v3233
    %4670 = vmatpush1.bf16.msra.mxu0 %v3232
    %4671 = vmatprep.subr.bf16.mxu0 %v3241
    %4672 = vmatpush1.bf16.msra.mxu0 %v3240
    %4673 = vmatprep.subr.bf16.mxu0 %v3249
    %4674 = vmatpush1.bf16.msra.mxu0 %v3248
    %4675 = vmatprep.subr.bf16.mxu0 %v3257
    %4676 = vmatpush1.bf16.msra.mxu0 %v3256
    %4677 = vmatprep.subr.bf16.mxu0 %v3265
    %4678 = vmatpush1.bf16.msra.mxu0 %v3264
    %4679 = vmatprep.subr.bf16.mxu0 %v3273
    %4680 = vmatpush1.bf16.msra.mxu0 %v3272
    %4681 = vmatprep.subr.bf16.mxu0 %v3281
    %4682 = vmatpush1.bf16.msra.mxu0 %v3280
    %4683 = vmatprep.subr.bf16.mxu0 %v3289
    %4684 = vmatpush1.bf16.msra.mxu0 %v3288
    %4685 = vmatprep.subr.bf16.mxu0 %v3297
    %4686 = vmatpush1.bf16.msra.mxu0 %v3296
    %4687 = vmatprep.subr.bf16.mxu0 %v3305
    %4688 = vmatpush1.bf16.msra.mxu0 %v3304
    %4689 = vmatprep.subr.bf16.mxu0 %v3313
    %4690 = vmatpush1.bf16.msra.mxu0 %v3312
    %4691 = vmatprep.subr.bf16.mxu0 %v3321
    %4692 = vmatpush1.bf16.msra.mxu0 %v3320
    %4693 = vmatprep.subr.bf16.mxu0 %v3329
    %4694 = vmatpush1.bf16.msra.mxu0 %v3328
    %4695 = vmatprep.subr.bf16.mxu0 %v3337
    %4696 = vmatpush1.bf16.msra.mxu0 %v3336
    %4697 = vmatprep.mubr.bf16.mxu0 %v987
    %4698 = vmatmul.mubr.bf16.gmra.mrb[0].mxu0 %v986
    %v4699 = vpop.f32.mrb[0].mxu0
    %v4700 = vadd.f32 %v4657, %v4699
    %v4701 = vpop.f32.mrb[0].mxu0
    %v4702 = vadd.f32 %v4659, %v4701
    %v4703 = vpop.f32.mrb[0].mxu0
    %v4704 = vadd.f32 %v4661, %v4703
    %v4705 = vpop.f32.mrb[0].mxu0
    %v4706 = vadd.f32 %v4663, %v4705
    %4707 = vdwg.mxu0
    %4708 = vmatprep.subr.bf16.mxu0 %v3345
    %4709 = vmatpush1.bf16.msra.mxu0 %v3344
    %4710 = vmatprep.subr.bf16.mxu0 %v3353
    %4711 = vmatpush1.bf16.msra.mxu0 %v3352
    %4712 = vmatprep.subr.bf16.mxu0 %v3361
    %4713 = vmatpush1.bf16.msra.mxu0 %v3360
    %4714 = vmatprep.subr.bf16.mxu0 %v3369
    %4715 = vmatpush1.bf16.msra.mxu0 %v3368
    %4716 = vmatprep.subr.bf16.mxu0 %v3377
    %4717 = vmatpush1.bf16.msra.mxu0 %v3376
    %4718 = vmatprep.subr.bf16.mxu0 %v3385
    %4719 = vmatpush1.bf16.msra.mxu0 %v3384
    %4720 = vmatprep.subr.bf16.mxu0 %v3393
    %4721 = vmatpush1.bf16.msra.mxu0 %v3392
    %4722 = vmatprep.subr.bf16.mxu0 %v3401
    %4723 = vmatpush1.bf16.msra.mxu0 %v3400
    %4724 = vmatprep.subr.bf16.mxu0 %v3409
    %4725 = vmatpush1.bf16.msra.mxu0 %v3408
    %4726 = vmatprep.subr.bf16.mxu0 %v3417
    %4727 = vmatpush1.bf16.msra.mxu0 %v3416
    %4728 = vmatprep.subr.bf16.mxu0 %v3425
    %4729 = vmatpush1.bf16.msra.mxu0 %v3424
    %4730 = vmatprep.subr.bf16.mxu0 %v3433
    %4731 = vmatpush1.bf16.msra.mxu0 %v3432
    %4732 = vmatprep.subr.bf16.mxu0 %v3441
    %4733 = vmatpush1.bf16.msra.mxu0 %v3440
    %4734 = vmatprep.subr.bf16.mxu0 %v3449
    %4735 = vmatpush1.bf16.msra.mxu0 %v3448
    %4736 = vmatprep.subr.bf16.mxu0 %v3457
    %4737 = vmatpush1.bf16.msra.mxu0 %v3456
    %4738 = vmatprep.subr.bf16.mxu0 %v3465
    %4739 = vmatpush1.bf16.msra.mxu0 %v3464
    %4740 = vmatprep.mubr.bf16.mxu0 %v989
    %4741 = vmatmul.mubr.bf16.gmra.mrb[0].mxu0 %v988
    %v4742 = vpop.f32.mrb[0].mxu0
    %v4743 = vadd.f32 %v4700, %v4742
    %v4744 = vpop.f32.mrb[0].mxu0
    %v4745 = vadd.f32 %v4702, %v4744
    %v4746 = vpop.f32.mrb[0].mxu0
    %v4747 = vadd.f32 %v4704, %v4746
    %v4748 = vpop.f32.mrb[0].mxu0
    %v4749 = vadd.f32 %v4706, %v4748
    %4750 = vdwg.mxu0
    %4751 = vmatprep.subr.bf16.mxu0 %v3473
    %4752 = vmatpush1.bf16.msra.mxu0 %v3472
    %4753 = vmatprep.subr.bf16.mxu0 %v3481
    %4754 = vmatpush1.bf16.msra.mxu0 %v3480
    %4755 = vmatprep.subr.bf16.mxu0 %v3489
    %4756 = vmatpush1.bf16.msra.mxu0 %v3488
    %4757 = vmatprep.subr.bf16.mxu0 %v3497
    %4758 = vmatpush1.bf16.msra.mxu0 %v3496
    %4759 = vmatprep.subr.bf16.mxu0 %v3505
    %4760 = vmatpush1.bf16.msra.mxu0 %v3504
    %4761 = vmatprep.subr.bf16.mxu0 %v3513
    %4762 = vmatpush1.bf16.msra.mxu0 %v3512
    %4763 = vmatprep.subr.bf16.mxu0 %v3521
    %4764 = vmatpush1.bf16.msra.mxu0 %v3520
    %4765 = vmatprep.subr.bf16.mxu0 %v3529
    %4766 = vmatpush1.bf16.msra.mxu0 %v3528
    %4767 = vmatprep.subr.bf16.mxu0 %v3537
    %4768 = vmatpush1.bf16.msra.mxu0 %v3536
    %4769 = vmatprep.subr.bf16.mxu0 %v3545
    %4770 = vmatpush1.bf16.msra.mxu0 %v3544
    %4771 = vmatprep.subr.bf16.mxu0 %v3553
    %4772 = vmatpush1.bf16.msra.mxu0 %v3552
    %4773 = vmatprep.subr.bf16.mxu0 %v3561
    %4774 = vmatpush1.bf16.msra.mxu0 %v3560
    %4775 = vmatprep.subr.bf16.mxu0 %v3569
    %4776 = vmatpush1.bf16.msra.mxu0 %v3568
    %4777 = vmatprep.subr.bf16.mxu0 %v3577
    %4778 = vmatpush1.bf16.msra.mxu0 %v3576
    %4779 = vmatprep.subr.bf16.mxu0 %v3585
    %4780 = vmatpush1.bf16.msra.mxu0 %v3584
    %4781 = vmatprep.subr.bf16.mxu0 %v3593
    %4782 = vmatpush1.bf16.msra.mxu0 %v3592
    %4783 = vmatprep.mubr.bf16.mxu0 %v991
    %4784 = vmatmul.mubr.bf16.gmra.mrb[0].mxu0 %v990
    %v4785 = vpop.f32.mrb[0].mxu0
    %v4786 = vadd.f32 %v4743, %v4785
    %v4787 = vpop.f32.mrb[0].mxu0
    %v4788 = vadd.f32 %v4745, %v4787
    %v4789 = vpop.f32.mrb[0].mxu0
    %v4790 = vadd.f32 %v4747, %v4789
    %v4791 = vpop.f32.mrb[0].mxu0
    %v4792 = vadd.f32 %v4749, %v4791
    %4793 = vdwg.mxu0
    %v4794 = vmax.f32 %v4270, 0.0
    %v4795 = vmax.f32 %v4272, 0.0
    %v4796 = vmax.f32 %v4442, 0.0
    %v4797 = vmax.f32 %v4444, 0.0
    %v4798 = vmax.f32 %v4614, 0.0
    %v4799 = vmax.f32 %v4616, 0.0
    %v4800 = vmax.f32 %v4786, 0.0
    %v4801 = vmax.f32 %v4788, 0.0
    %v4802 = vmax.f32 %v4274, 0.0
    %v4803 = vmax.f32 %v4276, 0.0
    %v4804 = vmax.f32 %v4446, 0.0
    %v4805 = vmax.f32 %v4448, 0.0
    %v4806 = vmax.f32 %v4618, 0.0
    %v4807 = vmax.f32 %v4620, 0.0
    %v4808 = vmax.f32 %v4790, 0.0
    %v4809 = vmax.f32 %v4792, 0.0
    %v4810 = vpack.c.bf16 %v4802, %v4794
    %v4811 = vpack.c.bf16 %v4803, %v4795
    %v4812 = vpack.c.bf16 %v4804, %v4796
    %v4813 = vpack.c.bf16 %v4805, %v4797
    %v4814 = vpack.c.bf16 %v4806, %v4798
    %v4815 = vpack.c.bf16 %v4807, %v4799
    %v4816 = vpack.c.bf16 %v4808, %v4800
    %v4817 = vpack.c.bf16 %v4809, %v4801
    %v4818 = vld [vmem:[#allocation11] sm:$0xff]
    %v4819 = vld [vmem:[#allocation11 + $0x8] sm:$0xff]
    %v4820 = vld [vmem:[#allocation11 + $0x10] sm:$0xff]
    %v4821 = vld [vmem:[#allocation11 + $0x18] sm:$0xff]
    %v4822 = vld [vmem:[#allocation11 + $0x20] sm:$0xff]
    %v4823 = vld [vmem:[#allocation11 + $0x28] sm:$0xff]
    %v4824 = vld [vmem:[#allocation11 + $0x30] sm:$0xff]
    %v4825 = vld [vmem:[#allocation11 + $0x38] sm:$0xff]
    %v4826 = vld [vmem:[#allocation11 + $0x40] sm:$0xff]
    %v4827 = vld [vmem:[#allocation11 + $0x48] sm:$0xff]
    %v4828 = vld [vmem:[#allocation11 + $0x50] sm:$0xff]
    %v4829 = vld [vmem:[#allocation11 + $0x58] sm:$0xff]
    %v4830 = vld [vmem:[#allocation11 + $0x60] sm:$0xff]
    %v4831 = vld [vmem:[#allocation11 + $0x68] sm:$0xff]
    %v4832 = vld [vmem:[#allocation11 + $0x70] sm:$0xff]
    %v4833 = vld [vmem:[#allocation11 + $0x78] sm:$0xff]
    %v4834 = vld [vmem:[#allocation11 + $0x80] sm:$0xff]
    %v4835 = vld [vmem:[#allocation11 + $0x88] sm:$0xff]
    %v4836 = vld [vmem:[#allocation11 + $0x90] sm:$0xff]
    %v4837 = vld [vmem:[#allocation11 + $0x98] sm:$0xff]
    %v4838 = vld [vmem:[#allocation11 + $0xa0] sm:$0xff]
    %v4839 = vld [vmem:[#allocation11 + $0xa8] sm:$0xff]
    %v4840 = vld [vmem:[#allocation11 + $0xb0] sm:$0xff]
    %v4841 = vld [vmem:[#allocation11 + $0xb8] sm:$0xff]
    %v4842 = vld [vmem:[#allocation11 + $0xc0] sm:$0xff]
    %v4843 = vld [vmem:[#allocation11 + $0xc8] sm:$0xff]
    %v4844 = vld [vmem:[#allocation11 + $0xd0] sm:$0xff]
    %v4845 = vld [vmem:[#allocation11 + $0xd8] sm:$0xff]
    %v4846 = vld [vmem:[#allocation11 + $0xe0] sm:$0xff]
    %v4847 = vld [vmem:[#allocation11 + $0xe8] sm:$0xff]
    %v4848 = vld [vmem:[#allocation11 + $0xf0] sm:$0xff]
    %v4849 = vld [vmem:[#allocation11 + $0xf8] sm:$0xff]
    %v4850 = vld [vmem:[#allocation11 + $0x100] sm:$0xff]
    %v4851 = vld [vmem:[#allocation11 + $0x108] sm:$0xff]
    %v4852 = vld [vmem:[#allocation11 + $0x110] sm:$0xff]
    %v4853 = vld [vmem:[#allocation11 + $0x118] sm:$0xff]
    %v4854 = vld [vmem:[#allocation11 + $0x120] sm:$0xff]
    %v4855 = vld [vmem:[#allocation11 + $0x128] sm:$0xff]
    %v4856 = vld [vmem:[#allocation11 + $0x130] sm:$0xff]
    %v4857 = vld [vmem:[#allocation11 + $0x138] sm:$0xff]
    %v4858 = vld [vmem:[#allocation11 + $0x140] sm:$0xff]
    %v4859 = vld [vmem:[#allocation11 + $0x148] sm:$0xff]
    %v4860 = vld [vmem:[#allocation11 + $0x150] sm:$0xff]
    %v4861 = vld [vmem:[#allocation11 + $0x158] sm:$0xff]
    %v4862 = vld [vmem:[#allocation11 + $0x160] sm:$0xff]
    %v4863 = vld [vmem:[#allocation11 + $0x168] sm:$0xff]
    %v4864 = vld [vmem:[#allocation11 + $0x170] sm:$0xff]
    %v4865 = vld [vmem:[#allocation11 + $0x178] sm:$0xff]
    %v4866 = vld [vmem:[#allocation11 + $0x180] sm:$0xff]
    %v4867 = vld [vmem:[#allocation11 + $0x188] sm:$0xff]
    %v4868 = vld [vmem:[#allocation11 + $0x190] sm:$0xff]
    %v4869 = vld [vmem:[#allocation11 + $0x198] sm:$0xff]
    %v4870 = vld [vmem:[#allocation11 + $0x1a0] sm:$0xff]
    %v4871 = vld [vmem:[#allocation11 + $0x1a8] sm:$0xff]
    %v4872 = vld [vmem:[#allocation11 + $0x1b0] sm:$0xff]
    %v4873 = vld [vmem:[#allocation11 + $0x1b8] sm:$0xff]
    %v4874 = vld [vmem:[#allocation11 + $0x1c0] sm:$0xff]
    %v4875 = vld [vmem:[#allocation11 + $0x1c8] sm:$0xff]
    %v4876 = vld [vmem:[#allocation11 + $0x1d0] sm:$0xff]
    %v4877 = vld [vmem:[#allocation11 + $0x1d8] sm:$0xff]
    %v4878 = vld [vmem:[#allocation11 + $0x1e0] sm:$0xff]
    %v4879 = vld [vmem:[#allocation11 + $0x1e8] sm:$0xff]
    %v4880 = vld [vmem:[#allocation11 + $0x1f0] sm:$0xff]
    %v4881 = vld [vmem:[#allocation11 + $0x1f8] sm:$0xff]
    %v4882 = vld [vmem:[#allocation11 + $0x200] sm:$0xff]
    %v4883 = vld [vmem:[#allocation11 + $0x208] sm:$0xff]
    %v4884 = vld [vmem:[#allocation11 + $0x210] sm:$0xff]
    %v4885 = vld [vmem:[#allocation11 + $0x218] sm:$0xff]
    %v4886 = vld [vmem:[#allocation11 + $0x220] sm:$0xff]
    %v4887 = vld [vmem:[#allocation11 + $0x228] sm:$0xff]
    %v4888 = vld [vmem:[#allocation11 + $0x230] sm:$0xff]
    %v4889 = vld [vmem:[#allocation11 + $0x238] sm:$0xff]
    %v4890 = vld [vmem:[#allocation11 + $0x240] sm:$0xff]
    %v4891 = vld [vmem:[#allocation11 + $0x248] sm:$0xff]
    %v4892 = vld [vmem:[#allocation11 + $0x250] sm:$0xff]
    %v4893 = vld [vmem:[#allocation11 + $0x258] sm:$0xff]
    %v4894 = vld [vmem:[#allocation11 + $0x260] sm:$0xff]
    %v4895 = vld [vmem:[#allocation11 + $0x268] sm:$0xff]
    %v4896 = vld [vmem:[#allocation11 + $0x270] sm:$0xff]
    %v4897 = vld [vmem:[#allocation11 + $0x278] sm:$0xff]
    %v4898 = vld [vmem:[#allocation11 + $0x280] sm:$0xff]
    %v4899 = vld [vmem:[#allocation11 + $0x288] sm:$0xff]
    %v4900 = vld [vmem:[#allocation11 + $0x290] sm:$0xff]
    %v4901 = vld [vmem:[#allocation11 + $0x298] sm:$0xff]
    %v4902 = vld [vmem:[#allocation11 + $0x2a0] sm:$0xff]
    %v4903 = vld [vmem:[#allocation11 + $0x2a8] sm:$0xff]
    %v4904 = vld [vmem:[#allocation11 + $0x2b0] sm:$0xff]
    %v4905 = vld [vmem:[#allocation11 + $0x2b8] sm:$0xff]
    %v4906 = vld [vmem:[#allocation11 + $0x2c0] sm:$0xff]
    %v4907 = vld [vmem:[#allocation11 + $0x2c8] sm:$0xff]
    %v4908 = vld [vmem:[#allocation11 + $0x2d0] sm:$0xff]
    %v4909 = vld [vmem:[#allocation11 + $0x2d8] sm:$0xff]
    %v4910 = vld [vmem:[#allocation11 + $0x2e0] sm:$0xff]
    %v4911 = vld [vmem:[#allocation11 + $0x2e8] sm:$0xff]
    %v4912 = vld [vmem:[#allocation11 + $0x2f0] sm:$0xff]
    %v4913 = vld [vmem:[#allocation11 + $0x2f8] sm:$0xff]
    %v4914 = vld [vmem:[#allocation11 + $0x300] sm:$0xff]
    %v4915 = vld [vmem:[#allocation11 + $0x308] sm:$0xff]
    %v4916 = vld [vmem:[#allocation11 + $0x310] sm:$0xff]
    %v4917 = vld [vmem:[#allocation11 + $0x318] sm:$0xff]
    %v4918 = vld [vmem:[#allocation11 + $0x320] sm:$0xff]
    %v4919 = vld [vmem:[#allocation11 + $0x328] sm:$0xff]
    %v4920 = vld [vmem:[#allocation11 + $0x330] sm:$0xff]
    %v4921 = vld [vmem:[#allocation11 + $0x338] sm:$0xff]
    %v4922 = vld [vmem:[#allocation11 + $0x340] sm:$0xff]
    %v4923 = vld [vmem:[#allocation11 + $0x348] sm:$0xff]
    %v4924 = vld [vmem:[#allocation11 + $0x350] sm:$0xff]
    %v4925 = vld [vmem:[#allocation11 + $0x358] sm:$0xff]
    %v4926 = vld [vmem:[#allocation11 + $0x360] sm:$0xff]
    %v4927 = vld [vmem:[#allocation11 + $0x368] sm:$0xff]
    %v4928 = vld [vmem:[#allocation11 + $0x370] sm:$0xff]
    %v4929 = vld [vmem:[#allocation11 + $0x378] sm:$0xff]
    %v4930 = vld [vmem:[#allocation11 + $0x380] sm:$0xff]
    %v4931 = vld [vmem:[#allocation11 + $0x388] sm:$0xff]
    %v4932 = vld [vmem:[#allocation11 + $0x390] sm:$0xff]
    %v4933 = vld [vmem:[#allocation11 + $0x398] sm:$0xff]
    %v4934 = vld [vmem:[#allocation11 + $0x3a0] sm:$0xff]
    %v4935 = vld [vmem:[#allocation11 + $0x3a8] sm:$0xff]
    %v4936 = vld [vmem:[#allocation11 + $0x3b0] sm:$0xff]
    %v4937 = vld [vmem:[#allocation11 + $0x3b8] sm:$0xff]
    %v4938 = vld [vmem:[#allocation11 + $0x3c0] sm:$0xff]
    %v4939 = vld [vmem:[#allocation11 + $0x3c8] sm:$0xff]
    %v4940 = vld [vmem:[#allocation11 + $0x3d0] sm:$0xff]
    %v4941 = vld [vmem:[#allocation11 + $0x3d8] sm:$0xff]
    %v4942 = vld [vmem:[#allocation11 + $0x3e0] sm:$0xff]
    %v4943 = vld [vmem:[#allocation11 + $0x3e8] sm:$0xff]
    %v4944 = vld [vmem:[#allocation11 + $0x3f0] sm:$0xff]
    %v4945 = vld [vmem:[#allocation11 + $0x3f8] sm:$0xff]
    %v4946 = vld [vmem:[#allocation13] sm:$0x3]
    %v4948 = vlaneseq
    %v4949 = vshrl.u32 %v4948, 7
    %v4950 = vsub.s32 0, %v4949
    %v4951 = vrot.slane %v4946, %v4950
    %v4952 = vlaneseq
    %v4953 = vshrl.u32 %v4952, 7
    %v4954 = vsub.s32 1, %v4953
    %v4955 = vrot.slane %v4946, %v4954
    %v5086 = vunpack.c.l.b16 %v4818
    %v5087 = vunpack.c.h.b16 %v4818
    %v5088 = vunpack.c.l.b16 %v4819
    %v5089 = vunpack.c.h.b16 %v4819
    %v5090 = vunpack.c.l.b16 %v4820
    %v5091 = vunpack.c.h.b16 %v4820
    %v5092 = vunpack.c.l.b16 %v4821
    %v5093 = vunpack.c.h.b16 %v4821
    %v5094 = vunpack.c.l.b16 %v4822
    %v5095 = vunpack.c.h.b16 %v4822
    %v5096 = vunpack.c.l.b16 %v4823
    %v5097 = vunpack.c.h.b16 %v4823
    %v5098 = vunpack.c.l.b16 %v4824
    %v5099 = vunpack.c.h.b16 %v4824
    %v5100 = vunpack.c.l.b16 %v4825
    %v5101 = vunpack.c.h.b16 %v4825
    %v5102 = vunpack.c.l.b16 %v4826
    %v5103 = vunpack.c.h.b16 %v4826
    %v5104 = vunpack.c.l.b16 %v4827
    %v5105 = vunpack.c.h.b16 %v4827
    %v5106 = vunpack.c.l.b16 %v4828
    %v5107 = vunpack.c.h.b16 %v4828
    %v5108 = vunpack.c.l.b16 %v4829
    %v5109 = vunpack.c.h.b16 %v4829
    %v5110 = vunpack.c.l.b16 %v4830
    %v5111 = vunpack.c.h.b16 %v4830
    %v5112 = vunpack.c.l.b16 %v4831
    %v5113 = vunpack.c.h.b16 %v4831
    %v5114 = vunpack.c.l.b16 %v4832
    %v5115 = vunpack.c.h.b16 %v4832
    %v5116 = vunpack.c.l.b16 %v4833
    %v5117 = vunpack.c.h.b16 %v4833
    %v5118 = vunpack.c.l.b16 %v4834
    %v5119 = vunpack.c.h.b16 %v4834
    %v5120 = vunpack.c.l.b16 %v4835
    %v5121 = vunpack.c.h.b16 %v4835
    %v5122 = vunpack.c.l.b16 %v4836
    %v5123 = vunpack.c.h.b16 %v4836
    %v5124 = vunpack.c.l.b16 %v4837
    %v5125 = vunpack.c.h.b16 %v4837
    %v5126 = vunpack.c.l.b16 %v4838
    %v5127 = vunpack.c.h.b16 %v4838
    %v5128 = vunpack.c.l.b16 %v4839
    %v5129 = vunpack.c.h.b16 %v4839
    %v5130 = vunpack.c.l.b16 %v4840
    %v5131 = vunpack.c.h.b16 %v4840
    %v5132 = vunpack.c.l.b16 %v4841
    %v5133 = vunpack.c.h.b16 %v4841
    %v5134 = vunpack.c.l.b16 %v4842
    %v5135 = vunpack.c.h.b16 %v4842
    %v5136 = vunpack.c.l.b16 %v4843
    %v5137 = vunpack.c.h.b16 %v4843
    %v5138 = vunpack.c.l.b16 %v4844
    %v5139 = vunpack.c.h.b16 %v4844
    %v5140 = vunpack.c.l.b16 %v4845
    %v5141 = vunpack.c.h.b16 %v4845
    %v5142 = vunpack.c.l.b16 %v4846
    %v5143 = vunpack.c.h.b16 %v4846
    %v5144 = vunpack.c.l.b16 %v4847
    %v5145 = vunpack.c.h.b16 %v4847
    %v5146 = vunpack.c.l.b16 %v4848
    %v5147 = vunpack.c.h.b16 %v4848
    %v5148 = vunpack.c.l.b16 %v4849
    %v5149 = vunpack.c.h.b16 %v4849
    %v5150 = vunpack.c.l.b16 %v4850
    %v5151 = vunpack.c.h.b16 %v4850
    %v5152 = vunpack.c.l.b16 %v4851
    %v5153 = vunpack.c.h.b16 %v4851
    %v5154 = vunpack.c.l.b16 %v4852
    %v5155 = vunpack.c.h.b16 %v4852
    %v5156 = vunpack.c.l.b16 %v4853
    %v5157 = vunpack.c.h.b16 %v4853
    %v5158 = vunpack.c.l.b16 %v4854
    %v5159 = vunpack.c.h.b16 %v4854
    %v5160 = vunpack.c.l.b16 %v4855
    %v5161 = vunpack.c.h.b16 %v4855
    %v5162 = vunpack.c.l.b16 %v4856
    %v5163 = vunpack.c.h.b16 %v4856
    %v5164 = vunpack.c.l.b16 %v4857
    %v5165 = vunpack.c.h.b16 %v4857
    %v5166 = vunpack.c.l.b16 %v4858
    %v5167 = vunpack.c.h.b16 %v4858
    %v5168 = vunpack.c.l.b16 %v4859
    %v5169 = vunpack.c.h.b16 %v4859
    %v5170 = vunpack.c.l.b16 %v4860
    %v5171 = vunpack.c.h.b16 %v4860
    %v5172 = vunpack.c.l.b16 %v4861
    %v5173 = vunpack.c.h.b16 %v4861
    %v5174 = vunpack.c.l.b16 %v4862
    %v5175 = vunpack.c.h.b16 %v4862
    %v5176 = vunpack.c.l.b16 %v4863
    %v5177 = vunpack.c.h.b16 %v4863
    %v5178 = vunpack.c.l.b16 %v4864
    %v5179 = vunpack.c.h.b16 %v4864
    %v5180 = vunpack.c.l.b16 %v4865
    %v5181 = vunpack.c.h.b16 %v4865
    %v5182 = vunpack.c.l.b16 %v4866
    %v5183 = vunpack.c.h.b16 %v4866
    %v5184 = vunpack.c.l.b16 %v4867
    %v5185 = vunpack.c.h.b16 %v4867
    %v5186 = vunpack.c.l.b16 %v4868
    %v5187 = vunpack.c.h.b16 %v4868
    %v5188 = vunpack.c.l.b16 %v4869
    %v5189 = vunpack.c.h.b16 %v4869
    %v5190 = vunpack.c.l.b16 %v4870
    %v5191 = vunpack.c.h.b16 %v4870
    %v5192 = vunpack.c.l.b16 %v4871
    %v5193 = vunpack.c.h.b16 %v4871
    %v5194 = vunpack.c.l.b16 %v4872
    %v5195 = vunpack.c.h.b16 %v4872
    %v5196 = vunpack.c.l.b16 %v4873
    %v5197 = vunpack.c.h.b16 %v4873
    %v5198 = vunpack.c.l.b16 %v4874
    %v5199 = vunpack.c.h.b16 %v4874
    %v5200 = vunpack.c.l.b16 %v4875
    %v5201 = vunpack.c.h.b16 %v4875
    %v5202 = vunpack.c.l.b16 %v4876
    %v5203 = vunpack.c.h.b16 %v4876
    %v5204 = vunpack.c.l.b16 %v4877
    %v5205 = vunpack.c.h.b16 %v4877
    %v5206 = vunpack.c.l.b16 %v4878
    %v5207 = vunpack.c.h.b16 %v4878
    %v5208 = vunpack.c.l.b16 %v4879
    %v5209 = vunpack.c.h.b16 %v4879
    %v5210 = vunpack.c.l.b16 %v4880
    %v5211 = vunpack.c.h.b16 %v4880
    %v5212 = vunpack.c.l.b16 %v4881
    %v5213 = vunpack.c.h.b16 %v4881
    %v5214 = vunpack.c.l.b16 %v4882
    %v5215 = vunpack.c.h.b16 %v4882
    %v5216 = vunpack.c.l.b16 %v4883
    %v5217 = vunpack.c.h.b16 %v4883
    %v5218 = vunpack.c.l.b16 %v4884
    %v5219 = vunpack.c.h.b16 %v4884
    %v5220 = vunpack.c.l.b16 %v4885
    %v5221 = vunpack.c.h.b16 %v4885
    %v5222 = vunpack.c.l.b16 %v4886
    %v5223 = vunpack.c.h.b16 %v4886
    %v5224 = vunpack.c.l.b16 %v4887
    %v5225 = vunpack.c.h.b16 %v4887
    %v5226 = vunpack.c.l.b16 %v4888
    %v5227 = vunpack.c.h.b16 %v4888
    %v5228 = vunpack.c.l.b16 %v4889
    %v5229 = vunpack.c.h.b16 %v4889
    %v5230 = vunpack.c.l.b16 %v4890
    %v5231 = vunpack.c.h.b16 %v4890
    %v5232 = vunpack.c.l.b16 %v4891
    %v5233 = vunpack.c.h.b16 %v4891
    %v5234 = vunpack.c.l.b16 %v4892
    %v5235 = vunpack.c.h.b16 %v4892
    %v5236 = vunpack.c.l.b16 %v4893
    %v5237 = vunpack.c.h.b16 %v4893
    %v5238 = vunpack.c.l.b16 %v4894
    %v5239 = vunpack.c.h.b16 %v4894
    %v5240 = vunpack.c.l.b16 %v4895
    %v5241 = vunpack.c.h.b16 %v4895
    %v5242 = vunpack.c.l.b16 %v4896
    %v5243 = vunpack.c.h.b16 %v4896
    %v5244 = vunpack.c.l.b16 %v4897
    %v5245 = vunpack.c.h.b16 %v4897
    %v5246 = vunpack.c.l.b16 %v4898
    %v5247 = vunpack.c.h.b16 %v4898
    %v5248 = vunpack.c.l.b16 %v4899
    %v5249 = vunpack.c.h.b16 %v4899
    %v5250 = vunpack.c.l.b16 %v4900
    %v5251 = vunpack.c.h.b16 %v4900
    %v5252 = vunpack.c.l.b16 %v4901
    %v5253 = vunpack.c.h.b16 %v4901
    %v5254 = vunpack.c.l.b16 %v4902
    %v5255 = vunpack.c.h.b16 %v4902
    %v5256 = vunpack.c.l.b16 %v4903
    %v5257 = vunpack.c.h.b16 %v4903
    %v5258 = vunpack.c.l.b16 %v4904
    %v5259 = vunpack.c.h.b16 %v4904
    %v5260 = vunpack.c.l.b16 %v4905
    %v5261 = vunpack.c.h.b16 %v4905
    %v5262 = vunpack.c.l.b16 %v4906
    %v5263 = vunpack.c.h.b16 %v4906
    %v5264 = vunpack.c.l.b16 %v4907
    %v5265 = vunpack.c.h.b16 %v4907
    %v5266 = vunpack.c.l.b16 %v4908
    %v5267 = vunpack.c.h.b16 %v4908
    %v5268 = vunpack.c.l.b16 %v4909
    %v5269 = vunpack.c.h.b16 %v4909
    %v5270 = vunpack.c.l.b16 %v4910
    %v5271 = vunpack.c.h.b16 %v4910
    %v5272 = vunpack.c.l.b16 %v4911
    %v5273 = vunpack.c.h.b16 %v4911
    %v5274 = vunpack.c.l.b16 %v4912
    %v5275 = vunpack.c.h.b16 %v4912
    %v5276 = vunpack.c.l.b16 %v4913
    %v5277 = vunpack.c.h.b16 %v4913
    %v5278 = vunpack.c.l.b16 %v4914
    %v5279 = vunpack.c.h.b16 %v4914
    %v5280 = vunpack.c.l.b16 %v4915
    %v5281 = vunpack.c.h.b16 %v4915
    %v5282 = vunpack.c.l.b16 %v4916
    %v5283 = vunpack.c.h.b16 %v4916
    %v5284 = vunpack.c.l.b16 %v4917
    %v5285 = vunpack.c.h.b16 %v4917
    %v5286 = vunpack.c.l.b16 %v4918
    %v5287 = vunpack.c.h.b16 %v4918
    %v5288 = vunpack.c.l.b16 %v4919
    %v5289 = vunpack.c.h.b16 %v4919
    %v5290 = vunpack.c.l.b16 %v4920
    %v5291 = vunpack.c.h.b16 %v4920
    %v5292 = vunpack.c.l.b16 %v4921
    %v5293 = vunpack.c.h.b16 %v4921
    %v5294 = vunpack.c.l.b16 %v4922
    %v5295 = vunpack.c.h.b16 %v4922
    %v5296 = vunpack.c.l.b16 %v4923
    %v5297 = vunpack.c.h.b16 %v4923
    %v5298 = vunpack.c.l.b16 %v4924
    %v5299 = vunpack.c.h.b16 %v4924
    %v5300 = vunpack.c.l.b16 %v4925
    %v5301 = vunpack.c.h.b16 %v4925
    %v5302 = vunpack.c.l.b16 %v4926
    %v5303 = vunpack.c.h.b16 %v4926
    %v5304 = vunpack.c.l.b16 %v4927
    %v5305 = vunpack.c.h.b16 %v4927
    %v5306 = vunpack.c.l.b16 %v4928
    %v5307 = vunpack.c.h.b16 %v4928
    %v5308 = vunpack.c.l.b16 %v4929
    %v5309 = vunpack.c.h.b16 %v4929
    %v5310 = vunpack.c.l.b16 %v4930
    %v5311 = vunpack.c.h.b16 %v4930
    %v5312 = vunpack.c.l.b16 %v4931
    %v5313 = vunpack.c.h.b16 %v4931
    %v5314 = vunpack.c.l.b16 %v4932
    %v5315 = vunpack.c.h.b16 %v4932
    %v5316 = vunpack.c.l.b16 %v4933
    %v5317 = vunpack.c.h.b16 %v4933
    %v5318 = vunpack.c.l.b16 %v4934
    %v5319 = vunpack.c.h.b16 %v4934
    %v5320 = vunpack.c.l.b16 %v4935
    %v5321 = vunpack.c.h.b16 %v4935
    %v5322 = vunpack.c.l.b16 %v4936
    %v5323 = vunpack.c.h.b16 %v4936
    %v5324 = vunpack.c.l.b16 %v4937
    %v5325 = vunpack.c.h.b16 %v4937
    %v5326 = vunpack.c.l.b16 %v4938
    %v5327 = vunpack.c.h.b16 %v4938
    %v5328 = vunpack.c.l.b16 %v4939
    %v5329 = vunpack.c.h.b16 %v4939
    %v5330 = vunpack.c.l.b16 %v4940
    %v5331 = vunpack.c.h.b16 %v4940
    %v5332 = vunpack.c.l.b16 %v4941
    %v5333 = vunpack.c.h.b16 %v4941
    %v5334 = vunpack.c.l.b16 %v4942
    %v5335 = vunpack.c.h.b16 %v4942
    %v5336 = vunpack.c.l.b16 %v4943
    %v5337 = vunpack.c.h.b16 %v4943
    %v5338 = vunpack.c.l.b16 %v4944
    %v5339 = vunpack.c.h.b16 %v4944
    %v5340 = vunpack.c.l.b16 %v4945
    %v5341 = vunpack.c.h.b16 %v4945
    %v5342 = vpack.c.b16 %v5088, %v5086
    %v5343 = vpack.c.b16 %v5089, %v5087
    %v5344 = vpack.c.b16 %v5092, %v5090
    %v5345 = vpack.c.b16 %v5093, %v5091
    %v5346 = vpack.c.b16 %v5096, %v5094
    %v5347 = vpack.c.b16 %v5097, %v5095
    %v5348 = vpack.c.b16 %v5100, %v5098
    %v5349 = vpack.c.b16 %v5101, %v5099
    %v5350 = vpack.c.b16 %v5104, %v5102
    %v5351 = vpack.c.b16 %v5105, %v5103
    %v5352 = vpack.c.b16 %v5108, %v5106
    %v5353 = vpack.c.b16 %v5109, %v5107
    %v5354 = vpack.c.b16 %v5112, %v5110
    %v5355 = vpack.c.b16 %v5113, %v5111
    %v5356 = vpack.c.b16 %v5116, %v5114
    %v5357 = vpack.c.b16 %v5117, %v5115
    %v5358 = vpack.c.b16 %v5120, %v5118
    %v5359 = vpack.c.b16 %v5121, %v5119
    %v5360 = vpack.c.b16 %v5124, %v5122
    %v5361 = vpack.c.b16 %v5125, %v5123
    %v5362 = vpack.c.b16 %v5128, %v5126
    %v5363 = vpack.c.b16 %v5129, %v5127
    %v5364 = vpack.c.b16 %v5132, %v5130
    %v5365 = vpack.c.b16 %v5133, %v5131
    %v5366 = vpack.c.b16 %v5136, %v5134
    %v5367 = vpack.c.b16 %v5137, %v5135
    %v5368 = vpack.c.b16 %v5140, %v5138
    %v5369 = vpack.c.b16 %v5141, %v5139
    %v5370 = vpack.c.b16 %v5144, %v5142
    %v5371 = vpack.c.b16 %v5145, %v5143
    %v5372 = vpack.c.b16 %v5148, %v5146
    %v5373 = vpack.c.b16 %v5149, %v5147
    %v5374 = vpack.c.b16 %v5152, %v5150
    %v5375 = vpack.c.b16 %v5153, %v5151
    %v5376 = vpack.c.b16 %v5156, %v5154
    %v5377 = vpack.c.b16 %v5157, %v5155
    %v5378 = vpack.c.b16 %v5160, %v5158
    %v5379 = vpack.c.b16 %v5161, %v5159
    %v5380 = vpack.c.b16 %v5164, %v5162
    %v5381 = vpack.c.b16 %v5165, %v5163
    %v5382 = vpack.c.b16 %v5168, %v5166
    %v5383 = vpack.c.b16 %v5169, %v5167
    %v5384 = vpack.c.b16 %v5172, %v5170
    %v5385 = vpack.c.b16 %v5173, %v5171
    %v5386 = vpack.c.b16 %v5176, %v5174
    %v5387 = vpack.c.b16 %v5177, %v5175
    %v5388 = vpack.c.b16 %v5180, %v5178
    %v5389 = vpack.c.b16 %v5181, %v5179
    %v5390 = vpack.c.b16 %v5184, %v5182
    %v5391 = vpack.c.b16 %v5185, %v5183
    %v5392 = vpack.c.b16 %v5188, %v5186
    %v5393 = vpack.c.b16 %v5189, %v5187
    %v5394 = vpack.c.b16 %v5192, %v5190
    %v5395 = vpack.c.b16 %v5193, %v5191
    %v5396 = vpack.c.b16 %v5196, %v5194
    %v5397 = vpack.c.b16 %v5197, %v5195
    %v5398 = vpack.c.b16 %v5200, %v5198
    %v5399 = vpack.c.b16 %v5201, %v5199
    %v5400 = vpack.c.b16 %v5204, %v5202
    %v5401 = vpack.c.b16 %v5205, %v5203
    %v5402 = vpack.c.b16 %v5208, %v5206
    %v5403 = vpack.c.b16 %v5209, %v5207
    %v5404 = vpack.c.b16 %v5212, %v5210
    %v5405 = vpack.c.b16 %v5213, %v5211
    %v5406 = vpack.c.b16 %v5216, %v5214
    %v5407 = vpack.c.b16 %v5217, %v5215
    %v5408 = vpack.c.b16 %v5220, %v5218
    %v5409 = vpack.c.b16 %v5221, %v5219
    %v5410 = vpack.c.b16 %v5224, %v5222
    %v5411 = vpack.c.b16 %v5225, %v5223
    %v5412 = vpack.c.b16 %v5228, %v5226
    %v5413 = vpack.c.b16 %v5229, %v5227
    %v5414 = vpack.c.b16 %v5232, %v5230
    %v5415 = vpack.c.b16 %v5233, %v5231
    %v5416 = vpack.c.b16 %v5236, %v5234
    %v5417 = vpack.c.b16 %v5237, %v5235
    %v5418 = vpack.c.b16 %v5240, %v5238
    %v5419 = vpack.c.b16 %v5241, %v5239
    %v5420 = vpack.c.b16 %v5244, %v5242
    %v5421 = vpack.c.b16 %v5245, %v5243
    %v5422 = vpack.c.b16 %v5248, %v5246
    %v5423 = vpack.c.b16 %v5249, %v5247
    %v5424 = vpack.c.b16 %v5252, %v5250
    %v5425 = vpack.c.b16 %v5253, %v5251
    %v5426 = vpack.c.b16 %v5256, %v5254
    %v5427 = vpack.c.b16 %v5257, %v5255
    %v5428 = vpack.c.b16 %v5260, %v5258
    %v5429 = vpack.c.b16 %v5261, %v5259
    %v5430 = vpack.c.b16 %v5264, %v5262
    %v5431 = vpack.c.b16 %v5265, %v5263
    %v5432 = vpack.c.b16 %v5268, %v5266
    %v5433 = vpack.c.b16 %v5269, %v5267
    %v5434 = vpack.c.b16 %v5272, %v5270
    %v5435 = vpack.c.b16 %v5273, %v5271
    %v5436 = vpack.c.b16 %v5276, %v5274
    %v5437 = vpack.c.b16 %v5277, %v5275
    %v5438 = vpack.c.b16 %v5280, %v5278
    %v5439 = vpack.c.b16 %v5281, %v5279
    %v5440 = vpack.c.b16 %v5284, %v5282
    %v5441 = vpack.c.b16 %v5285, %v5283
    %v5442 = vpack.c.b16 %v5288, %v5286
    %v5443 = vpack.c.b16 %v5289, %v5287
    %v5444 = vpack.c.b16 %v5292, %v5290
    %v5445 = vpack.c.b16 %v5293, %v5291
    %v5446 = vpack.c.b16 %v5296, %v5294
    %v5447 = vpack.c.b16 %v5297, %v5295
    %v5448 = vpack.c.b16 %v5300, %v5298
    %v5449 = vpack.c.b16 %v5301, %v5299
    %v5450 = vpack.c.b16 %v5304, %v5302
    %v5451 = vpack.c.b16 %v5305, %v5303
    %v5452 = vpack.c.b16 %v5308, %v5306
    %v5453 = vpack.c.b16 %v5309, %v5307
    %v5454 = vpack.c.b16 %v5312, %v5310
    %v5455 = vpack.c.b16 %v5313, %v5311
    %v5456 = vpack.c.b16 %v5316, %v5314
    %v5457 = vpack.c.b16 %v5317, %v5315
    %v5458 = vpack.c.b16 %v5320, %v5318
    %v5459 = vpack.c.b16 %v5321, %v5319
    %v5460 = vpack.c.b16 %v5324, %v5322
    %v5461 = vpack.c.b16 %v5325, %v5323
    %v5462 = vpack.c.b16 %v5328, %v5326
    %v5463 = vpack.c.b16 %v5329, %v5327
    %v5464 = vpack.c.b16 %v5332, %v5330
    %v5465 = vpack.c.b16 %v5333, %v5331
    %v5466 = vpack.c.b16 %v5336, %v5334
    %v5467 = vpack.c.b16 %v5337, %v5335
    %v5468 = vpack.c.b16 %v5340, %v5338
    %v5469 = vpack.c.b16 %v5341, %v5339
    %5598 = vmatprep.subr.bf16.mxu0 %v5343
    %5599 = vmatpush1.bf16.msra.mxu0 %v5342
    %5600 = vmatprep.subr.bf16.mxu0 %v5345
    %5601 = vmatpush1.bf16.msra.mxu0 %v5344
    %5602 = vmatprep.subr.bf16.mxu0 %v5347
    %5603 = vmatpush1.bf16.msra.mxu0 %v5346
    %5604 = vmatprep.subr.bf16.mxu0 %v5349
    %5605 = vmatpush1.bf16.msra.mxu0 %v5348
    %5606 = vmatprep.subr.bf16.mxu0 %v5351
    %5607 = vmatpush1.bf16.msra.mxu0 %v5350
    %5608 = vmatprep.subr.bf16.mxu0 %v5353
    %5609 = vmatpush1.bf16.msra.mxu0 %v5352
    %5610 = vmatprep.subr.bf16.mxu0 %v5355
    %5611 = vmatpush1.bf16.msra.mxu0 %v5354
    %5612 = vmatprep.subr.bf16.mxu0 %v5357
    %5613 = vmatpush1.bf16.msra.mxu0 %v5356
    %5614 = vmatprep.subr.bf16.mxu0 %v5359
    %5615 = vmatpush1.bf16.msra.mxu0 %v5358
    %5616 = vmatprep.subr.bf16.mxu0 %v5361
    %5617 = vmatpush1.bf16.msra.mxu0 %v5360
    %5618 = vmatprep.subr.bf16.mxu0 %v5363
    %5619 = vmatpush1.bf16.msra.mxu0 %v5362
    %5620 = vmatprep.subr.bf16.mxu0 %v5365
    %5621 = vmatpush1.bf16.msra.mxu0 %v5364
    %5622 = vmatprep.subr.bf16.mxu0 %v5367
    %5623 = vmatpush1.bf16.msra.mxu0 %v5366
    %5624 = vmatprep.subr.bf16.mxu0 %v5369
    %5625 = vmatpush1.bf16.msra.mxu0 %v5368
    %5626 = vmatprep.subr.bf16.mxu0 %v5371
    %5627 = vmatpush1.bf16.msra.mxu0 %v5370
    %5628 = vmatprep.subr.bf16.mxu0 %v5373
    %5629 = vmatpush1.bf16.msra.mxu0 %v5372
    %5630 = vmatprep.mubr.bf16.mxu0 %v4811
    %5631 = vmatmul.mubr.bf16.gmra.mrb[0].mxu0 %v4810
    %v5632 = vpop.f32.mrb[0].mxu0
    %v5633 = vadd.f32 %v4951, %v5632
    %v5634 = vpop.f32.mrb[0].mxu0
    %v5635 = vadd.f32 %v4955, %v5634
    %v5636 = vpop.f32.mrb[0].mxu0
    %v5637 = vadd.f32 %v4951, %v5636
    %v5638 = vpop.f32.mrb[0].mxu0
    %v5639 = vadd.f32 %v4955, %v5638
    %5640 = vdwg.mxu0
    %5641 = vmatprep.subr.bf16.mxu0 %v5375
    %5642 = vmatpush1.bf16.msra.mxu0 %v5374
    %5643 = vmatprep.subr.bf16.mxu0 %v5377
    %5644 = vmatpush1.bf16.msra.mxu0 %v5376
    %5645 = vmatprep.subr.bf16.mxu0 %v5379
    %5646 = vmatpush1.bf16.msra.mxu0 %v5378
    %5647 = vmatprep.subr.bf16.mxu0 %v5381
    %5648 = vmatpush1.bf16.msra.mxu0 %v5380
    %5649 = vmatprep.subr.bf16.mxu0 %v5383
    %5650 = vmatpush1.bf16.msra.mxu0 %v5382
    %5651 = vmatprep.subr.bf16.mxu0 %v5385
    %5652 = vmatpush1.bf16.msra.mxu0 %v5384
    %5653 = vmatprep.subr.bf16.mxu0 %v5387
    %5654 = vmatpush1.bf16.msra.mxu0 %v5386
    %5655 = vmatprep.subr.bf16.mxu0 %v5389
    %5656 = vmatpush1.bf16.msra.mxu0 %v5388
    %5657 = vmatprep.subr.bf16.mxu0 %v5391
    %5658 = vmatpush1.bf16.msra.mxu0 %v5390
    %5659 = vmatprep.subr.bf16.mxu0 %v5393
    %5660 = vmatpush1.bf16.msra.mxu0 %v5392
    %5661 = vmatprep.subr.bf16.mxu0 %v5395
    %5662 = vmatpush1.bf16.msra.mxu0 %v5394
    %5663 = vmatprep.subr.bf16.mxu0 %v5397
    %5664 = vmatpush1.bf16.msra.mxu0 %v5396
    %5665 = vmatprep.subr.bf16.mxu0 %v5399
    %5666 = vmatpush1.bf16.msra.mxu0 %v5398
    %5667 = vmatprep.subr.bf16.mxu0 %v5401
    %5668 = vmatpush1.bf16.msra.mxu0 %v5400
    %5669 = vmatprep.subr.bf16.mxu0 %v5403
    %5670 = vmatpush1.bf16.msra.mxu0 %v5402
    %5671 = vmatprep.subr.bf16.mxu0 %v5405
    %5672 = vmatpush1.bf16.msra.mxu0 %v5404
    %5673 = vmatprep.mubr.bf16.mxu0 %v4813
    %5674 = vmatmul.mubr.bf16.gmra.mrb[0].mxu0 %v4812
    %v5675 = vpop.f32.mrb[0].mxu0
    %v5676 = vadd.f32 %v5633, %v5675
    %v5677 = vpop.f32.mrb[0].mxu0
    %v5678 = vadd.f32 %v5635, %v5677
    %v5679 = vpop.f32.mrb[0].mxu0
    %v5680 = vadd.f32 %v5637, %v5679
    %v5681 = vpop.f32.mrb[0].mxu0
    %v5682 = vadd.f32 %v5639, %v5681
    %5683 = vdwg.mxu0
    %5684 = vmatprep.subr.bf16.mxu0 %v5407
    %5685 = vmatpush1.bf16.msra.mxu0 %v5406
    %5686 = vmatprep.subr.bf16.mxu0 %v5409
    %5687 = vmatpush1.bf16.msra.mxu0 %v5408
    %5688 = vmatprep.subr.bf16.mxu0 %v5411
    %5689 = vmatpush1.bf16.msra.mxu0 %v5410
    %5690 = vmatprep.subr.bf16.mxu0 %v5413
    %5691 = vmatpush1.bf16.msra.mxu0 %v5412
    %5692 = vmatprep.subr.bf16.mxu0 %v5415
    %5693 = vmatpush1.bf16.msra.mxu0 %v5414
    %5694 = vmatprep.subr.bf16.mxu0 %v5417
    %5695 = vmatpush1.bf16.msra.mxu0 %v5416
    %5696 = vmatprep.subr.bf16.mxu0 %v5419
    %5697 = vmatpush1.bf16.msra.mxu0 %v5418
    %5698 = vmatprep.subr.bf16.mxu0 %v5421
    %5699 = vmatpush1.bf16.msra.mxu0 %v5420
    %5700 = vmatprep.subr.bf16.mxu0 %v5423
    %5701 = vmatpush1.bf16.msra.mxu0 %v5422
    %5702 = vmatprep.subr.bf16.mxu0 %v5425
    %5703 = vmatpush1.bf16.msra.mxu0 %v5424
    %5704 = vmatprep.subr.bf16.mxu0 %v5427
    %5705 = vmatpush1.bf16.msra.mxu0 %v5426
    %5706 = vmatprep.subr.bf16.mxu0 %v5429
    %5707 = vmatpush1.bf16.msra.mxu0 %v5428
    %5708 = vmatprep.subr.bf16.mxu0 %v5431
    %5709 = vmatpush1.bf16.msra.mxu0 %v5430
    %5710 = vmatprep.subr.bf16.mxu0 %v5433
    %5711 = vmatpush1.bf16.msra.mxu0 %v5432
    %5712 = vmatprep.subr.bf16.mxu0 %v5435
    %5713 = vmatpush1.bf16.msra.mxu0 %v5434
    %5714 = vmatprep.subr.bf16.mxu0 %v5437
    %5715 = vmatpush1.bf16.msra.mxu0 %v5436
    %5716 = vmatprep.mubr.bf16.mxu0 %v4815
    %5717 = vmatmul.mubr.bf16.gmra.mrb[0].mxu0 %v4814
    %v5718 = vpop.f32.mrb[0].mxu0
    %v5719 = vadd.f32 %v5676, %v5718
    %v5720 = vpop.f32.mrb[0].mxu0
    %v5721 = vadd.f32 %v5678, %v5720
    %v5722 = vpop.f32.mrb[0].mxu0
    %v5723 = vadd.f32 %v5680, %v5722
    %v5724 = vpop.f32.mrb[0].mxu0
    %v5725 = vadd.f32 %v5682, %v5724
    %5726 = vdwg.mxu0
    %5727 = vmatprep.subr.bf16.mxu0 %v5439
    %5728 = vmatpush1.bf16.msra.mxu0 %v5438
    %5729 = vmatprep.subr.bf16.mxu0 %v5441
    %5730 = vmatpush1.bf16.msra.mxu0 %v5440
    %5731 = vmatprep.subr.bf16.mxu0 %v5443
    %5732 = vmatpush1.bf16.msra.mxu0 %v5442
    %5733 = vmatprep.subr.bf16.mxu0 %v5445
    %5734 = vmatpush1.bf16.msra.mxu0 %v5444
    %5735 = vmatprep.subr.bf16.mxu0 %v5447
    %5736 = vmatpush1.bf16.msra.mxu0 %v5446
    %5737 = vmatprep.subr.bf16.mxu0 %v5449
    %5738 = vmatpush1.bf16.msra.mxu0 %v5448
    %5739 = vmatprep.subr.bf16.mxu0 %v5451
    %5740 = vmatpush1.bf16.msra.mxu0 %v5450
    %5741 = vmatprep.subr.bf16.mxu0 %v5453
    %5742 = vmatpush1.bf16.msra.mxu0 %v5452
    %5743 = vmatprep.subr.bf16.mxu0 %v5455
    %5744 = vmatpush1.bf16.msra.mxu0 %v5454
    %5745 = vmatprep.subr.bf16.mxu0 %v5457
    %5746 = vmatpush1.bf16.msra.mxu0 %v5456
    %5747 = vmatprep.subr.bf16.mxu0 %v5459
    %5748 = vmatpush1.bf16.msra.mxu0 %v5458
    %5749 = vmatprep.subr.bf16.mxu0 %v5461
    %5750 = vmatpush1.bf16.msra.mxu0 %v5460
    %5751 = vmatprep.subr.bf16.mxu0 %v5463
    %5752 = vmatpush1.bf16.msra.mxu0 %v5462
    %5753 = vmatprep.subr.bf16.mxu0 %v5465
    %5754 = vmatpush1.bf16.msra.mxu0 %v5464
    %5755 = vmatprep.subr.bf16.mxu0 %v5467
    %5756 = vmatpush1.bf16.msra.mxu0 %v5466
    %5757 = vmatprep.subr.bf16.mxu0 %v5469
    %5758 = vmatpush1.bf16.msra.mxu0 %v5468
    %5759 = vmatprep.mubr.bf16.mxu0 %v4817
    %5760 = vmatmul.mubr.bf16.gmra.mrb[0].mxu0 %v4816
    %v5761 = vpop.f32.mrb[0].mxu0
    %v5762 = vadd.f32 %v5719, %v5761
    %v5763 = vpop.f32.mrb[0].mxu0
    %v5764 = vadd.f32 %v5721, %v5763
    %v5765 = vpop.f32.mrb[0].mxu0
    %v5766 = vadd.f32 %v5723, %v5765
    %v5767 = vpop.f32.mrb[0].mxu0
    %v5768 = vadd.f32 %v5725, %v5767
    %5769 = vdwg.mxu0
    %v5770 = vmax.f32 %v5762, 0.0
    %v5771 = vmax.f32 %v5764, 0.0
    %v5772 = vmax.f32 %v5766, 0.0
    %v5773 = vmax.f32 %v5768, 0.0
    %v5774 = vpack.c.bf16 %v5772, %v5770
    %v5775 = vpack.c.bf16 %v5773, %v5771
    %v5776 = vld [vmem:[#allocation14] sm:$0xf]
    %v5777 = vld [vmem:[#allocation14 + $0x4] sm:$0xf]
    %v5778 = vld [vmem:[#allocation14 + $0x8] sm:$0xf]
    %v5779 = vld [vmem:[#allocation14 + $0xc] sm:$0xf]
    %v5780 = vld [vmem:[#allocation14 + $0x10] sm:$0xf]
    %v5781 = vld [vmem:[#allocation14 + $0x14] sm:$0xf]
    %v5782 = vld [vmem:[#allocation14 + $0x18] sm:$0xf]
    %v5783 = vld [vmem:[#allocation14 + $0x1c] sm:$0xf]
    %v5784 = vld [vmem:[#allocation14 + $0x20] sm:$0xf]
    %v5785 = vld [vmem:[#allocation14 + $0x24] sm:$0xf]
    %v5786 = vld [vmem:[#allocation14 + $0x28] sm:$0xf]
    %v5787 = vld [vmem:[#allocation14 + $0x2c] sm:$0xf]
    %v5788 = vld [vmem:[#allocation14 + $0x30] sm:$0xf]
    %v5789 = vld [vmem:[#allocation14 + $0x34] sm:$0xf]
    %v5790 = vld [vmem:[#allocation14 + $0x38] sm:$0xf]
    %v5791 = vld [vmem:[#allocation14 + $0x3c] sm:$0xf]
    %v5792 = vld [vmem:[#allocation14 + $0x40] sm:$0xf]
    %v5793 = vld [vmem:[#allocation14 + $0x44] sm:$0xf]
    %v5794 = vld [vmem:[#allocation14 + $0x48] sm:$0xf]
    %v5795 = vld [vmem:[#allocation14 + $0x4c] sm:$0xf]
    %v5796 = vld [vmem:[#allocation14 + $0x50] sm:$0xf]
    %v5797 = vld [vmem:[#allocation14 + $0x54] sm:$0xf]
    %v5798 = vld [vmem:[#allocation14 + $0x58] sm:$0xf]
    %v5799 = vld [vmem:[#allocation14 + $0x5c] sm:$0xf]
    %v5800 = vld [vmem:[#allocation14 + $0x60] sm:$0xf]
    %v5801 = vld [vmem:[#allocation14 + $0x64] sm:$0xf]
    %v5802 = vld [vmem:[#allocation14 + $0x68] sm:$0xf]
    %v5803 = vld [vmem:[#allocation14 + $0x6c] sm:$0xf]
    %v5804 = vld [vmem:[#allocation14 + $0x70] sm:$0xf]
    %v5805 = vld [vmem:[#allocation14 + $0x74] sm:$0xf]
    %v5806 = vld [vmem:[#allocation14 + $0x78] sm:$0xf]
    %v5807 = vld [vmem:[#allocation14 + $0x7c] sm:$0xf]
    %v5808 = vld [vmem:[#allocation16] sm:$0x1]
    %v5810 = vlaneseq
    %v5811 = vshrl.u32 %v5810, 7
    %v5812 = vsub.s32 0, %v5811
    %v5813 = vrot.slane %v5808, %v5812
    %v5847 = vunpack.c.l.b16 %v5776
    %v5848 = vunpack.c.l.b16 %v5777
    %v5849 = vunpack.c.l.b16 %v5778
    %v5850 = vunpack.c.l.b16 %v5779
    %v5851 = vunpack.c.l.b16 %v5780
    %v5852 = vunpack.c.l.b16 %v5781
    %v5853 = vunpack.c.l.b16 %v5782
    %v5854 = vunpack.c.l.b16 %v5783
    %v5855 = vunpack.c.l.b16 %v5784
    %v5856 = vunpack.c.l.b16 %v5785
    %v5857 = vunpack.c.l.b16 %v5786
    %v5858 = vunpack.c.l.b16 %v5787
    %v5859 = vunpack.c.l.b16 %v5788
    %v5860 = vunpack.c.l.b16 %v5789
    %v5861 = vunpack.c.l.b16 %v5790
    %v5862 = vunpack.c.l.b16 %v5791
    %v5863 = vunpack.c.l.b16 %v5792
    %v5864 = vunpack.c.l.b16 %v5793
    %v5865 = vunpack.c.l.b16 %v5794
    %v5866 = vunpack.c.l.b16 %v5795
    %v5867 = vunpack.c.l.b16 %v5796
    %v5868 = vunpack.c.l.b16 %v5797
    %v5869 = vunpack.c.l.b16 %v5798
    %v5870 = vunpack.c.l.b16 %v5799
    %v5871 = vunpack.c.l.b16 %v5800
    %v5872 = vunpack.c.l.b16 %v5801
    %v5873 = vunpack.c.l.b16 %v5802
    %v5874 = vunpack.c.l.b16 %v5803
    %v5875 = vunpack.c.l.b16 %v5804
    %v5876 = vunpack.c.l.b16 %v5805
    %v5877 = vunpack.c.l.b16 %v5806
    %v5878 = vunpack.c.l.b16 %v5807
    %v5879 = vpack.c.b16 %v5848, %v5847
    %v5880 = vpack.c.b16 %v5850, %v5849
    %v5881 = vpack.c.b16 %v5852, %v5851
    %v5882 = vpack.c.b16 %v5854, %v5853
    %v5883 = vpack.c.b16 %v5856, %v5855
    %v5884 = vpack.c.b16 %v5858, %v5857
    %v5885 = vpack.c.b16 %v5860, %v5859
    %v5886 = vpack.c.b16 %v5862, %v5861
    %v5887 = vpack.c.b16 %v5864, %v5863
    %v5888 = vpack.c.b16 %v5866, %v5865
    %v5889 = vpack.c.b16 %v5868, %v5867
    %v5890 = vpack.c.b16 %v5870, %v5869
    %v5891 = vpack.c.b16 %v5872, %v5871
    %v5892 = vpack.c.b16 %v5874, %v5873
    %v5893 = vpack.c.b16 %v5876, %v5875
    %v5894 = vpack.c.b16 %v5878, %v5877
    %5911 = vmatprep.subr.bf16.mxu0 0
    %5912 = vmatpush1.bf16.msra.mxu0 %v5879
    %5913 = vmatprep.subr.bf16.mxu0 0
    %5914 = vmatpush1.bf16.msra.mxu0 %v5880
    %5915 = vmatprep.subr.bf16.mxu0 0
    %5916 = vmatpush1.bf16.msra.mxu0 %v5881
    %5917 = vmatprep.subr.bf16.mxu0 0
    %5918 = vmatpush1.bf16.msra.mxu0 %v5882
    %5919 = vmatprep.subr.bf16.mxu0 0
    %5920 = vmatpush1.bf16.msra.mxu0 %v5883
    %5921 = vmatprep.subr.bf16.mxu0 0
    %5922 = vmatpush1.bf16.msra.mxu0 %v5884
    %5923 = vmatprep.subr.bf16.mxu0 0
    %5924 = vmatpush1.bf16.msra.mxu0 %v5885
    %5925 = vmatprep.subr.bf16.mxu0 0
    %5926 = vmatpush1.bf16.msra.mxu0 %v5886
    %5927 = vmatprep.subr.bf16.mxu0 0
    %5928 = vmatpush1.bf16.msra.mxu0 %v5887
    %5929 = vmatprep.subr.bf16.mxu0 0
    %5930 = vmatpush1.bf16.msra.mxu0 %v5888
    %5931 = vmatprep.subr.bf16.mxu0 0
    %5932 = vmatpush1.bf16.msra.mxu0 %v5889
    %5933 = vmatprep.subr.bf16.mxu0 0
    %5934 = vmatpush1.bf16.msra.mxu0 %v5890
    %5935 = vmatprep.subr.bf16.mxu0 0
    %5936 = vmatpush1.bf16.msra.mxu0 %v5891
    %5937 = vmatprep.subr.bf16.mxu0 0
    %5938 = vmatpush1.bf16.msra.mxu0 %v5892
    %5939 = vmatprep.subr.bf16.mxu0 0
    %5940 = vmatpush1.bf16.msra.mxu0 %v5893
    %5941 = vmatprep.subr.bf16.mxu0 0
    %5942 = vmatpush1.bf16.msra.mxu0 %v5894
    %5943 = vmatprep.mubr.bf16.mxu0 %v5775
    %5944 = vmatmul.mubr.bf16.gmra.mrb[0].mxu0 %v5774
    %v5945 = vpop.f32.mrb[0].mxu0
    %v5946 = vadd.f32 %v5813, %v5945
    %v5947 = vpop.f32.mrb[0].mxu0
    %v5948 = vpop.f32.mrb[0].mxu0
    %v5949 = vadd.f32 %v5813, %v5948
    %v5950 = vpop.f32.mrb[0].mxu0
    %5951 = vdwg.mxu0
    %v5952 = vmax.f32 %v5946, 0.0
    %v5953 = vmax.f32 %v5949, 0.0
    %v5954 = vpack.c.bf16 %v5953, %v5952
    %v5955 = vld [vmem:[#allocation17] sm:$0xf]
    %v5956 = vld [vmem:[#allocation17 + $0x4] sm:$0xf]
    %v5957 = vld [vmem:[#allocation17 + $0x8] sm:$0xf]
    %v5958 = vld [vmem:[#allocation17 + $0xc] sm:$0xf]
    %v5959 = vld [vmem:[#allocation17 + $0x10] sm:$0xf]
    %v5960 = vld [vmem:[#allocation17 + $0x14] sm:$0xf]
    %v5961 = vld [vmem:[#allocation17 + $0x18] sm:$0xf]
    %v5962 = vld [vmem:[#allocation17 + $0x1c] sm:$0xf]
    %v5963 = vld [vmem:[#allocation19] sm:$0x1]
    %v5965 = vlaneseq
    %v5966 = vshrl.u32 %v5965, 7
    %v5967 = vsub.s32 0, %v5966
    %v5968 = vrot.slane %v5963, %v5967
    %v5978 = vunpack.c.l.b16 %v5955
    %v5979 = vunpack.c.l.b16 %v5956
    %v5980 = vunpack.c.l.b16 %v5957
    %v5981 = vunpack.c.l.b16 %v5958
    %v5982 = vunpack.c.l.b16 %v5959
    %v5983 = vunpack.c.l.b16 %v5960
    %v5984 = vunpack.c.l.b16 %v5961
    %v5985 = vunpack.c.l.b16 %v5962
    %v5986 = vpack.c.b16 %v5979, %v5978
    %v5987 = vpack.c.b16 %v5981, %v5980
    %v5988 = vpack.c.b16 %v5983, %v5982
    %v5989 = vpack.c.b16 %v5985, %v5984
    %vm5994 = vcmask 523264
    %v5996 = vsel %vm5994, %v5954, 0
    %5998 = vmatprep.subr.bf16.mxu0 0
    %5999 = vmatpush1.bf16.msra.mxu0 %v5986
    %6000 = vmatprep.subr.bf16.mxu0 0
    %6001 = vmatpush1.bf16.msra.mxu0 %v5987
    %6002 = vmatprep.subr.bf16.mxu0 0
    %6003 = vmatpush1.bf16.msra.mxu0 %v5988
    %6004 = vmatprep.subr.bf16.mxu0 0
    %6005 = vmatpush1.bf16.msra.mxu0 %v5989
    %6006 = vmatprep.subr.bf16.mxu0 0
    %6007 = vmatpush1.bf16.msra.mxu0 0
    %6008 = vmatprep.subr.bf16.mxu0 0
    %6009 = vmatpush1.bf16.msra.mxu0 0
    %6010 = vmatprep.subr.bf16.mxu0 0
    %6011 = vmatpush1.bf16.msra.mxu0 0
    %6012 = vmatprep.subr.bf16.mxu0 0
    %6013 = vmatpush1.bf16.msra.mxu0 0
    %6014 = vmatprep.subr.bf16.mxu0 0
    %6015 = vmatpush1.bf16.msra.mxu0 0
    %6016 = vmatprep.subr.bf16.mxu0 0
    %6017 = vmatpush1.bf16.msra.mxu0 0
    %6018 = vmatprep.subr.bf16.mxu0 0
    %6019 = vmatpush1.bf16.msra.mxu0 0
    %6020 = vmatprep.subr.bf16.mxu0 0
    %6021 = vmatpush1.bf16.msra.mxu0 0
    %6022 = vmatprep.subr.bf16.mxu0 0
    %6023 = vmatpush1.bf16.msra.mxu0 0
    %6024 = vmatprep.subr.bf16.mxu0 0
    %6025 = vmatpush1.bf16.msra.mxu0 0
    %6026 = vmatprep.subr.bf16.mxu0 0
    %6027 = vmatpush1.bf16.msra.mxu0 0
    %6028 = vmatprep.subr.bf16.mxu0 0
    %6029 = vmatpush1.bf16.msra.mxu0 0
    %6030 = vmatprep.mubr.bf16.mxu0 0
    %6031 = vmatmul.mubr.bf16.gmra.mrb[0].mxu0 %v5996
    %v6032 = vpop.f32.mrb[0].mxu0
    %v6033 = vadd.f32 %v5968, %v6032
    %v6034 = vpop.f32.mrb[0].mxu0
    %v6035 = vpop.f32.mrb[0].mxu0
    %v6036 = vadd.f32 %v5968, %v6035
    %v6037 = vpop.f32.mrb[0].mxu0
    %6038 = vdwg.mxu0
    %v6039 = vmax.f32 %v6033, 0.0
    %v6040 = vmax.f32 %v6036, 0.0
    %v6041 = vpack.c.bf16 %v6040, %v6039
    %v6042 = vld [vmem:[#allocation20] sm:$0xf]
    %v6043 = vld [vmem:[#allocation20 + $0x4] sm:$0xf]
    %v6044 = vld [vmem:[#allocation22] sm:$0x1]
    %v6046 = vlaneseq
    %v6047 = vshrl.u32 %v6046, 7
    %v6048 = vsub.s32 0, %v6047
    %v6049 = vrot.slane %v6044, %v6048
    %v6053 = vunpack.c.l.b16 %v6042
    %v6054 = vunpack.c.l.b16 %v6043
    %v6055 = vpack.c.b16 %v6054, %v6053
    %vm6057 = vcmask 130048
    %v6059 = vsel %vm6057, %v6041, 0
    %6061 = vmatprep.subr.bf16.mxu0 0
    %6062 = vmatpush1.bf16.msra.mxu0 %v6055
    %6063 = vmatprep.subr.bf16.mxu0 0
    %6064 = vmatpush1.bf16.msra.mxu0 0
    %6065 = vmatprep.subr.bf16.mxu0 0
    %6066 = vmatpush1.bf16.msra.mxu0 0
    %6067 = vmatprep.subr.bf16.mxu0 0
    %6068 = vmatpush1.bf16.msra.mxu0 0
    %6069 = vmatprep.subr.bf16.mxu0 0
    %6070 = vmatpush1.bf16.msra.mxu0 0
    %6071 = vmatprep.subr.bf16.mxu0 0
    %6072 = vmatpush1.bf16.msra.mxu0 0
    %6073 = vmatprep.subr.bf16.mxu0 0
    %6074 = vmatpush1.bf16.msra.mxu0 0
    %6075 = vmatprep.subr.bf16.mxu0 0
    %6076 = vmatpush1.bf16.msra.mxu0 0
    %6077 = vmatprep.subr.bf16.mxu0 0
    %6078 = vmatpush1.bf16.msra.mxu0 0
    %6079 = vmatprep.subr.bf16.mxu0 0
    %6080 = vmatpush1.bf16.msra.mxu0 0
    %6081 = vmatprep.subr.bf16.mxu0 0
    %6082 = vmatpush1.bf16.msra.mxu0 0
    %6083 = vmatprep.subr.bf16.mxu0 0
    %6084 = vmatpush1.bf16.msra.mxu0 0
    %6085 = vmatprep.subr.bf16.mxu0 0
    %6086 = vmatpush1.bf16.msra.mxu0 0
    %6087 = vmatprep.subr.bf16.mxu0 0
    %6088 = vmatpush1.bf16.msra.mxu0 0
    %6089 = vmatprep.subr.bf16.mxu0 0
    %6090 = vmatpush1.bf16.msra.mxu0 0
    %6091 = vmatprep.subr.bf16.mxu0 0
    %6092 = vmatpush1.bf16.msra.mxu0 0
    %6093 = vmatprep.mubr.bf16.mxu0 0
    %6094 = vmatmul.mubr.bf16.gmra.mrb[0].mxu0 %v6059
    %v6095 = vpop.f32.mrb[0].mxu0
    %v6096 = vadd.f32 %v6049, %v6095
    %v6097 = vpop.f32.mrb[0].mxu0
    %v6098 = vpop.f32.mrb[0].mxu0
    %v6099 = vadd.f32 %v6049, %v6098
    %v6100 = vpop.f32.mrb[0].mxu0
    %6101 = vdwg.mxu0
    %vm6102 = vcmask 64512
    %6103 = vst.msk [vmem:[#allocation23] sm:$0xff] %vm6102, %v6096
    %6104 = vst.msk [vmem:[#allocation23 + $0x8] sm:$0xff] %vm6102, %v6099
    // Predicated region
    $region106: #{tpu_custom_call.1} parent=1 // pred_check
      _
    $region107: #{tpu_custom_call.1} parent=1 // pred_check_branch
      %6106 = sbr.rel (0) target = $region109
    $region108: #{tpu_custom_call.1} parent=1 // pred_region
      %s6108 = ssub.s32 256, 256
      %6109 = vsyncadd [#allocation4], %s6108
      %s6110 = sshll.u32 [#allocation23], 4
      %s6111 = int_to_ptr.vmem [resolvable:$true] %s6110
      %6116 = dma.vmem_to_hbm [thread:$0]  %s6111, 256, %s13, [#allocation4], 128, 128, 8
    $region109: #{tpu_custom_call.1} parent=1 // pred_fallthru
      _
    // Predicated region
    $region110: #{tpu_custom_call.1} parent=1 // pred_check
      _
    $region111: #{tpu_custom_call.1} parent=1 // pred_check_branch
      %6118 = sbr.rel (0) target = $region113
    $region112: #{tpu_custom_call.1} parent=1 // pred_region
      %6119 = dma.done [#allocation4], 256
    $region113: #{tpu_custom_call.1} parent=1 // pred_fallthru
      _
    %6120 = vsyncpa [#allocation3], 1
    %6121 = vsyncpa [#allocation6], 1
    %6122 = vsyncpa [#allocation9], 1
    %6123 = vsyncpa [#allocation12], 1
    %6124 = vsyncpa [#allocation15], 1
    %6125 = vsyncpa [#allocation18], 1
    %6126 = vsyncpa [#allocation21], 1
    %6127 = vsyncpa [#allocation4], 1

// kernel: tpu_custom_call.1
$region0: #{tpu_custom_call.1}
  #allocation0 [shape = 'u32[]', space=smem, size = 0x4, offset = 0x4, fixed_abs, tag = 'smem constant byte address 0x4 - core index']
  #allocation1 [shape = 'u32[144,128]{1,0:T(1,128)}', space=vmem, size = 0x12000, scoped, tag = 'internal scratch']
  %s0 = inlined_call_operand.hbm [shape: bf16[16,168], index: 0, kind: input, shape index: {}]
  %s1 = inlined_call_operand.hbm [shape: bf16[168,1024], index: 1, kind: input, shape index: {}]
  %s2 = inlined_call_operand.hbm [shape: f32[1,1024], index: 2, kind: input, shape index: {}]
  %s3 = inlined_call_operand.hbm [shape: bf16[1024,1024], index: 3, kind: input, shape index: {}]
  %s4 = inlined_call_operand.hbm [shape: f32[1,1024], index: 4, kind: input, shape index: {}]
  %s5 = inlined_call_operand.hbm [shape: bf16[1024,256], index: 5, kind: input, shape index: {}]
  %s6 = inlined_call_operand.hbm [shape: f32[1,256], index: 6, kind: input, shape index: {}]
  %s7 = inlined_call_operand.vmem [shape: bf16[256,64], index: 7, kind: input, shape index: {}]
  %s8 = inlined_call_operand.hbm [shape: f32[1,64], index: 8, kind: input, shape index: {}]
  %s9 = inlined_call_operand.vmem [shape: bf16[64,16], index: 9, kind: input, shape index: {}]
  %s10 = inlined_call_operand.hbm [shape: f32[1,16], index: 10, kind: input, shape index: {}]
  %s11 = inlined_call_operand.vmem [shape: bf16[16,8], index: 11, kind: input, shape index: {}]
  %s12 = inlined_call_operand.hbm [shape: f32[1,8], index: 12, kind: input, shape index: {}]
  %s13 = inlined_call_operand.vmem [shape: f32[16,8], index: 13, kind: output, shape index: {}]
  %s14 = sld [smem:[#allocation0]]
  $region102: #{tpu_custom_call.1} parent=0
    _
  %s16 = ssub.s32 1, %s14
  %s17 = scalar_select 0, %s16, %s14
  $region1: #{tpu_custom_call.1} parent=0
    #allocation2 [shape = 'u8[8192]{0}', space=vmem, size = 0x2000, scoped, tag = 'input window, operand 0, single buffered']
    #allocation3 [shape = 's32[1]{0}', space=sflag, size = 0x4, scoped, tag = 'scoped memory for tpu_custom_call.1']
    #allocation4 [shape = 'u8[344064]{0}', space=vmem, size = 0x54000, scoped, tag = 'input window, operand 1, single buffered']
    #allocation5 [shape = 's32[1]{0}', space=sflag, size = 0x4, scoped, tag = 'scoped memory for tpu_custom_call.1']
    #allocation6 [shape = 'u8[4096]{0}', space=vmem, size = 0x1000, scoped, tag = 'input window, operand 2, single buffered']
    #allocation7 [shape = 'u8[2097152]{0}', space=vmem, size = 0x200000, scoped, tag = 'input window, operand 3, single buffered']
    #allocation8 [shape = 's32[1]{0}', space=sflag, size = 0x4, scoped, tag = 'scoped memory for tpu_custom_call.1']
    #allocation9 [shape = 'u8[4096]{0}', space=vmem, size = 0x1000, scoped, tag = 'input window, operand 4, single buffered']
    #allocation10 [shape = 'u8[524288]{0}', space=vmem, size = 0x80000, scoped, tag = 'input window, operand 5, single buffered']
    #allocation11 [shape = 's32[1]{0}', space=sflag, size = 0x4, scoped, tag = 'scoped memory for tpu_custom_call.1']
    #allocation12 [shape = 'u8[1024]{0}', space=vmem, size = 0x400, scoped, tag = 'input window, operand 6, single buffered']
    #allocation13 [shape = 'u8[512]{0}', space=vmem, size = 0x400, scoped, tag = 'input window, operand 8, single buffered']
    #allocation14 [shape = 's32[1]{0}', space=sflag, size = 0x4, scoped, tag = 'scoped memory for tpu_custom_call.1']
    #allocation15 [shape = 'u8[512]{0}', space=vmem, size = 0x400, scoped, tag = 'input window, operand 10, single buffered']
    #allocation16 [shape = 'u8[512]{0}', space=vmem, size = 0x400, scoped, tag = 'input window, operand 12, single buffered']
    #allocation17 [shape = 's32[1]{0}', space=sflag, size = 0x4, scoped, tag = 'scoped memory for tpu_custom_call.1']
    %18 = vsyncpa [#allocation3], 0
    %19 = vsyncpa [#allocation5], 0
    %20 = vsyncpa [#allocation8], 0
    %21 = vsyncpa [#allocation11], 0
    %22 = vsyncpa [#allocation14], 0
    %23 = vsyncpa [#allocation17], 0
    // Predicated region
    $region2: #{tpu_custom_call.1} parent=1 // pred_check
      _
    $region3: #{tpu_custom_call.1} parent=1 // pred_check_branch
      %25 = sbr.rel (0) target = $region5
    $region4: #{tpu_custom_call.1} parent=1 // pred_region
      %s27 = ssub.s32 256, 256
      %28 = vsyncadd [#allocation3], %s27
      %s29 = sshll.u32 [#allocation2], 4
      %s30 = int_to_ptr.vmem [resolvable:$true] %s29
      %35 = dma.hbm_to_vmem [thread:$0]  %s0, 256, %s30, [#allocation3], 128, 128, 8
    $region5: #{tpu_custom_call.1} parent=1 // pred_fallthru
      _
    // Predicated region
    $region6: #{tpu_custom_call.1} parent=1 // pred_check
      _
    $region7: #{tpu_custom_call.1} parent=1 // pred_check_branch
      %37 = sbr.rel (0) target = $region9
    $region8: #{tpu_custom_call.1} parent=1 // pred_region
      %s39 = ssub.s32 10752, 10752
      %40 = vsyncadd [#allocation5], %s39
      %s41 = sshll.u32 [#allocation4], 4
      %s42 = int_to_ptr.vmem [resolvable:$true] %s41
      %47 = dma.hbm_to_vmem [thread:$0]  %s1, 10752, %s42, [#allocation5], 512, 512, 32
    $region9: #{tpu_custom_call.1} parent=1 // pred_fallthru
      _
    // Predicated region
    $region10: #{tpu_custom_call.1} parent=1 // pred_check
      _
    $region11: #{tpu_custom_call.1} parent=1 // pred_check_branch
      %49 = sbr.rel (0) target = $region13
    $region12: #{tpu_custom_call.1} parent=1 // pred_region
      %s51 = ssub.s32 128, 128
      %52 = vsyncadd [#allocation5], %s51
      %s54 = sshll.u32 [#allocation6], 4
      %s55 = int_to_ptr.vmem [resolvable:$true] %s54
      %57 = dma.hbm_to_vmem [thread:$0]  %s2, 128, %s55, [#allocation5]
    $region13: #{tpu_custom_call.1} parent=1 // pred_fallthru
      _
    // Predicated region
    $region14: #{tpu_custom_call.1} parent=1 // pred_check
      _
    $region15: #{tpu_custom_call.1} parent=1 // pred_check_branch
      %59 = sbr.rel (0) target = $region17
    $region16: #{tpu_custom_call.1} parent=1 // pred_region
      %s61 = ssub.s32 65536, 65536
      %62 = vsyncadd [#allocation8], %s61
      %s63 = sshll.u32 [#allocation7], 4
      %s64 = int_to_ptr.vmem [resolvable:$true] %s63
      %69 = dma.hbm_to_vmem [thread:$0]  %s3, 65536, %s64, [#allocation8], 512, 512, 32
    $region17: #{tpu_custom_call.1} parent=1 // pred_fallthru
      _
    // Predicated region
    $region18: #{tpu_custom_call.1} parent=1 // pred_check
      _
    $region19: #{tpu_custom_call.1} parent=1 // pred_check_branch
      %71 = sbr.rel (0) target = $region21
    $region20: #{tpu_custom_call.1} parent=1 // pred_region
      %s73 = ssub.s32 128, 128
      %74 = vsyncadd [#allocation8], %s73
      %s76 = sshll.u32 [#allocation9], 4
      %s77 = int_to_ptr.vmem [resolvable:$true] %s76
      %79 = dma.hbm_to_vmem [thread:$0]  %s4, 128, %s77, [#allocation8]
    $region21: #{tpu_custom_call.1} parent=1 // pred_fallthru
      _
    // Predicated region
    $region22: #{tpu_custom_call.1} parent=1 // pred_check
      _
    $region23: #{tpu_custom_call.1} parent=1 // pred_check_branch
      %81 = sbr.rel (0) target = $region25
    $region24: #{tpu_custom_call.1} parent=1 // pred_region
      %s83 = ssub.s32 16384, 16384
      %84 = vsyncadd [#allocation11], %s83
      %s85 = sshll.u32 [#allocation10], 4
      %s86 = int_to_ptr.vmem [resolvable:$true] %s85
      %91 = dma.hbm_to_vmem [thread:$0]  %s5, 16384, %s86, [#allocation11], 128, 128, 8
    $region25: #{tpu_custom_call.1} parent=1 // pred_fallthru
      _
    // Predicated region
    $region26: #{tpu_custom_call.1} parent=1 // pred_check
      _
    $region27: #{tpu_custom_call.1} parent=1 // pred_check_branch
      %93 = sbr.rel (0) target = $region29
    $region28: #{tpu_custom_call.1} parent=1 // pred_region
      %s95 = ssub.s32 32, 32
      %96 = vsyncadd [#allocation11], %s95
      %s98 = sshll.u32 [#allocation12], 4
      %s99 = int_to_ptr.vmem [resolvable:$true] %s98
      %101 = dma.hbm_to_vmem [thread:$0]  %s6, 32, %s99, [#allocation11]
    $region29: #{tpu_custom_call.1} parent=1 // pred_fallthru
      _
    // Predicated region
    $region30: #{tpu_custom_call.1} parent=1 // pred_check
      _
    $region31: #{tpu_custom_call.1} parent=1 // pred_check_branch
      %103 = sbr.rel (0) target = $region33
    $region32: #{tpu_custom_call.1} parent=1 // pred_region
      _
    $region33: #{tpu_custom_call.1} parent=1 // pred_fallthru
      _
    // Predicated region
    $region34: #{tpu_custom_call.1} parent=1 // pred_check
      _
    $region35: #{tpu_custom_call.1} parent=1 // pred_check_branch
      %105 = sbr.rel (0) target = $region37
    $region36: #{tpu_custom_call.1} parent=1 // pred_region
      %s107 = ssub.s32 16, 16
      %108 = vsyncadd [#allocation14], %s107
      %s110 = sshll.u32 [#allocation13], 4
      %s111 = int_to_ptr.vmem [resolvable:$true] %s110
      %113 = dma.hbm_to_vmem [thread:$0]  %s8, 16, %s111, [#allocation14]
    $region37: #{tpu_custom_call.1} parent=1 // pred_fallthru
      _
    // Predicated region
    $region38: #{tpu_custom_call.1} parent=1 // pred_check
      _
    $region39: #{tpu_custom_call.1} parent=1 // pred_check_branch
      %115 = sbr.rel (0) target = $region41
    $region40: #{tpu_custom_call.1} parent=1 // pred_region
      _
    $region41: #{tpu_custom_call.1} parent=1 // pred_fallthru
      _
    // Predicated region
    $region42: #{tpu_custom_call.1} parent=1 // pred_check
      _
    $region43: #{tpu_custom_call.1} parent=1 // pred_check_branch
      %117 = sbr.rel (0) target = $region45
    $region44: #{tpu_custom_call.1} parent=1 // pred_region
      %s119 = ssub.s32 16, 16
      %120 = vsyncadd [#allocation14], %s119
      %s122 = sshll.u32 [#allocation15], 4
      %s123 = int_to_ptr.vmem [resolvable:$true] %s122
      %125 = dma.hbm_to_vmem [thread:$0]  %s10, 16, %s123, [#allocation14]
    $region45: #{tpu_custom_call.1} parent=1 // pred_fallthru
      _
    // Predicated region
    $region46: #{tpu_custom_call.1} parent=1 // pred_check
      _
    $region47: #{tpu_custom_call.1} parent=1 // pred_check_branch
      %127 = sbr.rel (0) target = $region49
    $region48: #{tpu_custom_call.1} parent=1 // pred_region
      _
    $region49: #{tpu_custom_call.1} parent=1 // pred_fallthru
      _
    // Predicated region
    $region50: #{tpu_custom_call.1} parent=1 // pred_check
      _
    $region51: #{tpu_custom_call.1} parent=1 // pred_check_branch
      %129 = sbr.rel (0) target = $region53
    $region52: #{tpu_custom_call.1} parent=1 // pred_region
      %s131 = ssub.s32 16, 16
      %132 = vsyncadd [#allocation17], %s131
      %s134 = sshll.u32 [#allocation16], 4
      %s135 = int_to_ptr.vmem [resolvable:$true] %s134
      %137 = dma.hbm_to_vmem [thread:$0]  %s12, 16, %s135, [#allocation17]
    $region53: #{tpu_custom_call.1} parent=1 // pred_fallthru
      _
    // Predicated region
    $region54: #{tpu_custom_call.1} parent=1 // pred_check
      _
    $region55: #{tpu_custom_call.1} parent=1 // pred_check_branch
      %139 = sbr.rel (0) target = $region57
    $region56: #{tpu_custom_call.1} parent=1 // pred_region
      %140 = dma.done [#allocation3], 256
    $region57: #{tpu_custom_call.1} parent=1 // pred_fallthru
      _
    // Predicated region
    $region58: #{tpu_custom_call.1} parent=1 // pred_check
      _
    $region59: #{tpu_custom_call.1} parent=1 // pred_check_branch
      %142 = sbr.rel (0) target = $region61
    $region60: #{tpu_custom_call.1} parent=1 // pred_region
      %143 = dma.done [#allocation5], 10752
    $region61: #{tpu_custom_call.1} parent=1 // pred_fallthru
      _
    // Predicated region
    $region62: #{tpu_custom_call.1} parent=1 // pred_check
      _
    $region63: #{tpu_custom_call.1} parent=1 // pred_check_branch
      %145 = sbr.rel (0) target = $region65
    $region64: #{tpu_custom_call.1} parent=1 // pred_region
      %146 = dma.done [#allocation5], 128
    $region65: #{tpu_custom_call.1} parent=1 // pred_fallthru
      _
    // Predicated region
    $region66: #{tpu_custom_call.1} parent=1 // pred_check
      _
    $region67: #{tpu_custom_call.1} parent=1 // pred_check_branch
      %148 = sbr.rel (0) target = $region69
    $region68: #{tpu_custom_call.1} parent=1 // pred_region
      %149 = dma.done [#allocation8], 65536
    $region69: #{tpu_custom_call.1} parent=1 // pred_fallthru
      _
    // Predicated region
    $region70: #{tpu_custom_call.1} parent=1 // pred_check
      _
    $region71: #{tpu_custom_call.1} parent=1 // pred_check_branch
      %151 = sbr.rel (0) target = $region73
    $region72: #{tpu_custom_call.1} parent=1 // pred_region
      %152 = dma.done [#allocation8], 128
    $region73: #{tpu_custom_call.1} parent=1 // pred_fallthru
      _
    // Predicated region
    $region74: #{tpu_custom_call.1} parent=1 // pred_check
      _
    $region75: #{tpu_custom_call.1} parent=1 // pred_check_branch
      %154 = sbr.rel (0) target = $region77
    $region76: #{tpu_custom_call.1} parent=1 // pred_region
      %155 = dma.done [#allocation11], 16384
    $region77: #{tpu_custom_call.1} parent=1 // pred_fallthru
      _
    // Predicated region
    $region78: #{tpu_custom_call.1} parent=1 // pred_check
      _
    $region79: #{tpu_custom_call.1} parent=1 // pred_check_branch
      %157 = sbr.rel (0) target = $region81
    $region80: #{tpu_custom_call.1} parent=1 // pred_region
      %158 = dma.done [#allocation11], 32
    $region81: #{tpu_custom_call.1} parent=1 // pred_fallthru
      _
    // Predicated region
    $region82: #{tpu_custom_call.1} parent=1 // pred_check
      _
    $region83: #{tpu_custom_call.1} parent=1 // pred_check_branch
      %160 = sbr.rel (0) target = $region85
    $region84: #{tpu_custom_call.1} parent=1 // pred_region
      %161 = dma.done [#allocation14], 16
    $region85: #{tpu_custom_call.1} parent=1 // pred_fallthru
      _
    // Predicated region
    $region86: #{tpu_custom_call.1} parent=1 // pred_check
      _
    $region87: #{tpu_custom_call.1} parent=1 // pred_check_branch
      %163 = sbr.rel (0) target = $region89
    $region88: #{tpu_custom_call.1} parent=1 // pred_region
      %164 = dma.done [#allocation14], 16
    $region89: #{tpu_custom_call.1} parent=1 // pred_fallthru
      _
    // Predicated region
    $region90: #{tpu_custom_call.1} parent=1 // pred_check
      _
    $region91: #{tpu_custom_call.1} parent=1 // pred_check_branch
      %166 = sbr.rel (0) target = $region93
    $region92: #{tpu_custom_call.1} parent=1 // pred_region
      %167 = dma.done [#allocation17], 16
    $region93: #{tpu_custom_call.1} parent=1 // pred_fallthru
      _
    %v169 = vld [vmem:[#allocation2] sm:$0xff]
    %v170 = vld [vmem:[#allocation2 + $0x8] sm:$0xff]
    %v171 = vld [vmem:[#allocation4] sm:$0xff]
    %v172 = vld [vmem:[#allocation4 + $0x8] sm:$0xff]
    %v173 = vld [vmem:[#allocation4 + $0x10] sm:$0xff]
    %v174 = vld [vmem:[#allocation4 + $0x18] sm:$0xff]
    %v175 = vld [vmem:[#allocation4 + $0x20] sm:$0xff]
    %v176 = vld [vmem:[#allocation4 + $0x28] sm:$0xff]
    %v177 = vld [vmem:[#allocation4 + $0x30] sm:$0xff]
    %v178 = vld [vmem:[#allocation4 + $0x38] sm:$0xff]
    %v179 = vld [vmem:[#allocation4 + $0x40] sm:$0xff]
    %v180 = vld [vmem:[#allocation4 + $0x48] sm:$0xff]
    %v181 = vld [vmem:[#allocation4 + $0x50] sm:$0xff]
    %v182 = vld [vmem:[#allocation4 + $0x58] sm:$0xff]
    %v183 = vld [vmem:[#allocation4 + $0x60] sm:$0xff]
    %v184 = vld [vmem:[#allocation4 + $0x68] sm:$0xff]
    %v185 = vld [vmem:[#allocation4 + $0x70] sm:$0xff]
    %v186 = vld [vmem:[#allocation4 + $0x78] sm:$0xff]
    %v187 = vld [vmem:[#allocation4 + $0x80] sm:$0xff]
    %v188 = vld [vmem:[#allocation4 + $0x88] sm:$0xff]
    %v189 = vld [vmem:[#allocation4 + $0x90] sm:$0xff]
    %v190 = vld [vmem:[#allocation4 + $0x98] sm:$0xff]
    %v191 = vld [vmem:[#allocation4 + $0xa0] sm:$0xff]
    %v192 = vld [vmem:[#allocation4 + $0xa8] sm:$0xff]
    %v193 = vld [vmem:[#allocation4 + $0xb0] sm:$0xff]
    %v194 = vld [vmem:[#allocation4 + $0xb8] sm:$0xff]
    %v195 = vld [vmem:[#allocation4 + $0xc0] sm:$0xff]
    %v196 = vld [vmem:[#allocation4 + $0xc8] sm:$0xff]
    %v197 = vld [vmem:[#allocation4 + $0xd0] sm:$0xff]
    %v198 = vld [vmem:[#allocation4 + $0xd8] sm:$0xff]
    %v199 = vld [vmem:[#allocation4 + $0xe0] sm:$0xff]
    %v200 = vld [vmem:[#allocation4 + $0xe8] sm:$0xff]
    %v201 = vld [vmem:[#allocation4 + $0xf0] sm:$0xff]
    %v202 = vld [vmem:[#allocation4 + $0xf8] sm:$0xff]
    %v203 = vld [vmem:[#allocation4 + $0x100] sm:$0xff]
    %v204 = vld [vmem:[#allocation4 + $0x108] sm:$0xff]
    %v205 = vld [vmem:[#allocation4 + $0x110] sm:$0xff]
    %v206 = vld [vmem:[#allocation4 + $0x118] sm:$0xff]
    %v207 = vld [vmem:[#allocation4 + $0x120] sm:$0xff]
    %v208 = vld [vmem:[#allocation4 + $0x128] sm:$0xff]
    %v209 = vld [vmem:[#allocation4 + $0x130] sm:$0xff]
    %v210 = vld [vmem:[#allocation4 + $0x138] sm:$0xff]
    %v211 = vld [vmem:[#allocation4 + $0x140] sm:$0xff]
    %v212 = vld [vmem:[#allocation4 + $0x148] sm:$0xff]
    %v213 = vld [vmem:[#allocation4 + $0x150] sm:$0xff]
    %v214 = vld [vmem:[#allocation4 + $0x158] sm:$0xff]
    %v215 = vld [vmem:[#allocation4 + $0x160] sm:$0xff]
    %v216 = vld [vmem:[#allocation4 + $0x168] sm:$0xff]
    %v217 = vld [vmem:[#allocation4 + $0x170] sm:$0xff]
    %v218 = vld [vmem:[#allocation4 + $0x178] sm:$0xff]
    %v219 = vld [vmem:[#allocation4 + $0x180] sm:$0xff]
    %v220 = vld [vmem:[#allocation4 + $0x188] sm:$0xff]
    %v221 = vld [vmem:[#allocation4 + $0x190] sm:$0xff]
    %v222 = vld [vmem:[#allocation4 + $0x198] sm:$0xff]
    %v223 = vld [vmem:[#allocation4 + $0x1a0] sm:$0xff]
    %v224 = vld [vmem:[#allocation4 + $0x1a8] sm:$0xff]
    %v225 = vld [vmem:[#allocation4 + $0x1b0] sm:$0xff]
    %v226 = vld [vmem:[#allocation4 + $0x1b8] sm:$0xff]
    %v227 = vld [vmem:[#allocation4 + $0x1c0] sm:$0xff]
    %v228 = vld [vmem:[#allocation4 + $0x1c8] sm:$0xff]
    %v229 = vld [vmem:[#allocation4 + $0x1d0] sm:$0xff]
    %v230 = vld [vmem:[#allocation4 + $0x1d8] sm:$0xff]
    %v231 = vld [vmem:[#allocation4 + $0x1e0] sm:$0xff]
    %v232 = vld [vmem:[#allocation4 + $0x1e8] sm:$0xff]
    %v233 = vld [vmem:[#allocation4 + $0x1f0] sm:$0xff]
    %v234 = vld [vmem:[#allocation4 + $0x1f8] sm:$0xff]
    %v235 = vld [vmem:[#allocation4 + $0x200] sm:$0xff]
    %v236 = vld [vmem:[#allocation4 + $0x208] sm:$0xff]
    %v237 = vld [vmem:[#allocation4 + $0x210] sm:$0xff]
    %v238 = vld [vmem:[#allocation4 + $0x218] sm:$0xff]
    %v239 = vld [vmem:[#allocation4 + $0x220] sm:$0xff]
    %v240 = vld [vmem:[#allocation4 + $0x228] sm:$0xff]
    %v241 = vld [vmem:[#allocation4 + $0x230] sm:$0xff]
    %v242 = vld [vmem:[#allocation4 + $0x238] sm:$0xff]
    %v243 = vld [vmem:[#allocation4 + $0x240] sm:$0xff]
    %v244 = vld [vmem:[#allocation4 + $0x248] sm:$0xff]
    %v245 = vld [vmem:[#allocation4 + $0x250] sm:$0xff]
    %v246 = vld [vmem:[#allocation4 + $0x258] sm:$0xff]
    %v247 = vld [vmem:[#allocation4 + $0x260] sm:$0xff]
    %v248 = vld [vmem:[#allocation4 + $0x268] sm:$0xff]
    %v249 = vld [vmem:[#allocation4 + $0x270] sm:$0xff]
    %v250 = vld [vmem:[#allocation4 + $0x278] sm:$0xff]
    %v251 = vld [vmem:[#allocation4 + $0x280] sm:$0xff]
    %v252 = vld [vmem:[#allocation4 + $0x288] sm:$0xff]
    %v253 = vld [vmem:[#allocation4 + $0x290] sm:$0xff]
    %v254 = vld [vmem:[#allocation4 + $0x298] sm:$0xff]
    %v255 = vld [vmem:[#allocation6] sm:$0xff]
    %v257 = vlaneseq
    %v258 = vshrl.u32 %v257, 7
    %v259 = vsub.s32 0, %v258
    %v260 = vrot.slane %v255, %v259
    %v261 = vlaneseq
    %v262 = vshrl.u32 %v261, 7
    %v263 = vsub.s32 1, %v262
    %v264 = vrot.slane %v255, %v263
    %v265 = vlaneseq
    %v266 = vshrl.u32 %v265, 7
    %v267 = vsub.s32 2, %v266
    %v268 = vrot.slane %v255, %v267
    %v269 = vlaneseq
    %v270 = vshrl.u32 %v269, 7
    %v271 = vsub.s32 3, %v270
    %v272 = vrot.slane %v255, %v271
    %v273 = vlaneseq
    %v274 = vshrl.u32 %v273, 7
    %v275 = vsub.s32 4, %v274
    %v276 = vrot.slane %v255, %v275
    %v277 = vlaneseq
    %v278 = vshrl.u32 %v277, 7
    %v279 = vsub.s32 5, %v278
    %v280 = vrot.slane %v255, %v279
    %v281 = vlaneseq
    %v282 = vshrl.u32 %v281, 7
    %v283 = vsub.s32 6, %v282
    %v284 = vrot.slane %v255, %v283
    %v285 = vlaneseq
    %v286 = vshrl.u32 %v285, 7
    %v287 = vsub.s32 7, %v286
    %v288 = vrot.slane %v255, %v287
    %v299 = vunpack.c.l.b16 %v169
    %v300 = vunpack.c.h.b16 %v169
    %v301 = vunpack.c.l.b16 %v170
    %v302 = vunpack.c.h.b16 %v170
    %v303 = vpack.c.b16 %v301, %v299
    %v304 = vpack.c.b16 %v302, %v300
    %v390 = vunpack.c.l.b16 %v171
    %v391 = vunpack.c.h.b16 %v171
    %v392 = vunpack.c.l.b16 %v172
    %v393 = vunpack.c.h.b16 %v172
    %v394 = vunpack.c.l.b16 %v173
    %v395 = vunpack.c.h.b16 %v173
    %v396 = vunpack.c.l.b16 %v174
    %v397 = vunpack.c.h.b16 %v174
    %v398 = vunpack.c.l.b16 %v175
    %v399 = vunpack.c.h.b16 %v175
    %v400 = vunpack.c.l.b16 %v176
    %v401 = vunpack.c.h.b16 %v176
    %v402 = vunpack.c.l.b16 %v177
    %v403 = vunpack.c.h.b16 %v177
    %v404 = vunpack.c.l.b16 %v178
    %v405 = vunpack.c.h.b16 %v178
    %v406 = vunpack.c.l.b16 %v179
    %v407 = vunpack.c.h.b16 %v179
    %v408 = vunpack.c.l.b16 %v180
    %v409 = vunpack.c.h.b16 %v180
    %v410 = vunpack.c.l.b16 %v181
    %v411 = vunpack.c.h.b16 %v181
    %v412 = vunpack.c.l.b16 %v182
    %v413 = vunpack.c.h.b16 %v182
    %v414 = vunpack.c.l.b16 %v183
    %v415 = vunpack.c.h.b16 %v183
    %v416 = vunpack.c.l.b16 %v184
    %v417 = vunpack.c.h.b16 %v184
    %v418 = vunpack.c.l.b16 %v185
    %v419 = vunpack.c.h.b16 %v185
    %v420 = vunpack.c.l.b16 %v186
    %v421 = vunpack.c.h.b16 %v186
    %v422 = vunpack.c.l.b16 %v187
    %v423 = vunpack.c.h.b16 %v187
    %v424 = vunpack.c.l.b16 %v188
    %v425 = vunpack.c.h.b16 %v188
    %v426 = vunpack.c.l.b16 %v189
    %v427 = vunpack.c.h.b16 %v189
    %v428 = vunpack.c.l.b16 %v190
    %v429 = vunpack.c.h.b16 %v190
    %v430 = vunpack.c.l.b16 %v191
    %v431 = vunpack.c.h.b16 %v191
    %v432 = vunpack.c.l.b16 %v192
    %v433 = vunpack.c.h.b16 %v192
    %v434 = vunpack.c.l.b16 %v193
    %v435 = vunpack.c.h.b16 %v193
    %v436 = vunpack.c.l.b16 %v194
    %v437 = vunpack.c.h.b16 %v194
    %v438 = vunpack.c.l.b16 %v195
    %v439 = vunpack.c.h.b16 %v195
    %v440 = vunpack.c.l.b16 %v196
    %v441 = vunpack.c.h.b16 %v196
    %v442 = vunpack.c.l.b16 %v197
    %v443 = vunpack.c.h.b16 %v197
    %v444 = vunpack.c.l.b16 %v198
    %v445 = vunpack.c.h.b16 %v198
    %v446 = vunpack.c.l.b16 %v199
    %v447 = vunpack.c.h.b16 %v199
    %v448 = vunpack.c.l.b16 %v200
    %v449 = vunpack.c.h.b16 %v200
    %v450 = vunpack.c.l.b16 %v201
    %v451 = vunpack.c.h.b16 %v201
    %v452 = vunpack.c.l.b16 %v202
    %v453 = vunpack.c.h.b16 %v202
    %v454 = vunpack.c.l.b16 %v203
    %v455 = vunpack.c.h.b16 %v203
    %v456 = vunpack.c.l.b16 %v204
    %v457 = vunpack.c.h.b16 %v204
    %v458 = vunpack.c.l.b16 %v205
    %v459 = vunpack.c.h.b16 %v205
    %v460 = vunpack.c.l.b16 %v206
    %v461 = vunpack.c.h.b16 %v206
    %v462 = vunpack.c.l.b16 %v207
    %v463 = vunpack.c.h.b16 %v207
    %v464 = vunpack.c.l.b16 %v208
    %v465 = vunpack.c.h.b16 %v208
    %v466 = vunpack.c.l.b16 %v209
    %v467 = vunpack.c.h.b16 %v209
    %v468 = vunpack.c.l.b16 %v210
    %v469 = vunpack.c.h.b16 %v210
    %v470 = vunpack.c.l.b16 %v211
    %v471 = vunpack.c.h.b16 %v211
    %v472 = vunpack.c.l.b16 %v212
    %v473 = vunpack.c.h.b16 %v212
    %v474 = vunpack.c.l.b16 %v213
    %v475 = vunpack.c.h.b16 %v213
    %v476 = vunpack.c.l.b16 %v214
    %v477 = vunpack.c.h.b16 %v214
    %v478 = vunpack.c.l.b16 %v215
    %v479 = vunpack.c.h.b16 %v215
    %v480 = vunpack.c.l.b16 %v216
    %v481 = vunpack.c.h.b16 %v216
    %v482 = vunpack.c.l.b16 %v217
    %v483 = vunpack.c.h.b16 %v217
    %v484 = vunpack.c.l.b16 %v218
    %v485 = vunpack.c.h.b16 %v218
    %v486 = vunpack.c.l.b16 %v219
    %v487 = vunpack.c.h.b16 %v219
    %v488 = vunpack.c.l.b16 %v220
    %v489 = vunpack.c.h.b16 %v220
    %v490 = vunpack.c.l.b16 %v221
    %v491 = vunpack.c.h.b16 %v221
    %v492 = vunpack.c.l.b16 %v222
    %v493 = vunpack.c.h.b16 %v222
    %v494 = vunpack.c.l.b16 %v223
    %v495 = vunpack.c.h.b16 %v223
    %v496 = vunpack.c.l.b16 %v224
    %v497 = vunpack.c.h.b16 %v224
    %v498 = vunpack.c.l.b16 %v225
    %v499 = vunpack.c.h.b16 %v225
    %v500 = vunpack.c.l.b16 %v226
    %v501 = vunpack.c.h.b16 %v226
    %v502 = vunpack.c.l.b16 %v227
    %v503 = vunpack.c.h.b16 %v227
    %v504 = vunpack.c.l.b16 %v228
    %v505 = vunpack.c.h.b16 %v228
    %v506 = vunpack.c.l.b16 %v229
    %v507 = vunpack.c.h.b16 %v229
    %v508 = vunpack.c.l.b16 %v230
    %v509 = vunpack.c.h.b16 %v230
    %v510 = vunpack.c.l.b16 %v231
    %v511 = vunpack.c.h.b16 %v231
    %v512 = vunpack.c.l.b16 %v232
    %v513 = vunpack.c.h.b16 %v232
    %v514 = vunpack.c.l.b16 %v233
    %v515 = vunpack.c.h.b16 %v233
    %v516 = vunpack.c.l.b16 %v234
    %v517 = vunpack.c.h.b16 %v234
    %v518 = vunpack.c.l.b16 %v235
    %v519 = vunpack.c.h.b16 %v235
    %v520 = vunpack.c.l.b16 %v236
    %v521 = vunpack.c.h.b16 %v236
    %v522 = vunpack.c.l.b16 %v237
    %v523 = vunpack.c.h.b16 %v237
    %v524 = vunpack.c.l.b16 %v238
    %v525 = vunpack.c.h.b16 %v238
    %v526 = vunpack.c.l.b16 %v239
    %v527 = vunpack.c.h.b16 %v239
    %v528 = vunpack.c.l.b16 %v240
    %v529 = vunpack.c.h.b16 %v240
    %v530 = vunpack.c.l.b16 %v241
    %v531 = vunpack.c.h.b16 %v241
    %v532 = vunpack.c.l.b16 %v242
    %v533 = vunpack.c.h.b16 %v242
    %v534 = vunpack.c.l.b16 %v243
    %v535 = vunpack.c.h.b16 %v243
    %v536 = vunpack.c.l.b16 %v244
    %v537 = vunpack.c.h.b16 %v244
    %v538 = vunpack.c.l.b16 %v245
    %v539 = vunpack.c.h.b16 %v245
    %v540 = vunpack.c.l.b16 %v246
    %v541 = vunpack.c.h.b16 %v246
    %v542 = vunpack.c.l.b16 %v247
    %v543 = vunpack.c.h.b16 %v247
    %v544 = vunpack.c.l.b16 %v248
    %v545 = vunpack.c.h.b16 %v248
    %v546 = vunpack.c.l.b16 %v249
    %v547 = vunpack.c.h.b16 %v249
    %v548 = vunpack.c.l.b16 %v250
    %v549 = vunpack.c.h.b16 %v250
    %v550 = vunpack.c.l.b16 %v251
    %v551 = vunpack.c.h.b16 %v251
    %v552 = vunpack.c.l.b16 %v252
    %v553 = vunpack.c.h.b16 %v252
    %v554 = vunpack.c.l.b16 %v253
    %v555 = vunpack.c.h.b16 %v253
    %v556 = vunpack.c.l.b16 %v254
    %v557 = vunpack.c.h.b16 %v254
    %v558 = vpack.c.b16 %v398, %v390
    %v559 = vpack.c.b16 %v399, %v391
    %v560 = vpack.c.b16 %v400, %v392
    %v561 = vpack.c.b16 %v401, %v393
    %v562 = vpack.c.b16 %v402, %v394
    %v563 = vpack.c.b16 %v403, %v395
    %v564 = vpack.c.b16 %v404, %v396
    %v565 = vpack.c.b16 %v405, %v397
    %v566 = vpack.c.b16 %v414, %v406
    %v567 = vpack.c.b16 %v415, %v407
    %v568 = vpack.c.b16 %v416, %v408
    %v569 = vpack.c.b16 %v417, %v409
    %v570 = vpack.c.b16 %v418, %v410
    %v571 = vpack.c.b16 %v419, %v411
    %v572 = vpack.c.b16 %v420, %v412
    %v573 = vpack.c.b16 %v421, %v413
    %v574 = vpack.c.b16 %v430, %v422
    %v575 = vpack.c.b16 %v431, %v423
    %v576 = vpack.c.b16 %v432, %v424
    %v577 = vpack.c.b16 %v433, %v425
    %v578 = vpack.c.b16 %v434, %v426
    %v579 = vpack.c.b16 %v435, %v427
    %v580 = vpack.c.b16 %v436, %v428
    %v581 = vpack.c.b16 %v437, %v429
    %v582 = vpack.c.b16 %v446, %v438
    %v583 = vpack.c.b16 %v447, %v439
    %v584 = vpack.c.b16 %v448, %v440
    %v585 = vpack.c.b16 %v449, %v441
    %v586 = vpack.c.b16 %v450, %v442
    %v587 = vpack.c.b16 %v451, %v443
    %v588 = vpack.c.b16 %v452, %v444
    %v589 = vpack.c.b16 %v453, %v445
    %v590 = vpack.c.b16 %v462, %v454
    %v591 = vpack.c.b16 %v463, %v455
    %v592 = vpack.c.b16 %v464, %v456
    %v593 = vpack.c.b16 %v465, %v457
    %v594 = vpack.c.b16 %v466, %v458
    %v595 = vpack.c.b16 %v467, %v459
    %v596 = vpack.c.b16 %v468, %v460
    %v597 = vpack.c.b16 %v469, %v461
    %v598 = vpack.c.b16 %v478, %v470
    %v599 = vpack.c.b16 %v479, %v471
    %v600 = vpack.c.b16 %v480, %v472
    %v601 = vpack.c.b16 %v481, %v473
    %v602 = vpack.c.b16 %v482, %v474
    %v603 = vpack.c.b16 %v483, %v475
    %v604 = vpack.c.b16 %v484, %v476
    %v605 = vpack.c.b16 %v485, %v477
    %v606 = vpack.c.b16 %v494, %v486
    %v607 = vpack.c.b16 %v495, %v487
    %v608 = vpack.c.b16 %v496, %v488
    %v609 = vpack.c.b16 %v497, %v489
    %v610 = vpack.c.b16 %v498, %v490
    %v611 = vpack.c.b16 %v499, %v491
    %v612 = vpack.c.b16 %v500, %v492
    %v613 = vpack.c.b16 %v501, %v493
    %v614 = vpack.c.b16 %v510, %v502
    %v615 = vpack.c.b16 %v511, %v503
    %v616 = vpack.c.b16 %v512, %v504
    %v617 = vpack.c.b16 %v513, %v505
    %v618 = vpack.c.b16 %v514, %v506
    %v619 = vpack.c.b16 %v515, %v507
    %v620 = vpack.c.b16 %v516, %v508
    %v621 = vpack.c.b16 %v517, %v509
    %v622 = vpack.c.b16 %v526, %v518
    %v623 = vpack.c.b16 %v527, %v519
    %v624 = vpack.c.b16 %v528, %v520
    %v625 = vpack.c.b16 %v529, %v521
    %v626 = vpack.c.b16 %v530, %v522
    %v627 = vpack.c.b16 %v531, %v523
    %v628 = vpack.c.b16 %v532, %v524
    %v629 = vpack.c.b16 %v533, %v525
    %v630 = vpack.c.b16 %v542, %v534
    %v631 = vpack.c.b16 %v543, %v535
    %v632 = vpack.c.b16 %v544, %v536
    %v633 = vpack.c.b16 %v545, %v537
    %v634 = vpack.c.b16 %v546, %v538
    %v635 = vpack.c.b16 %v547, %v539
    %v636 = vpack.c.b16 %v548, %v540
    %v637 = vpack.c.b16 %v549, %v541
    %v638 = vpack.c.b16 %v550, %v550
    %v639 = vpack.c.b16 %v551, %v551
    %v640 = vpack.c.b16 %v552, %v552
    %v641 = vpack.c.b16 %v553, %v553
    %v642 = vpack.c.b16 %v554, %v554
    %v643 = vpack.c.b16 %v555, %v555
    %v644 = vpack.c.b16 %v556, %v556
    %v645 = vpack.c.b16 %v557, %v557
    %vm726 = vcmask 326656
    %v728 = vsel %vm726, %v304, 0
    %vm730 = vcmask 1043456
    %v732 = vsel %vm730, %v638, 0
    %v735 = vsel %vm730, %v639, 0
    %v738 = vsel %vm730, %v640, 0
    %v741 = vsel %vm730, %v641, 0
    %v744 = vsel %vm730, %v642, 0
    %v747 = vsel %vm730, %v643, 0
    %v750 = vsel %vm730, %v644, 0
    %v753 = vsel %vm730, %v645, 0
    %755 = vmatprep.subr.bf16.mxu0 %v559
    %756 = vmatpush1.bf16.msra.mxu0 %v558
    %757 = vmatprep.subr.bf16.mxu0 %v567
    %758 = vmatpush1.bf16.msra.mxu0 %v566
    %759 = vmatprep.subr.bf16.mxu0 %v575
    %760 = vmatpush1.bf16.msra.mxu0 %v574
    %761 = vmatprep.subr.bf16.mxu0 %v583
    %762 = vmatpush1.bf16.msra.mxu0 %v582
    %763 = vmatprep.subr.bf16.mxu0 %v591
    %764 = vmatpush1.bf16.msra.mxu0 %v590
    %765 = vmatprep.subr.bf16.mxu0 %v599
    %766 = vmatpush1.bf16.msra.mxu0 %v598
    %767 = vmatprep.subr.bf16.mxu0 %v607
    %768 = vmatpush1.bf16.msra.mxu0 %v606
    %769 = vmatprep.subr.bf16.mxu0 %v615
    %770 = vmatpush1.bf16.msra.mxu0 %v614
    %771 = vmatprep.subr.bf16.mxu0 %v623
    %772 = vmatpush1.bf16.msra.mxu0 %v622
    %773 = vmatprep.subr.bf16.mxu0 %v631
    %774 = vmatpush1.bf16.msra.mxu0 %v630
    %775 = vmatprep.subr.bf16.mxu0 %v735
    %776 = vmatpush1.bf16.msra.mxu0 %v732
    %777 = vmatprep.subr.bf16.mxu0 0
    %778 = vmatpush1.bf16.msra.mxu0 0
    %779 = vmatprep.subr.bf16.mxu0 0
    %780 = vmatpush1.bf16.msra.mxu0 0
    %781 = vmatprep.subr.bf16.mxu0 0
    %782 = vmatpush1.bf16.msra.mxu0 0
    %783 = vmatprep.subr.bf16.mxu0 0
    %784 = vmatpush1.bf16.msra.mxu0 0
    %785 = vmatprep.subr.bf16.mxu0 0
    %786 = vmatpush1.bf16.msra.mxu0 0
    %787 = vmatprep.mubr.bf16.mxu0 %v728
    %788 = vmatmul.mubr.bf16.gmra.mrb[0].mxu0 %v303
    %v789 = vpop.f32.mrb[0].mxu0
    %v790 = vadd.f32 %v260, %v789
    %v791 = vpop.f32.mrb[0].mxu0
    %v792 = vadd.f32 %v264, %v791
    %v793 = vpop.f32.mrb[0].mxu0
    %v794 = vadd.f32 %v260, %v793
    %v795 = vpop.f32.mrb[0].mxu0
    %v796 = vadd.f32 %v264, %v795
    %797 = vdwg.mxu0
    %798 = vmatprep.subr.bf16.mxu0 %v561
    %799 = vmatpush1.bf16.msra.mxu0 %v560
    %800 = vmatprep.subr.bf16.mxu0 %v569
    %801 = vmatpush1.bf16.msra.mxu0 %v568
    %802 = vmatprep.subr.bf16.mxu0 %v577
    %803 = vmatpush1.bf16.msra.mxu0 %v576
    %804 = vmatprep.subr.bf16.mxu0 %v585
    %805 = vmatpush1.bf16.msra.mxu0 %v584
    %806 = vmatprep.subr.bf16.mxu0 %v593
    %807 = vmatpush1.bf16.msra.mxu0 %v592
    %808 = vmatprep.subr.bf16.mxu0 %v601
    %809 = vmatpush1.bf16.msra.mxu0 %v600
    %810 = vmatprep.subr.bf16.mxu0 %v609
    %811 = vmatpush1.bf16.msra.mxu0 %v608
    %812 = vmatprep.subr.bf16.mxu0 %v617
    %813 = vmatpush1.bf16.msra.mxu0 %v616
    %814 = vmatprep.subr.bf16.mxu0 %v625
    %815 = vmatpush1.bf16.msra.mxu0 %v624
    %816 = vmatprep.subr.bf16.mxu0 %v633
    %817 = vmatpush1.bf16.msra.mxu0 %v632
    %818 = vmatprep.subr.bf16.mxu0 %v741
    %819 = vmatpush1.bf16.msra.mxu0 %v738
    %820 = vmatprep.subr.bf16.mxu0 0
    %821 = vmatpush1.bf16.msra.mxu0 0
    %822 = vmatprep.subr.bf16.mxu0 0
    %823 = vmatpush1.bf16.msra.mxu0 0
    %824 = vmatprep.subr.bf16.mxu0 0
    %825 = vmatpush1.bf16.msra.mxu0 0
    %826 = vmatprep.subr.bf16.mxu0 0
    %827 = vmatpush1.bf16.msra.mxu0 0
    %828 = vmatprep.subr.bf16.mxu0 0
    %829 = vmatpush1.bf16.msra.mxu0 0
    %830 = vmatprep.mubr.bf16.mxu0 %v728
    %831 = vmatmul.mubr.bf16.gmra.mrb[0].mxu0 %v303
    %v832 = vpop.f32.mrb[0].mxu0
    %v833 = vadd.f32 %v268, %v832
    %v834 = vpop.f32.mrb[0].mxu0
    %v835 = vadd.f32 %v272, %v834
    %v836 = vpop.f32.mrb[0].mxu0
    %v837 = vadd.f32 %v268, %v836
    %v838 = vpop.f32.mrb[0].mxu0
    %v839 = vadd.f32 %v272, %v838
    %840 = vdwg.mxu0
    %841 = vmatprep.subr.bf16.mxu0 %v563
    %842 = vmatpush1.bf16.msra.mxu0 %v562
    %843 = vmatprep.subr.bf16.mxu0 %v571
    %844 = vmatpush1.bf16.msra.mxu0 %v570
    %845 = vmatprep.subr.bf16.mxu0 %v579
    %846 = vmatpush1.bf16.msra.mxu0 %v578
    %847 = vmatprep.subr.bf16.mxu0 %v587
    %848 = vmatpush1.bf16.msra.mxu0 %v586
    %849 = vmatprep.subr.bf16.mxu0 %v595
    %850 = vmatpush1.bf16.msra.mxu0 %v594
    %851 = vmatprep.subr.bf16.mxu0 %v603
    %852 = vmatpush1.bf16.msra.mxu0 %v602
    %853 = vmatprep.subr.bf16.mxu0 %v611
    %854 = vmatpush1.bf16.msra.mxu0 %v610
    %855 = vmatprep.subr.bf16.mxu0 %v619
    %856 = vmatpush1.bf16.msra.mxu0 %v618
    %857 = vmatprep.subr.bf16.mxu0 %v627
    %858 = vmatpush1.bf16.msra.mxu0 %v626
    %859 = vmatprep.subr.bf16.mxu0 %v635
    %860 = vmatpush1.bf16.msra.mxu0 %v634
    %861 = vmatprep.subr.bf16.mxu0 %v747
    %862 = vmatpush1.bf16.msra.mxu0 %v744
    %863 = vmatprep.subr.bf16.mxu0 0
    %864 = vmatpush1.bf16.msra.mxu0 0
    %865 = vmatprep.subr.bf16.mxu0 0
    %866 = vmatpush1.bf16.msra.mxu0 0
    %867 = vmatprep.subr.bf16.mxu0 0
    %868 = vmatpush1.bf16.msra.mxu0 0
    %869 = vmatprep.subr.bf16.mxu0 0
    %870 = vmatpush1.bf16.msra.mxu0 0
    %871 = vmatprep.subr.bf16.mxu0 0
    %872 = vmatpush1.bf16.msra.mxu0 0
    %873 = vmatprep.mubr.bf16.mxu0 %v728
    %874 = vmatmul.mubr.bf16.gmra.mrb[0].mxu0 %v303
    %v875 = vpop.f32.mrb[0].mxu0
    %v876 = vadd.f32 %v276, %v875
    %v877 = vpop.f32.mrb[0].mxu0
    %v878 = vadd.f32 %v280, %v877
    %v879 = vpop.f32.mrb[0].mxu0
    %v880 = vadd.f32 %v276, %v879
    %v881 = vpop.f32.mrb[0].mxu0
    %v882 = vadd.f32 %v280, %v881
    %883 = vdwg.mxu0
    %884 = vmatprep.subr.bf16.mxu0 %v565
    %885 = vmatpush1.bf16.msra.mxu0 %v564
    %886 = vmatprep.subr.bf16.mxu0 %v573
    %887 = vmatpush1.bf16.msra.mxu0 %v572
    %888 = vmatprep.subr.bf16.mxu0 %v581
    %889 = vmatpush1.bf16.msra.mxu0 %v580
    %890 = vmatprep.subr.bf16.mxu0 %v589
    %891 = vmatpush1.bf16.msra.mxu0 %v588
    %892 = vmatprep.subr.bf16.mxu0 %v597
    %893 = vmatpush1.bf16.msra.mxu0 %v596
    %894 = vmatprep.subr.bf16.mxu0 %v605
    %895 = vmatpush1.bf16.msra.mxu0 %v604
    %896 = vmatprep.subr.bf16.mxu0 %v613
    %897 = vmatpush1.bf16.msra.mxu0 %v612
    %898 = vmatprep.subr.bf16.mxu0 %v621
    %899 = vmatpush1.bf16.msra.mxu0 %v620
    %900 = vmatprep.subr.bf16.mxu0 %v629
    %901 = vmatpush1.bf16.msra.mxu0 %v628
    %902 = vmatprep.subr.bf16.mxu0 %v637
    %903 = vmatpush1.bf16.msra.mxu0 %v636
    %904 = vmatprep.subr.bf16.mxu0 %v753
    %905 = vmatpush1.bf16.msra.mxu0 %v750
    %906 = vmatprep.subr.bf16.mxu0 0
    %907 = vmatpush1.bf16.msra.mxu0 0
    %908 = vmatprep.subr.bf16.mxu0 0
    %909 = vmatpush1.bf16.msra.mxu0 0
    %910 = vmatprep.subr.bf16.mxu0 0
    %911 = vmatpush1.bf16.msra.mxu0 0
    %912 = vmatprep.subr.bf16.mxu0 0
    %913 = vmatpush1.bf16.msra.mxu0 0
    %914 = vmatprep.subr.bf16.mxu0 0
    %915 = vmatpush1.bf16.msra.mxu0 0
    %916 = vmatprep.mubr.bf16.mxu0 %v728
    %917 = vmatmul.mubr.bf16.gmra.mrb[0].mxu0 %v303
    %v918 = vpop.f32.mrb[0].mxu0
    %v919 = vadd.f32 %v284, %v918
    %v920 = vpop.f32.mrb[0].mxu0
    %v921 = vadd.f32 %v288, %v920
    %v922 = vpop.f32.mrb[0].mxu0
    %v923 = vadd.f32 %v284, %v922
    %v924 = vpop.f32.mrb[0].mxu0
    %v925 = vadd.f32 %v288, %v924
    %926 = vdwg.mxu0
    %v927 = vmax.f32 %v790, 0.0
    %v928 = vmax.f32 %v792, 0.0
    %v929 = vmax.f32 %v833, 0.0
    %v930 = vmax.f32 %v835, 0.0
    %v931 = vmax.f32 %v876, 0.0
    %v932 = vmax.f32 %v878, 0.0
    %v933 = vmax.f32 %v919, 0.0
    %v934 = vmax.f32 %v921, 0.0
    %v935 = vmax.f32 %v794, 0.0
    %v936 = vmax.f32 %v796, 0.0
    %v937 = vmax.f32 %v837, 0.0
    %v938 = vmax.f32 %v839, 0.0
    %v939 = vmax.f32 %v880, 0.0
    %v940 = vmax.f32 %v882, 0.0
    %v941 = vmax.f32 %v923, 0.0
    %v942 = vmax.f32 %v925, 0.0
    %v943 = vpack.c.bf16 %v935, %v927
    %v944 = vpack.c.bf16 %v936, %v928
    %v945 = vpack.c.bf16 %v937, %v929
    %v946 = vpack.c.bf16 %v938, %v930
    %v947 = vpack.c.bf16 %v939, %v931
    %v948 = vpack.c.bf16 %v940, %v932
    %v949 = vpack.c.bf16 %v941, %v933
    %v950 = vpack.c.bf16 %v942, %v934
    %v951 = vld [vmem:[#allocation7] sm:$0xff]
    %v952 = vld [vmem:[#allocation7 + $0x8] sm:$0xff]
    %v953 = vld [vmem:[#allocation7 + $0x10] sm:$0xff]
    %v954 = vld [vmem:[#allocation7 + $0x18] sm:$0xff]
    %v955 = vld [vmem:[#allocation7 + $0x20] sm:$0xff]
    %v956 = vld [vmem:[#allocation7 + $0x28] sm:$0xff]
    %v957 = vld [vmem:[#allocation7 + $0x30] sm:$0xff]
    %v958 = vld [vmem:[#allocation7 + $0x38] sm:$0xff]
    %v959 = vld [vmem:[#allocation7 + $0x40] sm:$0xff]
    %v960 = vld [vmem:[#allocation7 + $0x48] sm:$0xff]
    %v961 = vld [vmem:[#allocation7 + $0x50] sm:$0xff]
    %v962 = vld [vmem:[#allocation7 + $0x58] sm:$0xff]
    %v963 = vld [vmem:[#allocation7 + $0x60] sm:$0xff]
    %v964 = vld [vmem:[#allocation7 + $0x68] sm:$0xff]
    %v965 = vld [vmem:[#allocation7 + $0x70] sm:$0xff]
    %v966 = vld [vmem:[#allocation7 + $0x78] sm:$0xff]
    %v967 = vld [vmem:[#allocation7 + $0x80] sm:$0xff]
    %v968 = vld [vmem:[#allocation7 + $0x88] sm:$0xff]
    %v969 = vld [vmem:[#allocation7 + $0x90] sm:$0xff]
    %v970 = vld [vmem:[#allocation7 + $0x98] sm:$0xff]
    %v971 = vld [vmem:[#allocation7 + $0xa0] sm:$0xff]
    %v972 = vld [vmem:[#allocation7 + $0xa8] sm:$0xff]
    %v973 = vld [vmem:[#allocation7 + $0xb0] sm:$0xff]
    %v974 = vld [vmem:[#allocation7 + $0xb8] sm:$0xff]
    %v975 = vld [vmem:[#allocation7 + $0xc0] sm:$0xff]
    %v976 = vld [vmem:[#allocation7 + $0xc8] sm:$0xff]
    %v977 = vld [vmem:[#allocation7 + $0xd0] sm:$0xff]
    %v978 = vld [vmem:[#allocation7 + $0xd8] sm:$0xff]
    %v979 = vld [vmem:[#allocation7 + $0xe0] sm:$0xff]
    %v980 = vld [vmem:[#allocation7 + $0xe8] sm:$0xff]
    %v981 = vld [vmem:[#allocation7 + $0xf0] sm:$0xff]
    %v982 = vld [vmem:[#allocation7 + $0xf8] sm:$0xff]
    %v983 = vld [vmem:[#allocation7 + $0x100] sm:$0xff]
    %v984 = vld [vmem:[#allocation7 + $0x108] sm:$0xff]
    %v985 = vld [vmem:[#allocation7 + $0x110] sm:$0xff]
    %v986 = vld [vmem:[#allocation7 + $0x118] sm:$0xff]
    %v987 = vld [vmem:[#allocation7 + $0x120] sm:$0xff]
    %v988 = vld [vmem:[#allocation7 + $0x128] sm:$0xff]
    %v989 = vld [vmem:[#allocation7 + $0x130] sm:$0xff]
    %v990 = vld [vmem:[#allocation7 + $0x138] sm:$0xff]
    %v991 = vld [vmem:[#allocation7 + $0x140] sm:$0xff]
    %v992 = vld [vmem:[#allocation7 + $0x148] sm:$0xff]
    %v993 = vld [vmem:[#allocation7 + $0x150] sm:$0xff]
    %v994 = vld [vmem:[#allocation7 + $0x158] sm:$0xff]
    %v995 = vld [vmem:[#allocation7 + $0x160] sm:$0xff]
    %v996 = vld [vmem:[#allocation7 + $0x168] sm:$0xff]
    %v997 = vld [vmem:[#allocation7 + $0x170] sm:$0xff]
    %v998 = vld [vmem:[#allocation7 + $0x178] sm:$0xff]
    %v999 = vld [vmem:[#allocation7 + $0x180] sm:$0xff]
    %v1000 = vld [vmem:[#allocation7 + $0x188] sm:$0xff]
    %v1001 = vld [vmem:[#allocation7 + $0x190] sm:$0xff]
    %v1002 = vld [vmem:[#allocation7 + $0x198] sm:$0xff]
    %v1003 = vld [vmem:[#allocation7 + $0x1a0] sm:$0xff]
    %v1004 = vld [vmem:[#allocation7 + $0x1a8] sm:$0xff]
    %v1005 = vld [vmem:[#allocation7 + $0x1b0] sm:$0xff]
    %v1006 = vld [vmem:[#allocation7 + $0x1b8] sm:$0xff]
    %v1007 = vld [vmem:[#allocation7 + $0x1c0] sm:$0xff]
    %v1008 = vld [vmem:[#allocation7 + $0x1c8] sm:$0xff]
    %v1009 = vld [vmem:[#allocation7 + $0x1d0] sm:$0xff]
    %v1010 = vld [vmem:[#allocation7 + $0x1d8] sm:$0xff]
    %v1011 = vld [vmem:[#allocation7 + $0x1e0] sm:$0xff]
    %v1012 = vld [vmem:[#allocation7 + $0x1e8] sm:$0xff]
    %v1013 = vld [vmem:[#allocation7 + $0x1f0] sm:$0xff]
    %v1014 = vld [vmem:[#allocation7 + $0x1f8] sm:$0xff]
    %v1015 = vld [vmem:[#allocation7 + $0x200] sm:$0xff]
    %v1016 = vld [vmem:[#allocation7 + $0x208] sm:$0xff]
    %v1017 = vld [vmem:[#allocation7 + $0x210] sm:$0xff]
    %v1018 = vld [vmem:[#allocation7 + $0x218] sm:$0xff]
    %v1019 = vld [vmem:[#allocation7 + $0x220] sm:$0xff]
    %v1020 = vld [vmem:[#allocation7 + $0x228] sm:$0xff]
    %v1021 = vld [vmem:[#allocation7 + $0x230] sm:$0xff]
    %v1022 = vld [vmem:[#allocation7 + $0x238] sm:$0xff]
    %v1023 = vld [vmem:[#allocation7 + $0x240] sm:$0xff]
    %v1024 = vld [vmem:[#allocation7 + $0x248] sm:$0xff]
    %v1025 = vld [vmem:[#allocation7 + $0x250] sm:$0xff]
    %v1026 = vld [vmem:[#allocation7 + $0x258] sm:$0xff]
    %v1027 = vld [vmem:[#allocation7 + $0x260] sm:$0xff]
    %v1028 = vld [vmem:[#allocation7 + $0x268] sm:$0xff]
    %v1029 = vld [vmem:[#allocation7 + $0x270] sm:$0xff]
    %v1030 = vld [vmem:[#allocation7 + $0x278] sm:$0xff]
    %v1031 = vld [vmem:[#allocation7 + $0x280] sm:$0xff]
    %v1032 = vld [vmem:[#allocation7 + $0x288] sm:$0xff]
    %v1033 = vld [vmem:[#allocation7 + $0x290] sm:$0xff]
    %v1034 = vld [vmem:[#allocation7 + $0x298] sm:$0xff]
    %v1035 = vld [vmem:[#allocation7 + $0x2a0] sm:$0xff]
    %v1036 = vld [vmem:[#allocation7 + $0x2a8] sm:$0xff]
    %v1037 = vld [vmem:[#allocation7 + $0x2b0] sm:$0xff]
    %v1038 = vld [vmem:[#allocation7 + $0x2b8] sm:$0xff]
    %v1039 = vld [vmem:[#allocation7 + $0x2c0] sm:$0xff]
    %v1040 = vld [vmem:[#allocation7 + $0x2c8] sm:$0xff]
    %v1041 = vld [vmem:[#allocation7 + $0x2d0] sm:$0xff]
    %v1042 = vld [vmem:[#allocation7 + $0x2d8] sm:$0xff]
    %v1043 = vld [vmem:[#allocation7 + $0x2e0] sm:$0xff]
    %v1044 = vld [vmem:[#allocation7 + $0x2e8] sm:$0xff]
    %v1045 = vld [vmem:[#allocation7 + $0x2f0] sm:$0xff]
    %v1046 = vld [vmem:[#allocation7 + $0x2f8] sm:$0xff]
    %v1047 = vld [vmem:[#allocation7 + $0x300] sm:$0xff]
    %v1048 = vld [vmem:[#allocation7 + $0x308] sm:$0xff]
    %v1049 = vld [vmem:[#allocation7 + $0x310] sm:$0xff]
    %v1050 = vld [vmem:[#allocation7 + $0x318] sm:$0xff]
    %v1051 = vld [vmem:[#allocation7 + $0x320] sm:$0xff]
    %v1052 = vld [vmem:[#allocation7 + $0x328] sm:$0xff]
    %v1053 = vld [vmem:[#allocation7 + $0x330] sm:$0xff]
    %v1054 = vld [vmem:[#allocation7 + $0x338] sm:$0xff]
    %v1055 = vld [vmem:[#allocation7 + $0x340] sm:$0xff]
    %v1056 = vld [vmem:[#allocation7 + $0x348] sm:$0xff]
    %v1057 = vld [vmem:[#allocation7 + $0x350] sm:$0xff]
    %v1058 = vld [vmem:[#allocation7 + $0x358] sm:$0xff]
    %v1059 = vld [vmem:[#allocation7 + $0x360] sm:$0xff]
    %v1060 = vld [vmem:[#allocation7 + $0x368] sm:$0xff]
    %v1061 = vld [vmem:[#allocation7 + $0x370] sm:$0xff]
    %v1062 = vld [vmem:[#allocation7 + $0x378] sm:$0xff]
    %v1063 = vld [vmem:[#allocation7 + $0x380] sm:$0xff]
    %v1064 = vld [vmem:[#allocation7 + $0x388] sm:$0xff]
    %v1065 = vld [vmem:[#allocation7 + $0x390] sm:$0xff]
    %v1066 = vld [vmem:[#allocation7 + $0x398] sm:$0xff]
    %v1067 = vld [vmem:[#allocation7 + $0x3a0] sm:$0xff]
    %v1068 = vld [vmem:[#allocation7 + $0x3a8] sm:$0xff]
    %v1069 = vld [vmem:[#allocation7 + $0x3b0] sm:$0xff]
    %v1070 = vld [vmem:[#allocation7 + $0x3b8] sm:$0xff]
    %v1071 = vld [vmem:[#allocation7 + $0x3c0] sm:$0xff]
    %v1072 = vld [vmem:[#allocation7 + $0x3c8] sm:$0xff]
    %v1073 = vld [vmem:[#allocation7 + $0x3d0] sm:$0xff]
    %v1074 = vld [vmem:[#allocation7 + $0x3d8] sm:$0xff]
    %v1075 = vld [vmem:[#allocation7 + $0x3e0] sm:$0xff]
    %v1076 = vld [vmem:[#allocation7 + $0x3e8] sm:$0xff]
    %v1077 = vld [vmem:[#allocation7 + $0x3f0] sm:$0xff]
    %v1078 = vld [vmem:[#allocation7 + $0x3f8] sm:$0xff]
    %v1079 = vld [vmem:[#allocation7 + $0x400] sm:$0xff]
    %v1080 = vld [vmem:[#allocation7 + $0x408] sm:$0xff]
    %v1081 = vld [vmem:[#allocation7 + $0x410] sm:$0xff]
    %v1082 = vld [vmem:[#allocation7 + $0x418] sm:$0xff]
    %v1083 = vld [vmem:[#allocation7 + $0x420] sm:$0xff]
    %v1084 = vld [vmem:[#allocation7 + $0x428] sm:$0xff]
    %v1085 = vld [vmem:[#allocation7 + $0x430] sm:$0xff]
    %v1086 = vld [vmem:[#allocation7 + $0x438] sm:$0xff]
    %v1087 = vld [vmem:[#allocation7 + $0x440] sm:$0xff]
    %v1088 = vld [vmem:[#allocation7 + $0x448] sm:$0xff]
    %v1089 = vld [vmem:[#allocation7 + $0x450] sm:$0xff]
    %v1090 = vld [vmem:[#allocation7 + $0x458] sm:$0xff]
    %v1091 = vld [vmem:[#allocation7 + $0x460] sm:$0xff]
    %v1092 = vld [vmem:[#allocation7 + $0x468] sm:$0xff]
    %v1093 = vld [vmem:[#allocation7 + $0x470] sm:$0xff]
    %v1094 = vld [vmem:[#allocation7 + $0x478] sm:$0xff]
    %v1095 = vld [vmem:[#allocation7 + $0x480] sm:$0xff]
    %v1096 = vld [vmem:[#allocation7 + $0x488] sm:$0xff]
    %v1097 = vld [vmem:[#allocation7 + $0x490] sm:$0xff]
    %v1098 = vld [vmem:[#allocation7 + $0x498] sm:$0xff]
    %v1099 = vld [vmem:[#allocation7 + $0x4a0] sm:$0xff]
    %v1100 = vld [vmem:[#allocation7 + $0x4a8] sm:$0xff]
    %v1101 = vld [vmem:[#allocation7 + $0x4b0] sm:$0xff]
    %v1102 = vld [vmem:[#allocation7 + $0x4b8] sm:$0xff]
    %v1103 = vld [vmem:[#allocation7 + $0x4c0] sm:$0xff]
    %v1104 = vld [vmem:[#allocation7 + $0x4c8] sm:$0xff]
    %v1105 = vld [vmem:[#allocation7 + $0x4d0] sm:$0xff]
    %v1106 = vld [vmem:[#allocation7 + $0x4d8] sm:$0xff]
    %v1107 = vld [vmem:[#allocation7 + $0x4e0] sm:$0xff]
    %v1108 = vld [vmem:[#allocation7 + $0x4e8] sm:$0xff]
    %v1109 = vld [vmem:[#allocation7 + $0x4f0] sm:$0xff]
    %v1110 = vld [vmem:[#allocation7 + $0x4f8] sm:$0xff]
    %v1111 = vld [vmem:[#allocation7 + $0x500] sm:$0xff]
    %v1112 = vld [vmem:[#allocation7 + $0x508] sm:$0xff]
    %v1113 = vld [vmem:[#allocation7 + $0x510] sm:$0xff]
    %v1114 = vld [vmem:[#allocation7 + $0x518] sm:$0xff]
    %v1115 = vld [vmem:[#allocation7 + $0x520] sm:$0xff]
    %v1116 = vld [vmem:[#allocation7 + $0x528] sm:$0xff]
    %v1117 = vld [vmem:[#allocation7 + $0x530] sm:$0xff]
    %v1118 = vld [vmem:[#allocation7 + $0x538] sm:$0xff]
    %v1119 = vld [vmem:[#allocation7 + $0x540] sm:$0xff]
    %v1120 = vld [vmem:[#allocation7 + $0x548] sm:$0xff]
    %v1121 = vld [vmem:[#allocation7 + $0x550] sm:$0xff]
    %v1122 = vld [vmem:[#allocation7 + $0x558] sm:$0xff]
    %v1123 = vld [vmem:[#allocation7 + $0x560] sm:$0xff]
    %v1124 = vld [vmem:[#allocation7 + $0x568] sm:$0xff]
    %v1125 = vld [vmem:[#allocation7 + $0x570] sm:$0xff]
    %v1126 = vld [vmem:[#allocation7 + $0x578] sm:$0xff]
    %v1127 = vld [vmem:[#allocation7 + $0x580] sm:$0xff]
    %v1128 = vld [vmem:[#allocation7 + $0x588] sm:$0xff]
    %v1129 = vld [vmem:[#allocation7 + $0x590] sm:$0xff]
    %v1130 = vld [vmem:[#allocation7 + $0x598] sm:$0xff]
    %v1131 = vld [vmem:[#allocation7 + $0x5a0] sm:$0xff]
    %v1132 = vld [vmem:[#allocation7 + $0x5a8] sm:$0xff]
    %v1133 = vld [vmem:[#allocation7 + $0x5b0] sm:$0xff]
    %v1134 = vld [vmem:[#allocation7 + $0x5b8] sm:$0xff]
    %v1135 = vld [vmem:[#allocation7 + $0x5c0] sm:$0xff]
    %v1136 = vld [vmem:[#allocation7 + $0x5c8] sm:$0xff]
    %v1137 = vld [vmem:[#allocation7 + $0x5d0] sm:$0xff]
    %v1138 = vld [vmem:[#allocation7 + $0x5d8] sm:$0xff]
    %v1139 = vld [vmem:[#allocation7 + $0x5e0] sm:$0xff]
    %v1140 = vld [vmem:[#allocation7 + $0x5e8] sm:$0xff]
    %v1141 = vld [vmem:[#allocation7 + $0x5f0] sm:$0xff]
    %v1142 = vld [vmem:[#allocation7 + $0x5f8] sm:$0xff]
    %v1143 = vld [vmem:[#allocation7 + $0x600] sm:$0xff]
    %v1144 = vld [vmem:[#allocation7 + $0x608] sm:$0xff]
    %v1145 = vld [vmem:[#allocation7 + $0x610] sm:$0xff]
    %v1146 = vld [vmem:[#allocation7 + $0x618] sm:$0xff]
    %v1147 = vld [vmem:[#allocation7 + $0x620] sm:$0xff]
    %v1148 = vld [vmem:[#allocation7 + $0x628] sm:$0xff]
    %v1149 = vld [vmem:[#allocation7 + $0x630] sm:$0xff]
    %v1150 = vld [vmem:[#allocation7 + $0x638] sm:$0xff]
    %v1151 = vld [vmem:[#allocation7 + $0x640] sm:$0xff]
    %v1152 = vld [vmem:[#allocation7 + $0x648] sm:$0xff]
    %v1153 = vld [vmem:[#allocation7 + $0x650] sm:$0xff]
    %v1154 = vld [vmem:[#allocation7 + $0x658] sm:$0xff]
    %v1155 = vld [vmem:[#allocation7 + $0x660] sm:$0xff]
    %v1156 = vld [vmem:[#allocation7 + $0x668] sm:$0xff]
    %v1157 = vld [vmem:[#allocation7 + $0x670] sm:$0xff]
    %v1158 = vld [vmem:[#allocation7 + $0x678] sm:$0xff]
    %v1159 = vld [vmem:[#allocation7 + $0x680] sm:$0xff]
    %v1160 = vld [vmem:[#allocation7 + $0x688] sm:$0xff]
    %v1161 = vld [vmem:[#allocation7 + $0x690] sm:$0xff]
    %v1162 = vld [vmem:[#allocation7 + $0x698] sm:$0xff]
    %v1163 = vld [vmem:[#allocation7 + $0x6a0] sm:$0xff]
    %v1164 = vld [vmem:[#allocation7 + $0x6a8] sm:$0xff]
    %v1165 = vld [vmem:[#allocation7 + $0x6b0] sm:$0xff]
    %v1166 = vld [vmem:[#allocation7 + $0x6b8] sm:$0xff]
    %v1167 = vld [vmem:[#allocation7 + $0x6c0] sm:$0xff]
    %v1168 = vld [vmem:[#allocation7 + $0x6c8] sm:$0xff]
    %v1169 = vld [vmem:[#allocation7 + $0x6d0] sm:$0xff]
    %v1170 = vld [vmem:[#allocation7 + $0x6d8] sm:$0xff]
    %v1171 = vld [vmem:[#allocation7 + $0x6e0] sm:$0xff]
    %v1172 = vld [vmem:[#allocation7 + $0x6e8] sm:$0xff]
    %v1173 = vld [vmem:[#allocation7 + $0x6f0] sm:$0xff]
    %v1174 = vld [vmem:[#allocation7 + $0x6f8] sm:$0xff]
    %v1175 = vld [vmem:[#allocation7 + $0x700] sm:$0xff]
    %v1176 = vld [vmem:[#allocation7 + $0x708] sm:$0xff]
    %v1177 = vld [vmem:[#allocation7 + $0x710] sm:$0xff]
    %v1178 = vld [vmem:[#allocation7 + $0x718] sm:$0xff]
    %v1179 = vld [vmem:[#allocation7 + $0x720] sm:$0xff]
    %v1180 = vld [vmem:[#allocation7 + $0x728] sm:$0xff]
    %v1181 = vld [vmem:[#allocation7 + $0x730] sm:$0xff]
    %v1182 = vld [vmem:[#allocation7 + $0x738] sm:$0xff]
    %v1183 = vld [vmem:[#allocation7 + $0x740] sm:$0xff]
    %v1184 = vld [vmem:[#allocation7 + $0x748] sm:$0xff]
    %v1185 = vld [vmem:[#allocation7 + $0x750] sm:$0xff]
    %v1186 = vld [vmem:[#allocation7 + $0x758] sm:$0xff]
    %v1187 = vld [vmem:[#allocation7 + $0x760] sm:$0xff]
    %v1188 = vld [vmem:[#allocation7 + $0x768] sm:$0xff]
    %v1189 = vld [vmem:[#allocation7 + $0x770] sm:$0xff]
    %v1190 = vld [vmem:[#allocation7 + $0x778] sm:$0xff]
    %v1191 = vld [vmem:[#allocation7 + $0x780] sm:$0xff]
    %v1192 = vld [vmem:[#allocation7 + $0x788] sm:$0xff]
    %v1193 = vld [vmem:[#allocation7 + $0x790] sm:$0xff]
    %v1194 = vld [vmem:[#allocation7 + $0x798] sm:$0xff]
    %v1195 = vld [vmem:[#allocation7 + $0x7a0] sm:$0xff]
    %v1196 = vld [vmem:[#allocation7 + $0x7a8] sm:$0xff]
    %v1197 = vld [vmem:[#allocation7 + $0x7b0] sm:$0xff]
    %v1198 = vld [vmem:[#allocation7 + $0x7b8] sm:$0xff]
    %v1199 = vld [vmem:[#allocation7 + $0x7c0] sm:$0xff]
    %v1200 = vld [vmem:[#allocation7 + $0x7c8] sm:$0xff]
    %v1201 = vld [vmem:[#allocation7 + $0x7d0] sm:$0xff]
    %v1202 = vld [vmem:[#allocation7 + $0x7d8] sm:$0xff]
    %v1203 = vld [vmem:[#allocation7 + $0x7e0] sm:$0xff]
    %v1204 = vld [vmem:[#allocation7 + $0x7e8] sm:$0xff]
    %v1205 = vld [vmem:[#allocation7 + $0x7f0] sm:$0xff]
    %v1206 = vld [vmem:[#allocation7 + $0x7f8] sm:$0xff]
    %v1207 = vld [vmem:[#allocation7 + $0x800] sm:$0xff]
    %v1208 = vld [vmem:[#allocation7 + $0x808] sm:$0xff]
    %v1209 = vld [vmem:[#allocation7 + $0x810] sm:$0xff]
    %v1210 = vld [vmem:[#allocation7 + $0x818] sm:$0xff]
    %v1211 = vld [vmem:[#allocation7 + $0x820] sm:$0xff]
    %v1212 = vld [vmem:[#allocation7 + $0x828] sm:$0xff]
    %v1213 = vld [vmem:[#allocation7 + $0x830] sm:$0xff]
    %v1214 = vld [vmem:[#allocation7 + $0x838] sm:$0xff]
    %v1215 = vld [vmem:[#allocation7 + $0x840] sm:$0xff]
    %v1216 = vld [vmem:[#allocation7 + $0x848] sm:$0xff]
    %v1217 = vld [vmem:[#allocation7 + $0x850] sm:$0xff]
    %v1218 = vld [vmem:[#allocation7 + $0x858] sm:$0xff]
    %v1219 = vld [vmem:[#allocation7 + $0x860] sm:$0xff]
    %v1220 = vld [vmem:[#allocation7 + $0x868] sm:$0xff]
    %v1221 = vld [vmem:[#allocation7 + $0x870] sm:$0xff]
    %v1222 = vld [vmem:[#allocation7 + $0x878] sm:$0xff]
    %v1223 = vld [vmem:[#allocation7 + $0x880] sm:$0xff]
    %v1224 = vld [vmem:[#allocation7 + $0x888] sm:$0xff]
    %v1225 = vld [vmem:[#allocation7 + $0x890] sm:$0xff]
    %v1226 = vld [vmem:[#allocation7 + $0x898] sm:$0xff]
    %v1227 = vld [vmem:[#allocation7 + $0x8a0] sm:$0xff]
    %v1228 = vld [vmem:[#allocation7 + $0x8a8] sm:$0xff]
    %v1229 = vld [vmem:[#allocation7 + $0x8b0] sm:$0xff]
    %v1230 = vld [vmem:[#allocation7 + $0x8b8] sm:$0xff]
    %v1231 = vld [vmem:[#allocation7 + $0x8c0] sm:$0xff]
    %v1232 = vld [vmem:[#allocation7 + $0x8c8] sm:$0xff]
    %v1233 = vld [vmem:[#allocation7 + $0x8d0] sm:$0xff]
    %v1234 = vld [vmem:[#allocation7 + $0x8d8] sm:$0xff]
    %v1235 = vld [vmem:[#allocation7 + $0x8e0] sm:$0xff]
    %v1236 = vld [vmem:[#allocation7 + $0x8e8] sm:$0xff]
    %v1237 = vld [vmem:[#allocation7 + $0x8f0] sm:$0xff]
    %v1238 = vld [vmem:[#allocation7 + $0x8f8] sm:$0xff]
    %v1239 = vld [vmem:[#allocation7 + $0x900] sm:$0xff]
    %v1240 = vld [vmem:[#allocation7 + $0x908] sm:$0xff]
    %v1241 = vld [vmem:[#allocation7 + $0x910] sm:$0xff]
    %v1242 = vld [vmem:[#allocation7 + $0x918] sm:$0xff]
    %v1243 = vld [vmem:[#allocation7 + $0x920] sm:$0xff]
    %v1244 = vld [vmem:[#allocation7 + $0x928] sm:$0xff]
    %v1245 = vld [vmem:[#allocation7 + $0x930] sm:$0xff]
    %v1246 = vld [vmem:[#allocation7 + $0x938] sm:$0xff]
    %v1247 = vld [vmem:[#allocation7 + $0x940] sm:$0xff]
    %v1248 = vld [vmem:[#allocation7 + $0x948] sm:$0xff]
    %v1249 = vld [vmem:[#allocation7 + $0x950] sm:$0xff]
    %v1250 = vld [vmem:[#allocation7 + $0x958] sm:$0xff]
    %v1251 = vld [vmem:[#allocation7 + $0x960] sm:$0xff]
    %v1252 = vld [vmem:[#allocation7 + $0x968] sm:$0xff]
    %v1253 = vld [vmem:[#allocation7 + $0x970] sm:$0xff]
    %v1254 = vld [vmem:[#allocation7 + $0x978] sm:$0xff]
    %v1255 = vld [vmem:[#allocation7 + $0x980] sm:$0xff]
    %v1256 = vld [vmem:[#allocation7 + $0x988] sm:$0xff]
    %v1257 = vld [vmem:[#allocation7 + $0x990] sm:$0xff]
    %v1258 = vld [vmem:[#allocation7 + $0x998] sm:$0xff]
    %v1259 = vld [vmem:[#allocation7 + $0x9a0] sm:$0xff]
    %v1260 = vld [vmem:[#allocation7 + $0x9a8] sm:$0xff]
    %v1261 = vld [vmem:[#allocation7 + $0x9b0] sm:$0xff]
    %v1262 = vld [vmem:[#allocation7 + $0x9b8] sm:$0xff]
    %v1263 = vld [vmem:[#allocation7 + $0x9c0] sm:$0xff]
    %v1264 = vld [vmem:[#allocation7 + $0x9c8] sm:$0xff]
    %v1265 = vld [vmem:[#allocation7 + $0x9d0] sm:$0xff]
    %v1266 = vld [vmem:[#allocation7 + $0x9d8] sm:$0xff]
    %v1267 = vld [vmem:[#allocation7 + $0x9e0] sm:$0xff]
    %v1268 = vld [vmem:[#allocation7 + $0x9e8] sm:$0xff]
    %v1269 = vld [vmem:[#allocation7 + $0x9f0] sm:$0xff]
    %v1270 = vld [vmem:[#allocation7 + $0x9f8] sm:$0xff]
    %v1271 = vld [vmem:[#allocation7 + $0xa00] sm:$0xff]
    %v1272 = vld [vmem:[#allocation7 + $0xa08] sm:$0xff]
    %v1273 = vld [vmem:[#allocation7 + $0xa10] sm:$0xff]
    %v1274 = vld [vmem:[#allocation7 + $0xa18] sm:$0xff]
    %v1275 = vld [vmem:[#allocation7 + $0xa20] sm:$0xff]
    %v1276 = vld [vmem:[#allocation7 + $0xa28] sm:$0xff]
    %v1277 = vld [vmem:[#allocation7 + $0xa30] sm:$0xff]
    %v1278 = vld [vmem:[#allocation7 + $0xa38] sm:$0xff]
    %v1279 = vld [vmem:[#allocation7 + $0xa40] sm:$0xff]
    %v1280 = vld [vmem:[#allocation7 + $0xa48] sm:$0xff]
    %v1281 = vld [vmem:[#allocation7 + $0xa50] sm:$0xff]
    %v1282 = vld [vmem:[#allocation7 + $0xa58] sm:$0xff]
    %v1283 = vld [vmem:[#allocation7 + $0xa60] sm:$0xff]
    %v1284 = vld [vmem:[#allocation7 + $0xa68] sm:$0xff]
    %v1285 = vld [vmem:[#allocation7 + $0xa70] sm:$0xff]
    %v1286 = vld [vmem:[#allocation7 + $0xa78] sm:$0xff]
    %v1287 = vld [vmem:[#allocation7 + $0xa80] sm:$0xff]
    %v1288 = vld [vmem:[#allocation7 + $0xa88] sm:$0xff]
    %v1289 = vld [vmem:[#allocation7 + $0xa90] sm:$0xff]
    %v1290 = vld [vmem:[#allocation7 + $0xa98] sm:$0xff]
    %v1291 = vld [vmem:[#allocation7 + $0xaa0] sm:$0xff]
    %v1292 = vld [vmem:[#allocation7 + $0xaa8] sm:$0xff]
    %v1293 = vld [vmem:[#allocation7 + $0xab0] sm:$0xff]
    %v1294 = vld [vmem:[#allocation7 + $0xab8] sm:$0xff]
    %v1295 = vld [vmem:[#allocation7 + $0xac0] sm:$0xff]
    %v1296 = vld [vmem:[#allocation7 + $0xac8] sm:$0xff]
    %v1297 = vld [vmem:[#allocation7 + $0xad0] sm:$0xff]
    %v1298 = vld [vmem:[#allocation7 + $0xad8] sm:$0xff]
    %v1299 = vld [vmem:[#allocation7 + $0xae0] sm:$0xff]
    %v1300 = vld [vmem:[#allocation7 + $0xae8] sm:$0xff]
    %v1301 = vld [vmem:[#allocation7 + $0xaf0] sm:$0xff]
    %v1302 = vld [vmem:[#allocation7 + $0xaf8] sm:$0xff]
    %v1303 = vld [vmem:[#allocation7 + $0xb00] sm:$0xff]
    %v1304 = vld [vmem:[#allocation7 + $0xb08] sm:$0xff]
    %v1305 = vld [vmem:[#allocation7 + $0xb10] sm:$0xff]
    %v1306 = vld [vmem:[#allocation7 + $0xb18] sm:$0xff]
    %v1307 = vld [vmem:[#allocation7 + $0xb20] sm:$0xff]
    %v1308 = vld [vmem:[#allocation7 + $0xb28] sm:$0xff]
    %v1309 = vld [vmem:[#allocation7 + $0xb30] sm:$0xff]
    %v1310 = vld [vmem:[#allocation7 + $0xb38] sm:$0xff]
    %v1311 = vld [vmem:[#allocation7 + $0xb40] sm:$0xff]
    %v1312 = vld [vmem:[#allocation7 + $0xb48] sm:$0xff]
    %v1313 = vld [vmem:[#allocation7 + $0xb50] sm:$0xff]
    %v1314 = vld [vmem:[#allocation7 + $0xb58] sm:$0xff]
    %v1315 = vld [vmem:[#allocation7 + $0xb60] sm:$0xff]
    %v1316 = vld [vmem:[#allocation7 + $0xb68] sm:$0xff]
    %v1317 = vld [vmem:[#allocation7 + $0xb70] sm:$0xff]
    %v1318 = vld [vmem:[#allocation7 + $0xb78] sm:$0xff]
    %v1319 = vld [vmem:[#allocation7 + $0xb80] sm:$0xff]
    %v1320 = vld [vmem:[#allocation7 + $0xb88] sm:$0xff]
    %v1321 = vld [vmem:[#allocation7 + $0xb90] sm:$0xff]
    %v1322 = vld [vmem:[#allocation7 + $0xb98] sm:$0xff]
    %v1323 = vld [vmem:[#allocation7 + $0xba0] sm:$0xff]
    %v1324 = vld [vmem:[#allocation7 + $0xba8] sm:$0xff]
    %v1325 = vld [vmem:[#allocation7 + $0xbb0] sm:$0xff]
    %v1326 = vld [vmem:[#allocation7 + $0xbb8] sm:$0xff]
    %v1327 = vld [vmem:[#allocation7 + $0xbc0] sm:$0xff]
    %v1328 = vld [vmem:[#allocation7 + $0xbc8] sm:$0xff]
    %v1329 = vld [vmem:[#allocation7 + $0xbd0] sm:$0xff]
    %v1330 = vld [vmem:[#allocation7 + $0xbd8] sm:$0xff]
    %v1331 = vld [vmem:[#allocation7 + $0xbe0] sm:$0xff]
    %v1332 = vld [vmem:[#allocation7 + $0xbe8] sm:$0xff]
    %v1333 = vld [vmem:[#allocation7 + $0xbf0] sm:$0xff]
    %v1334 = vld [vmem:[#allocation7 + $0xbf8] sm:$0xff]
    %v1335 = vld [vmem:[#allocation7 + $0xc00] sm:$0xff]
    %v1336 = vld [vmem:[#allocation7 + $0xc08] sm:$0xff]
    %v1337 = vld [vmem:[#allocation7 + $0xc10] sm:$0xff]
    %v1338 = vld [vmem:[#allocation7 + $0xc18] sm:$0xff]
    %v1339 = vld [vmem:[#allocation7 + $0xc20] sm:$0xff]
    %v1340 = vld [vmem:[#allocation7 + $0xc28] sm:$0xff]
    %v1341 = vld [vmem:[#allocation7 + $0xc30] sm:$0xff]
    %v1342 = vld [vmem:[#allocation7 + $0xc38] sm:$0xff]
    %v1343 = vld [vmem:[#allocation7 + $0xc40] sm:$0xff]
    %v1344 = vld [vmem:[#allocation7 + $0xc48] sm:$0xff]
    %v1345 = vld [vmem:[#allocation7 + $0xc50] sm:$0xff]
    %v1346 = vld [vmem:[#allocation7 + $0xc58] sm:$0xff]
    %v1347 = vld [vmem:[#allocation7 + $0xc60] sm:$0xff]
    %v1348 = vld [vmem:[#allocation7 + $0xc68] sm:$0xff]
    %v1349 = vld [vmem:[#allocation7 + $0xc70] sm:$0xff]
    %v1350 = vld [vmem:[#allocation7 + $0xc78] sm:$0xff]
    %v1351 = vld [vmem:[#allocation7 + $0xc80] sm:$0xff]
    %v1352 = vld [vmem:[#allocation7 + $0xc88] sm:$0xff]
    %v1353 = vld [vmem:[#allocation7 + $0xc90] sm:$0xff]
    %v1354 = vld [vmem:[#allocation7 + $0xc98] sm:$0xff]
    %v1355 = vld [vmem:[#allocation7 + $0xca0] sm:$0xff]
    %v1356 = vld [vmem:[#allocation7 + $0xca8] sm:$0xff]
    %v1357 = vld [vmem:[#allocation7 + $0xcb0] sm:$0xff]
    %v1358 = vld [vmem:[#allocation7 + $0xcb8] sm:$0xff]
    %v1359 = vld [vmem:[#allocation7 + $0xcc0] sm:$0xff]
    %v1360 = vld [vmem:[#allocation7 + $0xcc8] sm:$0xff]
    %v1361 = vld [vmem:[#allocation7 + $0xcd0] sm:$0xff]
    %v1362 = vld [vmem:[#allocation7 + $0xcd8] sm:$0xff]
    %v1363 = vld [vmem:[#allocation7 + $0xce0] sm:$0xff]
    %v1364 = vld [vmem:[#allocation7 + $0xce8] sm:$0xff]
    %v1365 = vld [vmem:[#allocation7 + $0xcf0] sm:$0xff]
    %v1366 = vld [vmem:[#allocation7 + $0xcf8] sm:$0xff]
    %v1367 = vld [vmem:[#allocation7 + $0xd00] sm:$0xff]
    %v1368 = vld [vmem:[#allocation7 + $0xd08] sm:$0xff]
    %v1369 = vld [vmem:[#allocation7 + $0xd10] sm:$0xff]
    %v1370 = vld [vmem:[#allocation7 + $0xd18] sm:$0xff]
    %v1371 = vld [vmem:[#allocation7 + $0xd20] sm:$0xff]
    %v1372 = vld [vmem:[#allocation7 + $0xd28] sm:$0xff]
    %v1373 = vld [vmem:[#allocation7 + $0xd30] sm:$0xff]
    %v1374 = vld [vmem:[#allocation7 + $0xd38] sm:$0xff]
    %v1375 = vld [vmem:[#allocation7 + $0xd40] sm:$0xff]
    %v1376 = vld [vmem:[#allocation7 + $0xd48] sm:$0xff]
    %v1377 = vld [vmem:[#allocation7 + $0xd50] sm:$0xff]
    %v1378 = vld [vmem:[#allocation7 + $0xd58] sm:$0xff]
    %v1379 = vld [vmem:[#allocation7 + $0xd60] sm:$0xff]
    %v1380 = vld [vmem:[#allocation7 + $0xd68] sm:$0xff]
    %v1381 = vld [vmem:[#allocation7 + $0xd70] sm:$0xff]
    %v1382 = vld [vmem:[#allocation7 + $0xd78] sm:$0xff]
    %v1383 = vld [vmem:[#allocation7 + $0xd80] sm:$0xff]
    %v1384 = vld [vmem:[#allocation7 + $0xd88] sm:$0xff]
    %v1385 = vld [vmem:[#allocation7 + $0xd90] sm:$0xff]
    %v1386 = vld [vmem:[#allocation7 + $0xd98] sm:$0xff]
    %v1387 = vld [vmem:[#allocation7 + $0xda0] sm:$0xff]
    %v1388 = vld [vmem:[#allocation7 + $0xda8] sm:$0xff]
    %v1389 = vld [vmem:[#allocation7 + $0xdb0] sm:$0xff]
    %v1390 = vld [vmem:[#allocation7 + $0xdb8] sm:$0xff]
    %v1391 = vld [vmem:[#allocation7 + $0xdc0] sm:$0xff]
    %v1392 = vld [vmem:[#allocation7 + $0xdc8] sm:$0xff]
    %v1393 = vld [vmem:[#allocation7 + $0xdd0] sm:$0xff]
    %v1394 = vld [vmem:[#allocation7 + $0xdd8] sm:$0xff]
    %v1395 = vld [vmem:[#allocation7 + $0xde0] sm:$0xff]
    %v1396 = vld [vmem:[#allocation7 + $0xde8] sm:$0xff]
    %v1397 = vld [vmem:[#allocation7 + $0xdf0] sm:$0xff]
    %v1398 = vld [vmem:[#allocation7 + $0xdf8] sm:$0xff]
    %v1399 = vld [vmem:[#allocation7 + $0xe00] sm:$0xff]
    %v1400 = vld [vmem:[#allocation7 + $0xe08] sm:$0xff]
    %v1401 = vld [vmem:[#allocation7 + $0xe10] sm:$0xff]
    %v1402 = vld [vmem:[#allocation7 + $0xe18] sm:$0xff]
    %v1403 = vld [vmem:[#allocation7 + $0xe20] sm:$0xff]
    %v1404 = vld [vmem:[#allocation7 + $0xe28] sm:$0xff]
    %v1405 = vld [vmem:[#allocation7 + $0xe30] sm:$0xff]
    %v1406 = vld [vmem:[#allocation7 + $0xe38] sm:$0xff]
    %v1407 = vld [vmem:[#allocation7 + $0xe40] sm:$0xff]
    %v1408 = vld [vmem:[#allocation7 + $0xe48] sm:$0xff]
    %v1409 = vld [vmem:[#allocation7 + $0xe50] sm:$0xff]
    %v1410 = vld [vmem:[#allocation7 + $0xe58] sm:$0xff]
    %v1411 = vld [vmem:[#allocation7 + $0xe60] sm:$0xff]
    %v1412 = vld [vmem:[#allocation7 + $0xe68] sm:$0xff]
    %v1413 = vld [vmem:[#allocation7 + $0xe70] sm:$0xff]
    %v1414 = vld [vmem:[#allocation7 + $0xe78] sm:$0xff]
    %v1415 = vld [vmem:[#allocation7 + $0xe80] sm:$0xff]
    %v1416 = vld [vmem:[#allocation7 + $0xe88] sm:$0xff]
    %v1417 = vld [vmem:[#allocation7 + $0xe90] sm:$0xff]
    %v1418 = vld [vmem:[#allocation7 + $0xe98] sm:$0xff]
    %v1419 = vld [vmem:[#allocation7 + $0xea0] sm:$0xff]
    %v1420 = vld [vmem:[#allocation7 + $0xea8] sm:$0xff]
    %v1421 = vld [vmem:[#allocation7 + $0xeb0] sm:$0xff]
    %v1422 = vld [vmem:[#allocation7 + $0xeb8] sm:$0xff]
    %v1423 = vld [vmem:[#allocation7 + $0xec0] sm:$0xff]
    %v1424 = vld [vmem:[#allocation7 + $0xec8] sm:$0xff]
    %v1425 = vld [vmem:[#allocation7 + $0xed0] sm:$0xff]
    %v1426 = vld [vmem:[#allocation7 + $0xed8] sm:$0xff]
    %v1427 = vld [vmem:[#allocation7 + $0xee0] sm:$0xff]
    %v1428 = vld [vmem:[#allocation7 + $0xee8] sm:$0xff]
    %v1429 = vld [vmem:[#allocation7 + $0xef0] sm:$0xff]
    %v1430 = vld [vmem:[#allocation7 + $0xef8] sm:$0xff]
    %v1431 = vld [vmem:[#allocation7 + $0xf00] sm:$0xff]
    %v1432 = vld [vmem:[#allocation7 + $0xf08] sm:$0xff]
    %v1433 = vld [vmem:[#allocation7 + $0xf10] sm:$0xff]
    %v1434 = vld [vmem:[#allocation7 + $0xf18] sm:$0xff]
    %v1435 = vld [vmem:[#allocation7 + $0xf20] sm:$0xff]
    %v1436 = vld [vmem:[#allocation7 + $0xf28] sm:$0xff]
    %v1437 = vld [vmem:[#allocation7 + $0xf30] sm:$0xff]
    %v1438 = vld [vmem:[#allocation7 + $0xf38] sm:$0xff]
    %v1439 = vld [vmem:[#allocation7 + $0xf40] sm:$0xff]
    %v1440 = vld [vmem:[#allocation7 + $0xf48] sm:$0xff]
    %v1441 = vld [vmem:[#allocation7 + $0xf50] sm:$0xff]
    %v1442 = vld [vmem:[#allocation7 + $0xf58] sm:$0xff]
    %v1443 = vld [vmem:[#allocation7 + $0xf60] sm:$0xff]
    %v1444 = vld [vmem:[#allocation7 + $0xf68] sm:$0xff]
    %v1445 = vld [vmem:[#allocation7 + $0xf70] sm:$0xff]
    %v1446 = vld [vmem:[#allocation7 + $0xf78] sm:$0xff]
    %v1447 = vld [vmem:[#allocation7 + $0xf80] sm:$0xff]
    %v1448 = vld [vmem:[#allocation7 + $0xf88] sm:$0xff]
    %v1449 = vld [vmem:[#allocation7 + $0xf90] sm:$0xff]
    %v1450 = vld [vmem:[#allocation7 + $0xf98] sm:$0xff]
    %v1451 = vld [vmem:[#allocation7 + $0xfa0] sm:$0xff]
    %v1452 = vld [vmem:[#allocation7 + $0xfa8] sm:$0xff]
    %v1453 = vld [vmem:[#allocation7 + $0xfb0] sm:$0xff]
    %v1454 = vld [vmem:[#allocation7 + $0xfb8] sm:$0xff]
    %v1455 = vld [vmem:[#allocation7 + $0xfc0] sm:$0xff]
    %v1456 = vld [vmem:[#allocation7 + $0xfc8] sm:$0xff]
    %v1457 = vld [vmem:[#allocation7 + $0xfd0] sm:$0xff]
    %v1458 = vld [vmem:[#allocation7 + $0xfd8] sm:$0xff]
    %v1459 = vld [vmem:[#allocation7 + $0xfe0] sm:$0xff]
    %v1460 = vld [vmem:[#allocation7 + $0xfe8] sm:$0xff]
    %v1461 = vld [vmem:[#allocation7 + $0xff0] sm:$0xff]
    %v1462 = vld [vmem:[#allocation7 + $0xff8] sm:$0xff]
    %v1463 = vld [vmem:[#allocation9] sm:$0xff]
    %v1465 = vlaneseq
    %v1466 = vshrl.u32 %v1465, 7
    %v1467 = vsub.s32 0, %v1466
    %v1468 = vrot.slane %v1463, %v1467
    %v1469 = vlaneseq
    %v1470 = vshrl.u32 %v1469, 7
    %v1471 = vsub.s32 1, %v1470
    %v1472 = vrot.slane %v1463, %v1471
    %v1473 = vlaneseq
    %v1474 = vshrl.u32 %v1473, 7
    %v1475 = vsub.s32 2, %v1474
    %v1476 = vrot.slane %v1463, %v1475
    %v1477 = vlaneseq
    %v1478 = vshrl.u32 %v1477, 7
    %v1479 = vsub.s32 3, %v1478
    %v1480 = vrot.slane %v1463, %v1479
    %v1481 = vlaneseq
    %v1482 = vshrl.u32 %v1481, 7
    %v1483 = vsub.s32 4, %v1482
    %v1484 = vrot.slane %v1463, %v1483
    %v1485 = vlaneseq
    %v1486 = vshrl.u32 %v1485, 7
    %v1487 = vsub.s32 5, %v1486
    %v1488 = vrot.slane %v1463, %v1487
    %v1489 = vlaneseq
    %v1490 = vshrl.u32 %v1489, 7
    %v1491 = vsub.s32 6, %v1490
    %v1492 = vrot.slane %v1463, %v1491
    %v1493 = vlaneseq
    %v1494 = vshrl.u32 %v1493, 7
    %v1495 = vsub.s32 7, %v1494
    %v1496 = vrot.slane %v1463, %v1495
    %v2017 = vunpack.c.l.b16 %v951
    %v2018 = vunpack.c.h.b16 %v951
    %v2019 = vunpack.c.l.b16 %v952
    %v2020 = vunpack.c.h.b16 %v952
    %v2021 = vunpack.c.l.b16 %v953
    %v2022 = vunpack.c.h.b16 %v953
    %v2023 = vunpack.c.l.b16 %v954
    %v2024 = vunpack.c.h.b16 %v954
    %v2025 = vunpack.c.l.b16 %v955
    %v2026 = vunpack.c.h.b16 %v955
    %v2027 = vunpack.c.l.b16 %v956
    %v2028 = vunpack.c.h.b16 %v956
    %v2029 = vunpack.c.l.b16 %v957
    %v2030 = vunpack.c.h.b16 %v957
    %v2031 = vunpack.c.l.b16 %v958
    %v2032 = vunpack.c.h.b16 %v958
    %v2033 = vunpack.c.l.b16 %v959
    %v2034 = vunpack.c.h.b16 %v959
    %v2035 = vunpack.c.l.b16 %v960
    %v2036 = vunpack.c.h.b16 %v960
    %v2037 = vunpack.c.l.b16 %v961
    %v2038 = vunpack.c.h.b16 %v961
    %v2039 = vunpack.c.l.b16 %v962
    %v2040 = vunpack.c.h.b16 %v962
    %v2041 = vunpack.c.l.b16 %v963
    %v2042 = vunpack.c.h.b16 %v963
    %v2043 = vunpack.c.l.b16 %v964
    %v2044 = vunpack.c.h.b16 %v964
    %v2045 = vunpack.c.l.b16 %v965
    %v2046 = vunpack.c.h.b16 %v965
    %v2047 = vunpack.c.l.b16 %v966
    %v2048 = vunpack.c.h.b16 %v966
    %v2049 = vunpack.c.l.b16 %v967
    %v2050 = vunpack.c.h.b16 %v967
    %v2051 = vunpack.c.l.b16 %v968
    %v2052 = vunpack.c.h.b16 %v968
    %v2053 = vunpack.c.l.b16 %v969
    %v2054 = vunpack.c.h.b16 %v969
    %v2055 = vunpack.c.l.b16 %v970
    %v2056 = vunpack.c.h.b16 %v970
    %v2057 = vunpack.c.l.b16 %v971
    %v2058 = vunpack.c.h.b16 %v971
    %v2059 = vunpack.c.l.b16 %v972
    %v2060 = vunpack.c.h.b16 %v972
    %v2061 = vunpack.c.l.b16 %v973
    %v2062 = vunpack.c.h.b16 %v973
    %v2063 = vunpack.c.l.b16 %v974
    %v2064 = vunpack.c.h.b16 %v974
    %v2065 = vunpack.c.l.b16 %v975
    %v2066 = vunpack.c.h.b16 %v975
    %v2067 = vunpack.c.l.b16 %v976
    %v2068 = vunpack.c.h.b16 %v976
    %v2069 = vunpack.c.l.b16 %v977
    %v2070 = vunpack.c.h.b16 %v977
    %v2071 = vunpack.c.l.b16 %v978
    %v2072 = vunpack.c.h.b16 %v978
    %v2073 = vunpack.c.l.b16 %v979
    %v2074 = vunpack.c.h.b16 %v979
    %v2075 = vunpack.c.l.b16 %v980
    %v2076 = vunpack.c.h.b16 %v980
    %v2077 = vunpack.c.l.b16 %v981
    %v2078 = vunpack.c.h.b16 %v981
    %v2079 = vunpack.c.l.b16 %v982
    %v2080 = vunpack.c.h.b16 %v982
    %v2081 = vunpack.c.l.b16 %v983
    %v2082 = vunpack.c.h.b16 %v983
    %v2083 = vunpack.c.l.b16 %v984
    %v2084 = vunpack.c.h.b16 %v984
    %v2085 = vunpack.c.l.b16 %v985
    %v2086 = vunpack.c.h.b16 %v985
    %v2087 = vunpack.c.l.b16 %v986
    %v2088 = vunpack.c.h.b16 %v986
    %v2089 = vunpack.c.l.b16 %v987
    %v2090 = vunpack.c.h.b16 %v987
    %v2091 = vunpack.c.l.b16 %v988
    %v2092 = vunpack.c.h.b16 %v988
    %v2093 = vunpack.c.l.b16 %v989
    %v2094 = vunpack.c.h.b16 %v989
    %v2095 = vunpack.c.l.b16 %v990
    %v2096 = vunpack.c.h.b16 %v990
    %v2097 = vunpack.c.l.b16 %v991
    %v2098 = vunpack.c.h.b16 %v991
    %v2099 = vunpack.c.l.b16 %v992
    %v2100 = vunpack.c.h.b16 %v992
    %v2101 = vunpack.c.l.b16 %v993
    %v2102 = vunpack.c.h.b16 %v993
    %v2103 = vunpack.c.l.b16 %v994
    %v2104 = vunpack.c.h.b16 %v994
    %v2105 = vunpack.c.l.b16 %v995
    %v2106 = vunpack.c.h.b16 %v995
    %v2107 = vunpack.c.l.b16 %v996
    %v2108 = vunpack.c.h.b16 %v996
    %v2109 = vunpack.c.l.b16 %v997
    %v2110 = vunpack.c.h.b16 %v997
    %v2111 = vunpack.c.l.b16 %v998
    %v2112 = vunpack.c.h.b16 %v998
    %v2113 = vunpack.c.l.b16 %v999
    %v2114 = vunpack.c.h.b16 %v999
    %v2115 = vunpack.c.l.b16 %v1000
    %v2116 = vunpack.c.h.b16 %v1000
    %v2117 = vunpack.c.l.b16 %v1001
    %v2118 = vunpack.c.h.b16 %v1001
    %v2119 = vunpack.c.l.b16 %v1002
    %v2120 = vunpack.c.h.b16 %v1002
    %v2121 = vunpack.c.l.b16 %v1003
    %v2122 = vunpack.c.h.b16 %v1003
    %v2123 = vunpack.c.l.b16 %v1004
    %v2124 = vunpack.c.h.b16 %v1004
    %v2125 = vunpack.c.l.b16 %v1005
    %v2126 = vunpack.c.h.b16 %v1005
    %v2127 = vunpack.c.l.b16 %v1006
    %v2128 = vunpack.c.h.b16 %v1006
    %v2129 = vunpack.c.l.b16 %v1007
    %v2130 = vunpack.c.h.b16 %v1007
    %v2131 = vunpack.c.l.b16 %v1008
    %v2132 = vunpack.c.h.b16 %v1008
    %v2133 = vunpack.c.l.b16 %v1009
    %v2134 = vunpack.c.h.b16 %v1009
    %v2135 = vunpack.c.l.b16 %v1010
    %v2136 = vunpack.c.h.b16 %v1010
    %v2137 = vunpack.c.l.b16 %v1011
    %v2138 = vunpack.c.h.b16 %v1011
    %v2139 = vunpack.c.l.b16 %v1012
    %v2140 = vunpack.c.h.b16 %v1012
    %v2141 = vunpack.c.l.b16 %v1013
    %v2142 = vunpack.c.h.b16 %v1013
    %v2143 = vunpack.c.l.b16 %v1014
    %v2144 = vunpack.c.h.b16 %v1014
    %v2145 = vunpack.c.l.b16 %v1015
    %v2146 = vunpack.c.h.b16 %v1015
    %v2147 = vunpack.c.l.b16 %v1016
    %v2148 = vunpack.c.h.b16 %v1016
    %v2149 = vunpack.c.l.b16 %v1017
    %v2150 = vunpack.c.h.b16 %v1017
    %v2151 = vunpack.c.l.b16 %v1018
    %v2152 = vunpack.c.h.b16 %v1018
    %v2153 = vunpack.c.l.b16 %v1019
    %v2154 = vunpack.c.h.b16 %v1019
    %v2155 = vunpack.c.l.b16 %v1020
    %v2156 = vunpack.c.h.b16 %v1020
    %v2157 = vunpack.c.l.b16 %v1021
    %v2158 = vunpack.c.h.b16 %v1021
    %v2159 = vunpack.c.l.b16 %v1022
    %v2160 = vunpack.c.h.b16 %v1022
    %v2161 = vunpack.c.l.b16 %v1023
    %v2162 = vunpack.c.h.b16 %v1023
    %v2163 = vunpack.c.l.b16 %v1024
    %v2164 = vunpack.c.h.b16 %v1024
    %v2165 = vunpack.c.l.b16 %v1025
    %v2166 = vunpack.c.h.b16 %v1025
    %v2167 = vunpack.c.l.b16 %v1026
    %v2168 = vunpack.c.h.b16 %v1026
    %v2169 = vunpack.c.l.b16 %v1027
    %v2170 = vunpack.c.h.b16 %v1027
    %v2171 = vunpack.c.l.b16 %v1028
    %v2172 = vunpack.c.h.b16 %v1028
    %v2173 = vunpack.c.l.b16 %v1029
    %v2174 = vunpack.c.h.b16 %v1029
    %v2175 = vunpack.c.l.b16 %v1030
    %v2176 = vunpack.c.h.b16 %v1030
    %v2177 = vunpack.c.l.b16 %v1031
    %v2178 = vunpack.c.h.b16 %v1031
    %v2179 = vunpack.c.l.b16 %v1032
    %v2180 = vunpack.c.h.b16 %v1032
    %v2181 = vunpack.c.l.b16 %v1033
    %v2182 = vunpack.c.h.b16 %v1033
    %v2183 = vunpack.c.l.b16 %v1034
    %v2184 = vunpack.c.h.b16 %v1034
    %v2185 = vunpack.c.l.b16 %v1035
    %v2186 = vunpack.c.h.b16 %v1035
    %v2187 = vunpack.c.l.b16 %v1036
    %v2188 = vunpack.c.h.b16 %v1036
    %v2189 = vunpack.c.l.b16 %v1037
    %v2190 = vunpack.c.h.b16 %v1037
    %v2191 = vunpack.c.l.b16 %v1038
    %v2192 = vunpack.c.h.b16 %v1038
    %v2193 = vunpack.c.l.b16 %v1039
    %v2194 = vunpack.c.h.b16 %v1039
    %v2195 = vunpack.c.l.b16 %v1040
    %v2196 = vunpack.c.h.b16 %v1040
    %v2197 = vunpack.c.l.b16 %v1041
    %v2198 = vunpack.c.h.b16 %v1041
    %v2199 = vunpack.c.l.b16 %v1042
    %v2200 = vunpack.c.h.b16 %v1042
    %v2201 = vunpack.c.l.b16 %v1043
    %v2202 = vunpack.c.h.b16 %v1043
    %v2203 = vunpack.c.l.b16 %v1044
    %v2204 = vunpack.c.h.b16 %v1044
    %v2205 = vunpack.c.l.b16 %v1045
    %v2206 = vunpack.c.h.b16 %v1045
    %v2207 = vunpack.c.l.b16 %v1046
    %v2208 = vunpack.c.h.b16 %v1046
    %v2209 = vunpack.c.l.b16 %v1047
    %v2210 = vunpack.c.h.b16 %v1047
    %v2211 = vunpack.c.l.b16 %v1048
    %v2212 = vunpack.c.h.b16 %v1048
    %v2213 = vunpack.c.l.b16 %v1049
    %v2214 = vunpack.c.h.b16 %v1049
    %v2215 = vunpack.c.l.b16 %v1050
    %v2216 = vunpack.c.h.b16 %v1050
    %v2217 = vunpack.c.l.b16 %v1051
    %v2218 = vunpack.c.h.b16 %v1051
    %v2219 = vunpack.c.l.b16 %v1052
    %v2220 = vunpack.c.h.b16 %v1052
    %v2221 = vunpack.c.l.b16 %v1053
    %v2222 = vunpack.c.h.b16 %v1053
    %v2223 = vunpack.c.l.b16 %v1054
    %v2224 = vunpack.c.h.b16 %v1054
    %v2225 = vunpack.c.l.b16 %v1055
    %v2226 = vunpack.c.h.b16 %v1055
    %v2227 = vunpack.c.l.b16 %v1056
    %v2228 = vunpack.c.h.b16 %v1056
    %v2229 = vunpack.c.l.b16 %v1057
    %v2230 = vunpack.c.h.b16 %v1057
    %v2231 = vunpack.c.l.b16 %v1058
    %v2232 = vunpack.c.h.b16 %v1058
    %v2233 = vunpack.c.l.b16 %v1059
    %v2234 = vunpack.c.h.b16 %v1059
    %v2235 = vunpack.c.l.b16 %v1060
    %v2236 = vunpack.c.h.b16 %v1060
    %v2237 = vunpack.c.l.b16 %v1061
    %v2238 = vunpack.c.h.b16 %v1061
    %v2239 = vunpack.c.l.b16 %v1062
    %v2240 = vunpack.c.h.b16 %v1062
    %v2241 = vunpack.c.l.b16 %v1063
    %v2242 = vunpack.c.h.b16 %v1063
    %v2243 = vunpack.c.l.b16 %v1064
    %v2244 = vunpack.c.h.b16 %v1064
    %v2245 = vunpack.c.l.b16 %v1065
    %v2246 = vunpack.c.h.b16 %v1065
    %v2247 = vunpack.c.l.b16 %v1066
    %v2248 = vunpack.c.h.b16 %v1066
    %v2249 = vunpack.c.l.b16 %v1067
    %v2250 = vunpack.c.h.b16 %v1067
    %v2251 = vunpack.c.l.b16 %v1068
    %v2252 = vunpack.c.h.b16 %v1068
    %v2253 = vunpack.c.l.b16 %v1069
    %v2254 = vunpack.c.h.b16 %v1069
    %v2255 = vunpack.c.l.b16 %v1070
    %v2256 = vunpack.c.h.b16 %v1070
    %v2257 = vunpack.c.l.b16 %v1071
    %v2258 = vunpack.c.h.b16 %v1071
    %v2259 = vunpack.c.l.b16 %v1072
    %v2260 = vunpack.c.h.b16 %v1072
    %v2261 = vunpack.c.l.b16 %v1073
    %v2262 = vunpack.c.h.b16 %v1073
    %v2263 = vunpack.c.l.b16 %v1074
    %v2264 = vunpack.c.h.b16 %v1074
    %v2265 = vunpack.c.l.b16 %v1075
    %v2266 = vunpack.c.h.b16 %v1075
    %v2267 = vunpack.c.l.b16 %v1076
    %v2268 = vunpack.c.h.b16 %v1076
    %v2269 = vunpack.c.l.b16 %v1077
    %v2270 = vunpack.c.h.b16 %v1077
    %v2271 = vunpack.c.l.b16 %v1078
    %v2272 = vunpack.c.h.b16 %v1078
    %v2273 = vunpack.c.l.b16 %v1079
    %v2274 = vunpack.c.h.b16 %v1079
    %v2275 = vunpack.c.l.b16 %v1080
    %v2276 = vunpack.c.h.b16 %v1080
    %v2277 = vunpack.c.l.b16 %v1081
    %v2278 = vunpack.c.h.b16 %v1081
    %v2279 = vunpack.c.l.b16 %v1082
    %v2280 = vunpack.c.h.b16 %v1082
    %v2281 = vunpack.c.l.b16 %v1083
    %v2282 = vunpack.c.h.b16 %v1083
    %v2283 = vunpack.c.l.b16 %v1084
    %v2284 = vunpack.c.h.b16 %v1084
    %v2285 = vunpack.c.l.b16 %v1085
    %v2286 = vunpack.c.h.b16 %v1085
    %v2287 = vunpack.c.l.b16 %v1086
    %v2288 = vunpack.c.h.b16 %v1086
    %v2289 = vunpack.c.l.b16 %v1087
    %v2290 = vunpack.c.h.b16 %v1087
    %v2291 = vunpack.c.l.b16 %v1088
    %v2292 = vunpack.c.h.b16 %v1088
    %v2293 = vunpack.c.l.b16 %v1089
    %v2294 = vunpack.c.h.b16 %v1089
    %v2295 = vunpack.c.l.b16 %v1090
    %v2296 = vunpack.c.h.b16 %v1090
    %v2297 = vunpack.c.l.b16 %v1091
    %v2298 = vunpack.c.h.b16 %v1091
    %v2299 = vunpack.c.l.b16 %v1092
    %v2300 = vunpack.c.h.b16 %v1092
    %v2301 = vunpack.c.l.b16 %v1093
    %v2302 = vunpack.c.h.b16 %v1093
    %v2303 = vunpack.c.l.b16 %v1094
    %v2304 = vunpack.c.h.b16 %v1094
    %v2305 = vunpack.c.l.b16 %v1095
    %v2306 = vunpack.c.h.b16 %v1095
    %v2307 = vunpack.c.l.b16 %v1096
    %v2308 = vunpack.c.h.b16 %v1096
    %v2309 = vunpack.c.l.b16 %v1097
    %v2310 = vunpack.c.h.b16 %v1097
    %v2311 = vunpack.c.l.b16 %v1098
    %v2312 = vunpack.c.h.b16 %v1098
    %v2313 = vunpack.c.l.b16 %v1099
    %v2314 = vunpack.c.h.b16 %v1099
    %v2315 = vunpack.c.l.b16 %v1100
    %v2316 = vunpack.c.h.b16 %v1100
    %v2317 = vunpack.c.l.b16 %v1101
    %v2318 = vunpack.c.h.b16 %v1101
    %v2319 = vunpack.c.l.b16 %v1102
    %v2320 = vunpack.c.h.b16 %v1102
    %v2321 = vunpack.c.l.b16 %v1103
    %v2322 = vunpack.c.h.b16 %v1103
    %v2323 = vunpack.c.l.b16 %v1104
    %v2324 = vunpack.c.h.b16 %v1104
    %v2325 = vunpack.c.l.b16 %v1105
    %v2326 = vunpack.c.h.b16 %v1105
    %v2327 = vunpack.c.l.b16 %v1106
    %v2328 = vunpack.c.h.b16 %v1106
    %v2329 = vunpack.c.l.b16 %v1107
    %v2330 = vunpack.c.h.b16 %v1107
    %v2331 = vunpack.c.l.b16 %v1108
    %v2332 = vunpack.c.h.b16 %v1108
    %v2333 = vunpack.c.l.b16 %v1109
    %v2334 = vunpack.c.h.b16 %v1109
    %v2335 = vunpack.c.l.b16 %v1110
    %v2336 = vunpack.c.h.b16 %v1110
    %v2337 = vunpack.c.l.b16 %v1111
    %v2338 = vunpack.c.h.b16 %v1111
    %v2339 = vunpack.c.l.b16 %v1112
    %v2340 = vunpack.c.h.b16 %v1112
    %v2341 = vunpack.c.l.b16 %v1113
    %v2342 = vunpack.c.h.b16 %v1113
    %v2343 = vunpack.c.l.b16 %v1114
    %v2344 = vunpack.c.h.b16 %v1114
    %v2345 = vunpack.c.l.b16 %v1115
    %v2346 = vunpack.c.h.b16 %v1115
    %v2347 = vunpack.c.l.b16 %v1116
    %v2348 = vunpack.c.h.b16 %v1116
    %v2349 = vunpack.c.l.b16 %v1117
    %v2350 = vunpack.c.h.b16 %v1117
    %v2351 = vunpack.c.l.b16 %v1118
    %v2352 = vunpack.c.h.b16 %v1118
    %v2353 = vunpack.c.l.b16 %v1119
    %v2354 = vunpack.c.h.b16 %v1119
    %v2355 = vunpack.c.l.b16 %v1120
    %v2356 = vunpack.c.h.b16 %v1120
    %v2357 = vunpack.c.l.b16 %v1121
    %v2358 = vunpack.c.h.b16 %v1121
    %v2359 = vunpack.c.l.b16 %v1122
    %v2360 = vunpack.c.h.b16 %v1122
    %v2361 = vunpack.c.l.b16 %v1123
    %v2362 = vunpack.c.h.b16 %v1123
    %v2363 = vunpack.c.l.b16 %v1124
    %v2364 = vunpack.c.h.b16 %v1124
    %v2365 = vunpack.c.l.b16 %v1125
    %v2366 = vunpack.c.h.b16 %v1125
    %v2367 = vunpack.c.l.b16 %v1126
    %v2368 = vunpack.c.h.b16 %v1126
    %v2369 = vunpack.c.l.b16 %v1127
    %v2370 = vunpack.c.h.b16 %v1127
    %v2371 = vunpack.c.l.b16 %v1128
    %v2372 = vunpack.c.h.b16 %v1128
    %v2373 = vunpack.c.l.b16 %v1129
    %v2374 = vunpack.c.h.b16 %v1129
    %v2375 = vunpack.c.l.b16 %v1130
    %v2376 = vunpack.c.h.b16 %v1130
    %v2377 = vunpack.c.l.b16 %v1131
    %v2378 = vunpack.c.h.b16 %v1131
    %v2379 = vunpack.c.l.b16 %v1132
    %v2380 = vunpack.c.h.b16 %v1132
    %v2381 = vunpack.c.l.b16 %v1133
    %v2382 = vunpack.c.h.b16 %v1133
    %v2383 = vunpack.c.l.b16 %v1134
    %v2384 = vunpack.c.h.b16 %v1134
    %v2385 = vunpack.c.l.b16 %v1135
    %v2386 = vunpack.c.h.b16 %v1135
    %v2387 = vunpack.c.l.b16 %v1136
    %v2388 = vunpack.c.h.b16 %v1136
    %v2389 = vunpack.c.l.b16 %v1137
    %v2390 = vunpack.c.h.b16 %v1137
    %v2391 = vunpack.c.l.b16 %v1138
    %v2392 = vunpack.c.h.b16 %v1138
    %v2393 = vunpack.c.l.b16 %v1139
    %v2394 = vunpack.c.h.b16 %v1139
    %v2395 = vunpack.c.l.b16 %v1140
    %v2396 = vunpack.c.h.b16 %v1140
    %v2397 = vunpack.c.l.b16 %v1141
    %v2398 = vunpack.c.h.b16 %v1141
    %v2399 = vunpack.c.l.b16 %v1142
    %v2400 = vunpack.c.h.b16 %v1142
    %v2401 = vunpack.c.l.b16 %v1143
    %v2402 = vunpack.c.h.b16 %v1143
    %v2403 = vunpack.c.l.b16 %v1144
    %v2404 = vunpack.c.h.b16 %v1144
    %v2405 = vunpack.c.l.b16 %v1145
    %v2406 = vunpack.c.h.b16 %v1145
    %v2407 = vunpack.c.l.b16 %v1146
    %v2408 = vunpack.c.h.b16 %v1146
    %v2409 = vunpack.c.l.b16 %v1147
    %v2410 = vunpack.c.h.b16 %v1147
    %v2411 = vunpack.c.l.b16 %v1148
    %v2412 = vunpack.c.h.b16 %v1148
    %v2413 = vunpack.c.l.b16 %v1149
    %v2414 = vunpack.c.h.b16 %v1149
    %v2415 = vunpack.c.l.b16 %v1150
    %v2416 = vunpack.c.h.b16 %v1150
    %v2417 = vunpack.c.l.b16 %v1151
    %v2418 = vunpack.c.h.b16 %v1151
    %v2419 = vunpack.c.l.b16 %v1152
    %v2420 = vunpack.c.h.b16 %v1152
    %v2421 = vunpack.c.l.b16 %v1153
    %v2422 = vunpack.c.h.b16 %v1153
    %v2423 = vunpack.c.l.b16 %v1154
    %v2424 = vunpack.c.h.b16 %v1154
    %v2425 = vunpack.c.l.b16 %v1155
    %v2426 = vunpack.c.h.b16 %v1155
    %v2427 = vunpack.c.l.b16 %v1156
    %v2428 = vunpack.c.h.b16 %v1156
    %v2429 = vunpack.c.l.b16 %v1157
    %v2430 = vunpack.c.h.b16 %v1157
    %v2431 = vunpack.c.l.b16 %v1158
    %v2432 = vunpack.c.h.b16 %v1158
    %v2433 = vunpack.c.l.b16 %v1159
    %v2434 = vunpack.c.h.b16 %v1159
    %v2435 = vunpack.c.l.b16 %v1160
    %v2436 = vunpack.c.h.b16 %v1160
    %v2437 = vunpack.c.l.b16 %v1161
    %v2438 = vunpack.c.h.b16 %v1161
    %v2439 = vunpack.c.l.b16 %v1162
    %v2440 = vunpack.c.h.b16 %v1162
    %v2441 = vunpack.c.l.b16 %v1163
    %v2442 = vunpack.c.h.b16 %v1163
    %v2443 = vunpack.c.l.b16 %v1164
    %v2444 = vunpack.c.h.b16 %v1164
    %v2445 = vunpack.c.l.b16 %v1165
    %v2446 = vunpack.c.h.b16 %v1165
    %v2447 = vunpack.c.l.b16 %v1166
    %v2448 = vunpack.c.h.b16 %v1166
    %v2449 = vunpack.c.l.b16 %v1167
    %v2450 = vunpack.c.h.b16 %v1167
    %v2451 = vunpack.c.l.b16 %v1168
    %v2452 = vunpack.c.h.b16 %v1168
    %v2453 = vunpack.c.l.b16 %v1169
    %v2454 = vunpack.c.h.b16 %v1169
    %v2455 = vunpack.c.l.b16 %v1170
    %v2456 = vunpack.c.h.b16 %v1170
    %v2457 = vunpack.c.l.b16 %v1171
    %v2458 = vunpack.c.h.b16 %v1171
    %v2459 = vunpack.c.l.b16 %v1172
    %v2460 = vunpack.c.h.b16 %v1172
    %v2461 = vunpack.c.l.b16 %v1173
    %v2462 = vunpack.c.h.b16 %v1173
    %v2463 = vunpack.c.l.b16 %v1174
    %v2464 = vunpack.c.h.b16 %v1174
    %v2465 = vunpack.c.l.b16 %v1175
    %v2466 = vunpack.c.h.b16 %v1175
    %v2467 = vunpack.c.l.b16 %v1176
    %v2468 = vunpack.c.h.b16 %v1176
    %v2469 = vunpack.c.l.b16 %v1177
    %v2470 = vunpack.c.h.b16 %v1177
    %v2471 = vunpack.c.l.b16 %v1178
    %v2472 = vunpack.c.h.b16 %v1178
    %v2473 = vunpack.c.l.b16 %v1179
    %v2474 = vunpack.c.h.b16 %v1179
    %v2475 = vunpack.c.l.b16 %v1180
    %v2476 = vunpack.c.h.b16 %v1180
    %v2477 = vunpack.c.l.b16 %v1181
    %v2478 = vunpack.c.h.b16 %v1181
    %v2479 = vunpack.c.l.b16 %v1182
    %v2480 = vunpack.c.h.b16 %v1182
    %v2481 = vunpack.c.l.b16 %v1183
    %v2482 = vunpack.c.h.b16 %v1183
    %v2483 = vunpack.c.l.b16 %v1184
    %v2484 = vunpack.c.h.b16 %v1184
    %v2485 = vunpack.c.l.b16 %v1185
    %v2486 = vunpack.c.h.b16 %v1185
    %v2487 = vunpack.c.l.b16 %v1186
    %v2488 = vunpack.c.h.b16 %v1186
    %v2489 = vunpack.c.l.b16 %v1187
    %v2490 = vunpack.c.h.b16 %v1187
    %v2491 = vunpack.c.l.b16 %v1188
    %v2492 = vunpack.c.h.b16 %v1188
    %v2493 = vunpack.c.l.b16 %v1189
    %v2494 = vunpack.c.h.b16 %v1189
    %v2495 = vunpack.c.l.b16 %v1190
    %v2496 = vunpack.c.h.b16 %v1190
    %v2497 = vunpack.c.l.b16 %v1191
    %v2498 = vunpack.c.h.b16 %v1191
    %v2499 = vunpack.c.l.b16 %v1192
    %v2500 = vunpack.c.h.b16 %v1192
    %v2501 = vunpack.c.l.b16 %v1193
    %v2502 = vunpack.c.h.b16 %v1193
    %v2503 = vunpack.c.l.b16 %v1194
    %v2504 = vunpack.c.h.b16 %v1194
    %v2505 = vunpack.c.l.b16 %v1195
    %v2506 = vunpack.c.h.b16 %v1195
    %v2507 = vunpack.c.l.b16 %v1196
    %v2508 = vunpack.c.h.b16 %v1196
    %v2509 = vunpack.c.l.b16 %v1197
    %v2510 = vunpack.c.h.b16 %v1197
    %v2511 = vunpack.c.l.b16 %v1198
    %v2512 = vunpack.c.h.b16 %v1198
    %v2513 = vunpack.c.l.b16 %v1199
    %v2514 = vunpack.c.h.b16 %v1199
    %v2515 = vunpack.c.l.b16 %v1200
    %v2516 = vunpack.c.h.b16 %v1200
    %v2517 = vunpack.c.l.b16 %v1201
    %v2518 = vunpack.c.h.b16 %v1201
    %v2519 = vunpack.c.l.b16 %v1202
    %v2520 = vunpack.c.h.b16 %v1202
    %v2521 = vunpack.c.l.b16 %v1203
    %v2522 = vunpack.c.h.b16 %v1203
    %v2523 = vunpack.c.l.b16 %v1204
    %v2524 = vunpack.c.h.b16 %v1204
    %v2525 = vunpack.c.l.b16 %v1205
    %v2526 = vunpack.c.h.b16 %v1205
    %v2527 = vunpack.c.l.b16 %v1206
    %v2528 = vunpack.c.h.b16 %v1206
    %v2529 = vunpack.c.l.b16 %v1207
    %v2530 = vunpack.c.h.b16 %v1207
    %v2531 = vunpack.c.l.b16 %v1208
    %v2532 = vunpack.c.h.b16 %v1208
    %v2533 = vunpack.c.l.b16 %v1209
    %v2534 = vunpack.c.h.b16 %v1209
    %v2535 = vunpack.c.l.b16 %v1210
    %v2536 = vunpack.c.h.b16 %v1210
    %v2537 = vunpack.c.l.b16 %v1211
    %v2538 = vunpack.c.h.b16 %v1211
    %v2539 = vunpack.c.l.b16 %v1212
    %v2540 = vunpack.c.h.b16 %v1212
    %v2541 = vunpack.c.l.b16 %v1213
    %v2542 = vunpack.c.h.b16 %v1213
    %v2543 = vunpack.c.l.b16 %v1214
    %v2544 = vunpack.c.h.b16 %v1214
    %v2545 = vunpack.c.l.b16 %v1215
    %v2546 = vunpack.c.h.b16 %v1215
    %v2547 = vunpack.c.l.b16 %v1216
    %v2548 = vunpack.c.h.b16 %v1216
    %v2549 = vunpack.c.l.b16 %v1217
    %v2550 = vunpack.c.h.b16 %v1217
    %v2551 = vunpack.c.l.b16 %v1218
    %v2552 = vunpack.c.h.b16 %v1218
    %v2553 = vunpack.c.l.b16 %v1219
    %v2554 = vunpack.c.h.b16 %v1219
    %v2555 = vunpack.c.l.b16 %v1220
    %v2556 = vunpack.c.h.b16 %v1220
    %v2557 = vunpack.c.l.b16 %v1221
    %v2558 = vunpack.c.h.b16 %v1221
    %v2559 = vunpack.c.l.b16 %v1222
    %v2560 = vunpack.c.h.b16 %v1222
    %v2561 = vunpack.c.l.b16 %v1223
    %v2562 = vunpack.c.h.b16 %v1223
    %v2563 = vunpack.c.l.b16 %v1224
    %v2564 = vunpack.c.h.b16 %v1224
    %v2565 = vunpack.c.l.b16 %v1225
    %v2566 = vunpack.c.h.b16 %v1225
    %v2567 = vunpack.c.l.b16 %v1226
    %v2568 = vunpack.c.h.b16 %v1226
    %v2569 = vunpack.c.l.b16 %v1227
    %v2570 = vunpack.c.h.b16 %v1227
    %v2571 = vunpack.c.l.b16 %v1228
    %v2572 = vunpack.c.h.b16 %v1228
    %v2573 = vunpack.c.l.b16 %v1229
    %v2574 = vunpack.c.h.b16 %v1229
    %v2575 = vunpack.c.l.b16 %v1230
    %v2576 = vunpack.c.h.b16 %v1230
    %v2577 = vunpack.c.l.b16 %v1231
    %v2578 = vunpack.c.h.b16 %v1231
    %v2579 = vunpack.c.l.b16 %v1232
    %v2580 = vunpack.c.h.b16 %v1232
    %v2581 = vunpack.c.l.b16 %v1233
    %v2582 = vunpack.c.h.b16 %v1233
    %v2583 = vunpack.c.l.b16 %v1234
    %v2584 = vunpack.c.h.b16 %v1234
    %v2585 = vunpack.c.l.b16 %v1235
    %v2586 = vunpack.c.h.b16 %v1235
    %v2587 = vunpack.c.l.b16 %v1236
    %v2588 = vunpack.c.h.b16 %v1236
    %v2589 = vunpack.c.l.b16 %v1237
    %v2590 = vunpack.c.h.b16 %v1237
    %v2591 = vunpack.c.l.b16 %v1238
    %v2592 = vunpack.c.h.b16 %v1238
    %v2593 = vunpack.c.l.b16 %v1239
    %v2594 = vunpack.c.h.b16 %v1239
    %v2595 = vunpack.c.l.b16 %v1240
    %v2596 = vunpack.c.h.b16 %v1240
    %v2597 = vunpack.c.l.b16 %v1241
    %v2598 = vunpack.c.h.b16 %v1241
    %v2599 = vunpack.c.l.b16 %v1242
    %v2600 = vunpack.c.h.b16 %v1242
    %v2601 = vunpack.c.l.b16 %v1243
    %v2602 = vunpack.c.h.b16 %v1243
    %v2603 = vunpack.c.l.b16 %v1244
    %v2604 = vunpack.c.h.b16 %v1244
    %v2605 = vunpack.c.l.b16 %v1245
    %v2606 = vunpack.c.h.b16 %v1245
    %v2607 = vunpack.c.l.b16 %v1246
    %v2608 = vunpack.c.h.b16 %v1246
    %v2609 = vunpack.c.l.b16 %v1247
    %v2610 = vunpack.c.h.b16 %v1247
    %v2611 = vunpack.c.l.b16 %v1248
    %v2612 = vunpack.c.h.b16 %v1248
    %v2613 = vunpack.c.l.b16 %v1249
    %v2614 = vunpack.c.h.b16 %v1249
    %v2615 = vunpack.c.l.b16 %v1250
    %v2616 = vunpack.c.h.b16 %v1250
    %v2617 = vunpack.c.l.b16 %v1251
    %v2618 = vunpack.c.h.b16 %v1251
    %v2619 = vunpack.c.l.b16 %v1252
    %v2620 = vunpack.c.h.b16 %v1252
    %v2621 = vunpack.c.l.b16 %v1253
    %v2622 = vunpack.c.h.b16 %v1253
    %v2623 = vunpack.c.l.b16 %v1254
    %v2624 = vunpack.c.h.b16 %v1254
    %v2625 = vunpack.c.l.b16 %v1255
    %v2626 = vunpack.c.h.b16 %v1255
    %v2627 = vunpack.c.l.b16 %v1256
    %v2628 = vunpack.c.h.b16 %v1256
    %v2629 = vunpack.c.l.b16 %v1257
    %v2630 = vunpack.c.h.b16 %v1257
    %v2631 = vunpack.c.l.b16 %v1258
    %v2632 = vunpack.c.h.b16 %v1258
    %v2633 = vunpack.c.l.b16 %v1259
    %v2634 = vunpack.c.h.b16 %v1259
    %v2635 = vunpack.c.l.b16 %v1260
    %v2636 = vunpack.c.h.b16 %v1260
    %v2637 = vunpack.c.l.b16 %v1261
    %v2638 = vunpack.c.h.b16 %v1261
    %v2639 = vunpack.c.l.b16 %v1262
    %v2640 = vunpack.c.h.b16 %v1262
    %v2641 = vunpack.c.l.b16 %v1263
    %v2642 = vunpack.c.h.b16 %v1263
    %v2643 = vunpack.c.l.b16 %v1264
    %v2644 = vunpack.c.h.b16 %v1264
    %v2645 = vunpack.c.l.b16 %v1265
    %v2646 = vunpack.c.h.b16 %v1265
    %v2647 = vunpack.c.l.b16 %v1266
    %v2648 = vunpack.c.h.b16 %v1266
    %v2649 = vunpack.c.l.b16 %v1267
    %v2650 = vunpack.c.h.b16 %v1267
    %v2651 = vunpack.c.l.b16 %v1268
    %v2652 = vunpack.c.h.b16 %v1268
    %v2653 = vunpack.c.l.b16 %v1269
    %v2654 = vunpack.c.h.b16 %v1269
    %v2655 = vunpack.c.l.b16 %v1270
    %v2656 = vunpack.c.h.b16 %v1270
    %v2657 = vunpack.c.l.b16 %v1271
    %v2658 = vunpack.c.h.b16 %v1271
    %v2659 = vunpack.c.l.b16 %v1272
    %v2660 = vunpack.c.h.b16 %v1272
    %v2661 = vunpack.c.l.b16 %v1273
    %v2662 = vunpack.c.h.b16 %v1273
    %v2663 = vunpack.c.l.b16 %v1274
    %v2664 = vunpack.c.h.b16 %v1274
    %v2665 = vunpack.c.l.b16 %v1275
    %v2666 = vunpack.c.h.b16 %v1275
    %v2667 = vunpack.c.l.b16 %v1276
    %v2668 = vunpack.c.h.b16 %v1276
    %v2669 = vunpack.c.l.b16 %v1277
    %v2670 = vunpack.c.h.b16 %v1277
    %v2671 = vunpack.c.l.b16 %v1278
    %v2672 = vunpack.c.h.b16 %v1278
    %v2673 = vunpack.c.l.b16 %v1279
    %v2674 = vunpack.c.h.b16 %v1279
    %v2675 = vunpack.c.l.b16 %v1280
    %v2676 = vunpack.c.h.b16 %v1280
    %v2677 = vunpack.c.l.b16 %v1281
    %v2678 = vunpack.c.h.b16 %v1281
    %v2679 = vunpack.c.l.b16 %v1282
    %v2680 = vunpack.c.h.b16 %v1282
    %v2681 = vunpack.c.l.b16 %v1283
    %v2682 = vunpack.c.h.b16 %v1283
    %v2683 = vunpack.c.l.b16 %v1284
    %v2684 = vunpack.c.h.b16 %v1284
    %v2685 = vunpack.c.l.b16 %v1285
    %v2686 = vunpack.c.h.b16 %v1285
    %v2687 = vunpack.c.l.b16 %v1286
    %v2688 = vunpack.c.h.b16 %v1286
    %v2689 = vunpack.c.l.b16 %v1287
    %v2690 = vunpack.c.h.b16 %v1287
    %v2691 = vunpack.c.l.b16 %v1288
    %v2692 = vunpack.c.h.b16 %v1288
    %v2693 = vunpack.c.l.b16 %v1289
    %v2694 = vunpack.c.h.b16 %v1289
    %v2695 = vunpack.c.l.b16 %v1290
    %v2696 = vunpack.c.h.b16 %v1290
    %v2697 = vunpack.c.l.b16 %v1291
    %v2698 = vunpack.c.h.b16 %v1291
    %v2699 = vunpack.c.l.b16 %v1292
    %v2700 = vunpack.c.h.b16 %v1292
    %v2701 = vunpack.c.l.b16 %v1293
    %v2702 = vunpack.c.h.b16 %v1293
    %v2703 = vunpack.c.l.b16 %v1294
    %v2704 = vunpack.c.h.b16 %v1294
    %v2705 = vunpack.c.l.b16 %v1295
    %v2706 = vunpack.c.h.b16 %v1295
    %v2707 = vunpack.c.l.b16 %v1296
    %v2708 = vunpack.c.h.b16 %v1296
    %v2709 = vunpack.c.l.b16 %v1297
    %v2710 = vunpack.c.h.b16 %v1297
    %v2711 = vunpack.c.l.b16 %v1298
    %v2712 = vunpack.c.h.b16 %v1298
    %v2713 = vunpack.c.l.b16 %v1299
    %v2714 = vunpack.c.h.b16 %v1299
    %v2715 = vunpack.c.l.b16 %v1300
    %v2716 = vunpack.c.h.b16 %v1300
    %v2717 = vunpack.c.l.b16 %v1301
    %v2718 = vunpack.c.h.b16 %v1301
    %v2719 = vunpack.c.l.b16 %v1302
    %v2720 = vunpack.c.h.b16 %v1302
    %v2721 = vunpack.c.l.b16 %v1303
    %v2722 = vunpack.c.h.b16 %v1303
    %v2723 = vunpack.c.l.b16 %v1304
    %v2724 = vunpack.c.h.b16 %v1304
    %v2725 = vunpack.c.l.b16 %v1305
    %v2726 = vunpack.c.h.b16 %v1305
    %v2727 = vunpack.c.l.b16 %v1306
    %v2728 = vunpack.c.h.b16 %v1306
    %v2729 = vunpack.c.l.b16 %v1307
    %v2730 = vunpack.c.h.b16 %v1307
    %v2731 = vunpack.c.l.b16 %v1308
    %v2732 = vunpack.c.h.b16 %v1308
    %v2733 = vunpack.c.l.b16 %v1309
    %v2734 = vunpack.c.h.b16 %v1309
    %v2735 = vunpack.c.l.b16 %v1310
    %v2736 = vunpack.c.h.b16 %v1310
    %v2737 = vunpack.c.l.b16 %v1311
    %v2738 = vunpack.c.h.b16 %v1311
    %v2739 = vunpack.c.l.b16 %v1312
    %v2740 = vunpack.c.h.b16 %v1312
    %v2741 = vunpack.c.l.b16 %v1313
    %v2742 = vunpack.c.h.b16 %v1313
    %v2743 = vunpack.c.l.b16 %v1314
    %v2744 = vunpack.c.h.b16 %v1314
    %v2745 = vunpack.c.l.b16 %v1315
    %v2746 = vunpack.c.h.b16 %v1315
    %v2747 = vunpack.c.l.b16 %v1316
    %v2748 = vunpack.c.h.b16 %v1316
    %v2749 = vunpack.c.l.b16 %v1317
    %v2750 = vunpack.c.h.b16 %v1317
    %v2751 = vunpack.c.l.b16 %v1318
    %v2752 = vunpack.c.h.b16 %v1318
    %v2753 = vunpack.c.l.b16 %v1319
    %v2754 = vunpack.c.h.b16 %v1319
    %v2755 = vunpack.c.l.b16 %v1320
    %v2756 = vunpack.c.h.b16 %v1320
    %v2757 = vunpack.c.l.b16 %v1321
    %v2758 = vunpack.c.h.b16 %v1321
    %v2759 = vunpack.c.l.b16 %v1322
    %v2760 = vunpack.c.h.b16 %v1322
    %v2761 = vunpack.c.l.b16 %v1323
    %v2762 = vunpack.c.h.b16 %v1323
    %v2763 = vunpack.c.l.b16 %v1324
    %v2764 = vunpack.c.h.b16 %v1324
    %v2765 = vunpack.c.l.b16 %v1325
    %v2766 = vunpack.c.h.b16 %v1325
    %v2767 = vunpack.c.l.b16 %v1326
    %v2768 = vunpack.c.h.b16 %v1326
    %v2769 = vunpack.c.l.b16 %v1327
    %v2770 = vunpack.c.h.b16 %v1327
    %v2771 = vunpack.c.l.b16 %v1328
    %v2772 = vunpack.c.h.b16 %v1328
    %v2773 = vunpack.c.l.b16 %v1329
    %v2774 = vunpack.c.h.b16 %v1329
    %v2775 = vunpack.c.l.b16 %v1330
    %v2776 = vunpack.c.h.b16 %v1330
    %v2777 = vunpack.c.l.b16 %v1331
    %v2778 = vunpack.c.h.b16 %v1331
    %v2779 = vunpack.c.l.b16 %v1332
    %v2780 = vunpack.c.h.b16 %v1332
    %v2781 = vunpack.c.l.b16 %v1333
    %v2782 = vunpack.c.h.b16 %v1333
    %v2783 = vunpack.c.l.b16 %v1334
    %v2784 = vunpack.c.h.b16 %v1334
    %v2785 = vunpack.c.l.b16 %v1335
    %v2786 = vunpack.c.h.b16 %v1335
    %v2787 = vunpack.c.l.b16 %v1336
    %v2788 = vunpack.c.h.b16 %v1336
    %v2789 = vunpack.c.l.b16 %v1337
    %v2790 = vunpack.c.h.b16 %v1337
    %v2791 = vunpack.c.l.b16 %v1338
    %v2792 = vunpack.c.h.b16 %v1338
    %v2793 = vunpack.c.l.b16 %v1339
    %v2794 = vunpack.c.h.b16 %v1339
    %v2795 = vunpack.c.l.b16 %v1340
    %v2796 = vunpack.c.h.b16 %v1340
    %v2797 = vunpack.c.l.b16 %v1341
    %v2798 = vunpack.c.h.b16 %v1341
    %v2799 = vunpack.c.l.b16 %v1342
    %v2800 = vunpack.c.h.b16 %v1342
    %v2801 = vunpack.c.l.b16 %v1343
    %v2802 = vunpack.c.h.b16 %v1343
    %v2803 = vunpack.c.l.b16 %v1344
    %v2804 = vunpack.c.h.b16 %v1344
    %v2805 = vunpack.c.l.b16 %v1345
    %v2806 = vunpack.c.h.b16 %v1345
    %v2807 = vunpack.c.l.b16 %v1346
    %v2808 = vunpack.c.h.b16 %v1346
    %v2809 = vunpack.c.l.b16 %v1347
    %v2810 = vunpack.c.h.b16 %v1347
    %v2811 = vunpack.c.l.b16 %v1348
    %v2812 = vunpack.c.h.b16 %v1348
    %v2813 = vunpack.c.l.b16 %v1349
    %v2814 = vunpack.c.h.b16 %v1349
    %v2815 = vunpack.c.l.b16 %v1350
    %v2816 = vunpack.c.h.b16 %v1350
    %v2817 = vunpack.c.l.b16 %v1351
    %v2818 = vunpack.c.h.b16 %v1351
    %v2819 = vunpack.c.l.b16 %v1352
    %v2820 = vunpack.c.h.b16 %v1352
    %v2821 = vunpack.c.l.b16 %v1353
    %v2822 = vunpack.c.h.b16 %v1353
    %v2823 = vunpack.c.l.b16 %v1354
    %v2824 = vunpack.c.h.b16 %v1354
    %v2825 = vunpack.c.l.b16 %v1355
    %v2826 = vunpack.c.h.b16 %v1355
    %v2827 = vunpack.c.l.b16 %v1356
    %v2828 = vunpack.c.h.b16 %v1356
    %v2829 = vunpack.c.l.b16 %v1357
    %v2830 = vunpack.c.h.b16 %v1357
    %v2831 = vunpack.c.l.b16 %v1358
    %v2832 = vunpack.c.h.b16 %v1358
    %v2833 = vunpack.c.l.b16 %v1359
    %v2834 = vunpack.c.h.b16 %v1359
    %v2835 = vunpack.c.l.b16 %v1360
    %v2836 = vunpack.c.h.b16 %v1360
    %v2837 = vunpack.c.l.b16 %v1361
    %v2838 = vunpack.c.h.b16 %v1361
    %v2839 = vunpack.c.l.b16 %v1362
    %v2840 = vunpack.c.h.b16 %v1362
    %v2841 = vunpack.c.l.b16 %v1363
    %v2842 = vunpack.c.h.b16 %v1363
    %v2843 = vunpack.c.l.b16 %v1364
    %v2844 = vunpack.c.h.b16 %v1364
    %v2845 = vunpack.c.l.b16 %v1365
    %v2846 = vunpack.c.h.b16 %v1365
    %v2847 = vunpack.c.l.b16 %v1366
    %v2848 = vunpack.c.h.b16 %v1366
    %v2849 = vunpack.c.l.b16 %v1367
    %v2850 = vunpack.c.h.b16 %v1367
    %v2851 = vunpack.c.l.b16 %v1368
    %v2852 = vunpack.c.h.b16 %v1368
    %v2853 = vunpack.c.l.b16 %v1369
    %v2854 = vunpack.c.h.b16 %v1369
    %v2855 = vunpack.c.l.b16 %v1370
    %v2856 = vunpack.c.h.b16 %v1370
    %v2857 = vunpack.c.l.b16 %v1371
    %v2858 = vunpack.c.h.b16 %v1371
    %v2859 = vunpack.c.l.b16 %v1372
    %v2860 = vunpack.c.h.b16 %v1372
    %v2861 = vunpack.c.l.b16 %v1373
    %v2862 = vunpack.c.h.b16 %v1373
    %v2863 = vunpack.c.l.b16 %v1374
    %v2864 = vunpack.c.h.b16 %v1374
    %v2865 = vunpack.c.l.b16 %v1375
    %v2866 = vunpack.c.h.b16 %v1375
    %v2867 = vunpack.c.l.b16 %v1376
    %v2868 = vunpack.c.h.b16 %v1376
    %v2869 = vunpack.c.l.b16 %v1377
    %v2870 = vunpack.c.h.b16 %v1377
    %v2871 = vunpack.c.l.b16 %v1378
    %v2872 = vunpack.c.h.b16 %v1378
    %v2873 = vunpack.c.l.b16 %v1379
    %v2874 = vunpack.c.h.b16 %v1379
    %v2875 = vunpack.c.l.b16 %v1380
    %v2876 = vunpack.c.h.b16 %v1380
    %v2877 = vunpack.c.l.b16 %v1381
    %v2878 = vunpack.c.h.b16 %v1381
    %v2879 = vunpack.c.l.b16 %v1382
    %v2880 = vunpack.c.h.b16 %v1382
    %v2881 = vunpack.c.l.b16 %v1383
    %v2882 = vunpack.c.h.b16 %v1383
    %v2883 = vunpack.c.l.b16 %v1384
    %v2884 = vunpack.c.h.b16 %v1384
    %v2885 = vunpack.c.l.b16 %v1385
    %v2886 = vunpack.c.h.b16 %v1385
    %v2887 = vunpack.c.l.b16 %v1386
    %v2888 = vunpack.c.h.b16 %v1386
    %v2889 = vunpack.c.l.b16 %v1387
    %v2890 = vunpack.c.h.b16 %v1387
    %v2891 = vunpack.c.l.b16 %v1388
    %v2892 = vunpack.c.h.b16 %v1388
    %v2893 = vunpack.c.l.b16 %v1389
    %v2894 = vunpack.c.h.b16 %v1389
    %v2895 = vunpack.c.l.b16 %v1390
    %v2896 = vunpack.c.h.b16 %v1390
    %v2897 = vunpack.c.l.b16 %v1391
    %v2898 = vunpack.c.h.b16 %v1391
    %v2899 = vunpack.c.l.b16 %v1392
    %v2900 = vunpack.c.h.b16 %v1392
    %v2901 = vunpack.c.l.b16 %v1393
    %v2902 = vunpack.c.h.b16 %v1393
    %v2903 = vunpack.c.l.b16 %v1394
    %v2904 = vunpack.c.h.b16 %v1394
    %v2905 = vunpack.c.l.b16 %v1395
    %v2906 = vunpack.c.h.b16 %v1395
    %v2907 = vunpack.c.l.b16 %v1396
    %v2908 = vunpack.c.h.b16 %v1396
    %v2909 = vunpack.c.l.b16 %v1397
    %v2910 = vunpack.c.h.b16 %v1397
    %v2911 = vunpack.c.l.b16 %v1398
    %v2912 = vunpack.c.h.b16 %v1398
    %v2913 = vunpack.c.l.b16 %v1399
    %v2914 = vunpack.c.h.b16 %v1399
    %v2915 = vunpack.c.l.b16 %v1400
    %v2916 = vunpack.c.h.b16 %v1400
    %v2917 = vunpack.c.l.b16 %v1401
    %v2918 = vunpack.c.h.b16 %v1401
    %v2919 = vunpack.c.l.b16 %v1402
    %v2920 = vunpack.c.h.b16 %v1402
    %v2921 = vunpack.c.l.b16 %v1403
    %v2922 = vunpack.c.h.b16 %v1403
    %v2923 = vunpack.c.l.b16 %v1404
    %v2924 = vunpack.c.h.b16 %v1404
    %v2925 = vunpack.c.l.b16 %v1405
    %v2926 = vunpack.c.h.b16 %v1405
    %v2927 = vunpack.c.l.b16 %v1406
    %v2928 = vunpack.c.h.b16 %v1406
    %v2929 = vunpack.c.l.b16 %v1407
    %v2930 = vunpack.c.h.b16 %v1407
    %v2931 = vunpack.c.l.b16 %v1408
    %v2932 = vunpack.c.h.b16 %v1408
    %v2933 = vunpack.c.l.b16 %v1409
    %v2934 = vunpack.c.h.b16 %v1409
    %v2935 = vunpack.c.l.b16 %v1410
    %v2936 = vunpack.c.h.b16 %v1410
    %v2937 = vunpack.c.l.b16 %v1411
    %v2938 = vunpack.c.h.b16 %v1411
    %v2939 = vunpack.c.l.b16 %v1412
    %v2940 = vunpack.c.h.b16 %v1412
    %v2941 = vunpack.c.l.b16 %v1413
    %v2942 = vunpack.c.h.b16 %v1413
    %v2943 = vunpack.c.l.b16 %v1414
    %v2944 = vunpack.c.h.b16 %v1414
    %v2945 = vunpack.c.l.b16 %v1415
    %v2946 = vunpack.c.h.b16 %v1415
    %v2947 = vunpack.c.l.b16 %v1416
    %v2948 = vunpack.c.h.b16 %v1416
    %v2949 = vunpack.c.l.b16 %v1417
    %v2950 = vunpack.c.h.b16 %v1417
    %v2951 = vunpack.c.l.b16 %v1418
    %v2952 = vunpack.c.h.b16 %v1418
    %v2953 = vunpack.c.l.b16 %v1419
    %v2954 = vunpack.c.h.b16 %v1419
    %v2955 = vunpack.c.l.b16 %v1420
    %v2956 = vunpack.c.h.b16 %v1420
    %v2957 = vunpack.c.l.b16 %v1421
    %v2958 = vunpack.c.h.b16 %v1421
    %v2959 = vunpack.c.l.b16 %v1422
    %v2960 = vunpack.c.h.b16 %v1422
    %v2961 = vunpack.c.l.b16 %v1423
    %v2962 = vunpack.c.h.b16 %v1423
    %v2963 = vunpack.c.l.b16 %v1424
    %v2964 = vunpack.c.h.b16 %v1424
    %v2965 = vunpack.c.l.b16 %v1425
    %v2966 = vunpack.c.h.b16 %v1425
    %v2967 = vunpack.c.l.b16 %v1426
    %v2968 = vunpack.c.h.b16 %v1426
    %v2969 = vunpack.c.l.b16 %v1427
    %v2970 = vunpack.c.h.b16 %v1427
    %v2971 = vunpack.c.l.b16 %v1428
    %v2972 = vunpack.c.h.b16 %v1428
    %v2973 = vunpack.c.l.b16 %v1429
    %v2974 = vunpack.c.h.b16 %v1429
    %v2975 = vunpack.c.l.b16 %v1430
    %v2976 = vunpack.c.h.b16 %v1430
    %v2977 = vunpack.c.l.b16 %v1431
    %v2978 = vunpack.c.h.b16 %v1431
    %v2979 = vunpack.c.l.b16 %v1432
    %v2980 = vunpack.c.h.b16 %v1432
    %v2981 = vunpack.c.l.b16 %v1433
    %v2982 = vunpack.c.h.b16 %v1433
    %v2983 = vunpack.c.l.b16 %v1434
    %v2984 = vunpack.c.h.b16 %v1434
    %v2985 = vunpack.c.l.b16 %v1435
    %v2986 = vunpack.c.h.b16 %v1435
    %v2987 = vunpack.c.l.b16 %v1436
    %v2988 = vunpack.c.h.b16 %v1436
    %v2989 = vunpack.c.l.b16 %v1437
    %v2990 = vunpack.c.h.b16 %v1437
    %v2991 = vunpack.c.l.b16 %v1438
    %v2992 = vunpack.c.h.b16 %v1438
    %v2993 = vunpack.c.l.b16 %v1439
    %v2994 = vunpack.c.h.b16 %v1439
    %v2995 = vunpack.c.l.b16 %v1440
    %v2996 = vunpack.c.h.b16 %v1440
    %v2997 = vunpack.c.l.b16 %v1441
    %v2998 = vunpack.c.h.b16 %v1441
    %v2999 = vunpack.c.l.b16 %v1442
    %v3000 = vunpack.c.h.b16 %v1442
    %v3001 = vunpack.c.l.b16 %v1443
    %v3002 = vunpack.c.h.b16 %v1443
    %v3003 = vunpack.c.l.b16 %v1444
    %v3004 = vunpack.c.h.b16 %v1444
    %v3005 = vunpack.c.l.b16 %v1445
    %v3006 = vunpack.c.h.b16 %v1445
    %v3007 = vunpack.c.l.b16 %v1446
    %v3008 = vunpack.c.h.b16 %v1446
    %v3009 = vunpack.c.l.b16 %v1447
    %v3010 = vunpack.c.h.b16 %v1447
    %v3011 = vunpack.c.l.b16 %v1448
    %v3012 = vunpack.c.h.b16 %v1448
    %v3013 = vunpack.c.l.b16 %v1449
    %v3014 = vunpack.c.h.b16 %v1449
    %v3015 = vunpack.c.l.b16 %v1450
    %v3016 = vunpack.c.h.b16 %v1450
    %v3017 = vunpack.c.l.b16 %v1451
    %v3018 = vunpack.c.h.b16 %v1451
    %v3019 = vunpack.c.l.b16 %v1452
    %v3020 = vunpack.c.h.b16 %v1452
    %v3021 = vunpack.c.l.b16 %v1453
    %v3022 = vunpack.c.h.b16 %v1453
    %v3023 = vunpack.c.l.b16 %v1454
    %v3024 = vunpack.c.h.b16 %v1454
    %v3025 = vunpack.c.l.b16 %v1455
    %v3026 = vunpack.c.h.b16 %v1455
    %v3027 = vunpack.c.l.b16 %v1456
    %v3028 = vunpack.c.h.b16 %v1456
    %v3029 = vunpack.c.l.b16 %v1457
    %v3030 = vunpack.c.h.b16 %v1457
    %v3031 = vunpack.c.l.b16 %v1458
    %v3032 = vunpack.c.h.b16 %v1458
    %v3033 = vunpack.c.l.b16 %v1459
    %v3034 = vunpack.c.h.b16 %v1459
    %v3035 = vunpack.c.l.b16 %v1460
    %v3036 = vunpack.c.h.b16 %v1460
    %v3037 = vunpack.c.l.b16 %v1461
    %v3038 = vunpack.c.h.b16 %v1461
    %v3039 = vunpack.c.l.b16 %v1462
    %v3040 = vunpack.c.h.b16 %v1462
    %v3041 = vpack.c.b16 %v2025, %v2017
    %v3042 = vpack.c.b16 %v2026, %v2018
    %v3043 = vpack.c.b16 %v2027, %v2019
    %v3044 = vpack.c.b16 %v2028, %v2020
    %v3045 = vpack.c.b16 %v2029, %v2021
    %v3046 = vpack.c.b16 %v2030, %v2022
    %v3047 = vpack.c.b16 %v2031, %v2023
    %v3048 = vpack.c.b16 %v2032, %v2024
    %v3049 = vpack.c.b16 %v2041, %v2033
    %v3050 = vpack.c.b16 %v2042, %v2034
    %v3051 = vpack.c.b16 %v2043, %v2035
    %v3052 = vpack.c.b16 %v2044, %v2036
    %v3053 = vpack.c.b16 %v2045, %v2037
    %v3054 = vpack.c.b16 %v2046, %v2038
    %v3055 = vpack.c.b16 %v2047, %v2039
    %v3056 = vpack.c.b16 %v2048, %v2040
    %v3057 = vpack.c.b16 %v2057, %v2049
    %v3058 = vpack.c.b16 %v2058, %v2050
    %v3059 = vpack.c.b16 %v2059, %v2051
    %v3060 = vpack.c.b16 %v2060, %v2052
    %v3061 = vpack.c.b16 %v2061, %v2053
    %v3062 = vpack.c.b16 %v2062, %v2054
    %v3063 = vpack.c.b16 %v2063, %v2055
    %v3064 = vpack.c.b16 %v2064, %v2056
    %v3065 = vpack.c.b16 %v2073, %v2065
    %v3066 = vpack.c.b16 %v2074, %v2066
    %v3067 = vpack.c.b16 %v2075, %v2067
    %v3068 = vpack.c.b16 %v2076, %v2068
    %v3069 = vpack.c.b16 %v2077, %v2069
    %v3070 = vpack.c.b16 %v2078, %v2070
    %v3071 = vpack.c.b16 %v2079, %v2071
    %v3072 = vpack.c.b16 %v2080, %v2072
    %v3073 = vpack.c.b16 %v2089, %v2081
    %v3074 = vpack.c.b16 %v2090, %v2082
    %v3075 = vpack.c.b16 %v2091, %v2083
    %v3076 = vpack.c.b16 %v2092, %v2084
    %v3077 = vpack.c.b16 %v2093, %v2085
    %v3078 = vpack.c.b16 %v2094, %v2086
    %v3079 = vpack.c.b16 %v2095, %v2087
    %v3080 = vpack.c.b16 %v2096, %v2088
    %v3081 = vpack.c.b16 %v2105, %v2097
    %v3082 = vpack.c.b16 %v2106, %v2098
    %v3083 = vpack.c.b16 %v2107, %v2099
    %v3084 = vpack.c.b16 %v2108, %v2100
    %v3085 = vpack.c.b16 %v2109, %v2101
    %v3086 = vpack.c.b16 %v2110, %v2102
    %v3087 = vpack.c.b16 %v2111, %v2103
    %v3088 = vpack.c.b16 %v2112, %v2104
    %v3089 = vpack.c.b16 %v2121, %v2113
    %v3090 = vpack.c.b16 %v2122, %v2114
    %v3091 = vpack.c.b16 %v2123, %v2115
    %v3092 = vpack.c.b16 %v2124, %v2116
    %v3093 = vpack.c.b16 %v2125, %v2117
    %v3094 = vpack.c.b16 %v2126, %v2118
    %v3095 = vpack.c.b16 %v2127, %v2119
    %v3096 = vpack.c.b16 %v2128, %v2120
    %v3097 = vpack.c.b16 %v2137, %v2129
    %v3098 = vpack.c.b16 %v2138, %v2130
    %v3099 = vpack.c.b16 %v2139, %v2131
    %v3100 = vpack.c.b16 %v2140, %v2132
    %v3101 = vpack.c.b16 %v2141, %v2133
    %v3102 = vpack.c.b16 %v2142, %v2134
    %v3103 = vpack.c.b16 %v2143, %v2135
    %v3104 = vpack.c.b16 %v2144, %v2136
    %v3105 = vpack.c.b16 %v2153, %v2145
    %v3106 = vpack.c.b16 %v2154, %v2146
    %v3107 = vpack.c.b16 %v2155, %v2147
    %v3108 = vpack.c.b16 %v2156, %v2148
    %v3109 = vpack.c.b16 %v2157, %v2149
    %v3110 = vpack.c.b16 %v2158, %v2150
    %v3111 = vpack.c.b16 %v2159, %v2151
    %v3112 = vpack.c.b16 %v2160, %v2152
    %v3113 = vpack.c.b16 %v2169, %v2161
    %v3114 = vpack.c.b16 %v2170, %v2162
    %v3115 = vpack.c.b16 %v2171, %v2163
    %v3116 = vpack.c.b16 %v2172, %v2164
    %v3117 = vpack.c.b16 %v2173, %v2165
    %v3118 = vpack.c.b16 %v2174, %v2166
    %v3119 = vpack.c.b16 %v2175, %v2167
    %v3120 = vpack.c.b16 %v2176, %v2168
    %v3121 = vpack.c.b16 %v2185, %v2177
    %v3122 = vpack.c.b16 %v2186, %v2178
    %v3123 = vpack.c.b16 %v2187, %v2179
    %v3124 = vpack.c.b16 %v2188, %v2180
    %v3125 = vpack.c.b16 %v2189, %v2181
    %v3126 = vpack.c.b16 %v2190, %v2182
    %v3127 = vpack.c.b16 %v2191, %v2183
    %v3128 = vpack.c.b16 %v2192, %v2184
    %v3129 = vpack.c.b16 %v2201, %v2193
    %v3130 = vpack.c.b16 %v2202, %v2194
    %v3131 = vpack.c.b16 %v2203, %v2195
    %v3132 = vpack.c.b16 %v2204, %v2196
    %v3133 = vpack.c.b16 %v2205, %v2197
    %v3134 = vpack.c.b16 %v2206, %v2198
    %v3135 = vpack.c.b16 %v2207, %v2199
    %v3136 = vpack.c.b16 %v2208, %v2200
    %v3137 = vpack.c.b16 %v2217, %v2209
    %v3138 = vpack.c.b16 %v2218, %v2210
    %v3139 = vpack.c.b16 %v2219, %v2211
    %v3140 = vpack.c.b16 %v2220, %v2212
    %v3141 = vpack.c.b16 %v2221, %v2213
    %v3142 = vpack.c.b16 %v2222, %v2214
    %v3143 = vpack.c.b16 %v2223, %v2215
    %v3144 = vpack.c.b16 %v2224, %v2216
    %v3145 = vpack.c.b16 %v2233, %v2225
    %v3146 = vpack.c.b16 %v2234, %v2226
    %v3147 = vpack.c.b16 %v2235, %v2227
    %v3148 = vpack.c.b16 %v2236, %v2228
    %v3149 = vpack.c.b16 %v2237, %v2229
    %v3150 = vpack.c.b16 %v2238, %v2230
    %v3151 = vpack.c.b16 %v2239, %v2231
    %v3152 = vpack.c.b16 %v2240, %v2232
    %v3153 = vpack.c.b16 %v2249, %v2241
    %v3154 = vpack.c.b16 %v2250, %v2242
    %v3155 = vpack.c.b16 %v2251, %v2243
    %v3156 = vpack.c.b16 %v2252, %v2244
    %v3157 = vpack.c.b16 %v2253, %v2245
    %v3158 = vpack.c.b16 %v2254, %v2246
    %v3159 = vpack.c.b16 %v2255, %v2247
    %v3160 = vpack.c.b16 %v2256, %v2248
    %v3161 = vpack.c.b16 %v2265, %v2257
    %v3162 = vpack.c.b16 %v2266, %v2258
    %v3163 = vpack.c.b16 %v2267, %v2259
    %v3164 = vpack.c.b16 %v2268, %v2260
    %v3165 = vpack.c.b16 %v2269, %v2261
    %v3166 = vpack.c.b16 %v2270, %v2262
    %v3167 = vpack.c.b16 %v2271, %v2263
    %v3168 = vpack.c.b16 %v2272, %v2264
    %v3169 = vpack.c.b16 %v2281, %v2273
    %v3170 = vpack.c.b16 %v2282, %v2274
    %v3171 = vpack.c.b16 %v2283, %v2275
    %v3172 = vpack.c.b16 %v2284, %v2276
    %v3173 = vpack.c.b16 %v2285, %v2277
    %v3174 = vpack.c.b16 %v2286, %v2278
    %v3175 = vpack.c.b16 %v2287, %v2279
    %v3176 = vpack.c.b16 %v2288, %v2280
    %v3177 = vpack.c.b16 %v2297, %v2289
    %v3178 = vpack.c.b16 %v2298, %v2290
    %v3179 = vpack.c.b16 %v2299, %v2291
    %v3180 = vpack.c.b16 %v2300, %v2292
    %v3181 = vpack.c.b16 %v2301, %v2293
    %v3182 = vpack.c.b16 %v2302, %v2294
    %v3183 = vpack.c.b16 %v2303, %v2295
    %v3184 = vpack.c.b16 %v2304, %v2296
    %v3185 = vpack.c.b16 %v2313, %v2305
    %v3186 = vpack.c.b16 %v2314, %v2306
    %v3187 = vpack.c.b16 %v2315, %v2307
    %v3188 = vpack.c.b16 %v2316, %v2308
    %v3189 = vpack.c.b16 %v2317, %v2309
    %v3190 = vpack.c.b16 %v2318, %v2310
    %v3191 = vpack.c.b16 %v2319, %v2311
    %v3192 = vpack.c.b16 %v2320, %v2312
    %v3193 = vpack.c.b16 %v2329, %v2321
    %v3194 = vpack.c.b16 %v2330, %v2322
    %v3195 = vpack.c.b16 %v2331, %v2323
    %v3196 = vpack.c.b16 %v2332, %v2324
    %v3197 = vpack.c.b16 %v2333, %v2325
    %v3198 = vpack.c.b16 %v2334, %v2326
    %v3199 = vpack.c.b16 %v2335, %v2327
    %v3200 = vpack.c.b16 %v2336, %v2328
    %v3201 = vpack.c.b16 %v2345, %v2337
    %v3202 = vpack.c.b16 %v2346, %v2338
    %v3203 = vpack.c.b16 %v2347, %v2339
    %v3204 = vpack.c.b16 %v2348, %v2340
    %v3205 = vpack.c.b16 %v2349, %v2341
    %v3206 = vpack.c.b16 %v2350, %v2342
    %v3207 = vpack.c.b16 %v2351, %v2343
    %v3208 = vpack.c.b16 %v2352, %v2344
    %v3209 = vpack.c.b16 %v2361, %v2353
    %v3210 = vpack.c.b16 %v2362, %v2354
    %v3211 = vpack.c.b16 %v2363, %v2355
    %v3212 = vpack.c.b16 %v2364, %v2356
    %v3213 = vpack.c.b16 %v2365, %v2357
    %v3214 = vpack.c.b16 %v2366, %v2358
    %v3215 = vpack.c.b16 %v2367, %v2359
    %v3216 = vpack.c.b16 %v2368, %v2360
    %v3217 = vpack.c.b16 %v2377, %v2369
    %v3218 = vpack.c.b16 %v2378, %v2370
    %v3219 = vpack.c.b16 %v2379, %v2371
    %v3220 = vpack.c.b16 %v2380, %v2372
    %v3221 = vpack.c.b16 %v2381, %v2373
    %v3222 = vpack.c.b16 %v2382, %v2374
    %v3223 = vpack.c.b16 %v2383, %v2375
    %v3224 = vpack.c.b16 %v2384, %v2376
    %v3225 = vpack.c.b16 %v2393, %v2385
    %v3226 = vpack.c.b16 %v2394, %v2386
    %v3227 = vpack.c.b16 %v2395, %v2387
    %v3228 = vpack.c.b16 %v2396, %v2388
    %v3229 = vpack.c.b16 %v2397, %v2389
    %v3230 = vpack.c.b16 %v2398, %v2390
    %v3231 = vpack.c.b16 %v2399, %v2391
    %v3232 = vpack.c.b16 %v2400, %v2392
    %v3233 = vpack.c.b16 %v2409, %v2401
    %v3234 = vpack.c.b16 %v2410, %v2402
    %v3235 = vpack.c.b16 %v2411, %v2403
    %v3236 = vpack.c.b16 %v2412, %v2404
    %v3237 = vpack.c.b16 %v2413, %v2405
    %v3238 = vpack.c.b16 %v2414, %v2406
    %v3239 = vpack.c.b16 %v2415, %v2407
    %v3240 = vpack.c.b16 %v2416, %v2408
    %v3241 = vpack.c.b16 %v2425, %v2417
    %v3242 = vpack.c.b16 %v2426, %v2418
    %v3243 = vpack.c.b16 %v2427, %v2419
    %v3244 = vpack.c.b16 %v2428, %v2420
    %v3245 = vpack.c.b16 %v2429, %v2421
    %v3246 = vpack.c.b16 %v2430, %v2422
    %v3247 = vpack.c.b16 %v2431, %v2423
    %v3248 = vpack.c.b16 %v2432, %v2424
    %v3249 = vpack.c.b16 %v2441, %v2433
    %v3250 = vpack.c.b16 %v2442, %v2434
    %v3251 = vpack.c.b16 %v2443, %v2435
    %v3252 = vpack.c.b16 %v2444, %v2436
    %v3253 = vpack.c.b16 %v2445, %v2437
    %v3254 = vpack.c.b16 %v2446, %v2438
    %v3255 = vpack.c.b16 %v2447, %v2439
    %v3256 = vpack.c.b16 %v2448, %v2440
    %v3257 = vpack.c.b16 %v2457, %v2449
    %v3258 = vpack.c.b16 %v2458, %v2450
    %v3259 = vpack.c.b16 %v2459, %v2451
    %v3260 = vpack.c.b16 %v2460, %v2452
    %v3261 = vpack.c.b16 %v2461, %v2453
    %v3262 = vpack.c.b16 %v2462, %v2454
    %v3263 = vpack.c.b16 %v2463, %v2455
    %v3264 = vpack.c.b16 %v2464, %v2456
    %v3265 = vpack.c.b16 %v2473, %v2465
    %v3266 = vpack.c.b16 %v2474, %v2466
    %v3267 = vpack.c.b16 %v2475, %v2467
    %v3268 = vpack.c.b16 %v2476, %v2468
    %v3269 = vpack.c.b16 %v2477, %v2469
    %v3270 = vpack.c.b16 %v2478, %v2470
    %v3271 = vpack.c.b16 %v2479, %v2471
    %v3272 = vpack.c.b16 %v2480, %v2472
    %v3273 = vpack.c.b16 %v2489, %v2481
    %v3274 = vpack.c.b16 %v2490, %v2482
    %v3275 = vpack.c.b16 %v2491, %v2483
    %v3276 = vpack.c.b16 %v2492, %v2484
    %v3277 = vpack.c.b16 %v2493, %v2485
    %v3278 = vpack.c.b16 %v2494, %v2486
    %v3279 = vpack.c.b16 %v2495, %v2487
    %v3280 = vpack.c.b16 %v2496, %v2488
    %v3281 = vpack.c.b16 %v2505, %v2497
    %v3282 = vpack.c.b16 %v2506, %v2498
    %v3283 = vpack.c.b16 %v2507, %v2499
    %v3284 = vpack.c.b16 %v2508, %v2500
    %v3285 = vpack.c.b16 %v2509, %v2501
    %v3286 = vpack.c.b16 %v2510, %v2502
    %v3287 = vpack.c.b16 %v2511, %v2503
    %v3288 = vpack.c.b16 %v2512, %v2504
    %v3289 = vpack.c.b16 %v2521, %v2513
    %v3290 = vpack.c.b16 %v2522, %v2514
    %v3291 = vpack.c.b16 %v2523, %v2515
    %v3292 = vpack.c.b16 %v2524, %v2516
    %v3293 = vpack.c.b16 %v2525, %v2517
    %v3294 = vpack.c.b16 %v2526, %v2518
    %v3295 = vpack.c.b16 %v2527, %v2519
    %v3296 = vpack.c.b16 %v2528, %v2520
    %v3297 = vpack.c.b16 %v2537, %v2529
    %v3298 = vpack.c.b16 %v2538, %v2530
    %v3299 = vpack.c.b16 %v2539, %v2531
    %v3300 = vpack.c.b16 %v2540, %v2532
    %v3301 = vpack.c.b16 %v2541, %v2533
    %v3302 = vpack.c.b16 %v2542, %v2534
    %v3303 = vpack.c.b16 %v2543, %v2535
    %v3304 = vpack.c.b16 %v2544, %v2536
    %v3305 = vpack.c.b16 %v2553, %v2545
    %v3306 = vpack.c.b16 %v2554, %v2546
    %v3307 = vpack.c.b16 %v2555, %v2547
    %v3308 = vpack.c.b16 %v2556, %v2548
    %v3309 = vpack.c.b16 %v2557, %v2549
    %v3310 = vpack.c.b16 %v2558, %v2550
    %v3311 = vpack.c.b16 %v2559, %v2551
    %v3312 = vpack.c.b16 %v2560, %v2552
    %v3313 = vpack.c.b16 %v2569, %v2561
    %v3314 = vpack.c.b16 %v2570, %v2562
    %v3315 = vpack.c.b16 %v2571, %v2563
    %v3316 = vpack.c.b16 %v2572, %v2564
    %v3317 = vpack.c.b16 %v2573, %v2565
    %v3318 = vpack.c.b16 %v2574, %v2566
    %v3319 = vpack.c.b16 %v2575, %v2567
    %v3320 = vpack.c.b16 %v2576, %v2568
    %v3321 = vpack.c.b16 %v2585, %v2577
    %v3322 = vpack.c.b16 %v2586, %v2578
    %v3323 = vpack.c.b16 %v2587, %v2579
    %v3324 = vpack.c.b16 %v2588, %v2580
    %v3325 = vpack.c.b16 %v2589, %v2581
    %v3326 = vpack.c.b16 %v2590, %v2582
    %v3327 = vpack.c.b16 %v2591, %v2583
    %v3328 = vpack.c.b16 %v2592, %v2584
    %v3329 = vpack.c.b16 %v2601, %v2593
    %v3330 = vpack.c.b16 %v2602, %v2594
    %v3331 = vpack.c.b16 %v2603, %v2595
    %v3332 = vpack.c.b16 %v2604, %v2596
    %v3333 = vpack.c.b16 %v2605, %v2597
    %v3334 = vpack.c.b16 %v2606, %v2598
    %v3335 = vpack.c.b16 %v2607, %v2599
    %v3336 = vpack.c.b16 %v2608, %v2600
    %v3337 = vpack.c.b16 %v2617, %v2609
    %v3338 = vpack.c.b16 %v2618, %v2610
    %v3339 = vpack.c.b16 %v2619, %v2611
    %v3340 = vpack.c.b16 %v2620, %v2612
    %v3341 = vpack.c.b16 %v2621, %v2613
    %v3342 = vpack.c.b16 %v2622, %v2614
    %v3343 = vpack.c.b16 %v2623, %v2615
    %v3344 = vpack.c.b16 %v2624, %v2616
    %v3345 = vpack.c.b16 %v2633, %v2625
    %v3346 = vpack.c.b16 %v2634, %v2626
    %v3347 = vpack.c.b16 %v2635, %v2627
    %v3348 = vpack.c.b16 %v2636, %v2628
    %v3349 = vpack.c.b16 %v2637, %v2629
    %v3350 = vpack.c.b16 %v2638, %v2630
    %v3351 = vpack.c.b16 %v2639, %v2631
    %v3352 = vpack.c.b16 %v2640, %v2632
    %v3353 = vpack.c.b16 %v2649, %v2641
    %v3354 = vpack.c.b16 %v2650, %v2642
    %v3355 = vpack.c.b16 %v2651, %v2643
    %v3356 = vpack.c.b16 %v2652, %v2644
    %v3357 = vpack.c.b16 %v2653, %v2645
    %v3358 = vpack.c.b16 %v2654, %v2646
    %v3359 = vpack.c.b16 %v2655, %v2647
    %v3360 = vpack.c.b16 %v2656, %v2648
    %v3361 = vpack.c.b16 %v2665, %v2657
    %v3362 = vpack.c.b16 %v2666, %v2658
    %v3363 = vpack.c.b16 %v2667, %v2659
    %v3364 = vpack.c.b16 %v2668, %v2660
    %v3365 = vpack.c.b16 %v2669, %v2661
    %v3366 = vpack.c.b16 %v2670, %v2662
    %v3367 = vpack.c.b16 %v2671, %v2663
    %v3368 = vpack.c.b16 %v2672, %v2664
    %v3369 = vpack.c.b16 %v2681, %v2673
    %v3370 = vpack.c.b16 %v2682, %v2674
    %v3371 = vpack.c.b16 %v2683, %v2675
    %v3372 = vpack.c.b16 %v2684, %v2676
    %v3373 = vpack.c.b16 %v2685, %v2677
    %v3374 = vpack.c.b16 %v2686, %v2678
    %v3375 = vpack.c.b16 %v2687, %v2679
    %v3376 = vpack.c.b16 %v2688, %v2680
    %v3377 = vpack.c.b16 %v2697, %v2689
    %v3378 = vpack.c.b16 %v2698, %v2690
    %v3379 = vpack.c.b16 %v2699, %v2691
    %v3380 = vpack.c.b16 %v2700, %v2692
    %v3381 = vpack.c.b16 %v2701, %v2693
    %v3382 = vpack.c.b16 %v2702, %v2694
    %v3383 = vpack.c.b16 %v2703, %v2695
    %v3384 = vpack.c.b16 %v2704, %v2696
    %v3385 = vpack.c.b16 %v2713, %v2705
    %v3386 = vpack.c.b16 %v2714, %v2706
    %v3387 = vpack.c.b16 %v2715, %v2707
    %v3388 = vpack.c.b16 %v2716, %v2708
    %v3389 = vpack.c.b16 %v2717, %v2709
    %v3390 = vpack.c.b16 %v2718, %v2710
    %v3391 = vpack.c.b16 %v2719, %v2711
    %v3392 = vpack.c.b16 %v2720, %v2712
    %v3393 = vpack.c.b16 %v2729, %v2721
    %v3394 = vpack.c.b16 %v2730, %v2722
    %v3395 = vpack.c.b16 %v2731, %v2723
    %v3396 = vpack.c.b16 %v2732, %v2724
    %v3397 = vpack.c.b16 %v2733, %v2725
    %v3398 = vpack.c.b16 %v2734, %v2726
    %v3399 = vpack.c.b16 %v2735, %v2727
    %v3400 = vpack.c.b16 %v2736, %v2728
    %v3401 = vpack.c.b16 %v2745, %v2737
    %v3402 = vpack.c.b16 %v2746, %v2738
    %v3403 = vpack.c.b16 %v2747, %v2739
    %v3404 = vpack.c.b16 %v2748, %v2740
    %v3405 = vpack.c.b16 %v2749, %v2741
    %v3406 = vpack.c.b16 %v2750, %v2742
    %v3407 = vpack.c.b16 %v2751, %v2743
    %v3408 = vpack.c.b16 %v2752, %v2744
    %v3409 = vpack.c.b16 %v2761, %v2753
    %v3410 = vpack.c.b16 %v2762, %v2754
    %v3411 = vpack.c.b16 %v2763, %v2755
    %v3412 = vpack.c.b16 %v2764, %v2756
    %v3413 = vpack.c.b16 %v2765, %v2757
    %v3414 = vpack.c.b16 %v2766, %v2758
    %v3415 = vpack.c.b16 %v2767, %v2759
    %v3416 = vpack.c.b16 %v2768, %v2760
    %v3417 = vpack.c.b16 %v2777, %v2769
    %v3418 = vpack.c.b16 %v2778, %v2770
    %v3419 = vpack.c.b16 %v2779, %v2771
    %v3420 = vpack.c.b16 %v2780, %v2772
    %v3421 = vpack.c.b16 %v2781, %v2773
    %v3422 = vpack.c.b16 %v2782, %v2774
    %v3423 = vpack.c.b16 %v2783, %v2775
    %v3424 = vpack.c.b16 %v2784, %v2776
    %v3425 = vpack.c.b16 %v2793, %v2785
    %v3426 = vpack.c.b16 %v2794, %v2786
    %v3427 = vpack.c.b16 %v2795, %v2787
    %v3428 = vpack.c.b16 %v2796, %v2788
    %v3429 = vpack.c.b16 %v2797, %v2789
    %v3430 = vpack.c.b16 %v2798, %v2790
    %v3431 = vpack.c.b16 %v2799, %v2791
    %v3432 = vpack.c.b16 %v2800, %v2792
    %v3433 = vpack.c.b16 %v2809, %v2801
    %v3434 = vpack.c.b16 %v2810, %v2802
    %v3435 = vpack.c.b16 %v2811, %v2803
    %v3436 = vpack.c.b16 %v2812, %v2804
    %v3437 = vpack.c.b16 %v2813, %v2805
    %v3438 = vpack.c.b16 %v2814, %v2806
    %v3439 = vpack.c.b16 %v2815, %v2807
    %v3440 = vpack.c.b16 %v2816, %v2808
    %v3441 = vpack.c.b16 %v2825, %v2817
    %v3442 = vpack.c.b16 %v2826, %v2818
    %v3443 = vpack.c.b16 %v2827, %v2819
    %v3444 = vpack.c.b16 %v2828, %v2820
    %v3445 = vpack.c.b16 %v2829, %v2821
    %v3446 = vpack.c.b16 %v2830, %v2822
    %v3447 = vpack.c.b16 %v2831, %v2823
    %v3448 = vpack.c.b16 %v2832, %v2824
    %v3449 = vpack.c.b16 %v2841, %v2833
    %v3450 = vpack.c.b16 %v2842, %v2834
    %v3451 = vpack.c.b16 %v2843, %v2835
    %v3452 = vpack.c.b16 %v2844, %v2836
    %v3453 = vpack.c.b16 %v2845, %v2837
    %v3454 = vpack.c.b16 %v2846, %v2838
    %v3455 = vpack.c.b16 %v2847, %v2839
    %v3456 = vpack.c.b16 %v2848, %v2840
    %v3457 = vpack.c.b16 %v2857, %v2849
    %v3458 = vpack.c.b16 %v2858, %v2850
    %v3459 = vpack.c.b16 %v2859, %v2851
    %v3460 = vpack.c.b16 %v2860, %v2852
    %v3461 = vpack.c.b16 %v2861, %v2853
    %v3462 = vpack.c.b16 %v2862, %v2854
    %v3463 = vpack.c.b16 %v2863, %v2855
    %v3464 = vpack.c.b16 %v2864, %v2856
    %v3465 = vpack.c.b16 %v2873, %v2865
    %v3466 = vpack.c.b16 %v2874, %v2866
    %v3467 = vpack.c.b16 %v2875, %v2867
    %v3468 = vpack.c.b16 %v2876, %v2868
    %v3469 = vpack.c.b16 %v2877, %v2869
    %v3470 = vpack.c.b16 %v2878, %v2870
    %v3471 = vpack.c.b16 %v2879, %v2871
    %v3472 = vpack.c.b16 %v2880, %v2872
    %v3473 = vpack.c.b16 %v2889, %v2881
    %v3474 = vpack.c.b16 %v2890, %v2882
    %v3475 = vpack.c.b16 %v2891, %v2883
    %v3476 = vpack.c.b16 %v2892, %v2884
    %v3477 = vpack.c.b16 %v2893, %v2885
    %v3478 = vpack.c.b16 %v2894, %v2886
    %v3479 = vpack.c.b16 %v2895, %v2887
    %v3480 = vpack.c.b16 %v2896, %v2888
    %v3481 = vpack.c.b16 %v2905, %v2897
    %v3482 = vpack.c.b16 %v2906, %v2898
    %v3483 = vpack.c.b16 %v2907, %v2899
    %v3484 = vpack.c.b16 %v2908, %v2900
    %v3485 = vpack.c.b16 %v2909, %v2901
    %v3486 = vpack.c.b16 %v2910, %v2902
    %v3487 = vpack.c.b16 %v2911, %v2903
    %v3488 = vpack.c.b16 %v2912, %v2904
    %v3489 = vpack.c.b16 %v2921, %v2913
    %v3490 = vpack.c.b16 %v2922, %v2914
    %v3491 = vpack.c.b16 %v2923, %v2915
    %v3492 = vpack.c.b16 %v2924, %v2916
    %v3493 = vpack.c.b16 %v2925, %v2917
    %v3494 = vpack.c.b16 %v2926, %v2918
    %v3495 = vpack.c.b16 %v2927, %v2919
    %v3496 = vpack.c.b16 %v2928, %v2920
    %v3497 = vpack.c.b16 %v2937, %v2929
    %v3498 = vpack.c.b16 %v2938, %v2930
    %v3499 = vpack.c.b16 %v2939, %v2931
    %v3500 = vpack.c.b16 %v2940, %v2932
    %v3501 = vpack.c.b16 %v2941, %v2933
    %v3502 = vpack.c.b16 %v2942, %v2934
    %v3503 = vpack.c.b16 %v2943, %v2935
    %v3504 = vpack.c.b16 %v2944, %v2936
    %v3505 = vpack.c.b16 %v2953, %v2945
    %v3506 = vpack.c.b16 %v2954, %v2946
    %v3507 = vpack.c.b16 %v2955, %v2947
    %v3508 = vpack.c.b16 %v2956, %v2948
    %v3509 = vpack.c.b16 %v2957, %v2949
    %v3510 = vpack.c.b16 %v2958, %v2950
    %v3511 = vpack.c.b16 %v2959, %v2951
    %v3512 = vpack.c.b16 %v2960, %v2952
    %v3513 = vpack.c.b16 %v2969, %v2961
    %v3514 = vpack.c.b16 %v2970, %v2962
    %v3515 = vpack.c.b16 %v2971, %v2963
    %v3516 = vpack.c.b16 %v2972, %v2964
    %v3517 = vpack.c.b16 %v2973, %v2965
    %v3518 = vpack.c.b16 %v2974, %v2966
    %v3519 = vpack.c.b16 %v2975, %v2967
    %v3520 = vpack.c.b16 %v2976, %v2968
    %v3521 = vpack.c.b16 %v2985, %v2977
    %v3522 = vpack.c.b16 %v2986, %v2978
    %v3523 = vpack.c.b16 %v2987, %v2979
    %v3524 = vpack.c.b16 %v2988, %v2980
    %v3525 = vpack.c.b16 %v2989, %v2981
    %v3526 = vpack.c.b16 %v2990, %v2982
    %v3527 = vpack.c.b16 %v2991, %v2983
    %v3528 = vpack.c.b16 %v2992, %v2984
    %v3529 = vpack.c.b16 %v3001, %v2993
    %v3530 = vpack.c.b16 %v3002, %v2994
    %v3531 = vpack.c.b16 %v3003, %v2995
    %v3532 = vpack.c.b16 %v3004, %v2996
    %v3533 = vpack.c.b16 %v3005, %v2997
    %v3534 = vpack.c.b16 %v3006, %v2998
    %v3535 = vpack.c.b16 %v3007, %v2999
    %v3536 = vpack.c.b16 %v3008, %v3000
    %v3537 = vpack.c.b16 %v3017, %v3009
    %v3538 = vpack.c.b16 %v3018, %v3010
    %v3539 = vpack.c.b16 %v3019, %v3011
    %v3540 = vpack.c.b16 %v3020, %v3012
    %v3541 = vpack.c.b16 %v3021, %v3013
    %v3542 = vpack.c.b16 %v3022, %v3014
    %v3543 = vpack.c.b16 %v3023, %v3015
    %v3544 = vpack.c.b16 %v3024, %v3016
    %v3545 = vpack.c.b16 %v3033, %v3025
    %v3546 = vpack.c.b16 %v3034, %v3026
    %v3547 = vpack.c.b16 %v3035, %v3027
    %v3548 = vpack.c.b16 %v3036, %v3028
    %v3549 = vpack.c.b16 %v3037, %v3029
    %v3550 = vpack.c.b16 %v3038, %v3030
    %v3551 = vpack.c.b16 %v3039, %v3031
    %v3552 = vpack.c.b16 %v3040, %v3032
    %4065 = vmatprep.subr.bf16.mxu0 %v3042
    %4066 = vmatpush1.bf16.msra.mxu0 %v3041
    %4067 = vmatprep.subr.bf16.mxu0 %v3050
    %4068 = vmatpush1.bf16.msra.mxu0 %v3049
    %4069 = vmatprep.subr.bf16.mxu0 %v3058
    %4070 = vmatpush1.bf16.msra.mxu0 %v3057
    %4071 = vmatprep.subr.bf16.mxu0 %v3066
    %4072 = vmatpush1.bf16.msra.mxu0 %v3065
    %4073 = vmatprep.subr.bf16.mxu0 %v3074
    %4074 = vmatpush1.bf16.msra.mxu0 %v3073
    %4075 = vmatprep.subr.bf16.mxu0 %v3082
    %4076 = vmatpush1.bf16.msra.mxu0 %v3081
    %4077 = vmatprep.subr.bf16.mxu0 %v3090
    %4078 = vmatpush1.bf16.msra.mxu0 %v3089
    %4079 = vmatprep.subr.bf16.mxu0 %v3098
    %4080 = vmatpush1.bf16.msra.mxu0 %v3097
    %4081 = vmatprep.subr.bf16.mxu0 %v3106
    %4082 = vmatpush1.bf16.msra.mxu0 %v3105
    %4083 = vmatprep.subr.bf16.mxu0 %v3114
    %4084 = vmatpush1.bf16.msra.mxu0 %v3113
    %4085 = vmatprep.subr.bf16.mxu0 %v3122
    %4086 = vmatpush1.bf16.msra.mxu0 %v3121
    %4087 = vmatprep.subr.bf16.mxu0 %v3130
    %4088 = vmatpush1.bf16.msra.mxu0 %v3129
    %4089 = vmatprep.subr.bf16.mxu0 %v3138
    %4090 = vmatpush1.bf16.msra.mxu0 %v3137
    %4091 = vmatprep.subr.bf16.mxu0 %v3146
    %4092 = vmatpush1.bf16.msra.mxu0 %v3145
    %4093 = vmatprep.subr.bf16.mxu0 %v3154
    %4094 = vmatpush1.bf16.msra.mxu0 %v3153
    %4095 = vmatprep.subr.bf16.mxu0 %v3162
    %4096 = vmatpush1.bf16.msra.mxu0 %v3161
    %4097 = vmatprep.mubr.bf16.mxu0 %v944
    %4098 = vmatmul.mubr.bf16.gmra.mrb[0].mxu0 %v943
    %v4099 = vpop.f32.mrb[0].mxu0
    %v4100 = vadd.f32 %v1468, %v4099
    %v4101 = vpop.f32.mrb[0].mxu0
    %v4102 = vadd.f32 %v1472, %v4101
    %v4103 = vpop.f32.mrb[0].mxu0
    %v4104 = vadd.f32 %v1468, %v4103
    %v4105 = vpop.f32.mrb[0].mxu0
    %v4106 = vadd.f32 %v1472, %v4105
    %4107 = vdwg.mxu0
    %4108 = vmatprep.subr.bf16.mxu0 %v3170
    %4109 = vmatpush1.bf16.msra.mxu0 %v3169
    %4110 = vmatprep.subr.bf16.mxu0 %v3178
    %4111 = vmatpush1.bf16.msra.mxu0 %v3177
    %4112 = vmatprep.subr.bf16.mxu0 %v3186
    %4113 = vmatpush1.bf16.msra.mxu0 %v3185
    %4114 = vmatprep.subr.bf16.mxu0 %v3194
    %4115 = vmatpush1.bf16.msra.mxu0 %v3193
    %4116 = vmatprep.subr.bf16.mxu0 %v3202
    %4117 = vmatpush1.bf16.msra.mxu0 %v3201
    %4118 = vmatprep.subr.bf16.mxu0 %v3210
    %4119 = vmatpush1.bf16.msra.mxu0 %v3209
    %4120 = vmatprep.subr.bf16.mxu0 %v3218
    %4121 = vmatpush1.bf16.msra.mxu0 %v3217
    %4122 = vmatprep.subr.bf16.mxu0 %v3226
    %4123 = vmatpush1.bf16.msra.mxu0 %v3225
    %4124 = vmatprep.subr.bf16.mxu0 %v3234
    %4125 = vmatpush1.bf16.msra.mxu0 %v3233
    %4126 = vmatprep.subr.bf16.mxu0 %v3242
    %4127 = vmatpush1.bf16.msra.mxu0 %v3241
    %4128 = vmatprep.subr.bf16.mxu0 %v3250
    %4129 = vmatpush1.bf16.msra.mxu0 %v3249
    %4130 = vmatprep.subr.bf16.mxu0 %v3258
    %4131 = vmatpush1.bf16.msra.mxu0 %v3257
    %4132 = vmatprep.subr.bf16.mxu0 %v3266
    %4133 = vmatpush1.bf16.msra.mxu0 %v3265
    %4134 = vmatprep.subr.bf16.mxu0 %v3274
    %4135 = vmatpush1.bf16.msra.mxu0 %v3273
    %4136 = vmatprep.subr.bf16.mxu0 %v3282
    %4137 = vmatpush1.bf16.msra.mxu0 %v3281
    %4138 = vmatprep.subr.bf16.mxu0 %v3290
    %4139 = vmatpush1.bf16.msra.mxu0 %v3289
    %4140 = vmatprep.mubr.bf16.mxu0 %v946
    %4141 = vmatmul.mubr.bf16.gmra.mrb[0].mxu0 %v945
    %v4142 = vpop.f32.mrb[0].mxu0
    %v4143 = vadd.f32 %v4100, %v4142
    %v4144 = vpop.f32.mrb[0].mxu0
    %v4145 = vadd.f32 %v4102, %v4144
    %v4146 = vpop.f32.mrb[0].mxu0
    %v4147 = vadd.f32 %v4104, %v4146
    %v4148 = vpop.f32.mrb[0].mxu0
    %v4149 = vadd.f32 %v4106, %v4148
    %4150 = vdwg.mxu0
    %4151 = vmatprep.subr.bf16.mxu0 %v3298
    %4152 = vmatpush1.bf16.msra.mxu0 %v3297
    %4153 = vmatprep.subr.bf16.mxu0 %v3306
    %4154 = vmatpush1.bf16.msra.mxu0 %v3305
    %4155 = vmatprep.subr.bf16.mxu0 %v3314
    %4156 = vmatpush1.bf16.msra.mxu0 %v3313
    %4157 = vmatprep.subr.bf16.mxu0 %v3322
    %4158 = vmatpush1.bf16.msra.mxu0 %v3321
    %4159 = vmatprep.subr.bf16.mxu0 %v3330
    %4160 = vmatpush1.bf16.msra.mxu0 %v3329
    %4161 = vmatprep.subr.bf16.mxu0 %v3338
    %4162 = vmatpush1.bf16.msra.mxu0 %v3337
    %4163 = vmatprep.subr.bf16.mxu0 %v3346
    %4164 = vmatpush1.bf16.msra.mxu0 %v3345
    %4165 = vmatprep.subr.bf16.mxu0 %v3354
    %4166 = vmatpush1.bf16.msra.mxu0 %v3353
    %4167 = vmatprep.subr.bf16.mxu0 %v3362
    %4168 = vmatpush1.bf16.msra.mxu0 %v3361
    %4169 = vmatprep.subr.bf16.mxu0 %v3370
    %4170 = vmatpush1.bf16.msra.mxu0 %v3369
    %4171 = vmatprep.subr.bf16.mxu0 %v3378
    %4172 = vmatpush1.bf16.msra.mxu0 %v3377
    %4173 = vmatprep.subr.bf16.mxu0 %v3386
    %4174 = vmatpush1.bf16.msra.mxu0 %v3385
    %4175 = vmatprep.subr.bf16.mxu0 %v3394
    %4176 = vmatpush1.bf16.msra.mxu0 %v3393
    %4177 = vmatprep.subr.bf16.mxu0 %v3402
    %4178 = vmatpush1.bf16.msra.mxu0 %v3401
    %4179 = vmatprep.subr.bf16.mxu0 %v3410
    %4180 = vmatpush1.bf16.msra.mxu0 %v3409
    %4181 = vmatprep.subr.bf16.mxu0 %v3418
    %4182 = vmatpush1.bf16.msra.mxu0 %v3417
    %4183 = vmatprep.mubr.bf16.mxu0 %v948
    %4184 = vmatmul.mubr.bf16.gmra.mrb[0].mxu0 %v947
    %v4185 = vpop.f32.mrb[0].mxu0
    %v4186 = vadd.f32 %v4143, %v4185
    %v4187 = vpop.f32.mrb[0].mxu0
    %v4188 = vadd.f32 %v4145, %v4187
    %v4189 = vpop.f32.mrb[0].mxu0
    %v4190 = vadd.f32 %v4147, %v4189
    %v4191 = vpop.f32.mrb[0].mxu0
    %v4192 = vadd.f32 %v4149, %v4191
    %4193 = vdwg.mxu0
    %4194 = vmatprep.subr.bf16.mxu0 %v3426
    %4195 = vmatpush1.bf16.msra.mxu0 %v3425
    %4196 = vmatprep.subr.bf16.mxu0 %v3434
    %4197 = vmatpush1.bf16.msra.mxu0 %v3433
    %4198 = vmatprep.subr.bf16.mxu0 %v3442
    %4199 = vmatpush1.bf16.msra.mxu0 %v3441
    %4200 = vmatprep.subr.bf16.mxu0 %v3450
    %4201 = vmatpush1.bf16.msra.mxu0 %v3449
    %4202 = vmatprep.subr.bf16.mxu0 %v3458
    %4203 = vmatpush1.bf16.msra.mxu0 %v3457
    %4204 = vmatprep.subr.bf16.mxu0 %v3466
    %4205 = vmatpush1.bf16.msra.mxu0 %v3465
    %4206 = vmatprep.subr.bf16.mxu0 %v3474
    %4207 = vmatpush1.bf16.msra.mxu0 %v3473
    %4208 = vmatprep.subr.bf16.mxu0 %v3482
    %4209 = vmatpush1.bf16.msra.mxu0 %v3481
    %4210 = vmatprep.subr.bf16.mxu0 %v3490
    %4211 = vmatpush1.bf16.msra.mxu0 %v3489
    %4212 = vmatprep.subr.bf16.mxu0 %v3498
    %4213 = vmatpush1.bf16.msra.mxu0 %v3497
    %4214 = vmatprep.subr.bf16.mxu0 %v3506
    %4215 = vmatpush1.bf16.msra.mxu0 %v3505
    %4216 = vmatprep.subr.bf16.mxu0 %v3514
    %4217 = vmatpush1.bf16.msra.mxu0 %v3513
    %4218 = vmatprep.subr.bf16.mxu0 %v3522
    %4219 = vmatpush1.bf16.msra.mxu0 %v3521
    %4220 = vmatprep.subr.bf16.mxu0 %v3530
    %4221 = vmatpush1.bf16.msra.mxu0 %v3529
    %4222 = vmatprep.subr.bf16.mxu0 %v3538
    %4223 = vmatpush1.bf16.msra.mxu0 %v3537
    %4224 = vmatprep.subr.bf16.mxu0 %v3546
    %4225 = vmatpush1.bf16.msra.mxu0 %v3545
    %4226 = vmatprep.mubr.bf16.mxu0 %v950
    %4227 = vmatmul.mubr.bf16.gmra.mrb[0].mxu0 %v949
    %v4228 = vpop.f32.mrb[0].mxu0
    %v4229 = vadd.f32 %v4186, %v4228
    %v4230 = vpop.f32.mrb[0].mxu0
    %v4231 = vadd.f32 %v4188, %v4230
    %v4232 = vpop.f32.mrb[0].mxu0
    %v4233 = vadd.f32 %v4190, %v4232
    %v4234 = vpop.f32.mrb[0].mxu0
    %v4235 = vadd.f32 %v4192, %v4234
    %4236 = vdwg.mxu0
    %4237 = vmatprep.subr.bf16.mxu0 %v3044
    %4238 = vmatpush1.bf16.msra.mxu0 %v3043
    %4239 = vmatprep.subr.bf16.mxu0 %v3052
    %4240 = vmatpush1.bf16.msra.mxu0 %v3051
    %4241 = vmatprep.subr.bf16.mxu0 %v3060
    %4242 = vmatpush1.bf16.msra.mxu0 %v3059
    %4243 = vmatprep.subr.bf16.mxu0 %v3068
    %4244 = vmatpush1.bf16.msra.mxu0 %v3067
    %4245 = vmatprep.subr.bf16.mxu0 %v3076
    %4246 = vmatpush1.bf16.msra.mxu0 %v3075
    %4247 = vmatprep.subr.bf16.mxu0 %v3084
    %4248 = vmatpush1.bf16.msra.mxu0 %v3083
    %4249 = vmatprep.subr.bf16.mxu0 %v3092
    %4250 = vmatpush1.bf16.msra.mxu0 %v3091
    %4251 = vmatprep.subr.bf16.mxu0 %v3100
    %4252 = vmatpush1.bf16.msra.mxu0 %v3099
    %4253 = vmatprep.subr.bf16.mxu0 %v3108
    %4254 = vmatpush1.bf16.msra.mxu0 %v3107
    %4255 = vmatprep.subr.bf16.mxu0 %v3116
    %4256 = vmatpush1.bf16.msra.mxu0 %v3115
    %4257 = vmatprep.subr.bf16.mxu0 %v3124
    %4258 = vmatpush1.bf16.msra.mxu0 %v3123
    %4259 = vmatprep.subr.bf16.mxu0 %v3132
    %4260 = vmatpush1.bf16.msra.mxu0 %v3131
    %4261 = vmatprep.subr.bf16.mxu0 %v3140
    %4262 = vmatpush1.bf16.msra.mxu0 %v3139
    %4263 = vmatprep.subr.bf16.mxu0 %v3148
    %4264 = vmatpush1.bf16.msra.mxu0 %v3147
    %4265 = vmatprep.subr.bf16.mxu0 %v3156
    %4266 = vmatpush1.bf16.msra.mxu0 %v3155
    %4267 = vmatprep.subr.bf16.mxu0 %v3164
    %4268 = vmatpush1.bf16.msra.mxu0 %v3163
    %4269 = vmatprep.mubr.bf16.mxu0 %v944
    %4270 = vmatmul.mubr.bf16.gmra.mrb[0].mxu0 %v943
    %v4271 = vpop.f32.mrb[0].mxu0
    %v4272 = vadd.f32 %v1476, %v4271
    %v4273 = vpop.f32.mrb[0].mxu0
    %v4274 = vadd.f32 %v1480, %v4273
    %v4275 = vpop.f32.mrb[0].mxu0
    %v4276 = vadd.f32 %v1476, %v4275
    %v4277 = vpop.f32.mrb[0].mxu0
    %v4278 = vadd.f32 %v1480, %v4277
    %4279 = vdwg.mxu0
    %4280 = vmatprep.subr.bf16.mxu0 %v3172
    %4281 = vmatpush1.bf16.msra.mxu0 %v3171
    %4282 = vmatprep.subr.bf16.mxu0 %v3180
    %4283 = vmatpush1.bf16.msra.mxu0 %v3179
    %4284 = vmatprep.subr.bf16.mxu0 %v3188
    %4285 = vmatpush1.bf16.msra.mxu0 %v3187
    %4286 = vmatprep.subr.bf16.mxu0 %v3196
    %4287 = vmatpush1.bf16.msra.mxu0 %v3195
    %4288 = vmatprep.subr.bf16.mxu0 %v3204
    %4289 = vmatpush1.bf16.msra.mxu0 %v3203
    %4290 = vmatprep.subr.bf16.mxu0 %v3212
    %4291 = vmatpush1.bf16.msra.mxu0 %v3211
    %4292 = vmatprep.subr.bf16.mxu0 %v3220
    %4293 = vmatpush1.bf16.msra.mxu0 %v3219
    %4294 = vmatprep.subr.bf16.mxu0 %v3228
    %4295 = vmatpush1.bf16.msra.mxu0 %v3227
    %4296 = vmatprep.subr.bf16.mxu0 %v3236
    %4297 = vmatpush1.bf16.msra.mxu0 %v3235
    %4298 = vmatprep.subr.bf16.mxu0 %v3244
    %4299 = vmatpush1.bf16.msra.mxu0 %v3243
    %4300 = vmatprep.subr.bf16.mxu0 %v3252
    %4301 = vmatpush1.bf16.msra.mxu0 %v3251
    %4302 = vmatprep.subr.bf16.mxu0 %v3260
    %4303 = vmatpush1.bf16.msra.mxu0 %v3259
    %4304 = vmatprep.subr.bf16.mxu0 %v3268
    %4305 = vmatpush1.bf16.msra.mxu0 %v3267
    %4306 = vmatprep.subr.bf16.mxu0 %v3276
    %4307 = vmatpush1.bf16.msra.mxu0 %v3275
    %4308 = vmatprep.subr.bf16.mxu0 %v3284
    %4309 = vmatpush1.bf16.msra.mxu0 %v3283
    %4310 = vmatprep.subr.bf16.mxu0 %v3292
    %4311 = vmatpush1.bf16.msra.mxu0 %v3291
    %4312 = vmatprep.mubr.bf16.mxu0 %v946
    %4313 = vmatmul.mubr.bf16.gmra.mrb[0].mxu0 %v945
    %v4314 = vpop.f32.mrb[0].mxu0
    %v4315 = vadd.f32 %v4272, %v4314
    %v4316 = vpop.f32.mrb[0].mxu0
    %v4317 = vadd.f32 %v4274, %v4316
    %v4318 = vpop.f32.mrb[0].mxu0
    %v4319 = vadd.f32 %v4276, %v4318
    %v4320 = vpop.f32.mrb[0].mxu0
    %v4321 = vadd.f32 %v4278, %v4320
    %4322 = vdwg.mxu0
    %4323 = vmatprep.subr.bf16.mxu0 %v3300
    %4324 = vmatpush1.bf16.msra.mxu0 %v3299
    %4325 = vmatprep.subr.bf16.mxu0 %v3308
    %4326 = vmatpush1.bf16.msra.mxu0 %v3307
    %4327 = vmatprep.subr.bf16.mxu0 %v3316
    %4328 = vmatpush1.bf16.msra.mxu0 %v3315
    %4329 = vmatprep.subr.bf16.mxu0 %v3324
    %4330 = vmatpush1.bf16.msra.mxu0 %v3323
    %4331 = vmatprep.subr.bf16.mxu0 %v3332
    %4332 = vmatpush1.bf16.msra.mxu0 %v3331
    %4333 = vmatprep.subr.bf16.mxu0 %v3340
    %4334 = vmatpush1.bf16.msra.mxu0 %v3339
    %4335 = vmatprep.subr.bf16.mxu0 %v3348
    %4336 = vmatpush1.bf16.msra.mxu0 %v3347
    %4337 = vmatprep.subr.bf16.mxu0 %v3356
    %4338 = vmatpush1.bf16.msra.mxu0 %v3355
    %4339 = vmatprep.subr.bf16.mxu0 %v3364
    %4340 = vmatpush1.bf16.msra.mxu0 %v3363
    %4341 = vmatprep.subr.bf16.mxu0 %v3372
    %4342 = vmatpush1.bf16.msra.mxu0 %v3371
    %4343 = vmatprep.subr.bf16.mxu0 %v3380
    %4344 = vmatpush1.bf16.msra.mxu0 %v3379
    %4345 = vmatprep.subr.bf16.mxu0 %v3388
    %4346 = vmatpush1.bf16.msra.mxu0 %v3387
    %4347 = vmatprep.subr.bf16.mxu0 %v3396
    %4348 = vmatpush1.bf16.msra.mxu0 %v3395
    %4349 = vmatprep.subr.bf16.mxu0 %v3404
    %4350 = vmatpush1.bf16.msra.mxu0 %v3403
    %4351 = vmatprep.subr.bf16.mxu0 %v3412
    %4352 = vmatpush1.bf16.msra.mxu0 %v3411
    %4353 = vmatprep.subr.bf16.mxu0 %v3420
    %4354 = vmatpush1.bf16.msra.mxu0 %v3419
    %4355 = vmatprep.mubr.bf16.mxu0 %v948
    %4356 = vmatmul.mubr.bf16.gmra.mrb[0].mxu0 %v947
    %v4357 = vpop.f32.mrb[0].mxu0
    %v4358 = vadd.f32 %v4315, %v4357
    %v4359 = vpop.f32.mrb[0].mxu0
    %v4360 = vadd.f32 %v4317, %v4359
    %v4361 = vpop.f32.mrb[0].mxu0
    %v4362 = vadd.f32 %v4319, %v4361
    %v4363 = vpop.f32.mrb[0].mxu0
    %v4364 = vadd.f32 %v4321, %v4363
    %4365 = vdwg.mxu0
    %4366 = vmatprep.subr.bf16.mxu0 %v3428
    %4367 = vmatpush1.bf16.msra.mxu0 %v3427
    %4368 = vmatprep.subr.bf16.mxu0 %v3436
    %4369 = vmatpush1.bf16.msra.mxu0 %v3435
    %4370 = vmatprep.subr.bf16.mxu0 %v3444
    %4371 = vmatpush1.bf16.msra.mxu0 %v3443
    %4372 = vmatprep.subr.bf16.mxu0 %v3452
    %4373 = vmatpush1.bf16.msra.mxu0 %v3451
    %4374 = vmatprep.subr.bf16.mxu0 %v3460
    %4375 = vmatpush1.bf16.msra.mxu0 %v3459
    %4376 = vmatprep.subr.bf16.mxu0 %v3468
    %4377 = vmatpush1.bf16.msra.mxu0 %v3467
    %4378 = vmatprep.subr.bf16.mxu0 %v3476
    %4379 = vmatpush1.bf16.msra.mxu0 %v3475
    %4380 = vmatprep.subr.bf16.mxu0 %v3484
    %4381 = vmatpush1.bf16.msra.mxu0 %v3483
    %4382 = vmatprep.subr.bf16.mxu0 %v3492
    %4383 = vmatpush1.bf16.msra.mxu0 %v3491
    %4384 = vmatprep.subr.bf16.mxu0 %v3500
    %4385 = vmatpush1.bf16.msra.mxu0 %v3499
    %4386 = vmatprep.subr.bf16.mxu0 %v3508
    %4387 = vmatpush1.bf16.msra.mxu0 %v3507
    %4388 = vmatprep.subr.bf16.mxu0 %v3516
    %4389 = vmatpush1.bf16.msra.mxu0 %v3515
    %4390 = vmatprep.subr.bf16.mxu0 %v3524
    %4391 = vmatpush1.bf16.msra.mxu0 %v3523
    %4392 = vmatprep.subr.bf16.mxu0 %v3532
    %4393 = vmatpush1.bf16.msra.mxu0 %v3531
    %4394 = vmatprep.subr.bf16.mxu0 %v3540
    %4395 = vmatpush1.bf16.msra.mxu0 %v3539
    %4396 = vmatprep.subr.bf16.mxu0 %v3548
    %4397 = vmatpush1.bf16.msra.mxu0 %v3547
    %4398 = vmatprep.mubr.bf16.mxu0 %v950
    %4399 = vmatmul.mubr.bf16.gmra.mrb[0].mxu0 %v949
    %v4400 = vpop.f32.mrb[0].mxu0
    %v4401 = vadd.f32 %v4358, %v4400
    %v4402 = vpop.f32.mrb[0].mxu0
    %v4403 = vadd.f32 %v4360, %v4402
    %v4404 = vpop.f32.mrb[0].mxu0
    %v4405 = vadd.f32 %v4362, %v4404
    %v4406 = vpop.f32.mrb[0].mxu0
    %v4407 = vadd.f32 %v4364, %v4406
    %4408 = vdwg.mxu0
    %4409 = vmatprep.subr.bf16.mxu0 %v3046
    %4410 = vmatpush1.bf16.msra.mxu0 %v3045
    %4411 = vmatprep.subr.bf16.mxu0 %v3054
    %4412 = vmatpush1.bf16.msra.mxu0 %v3053
    %4413 = vmatprep.subr.bf16.mxu0 %v3062
    %4414 = vmatpush1.bf16.msra.mxu0 %v3061
    %4415 = vmatprep.subr.bf16.mxu0 %v3070
    %4416 = vmatpush1.bf16.msra.mxu0 %v3069
    %4417 = vmatprep.subr.bf16.mxu0 %v3078
    %4418 = vmatpush1.bf16.msra.mxu0 %v3077
    %4419 = vmatprep.subr.bf16.mxu0 %v3086
    %4420 = vmatpush1.bf16.msra.mxu0 %v3085
    %4421 = vmatprep.subr.bf16.mxu0 %v3094
    %4422 = vmatpush1.bf16.msra.mxu0 %v3093
    %4423 = vmatprep.subr.bf16.mxu0 %v3102
    %4424 = vmatpush1.bf16.msra.mxu0 %v3101
    %4425 = vmatprep.subr.bf16.mxu0 %v3110
    %4426 = vmatpush1.bf16.msra.mxu0 %v3109
    %4427 = vmatprep.subr.bf16.mxu0 %v3118
    %4428 = vmatpush1.bf16.msra.mxu0 %v3117
    %4429 = vmatprep.subr.bf16.mxu0 %v3126
    %4430 = vmatpush1.bf16.msra.mxu0 %v3125
    %4431 = vmatprep.subr.bf16.mxu0 %v3134
    %4432 = vmatpush1.bf16.msra.mxu0 %v3133
    %4433 = vmatprep.subr.bf16.mxu0 %v3142
    %4434 = vmatpush1.bf16.msra.mxu0 %v3141
    %4435 = vmatprep.subr.bf16.mxu0 %v3150
    %4436 = vmatpush1.bf16.msra.mxu0 %v3149
    %4437 = vmatprep.subr.bf16.mxu0 %v3158
    %4438 = vmatpush1.bf16.msra.mxu0 %v3157
    %4439 = vmatprep.subr.bf16.mxu0 %v3166
    %4440 = vmatpush1.bf16.msra.mxu0 %v3165
    %4441 = vmatprep.mubr.bf16.mxu0 %v944
    %4442 = vmatmul.mubr.bf16.gmra.mrb[0].mxu0 %v943
    %v4443 = vpop.f32.mrb[0].mxu0
    %v4444 = vadd.f32 %v1484, %v4443
    %v4445 = vpop.f32.mrb[0].mxu0
    %v4446 = vadd.f32 %v1488, %v4445
    %v4447 = vpop.f32.mrb[0].mxu0
    %v4448 = vadd.f32 %v1484, %v4447
    %v4449 = vpop.f32.mrb[0].mxu0
    %v4450 = vadd.f32 %v1488, %v4449
    %4451 = vdwg.mxu0
    %4452 = vmatprep.subr.bf16.mxu0 %v3174
    %4453 = vmatpush1.bf16.msra.mxu0 %v3173
    %4454 = vmatprep.subr.bf16.mxu0 %v3182
    %4455 = vmatpush1.bf16.msra.mxu0 %v3181
    %4456 = vmatprep.subr.bf16.mxu0 %v3190
    %4457 = vmatpush1.bf16.msra.mxu0 %v3189
    %4458 = vmatprep.subr.bf16.mxu0 %v3198
    %4459 = vmatpush1.bf16.msra.mxu0 %v3197
    %4460 = vmatprep.subr.bf16.mxu0 %v3206
    %4461 = vmatpush1.bf16.msra.mxu0 %v3205
    %4462 = vmatprep.subr.bf16.mxu0 %v3214
    %4463 = vmatpush1.bf16.msra.mxu0 %v3213
    %4464 = vmatprep.subr.bf16.mxu0 %v3222
    %4465 = vmatpush1.bf16.msra.mxu0 %v3221
    %4466 = vmatprep.subr.bf16.mxu0 %v3230
    %4467 = vmatpush1.bf16.msra.mxu0 %v3229
    %4468 = vmatprep.subr.bf16.mxu0 %v3238
    %4469 = vmatpush1.bf16.msra.mxu0 %v3237
    %4470 = vmatprep.subr.bf16.mxu0 %v3246
    %4471 = vmatpush1.bf16.msra.mxu0 %v3245
    %4472 = vmatprep.subr.bf16.mxu0 %v3254
    %4473 = vmatpush1.bf16.msra.mxu0 %v3253
    %4474 = vmatprep.subr.bf16.mxu0 %v3262
    %4475 = vmatpush1.bf16.msra.mxu0 %v3261
    %4476 = vmatprep.subr.bf16.mxu0 %v3270
    %4477 = vmatpush1.bf16.msra.mxu0 %v3269
    %4478 = vmatprep.subr.bf16.mxu0 %v3278
    %4479 = vmatpush1.bf16.msra.mxu0 %v3277
    %4480 = vmatprep.subr.bf16.mxu0 %v3286
    %4481 = vmatpush1.bf16.msra.mxu0 %v3285
    %4482 = vmatprep.subr.bf16.mxu0 %v3294
    %4483 = vmatpush1.bf16.msra.mxu0 %v3293
    %4484 = vmatprep.mubr.bf16.mxu0 %v946
    %4485 = vmatmul.mubr.bf16.gmra.mrb[0].mxu0 %v945
    %v4486 = vpop.f32.mrb[0].mxu0
    %v4487 = vadd.f32 %v4444, %v4486
    %v4488 = vpop.f32.mrb[0].mxu0
    %v4489 = vadd.f32 %v4446, %v4488
    %v4490 = vpop.f32.mrb[0].mxu0
    %v4491 = vadd.f32 %v4448, %v4490
    %v4492 = vpop.f32.mrb[0].mxu0
    %v4493 = vadd.f32 %v4450, %v4492
    %4494 = vdwg.mxu0
    %4495 = vmatprep.subr.bf16.mxu0 %v3302
    %4496 = vmatpush1.bf16.msra.mxu0 %v3301
    %4497 = vmatprep.subr.bf16.mxu0 %v3310
    %4498 = vmatpush1.bf16.msra.mxu0 %v3309
    %4499 = vmatprep.subr.bf16.mxu0 %v3318
    %4500 = vmatpush1.bf16.msra.mxu0 %v3317
    %4501 = vmatprep.subr.bf16.mxu0 %v3326
    %4502 = vmatpush1.bf16.msra.mxu0 %v3325
    %4503 = vmatprep.subr.bf16.mxu0 %v3334
    %4504 = vmatpush1.bf16.msra.mxu0 %v3333
    %4505 = vmatprep.subr.bf16.mxu0 %v3342
    %4506 = vmatpush1.bf16.msra.mxu0 %v3341
    %4507 = vmatprep.subr.bf16.mxu0 %v3350
    %4508 = vmatpush1.bf16.msra.mxu0 %v3349
    %4509 = vmatprep.subr.bf16.mxu0 %v3358
    %4510 = vmatpush1.bf16.msra.mxu0 %v3357
    %4511 = vmatprep.subr.bf16.mxu0 %v3366
    %4512 = vmatpush1.bf16.msra.mxu0 %v3365
    %4513 = vmatprep.subr.bf16.mxu0 %v3374
    %4514 = vmatpush1.bf16.msra.mxu0 %v3373
    %4515 = vmatprep.subr.bf16.mxu0 %v3382
    %4516 = vmatpush1.bf16.msra.mxu0 %v3381
    %4517 = vmatprep.subr.bf16.mxu0 %v3390
    %4518 = vmatpush1.bf16.msra.mxu0 %v3389
    %4519 = vmatprep.subr.bf16.mxu0 %v3398
    %4520 = vmatpush1.bf16.msra.mxu0 %v3397
    %4521 = vmatprep.subr.bf16.mxu0 %v3406
    %4522 = vmatpush1.bf16.msra.mxu0 %v3405
    %4523 = vmatprep.subr.bf16.mxu0 %v3414
    %4524 = vmatpush1.bf16.msra.mxu0 %v3413
    %4525 = vmatprep.subr.bf16.mxu0 %v3422
    %4526 = vmatpush1.bf16.msra.mxu0 %v3421
    %4527 = vmatprep.mubr.bf16.mxu0 %v948
    %4528 = vmatmul.mubr.bf16.gmra.mrb[0].mxu0 %v947
    %v4529 = vpop.f32.mrb[0].mxu0
    %v4530 = vadd.f32 %v4487, %v4529
    %v4531 = vpop.f32.mrb[0].mxu0
    %v4532 = vadd.f32 %v4489, %v4531
    %v4533 = vpop.f32.mrb[0].mxu0
    %v4534 = vadd.f32 %v4491, %v4533
    %v4535 = vpop.f32.mrb[0].mxu0
    %v4536 = vadd.f32 %v4493, %v4535
    %4537 = vdwg.mxu0
    %4538 = vmatprep.subr.bf16.mxu0 %v3430
    %4539 = vmatpush1.bf16.msra.mxu0 %v3429
    %4540 = vmatprep.subr.bf16.mxu0 %v3438
    %4541 = vmatpush1.bf16.msra.mxu0 %v3437
    %4542 = vmatprep.subr.bf16.mxu0 %v3446
    %4543 = vmatpush1.bf16.msra.mxu0 %v3445
    %4544 = vmatprep.subr.bf16.mxu0 %v3454
    %4545 = vmatpush1.bf16.msra.mxu0 %v3453
    %4546 = vmatprep.subr.bf16.mxu0 %v3462
    %4547 = vmatpush1.bf16.msra.mxu0 %v3461
    %4548 = vmatprep.subr.bf16.mxu0 %v3470
    %4549 = vmatpush1.bf16.msra.mxu0 %v3469
    %4550 = vmatprep.subr.bf16.mxu0 %v3478
    %4551 = vmatpush1.bf16.msra.mxu0 %v3477
    %4552 = vmatprep.subr.bf16.mxu0 %v3486
    %4553 = vmatpush1.bf16.msra.mxu0 %v3485
    %4554 = vmatprep.subr.bf16.mxu0 %v3494
    %4555 = vmatpush1.bf16.msra.mxu0 %v3493
    %4556 = vmatprep.subr.bf16.mxu0 %v3502
    %4557 = vmatpush1.bf16.msra.mxu0 %v3501
    %4558 = vmatprep.subr.bf16.mxu0 %v3510
    %4559 = vmatpush1.bf16.msra.mxu0 %v3509
    %4560 = vmatprep.subr.bf16.mxu0 %v3518
    %4561 = vmatpush1.bf16.msra.mxu0 %v3517
    %4562 = vmatprep.subr.bf16.mxu0 %v3526
    %4563 = vmatpush1.bf16.msra.mxu0 %v3525
    %4564 = vmatprep.subr.bf16.mxu0 %v3534
    %4565 = vmatpush1.bf16.msra.mxu0 %v3533
    %4566 = vmatprep.subr.bf16.mxu0 %v3542
    %4567 = vmatpush1.bf16.msra.mxu0 %v3541
    %4568 = vmatprep.subr.bf16.mxu0 %v3550
    %4569 = vmatpush1.bf16.msra.mxu0 %v3549
    %4570 = vmatprep.mubr.bf16.mxu0 %v950
    %4571 = vmatmul.mubr.bf16.gmra.mrb[0].mxu0 %v949
    %v4572 = vpop.f32.mrb[0].mxu0
    %v4573 = vadd.f32 %v4530, %v4572
    %v4574 = vpop.f32.mrb[0].mxu0
    %v4575 = vadd.f32 %v4532, %v4574
    %v4576 = vpop.f32.mrb[0].mxu0
    %v4577 = vadd.f32 %v4534, %v4576
    %v4578 = vpop.f32.mrb[0].mxu0
    %v4579 = vadd.f32 %v4536, %v4578
    %4580 = vdwg.mxu0
    %4581 = vmatprep.subr.bf16.mxu0 %v3048
    %4582 = vmatpush1.bf16.msra.mxu0 %v3047
    %4583 = vmatprep.subr.bf16.mxu0 %v3056
    %4584 = vmatpush1.bf16.msra.mxu0 %v3055
    %4585 = vmatprep.subr.bf16.mxu0 %v3064
    %4586 = vmatpush1.bf16.msra.mxu0 %v3063
    %4587 = vmatprep.subr.bf16.mxu0 %v3072
    %4588 = vmatpush1.bf16.msra.mxu0 %v3071
    %4589 = vmatprep.subr.bf16.mxu0 %v3080
    %4590 = vmatpush1.bf16.msra.mxu0 %v3079
    %4591 = vmatprep.subr.bf16.mxu0 %v3088
    %4592 = vmatpush1.bf16.msra.mxu0 %v3087
    %4593 = vmatprep.subr.bf16.mxu0 %v3096
    %4594 = vmatpush1.bf16.msra.mxu0 %v3095
    %4595 = vmatprep.subr.bf16.mxu0 %v3104
    %4596 = vmatpush1.bf16.msra.mxu0 %v3103
    %4597 = vmatprep.subr.bf16.mxu0 %v3112
    %4598 = vmatpush1.bf16.msra.mxu0 %v3111
    %4599 = vmatprep.subr.bf16.mxu0 %v3120
    %4600 = vmatpush1.bf16.msra.mxu0 %v3119
    %4601 = vmatprep.subr.bf16.mxu0 %v3128
    %4602 = vmatpush1.bf16.msra.mxu0 %v3127
    %4603 = vmatprep.subr.bf16.mxu0 %v3136
    %4604 = vmatpush1.bf16.msra.mxu0 %v3135
    %4605 = vmatprep.subr.bf16.mxu0 %v3144
    %4606 = vmatpush1.bf16.msra.mxu0 %v3143
    %4607 = vmatprep.subr.bf16.mxu0 %v3152
    %4608 = vmatpush1.bf16.msra.mxu0 %v3151
    %4609 = vmatprep.subr.bf16.mxu0 %v3160
    %4610 = vmatpush1.bf16.msra.mxu0 %v3159
    %4611 = vmatprep.subr.bf16.mxu0 %v3168
    %4612 = vmatpush1.bf16.msra.mxu0 %v3167
    %4613 = vmatprep.mubr.bf16.mxu0 %v944
    %4614 = vmatmul.mubr.bf16.gmra.mrb[0].mxu0 %v943
    %v4615 = vpop.f32.mrb[0].mxu0
    %v4616 = vadd.f32 %v1492, %v4615
    %v4617 = vpop.f32.mrb[0].mxu0
    %v4618 = vadd.f32 %v1496, %v4617
    %v4619 = vpop.f32.mrb[0].mxu0
    %v4620 = vadd.f32 %v1492, %v4619
    %v4621 = vpop.f32.mrb[0].mxu0
    %v4622 = vadd.f32 %v1496, %v4621
    %4623 = vdwg.mxu0
    %4624 = vmatprep.subr.bf16.mxu0 %v3176
    %4625 = vmatpush1.bf16.msra.mxu0 %v3175
    %4626 = vmatprep.subr.bf16.mxu0 %v3184
    %4627 = vmatpush1.bf16.msra.mxu0 %v3183
    %4628 = vmatprep.subr.bf16.mxu0 %v3192
    %4629 = vmatpush1.bf16.msra.mxu0 %v3191
    %4630 = vmatprep.subr.bf16.mxu0 %v3200
    %4631 = vmatpush1.bf16.msra.mxu0 %v3199
    %4632 = vmatprep.subr.bf16.mxu0 %v3208
    %4633 = vmatpush1.bf16.msra.mxu0 %v3207
    %4634 = vmatprep.subr.bf16.mxu0 %v3216
    %4635 = vmatpush1.bf16.msra.mxu0 %v3215
    %4636 = vmatprep.subr.bf16.mxu0 %v3224
    %4637 = vmatpush1.bf16.msra.mxu0 %v3223
    %4638 = vmatprep.subr.bf16.mxu0 %v3232
    %4639 = vmatpush1.bf16.msra.mxu0 %v3231
    %4640 = vmatprep.subr.bf16.mxu0 %v3240
    %4641 = vmatpush1.bf16.msra.mxu0 %v3239
    %4642 = vmatprep.subr.bf16.mxu0 %v3248
    %4643 = vmatpush1.bf16.msra.mxu0 %v3247
    %4644 = vmatprep.subr.bf16.mxu0 %v3256
    %4645 = vmatpush1.bf16.msra.mxu0 %v3255
    %4646 = vmatprep.subr.bf16.mxu0 %v3264
    %4647 = vmatpush1.bf16.msra.mxu0 %v3263
    %4648 = vmatprep.subr.bf16.mxu0 %v3272
    %4649 = vmatpush1.bf16.msra.mxu0 %v3271
    %4650 = vmatprep.subr.bf16.mxu0 %v3280
    %4651 = vmatpush1.bf16.msra.mxu0 %v3279
    %4652 = vmatprep.subr.bf16.mxu0 %v3288
    %4653 = vmatpush1.bf16.msra.mxu0 %v3287
    %4654 = vmatprep.subr.bf16.mxu0 %v3296
    %4655 = vmatpush1.bf16.msra.mxu0 %v3295
    %4656 = vmatprep.mubr.bf16.mxu0 %v946
    %4657 = vmatmul.mubr.bf16.gmra.mrb[0].mxu0 %v945
    %v4658 = vpop.f32.mrb[0].mxu0
    %v4659 = vadd.f32 %v4616, %v4658
    %v4660 = vpop.f32.mrb[0].mxu0
    %v4661 = vadd.f32 %v4618, %v4660
    %v4662 = vpop.f32.mrb[0].mxu0
    %v4663 = vadd.f32 %v4620, %v4662
    %v4664 = vpop.f32.mrb[0].mxu0
    %v4665 = vadd.f32 %v4622, %v4664
    %4666 = vdwg.mxu0
    %4667 = vmatprep.subr.bf16.mxu0 %v3304
    %4668 = vmatpush1.bf16.msra.mxu0 %v3303
    %4669 = vmatprep.subr.bf16.mxu0 %v3312
    %4670 = vmatpush1.bf16.msra.mxu0 %v3311
    %4671 = vmatprep.subr.bf16.mxu0 %v3320
    %4672 = vmatpush1.bf16.msra.mxu0 %v3319
    %4673 = vmatprep.subr.bf16.mxu0 %v3328
    %4674 = vmatpush1.bf16.msra.mxu0 %v3327
    %4675 = vmatprep.subr.bf16.mxu0 %v3336
    %4676 = vmatpush1.bf16.msra.mxu0 %v3335
    %4677 = vmatprep.subr.bf16.mxu0 %v3344
    %4678 = vmatpush1.bf16.msra.mxu0 %v3343
    %4679 = vmatprep.subr.bf16.mxu0 %v3352
    %4680 = vmatpush1.bf16.msra.mxu0 %v3351
    %4681 = vmatprep.subr.bf16.mxu0 %v3360
    %4682 = vmatpush1.bf16.msra.mxu0 %v3359
    %4683 = vmatprep.subr.bf16.mxu0 %v3368
    %4684 = vmatpush1.bf16.msra.mxu0 %v3367
    %4685 = vmatprep.subr.bf16.mxu0 %v3376
    %4686 = vmatpush1.bf16.msra.mxu0 %v3375
    %4687 = vmatprep.subr.bf16.mxu0 %v3384
    %4688 = vmatpush1.bf16.msra.mxu0 %v3383
    %4689 = vmatprep.subr.bf16.mxu0 %v3392
    %4690 = vmatpush1.bf16.msra.mxu0 %v3391
    %4691 = vmatprep.subr.bf16.mxu0 %v3400
    %4692 = vmatpush1.bf16.msra.mxu0 %v3399
    %4693 = vmatprep.subr.bf16.mxu0 %v3408
    %4694 = vmatpush1.bf16.msra.mxu0 %v3407
    %4695 = vmatprep.subr.bf16.mxu0 %v3416
    %4696 = vmatpush1.bf16.msra.mxu0 %v3415
    %4697 = vmatprep.subr.bf16.mxu0 %v3424
    %4698 = vmatpush1.bf16.msra.mxu0 %v3423
    %4699 = vmatprep.mubr.bf16.mxu0 %v948
    %4700 = vmatmul.mubr.bf16.gmra.mrb[0].mxu0 %v947
    %v4701 = vpop.f32.mrb[0].mxu0
    %v4702 = vadd.f32 %v4659, %v4701
    %v4703 = vpop.f32.mrb[0].mxu0
    %v4704 = vadd.f32 %v4661, %v4703
    %v4705 = vpop.f32.mrb[0].mxu0
    %v4706 = vadd.f32 %v4663, %v4705
    %v4707 = vpop.f32.mrb[0].mxu0
    %v4708 = vadd.f32 %v4665, %v4707
    %4709 = vdwg.mxu0
    %4710 = vmatprep.subr.bf16.mxu0 %v3432
    %4711 = vmatpush1.bf16.msra.mxu0 %v3431
    %4712 = vmatprep.subr.bf16.mxu0 %v3440
    %4713 = vmatpush1.bf16.msra.mxu0 %v3439
    %4714 = vmatprep.subr.bf16.mxu0 %v3448
    %4715 = vmatpush1.bf16.msra.mxu0 %v3447
    %4716 = vmatprep.subr.bf16.mxu0 %v3456
    %4717 = vmatpush1.bf16.msra.mxu0 %v3455
    %4718 = vmatprep.subr.bf16.mxu0 %v3464
    %4719 = vmatpush1.bf16.msra.mxu0 %v3463
    %4720 = vmatprep.subr.bf16.mxu0 %v3472
    %4721 = vmatpush1.bf16.msra.mxu0 %v3471
    %4722 = vmatprep.subr.bf16.mxu0 %v3480
    %4723 = vmatpush1.bf16.msra.mxu0 %v3479
    %4724 = vmatprep.subr.bf16.mxu0 %v3488
    %4725 = vmatpush1.bf16.msra.mxu0 %v3487
    %4726 = vmatprep.subr.bf16.mxu0 %v3496
    %4727 = vmatpush1.bf16.msra.mxu0 %v3495
    %4728 = vmatprep.subr.bf16.mxu0 %v3504
    %4729 = vmatpush1.bf16.msra.mxu0 %v3503
    %4730 = vmatprep.subr.bf16.mxu0 %v3512
    %4731 = vmatpush1.bf16.msra.mxu0 %v3511
    %4732 = vmatprep.subr.bf16.mxu0 %v3520
    %4733 = vmatpush1.bf16.msra.mxu0 %v3519
    %4734 = vmatprep.subr.bf16.mxu0 %v3528
    %4735 = vmatpush1.bf16.msra.mxu0 %v3527
    %4736 = vmatprep.subr.bf16.mxu0 %v3536
    %4737 = vmatpush1.bf16.msra.mxu0 %v3535
    %4738 = vmatprep.subr.bf16.mxu0 %v3544
    %4739 = vmatpush1.bf16.msra.mxu0 %v3543
    %4740 = vmatprep.subr.bf16.mxu0 %v3552
    %4741 = vmatpush1.bf16.msra.mxu0 %v3551
    %4742 = vmatprep.mubr.bf16.mxu0 %v950
    %4743 = vmatmul.mubr.bf16.gmra.mrb[0].mxu0 %v949
    %v4744 = vpop.f32.mrb[0].mxu0
    %v4745 = vadd.f32 %v4702, %v4744
    %v4746 = vpop.f32.mrb[0].mxu0
    %v4747 = vadd.f32 %v4704, %v4746
    %v4748 = vpop.f32.mrb[0].mxu0
    %v4749 = vadd.f32 %v4706, %v4748
    %v4750 = vpop.f32.mrb[0].mxu0
    %v4751 = vadd.f32 %v4708, %v4750
    %4752 = vdwg.mxu0
    %v4753 = vmax.f32 %v4229, 0.0
    %v4754 = vmax.f32 %v4231, 0.0
    %v4755 = vmax.f32 %v4401, 0.0
    %v4756 = vmax.f32 %v4403, 0.0
    %v4757 = vmax.f32 %v4573, 0.0
    %v4758 = vmax.f32 %v4575, 0.0
    %v4759 = vmax.f32 %v4745, 0.0
    %v4760 = vmax.f32 %v4747, 0.0
    %v4761 = vmax.f32 %v4233, 0.0
    %v4762 = vmax.f32 %v4235, 0.0
    %v4763 = vmax.f32 %v4405, 0.0
    %v4764 = vmax.f32 %v4407, 0.0
    %v4765 = vmax.f32 %v4577, 0.0
    %v4766 = vmax.f32 %v4579, 0.0
    %v4767 = vmax.f32 %v4749, 0.0
    %v4768 = vmax.f32 %v4751, 0.0
    %v4769 = vpack.c.bf16 %v4761, %v4753
    %v4770 = vpack.c.bf16 %v4762, %v4754
    %v4771 = vpack.c.bf16 %v4763, %v4755
    %v4772 = vpack.c.bf16 %v4764, %v4756
    %v4773 = vpack.c.bf16 %v4765, %v4757
    %v4774 = vpack.c.bf16 %v4766, %v4758
    %v4775 = vpack.c.bf16 %v4767, %v4759
    %v4776 = vpack.c.bf16 %v4768, %v4760
    %v4777 = vld [vmem:[#allocation10] sm:$0xff]
    %v4778 = vld [vmem:[#allocation10 + $0x8] sm:$0xff]
    %v4779 = vld [vmem:[#allocation10 + $0x10] sm:$0xff]
    %v4780 = vld [vmem:[#allocation10 + $0x18] sm:$0xff]
    %v4781 = vld [vmem:[#allocation10 + $0x20] sm:$0xff]
    %v4782 = vld [vmem:[#allocation10 + $0x28] sm:$0xff]
    %v4783 = vld [vmem:[#allocation10 + $0x30] sm:$0xff]
    %v4784 = vld [vmem:[#allocation10 + $0x38] sm:$0xff]
    %v4785 = vld [vmem:[#allocation10 + $0x40] sm:$0xff]
    %v4786 = vld [vmem:[#allocation10 + $0x48] sm:$0xff]
    %v4787 = vld [vmem:[#allocation10 + $0x50] sm:$0xff]
    %v4788 = vld [vmem:[#allocation10 + $0x58] sm:$0xff]
    %v4789 = vld [vmem:[#allocation10 + $0x60] sm:$0xff]
    %v4790 = vld [vmem:[#allocation10 + $0x68] sm:$0xff]
    %v4791 = vld [vmem:[#allocation10 + $0x70] sm:$0xff]
    %v4792 = vld [vmem:[#allocation10 + $0x78] sm:$0xff]
    %v4793 = vld [vmem:[#allocation10 + $0x80] sm:$0xff]
    %v4794 = vld [vmem:[#allocation10 + $0x88] sm:$0xff]
    %v4795 = vld [vmem:[#allocation10 + $0x90] sm:$0xff]
    %v4796 = vld [vmem:[#allocation10 + $0x98] sm:$0xff]
    %v4797 = vld [vmem:[#allocation10 + $0xa0] sm:$0xff]
    %v4798 = vld [vmem:[#allocation10 + $0xa8] sm:$0xff]
    %v4799 = vld [vmem:[#allocation10 + $0xb0] sm:$0xff]
    %v4800 = vld [vmem:[#allocation10 + $0xb8] sm:$0xff]
    %v4801 = vld [vmem:[#allocation10 + $0xc0] sm:$0xff]
    %v4802 = vld [vmem:[#allocation10 + $0xc8] sm:$0xff]
    %v4803 = vld [vmem:[#allocation10 + $0xd0] sm:$0xff]
    %v4804 = vld [vmem:[#allocation10 + $0xd8] sm:$0xff]
    %v4805 = vld [vmem:[#allocation10 + $0xe0] sm:$0xff]
    %v4806 = vld [vmem:[#allocation10 + $0xe8] sm:$0xff]
    %v4807 = vld [vmem:[#allocation10 + $0xf0] sm:$0xff]
    %v4808 = vld [vmem:[#allocation10 + $0xf8] sm:$0xff]
    %v4809 = vld [vmem:[#allocation10 + $0x100] sm:$0xff]
    %v4810 = vld [vmem:[#allocation10 + $0x108] sm:$0xff]
    %v4811 = vld [vmem:[#allocation10 + $0x110] sm:$0xff]
    %v4812 = vld [vmem:[#allocation10 + $0x118] sm:$0xff]
    %v4813 = vld [vmem:[#allocation10 + $0x120] sm:$0xff]
    %v4814 = vld [vmem:[#allocation10 + $0x128] sm:$0xff]
    %v4815 = vld [vmem:[#allocation10 + $0x130] sm:$0xff]
    %v4816 = vld [vmem:[#allocation10 + $0x138] sm:$0xff]
    %v4817 = vld [vmem:[#allocation10 + $0x140] sm:$0xff]
    %v4818 = vld [vmem:[#allocation10 + $0x148] sm:$0xff]
    %v4819 = vld [vmem:[#allocation10 + $0x150] sm:$0xff]
    %v4820 = vld [vmem:[#allocation10 + $0x158] sm:$0xff]
    %v4821 = vld [vmem:[#allocation10 + $0x160] sm:$0xff]
    %v4822 = vld [vmem:[#allocation10 + $0x168] sm:$0xff]
    %v4823 = vld [vmem:[#allocation10 + $0x170] sm:$0xff]
    %v4824 = vld [vmem:[#allocation10 + $0x178] sm:$0xff]
    %v4825 = vld [vmem:[#allocation10 + $0x180] sm:$0xff]
    %v4826 = vld [vmem:[#allocation10 + $0x188] sm:$0xff]
    %v4827 = vld [vmem:[#allocation10 + $0x190] sm:$0xff]
    %v4828 = vld [vmem:[#allocation10 + $0x198] sm:$0xff]
    %v4829 = vld [vmem:[#allocation10 + $0x1a0] sm:$0xff]
    %v4830 = vld [vmem:[#allocation10 + $0x1a8] sm:$0xff]
    %v4831 = vld [vmem:[#allocation10 + $0x1b0] sm:$0xff]
    %v4832 = vld [vmem:[#allocation10 + $0x1b8] sm:$0xff]
    %v4833 = vld [vmem:[#allocation10 + $0x1c0] sm:$0xff]
    %v4834 = vld [vmem:[#allocation10 + $0x1c8] sm:$0xff]
    %v4835 = vld [vmem:[#allocation10 + $0x1d0] sm:$0xff]
    %v4836 = vld [vmem:[#allocation10 + $0x1d8] sm:$0xff]
    %v4837 = vld [vmem:[#allocation10 + $0x1e0] sm:$0xff]
    %v4838 = vld [vmem:[#allocation10 + $0x1e8] sm:$0xff]
    %v4839 = vld [vmem:[#allocation10 + $0x1f0] sm:$0xff]
    %v4840 = vld [vmem:[#allocation10 + $0x1f8] sm:$0xff]
    %v4841 = vld [vmem:[#allocation10 + $0x200] sm:$0xff]
    %v4842 = vld [vmem:[#allocation10 + $0x208] sm:$0xff]
    %v4843 = vld [vmem:[#allocation10 + $0x210] sm:$0xff]
    %v4844 = vld [vmem:[#allocation10 + $0x218] sm:$0xff]
    %v4845 = vld [vmem:[#allocation10 + $0x220] sm:$0xff]
    %v4846 = vld [vmem:[#allocation10 + $0x228] sm:$0xff]
    %v4847 = vld [vmem:[#allocation10 + $0x230] sm:$0xff]
    %v4848 = vld [vmem:[#allocation10 + $0x238] sm:$0xff]
    %v4849 = vld [vmem:[#allocation10 + $0x240] sm:$0xff]
    %v4850 = vld [vmem:[#allocation10 + $0x248] sm:$0xff]
    %v4851 = vld [vmem:[#allocation10 + $0x250] sm:$0xff]
    %v4852 = vld [vmem:[#allocation10 + $0x258] sm:$0xff]
    %v4853 = vld [vmem:[#allocation10 + $0x260] sm:$0xff]
    %v4854 = vld [vmem:[#allocation10 + $0x268] sm:$0xff]
    %v4855 = vld [vmem:[#allocation10 + $0x270] sm:$0xff]
    %v4856 = vld [vmem:[#allocation10 + $0x278] sm:$0xff]
    %v4857 = vld [vmem:[#allocation10 + $0x280] sm:$0xff]
    %v4858 = vld [vmem:[#allocation10 + $0x288] sm:$0xff]
    %v4859 = vld [vmem:[#allocation10 + $0x290] sm:$0xff]
    %v4860 = vld [vmem:[#allocation10 + $0x298] sm:$0xff]
    %v4861 = vld [vmem:[#allocation10 + $0x2a0] sm:$0xff]
    %v4862 = vld [vmem:[#allocation10 + $0x2a8] sm:$0xff]
    %v4863 = vld [vmem:[#allocation10 + $0x2b0] sm:$0xff]
    %v4864 = vld [vmem:[#allocation10 + $0x2b8] sm:$0xff]
    %v4865 = vld [vmem:[#allocation10 + $0x2c0] sm:$0xff]
    %v4866 = vld [vmem:[#allocation10 + $0x2c8] sm:$0xff]
    %v4867 = vld [vmem:[#allocation10 + $0x2d0] sm:$0xff]
    %v4868 = vld [vmem:[#allocation10 + $0x2d8] sm:$0xff]
    %v4869 = vld [vmem:[#allocation10 + $0x2e0] sm:$0xff]
    %v4870 = vld [vmem:[#allocation10 + $0x2e8] sm:$0xff]
    %v4871 = vld [vmem:[#allocation10 + $0x2f0] sm:$0xff]
    %v4872 = vld [vmem:[#allocation10 + $0x2f8] sm:$0xff]
    %v4873 = vld [vmem:[#allocation10 + $0x300] sm:$0xff]
    %v4874 = vld [vmem:[#allocation10 + $0x308] sm:$0xff]
    %v4875 = vld [vmem:[#allocation10 + $0x310] sm:$0xff]
    %v4876 = vld [vmem:[#allocation10 + $0x318] sm:$0xff]
    %v4877 = vld [vmem:[#allocation10 + $0x320] sm:$0xff]
    %v4878 = vld [vmem:[#allocation10 + $0x328] sm:$0xff]
    %v4879 = vld [vmem:[#allocation10 + $0x330] sm:$0xff]
    %v4880 = vld [vmem:[#allocation10 + $0x338] sm:$0xff]
    %v4881 = vld [vmem:[#allocation10 + $0x340] sm:$0xff]
    %v4882 = vld [vmem:[#allocation10 + $0x348] sm:$0xff]
    %v4883 = vld [vmem:[#allocation10 + $0x350] sm:$0xff]
    %v4884 = vld [vmem:[#allocation10 + $0x358] sm:$0xff]
    %v4885 = vld [vmem:[#allocation10 + $0x360] sm:$0xff]
    %v4886 = vld [vmem:[#allocation10 + $0x368] sm:$0xff]
    %v4887 = vld [vmem:[#allocation10 + $0x370] sm:$0xff]
    %v4888 = vld [vmem:[#allocation10 + $0x378] sm:$0xff]
    %v4889 = vld [vmem:[#allocation10 + $0x380] sm:$0xff]
    %v4890 = vld [vmem:[#allocation10 + $0x388] sm:$0xff]
    %v4891 = vld [vmem:[#allocation10 + $0x390] sm:$0xff]
    %v4892 = vld [vmem:[#allocation10 + $0x398] sm:$0xff]
    %v4893 = vld [vmem:[#allocation10 + $0x3a0] sm:$0xff]
    %v4894 = vld [vmem:[#allocation10 + $0x3a8] sm:$0xff]
    %v4895 = vld [vmem:[#allocation10 + $0x3b0] sm:$0xff]
    %v4896 = vld [vmem:[#allocation10 + $0x3b8] sm:$0xff]
    %v4897 = vld [vmem:[#allocation10 + $0x3c0] sm:$0xff]
    %v4898 = vld [vmem:[#allocation10 + $0x3c8] sm:$0xff]
    %v4899 = vld [vmem:[#allocation10 + $0x3d0] sm:$0xff]
    %v4900 = vld [vmem:[#allocation10 + $0x3d8] sm:$0xff]
    %v4901 = vld [vmem:[#allocation10 + $0x3e0] sm:$0xff]
    %v4902 = vld [vmem:[#allocation10 + $0x3e8] sm:$0xff]
    %v4903 = vld [vmem:[#allocation10 + $0x3f0] sm:$0xff]
    %v4904 = vld [vmem:[#allocation10 + $0x3f8] sm:$0xff]
    %v4905 = vld [vmem:[#allocation12] sm:$0x3]
    %v4907 = vlaneseq
    %v4908 = vshrl.u32 %v4907, 7
    %v4909 = vsub.s32 0, %v4908
    %v4910 = vrot.slane %v4905, %v4909
    %v4911 = vlaneseq
    %v4912 = vshrl.u32 %v4911, 7
    %v4913 = vsub.s32 1, %v4912
    %v4914 = vrot.slane %v4905, %v4913
    %v5045 = vunpack.c.l.b16 %v4777
    %v5046 = vunpack.c.h.b16 %v4777
    %v5047 = vunpack.c.l.b16 %v4778
    %v5048 = vunpack.c.h.b16 %v4778
    %v5049 = vunpack.c.l.b16 %v4779
    %v5050 = vunpack.c.h.b16 %v4779
    %v5051 = vunpack.c.l.b16 %v4780
    %v5052 = vunpack.c.h.b16 %v4780
    %v5053 = vunpack.c.l.b16 %v4781
    %v5054 = vunpack.c.h.b16 %v4781
    %v5055 = vunpack.c.l.b16 %v4782
    %v5056 = vunpack.c.h.b16 %v4782
    %v5057 = vunpack.c.l.b16 %v4783
    %v5058 = vunpack.c.h.b16 %v4783
    %v5059 = vunpack.c.l.b16 %v4784
    %v5060 = vunpack.c.h.b16 %v4784
    %v5061 = vunpack.c.l.b16 %v4785
    %v5062 = vunpack.c.h.b16 %v4785
    %v5063 = vunpack.c.l.b16 %v4786
    %v5064 = vunpack.c.h.b16 %v4786
    %v5065 = vunpack.c.l.b16 %v4787
    %v5066 = vunpack.c.h.b16 %v4787
    %v5067 = vunpack.c.l.b16 %v4788
    %v5068 = vunpack.c.h.b16 %v4788
    %v5069 = vunpack.c.l.b16 %v4789
    %v5070 = vunpack.c.h.b16 %v4789
    %v5071 = vunpack.c.l.b16 %v4790
    %v5072 = vunpack.c.h.b16 %v4790
    %v5073 = vunpack.c.l.b16 %v4791
    %v5074 = vunpack.c.h.b16 %v4791
    %v5075 = vunpack.c.l.b16 %v4792
    %v5076 = vunpack.c.h.b16 %v4792
    %v5077 = vunpack.c.l.b16 %v4793
    %v5078 = vunpack.c.h.b16 %v4793
    %v5079 = vunpack.c.l.b16 %v4794
    %v5080 = vunpack.c.h.b16 %v4794
    %v5081 = vunpack.c.l.b16 %v4795
    %v5082 = vunpack.c.h.b16 %v4795
    %v5083 = vunpack.c.l.b16 %v4796
    %v5084 = vunpack.c.h.b16 %v4796
    %v5085 = vunpack.c.l.b16 %v4797
    %v5086 = vunpack.c.h.b16 %v4797
    %v5087 = vunpack.c.l.b16 %v4798
    %v5088 = vunpack.c.h.b16 %v4798
    %v5089 = vunpack.c.l.b16 %v4799
    %v5090 = vunpack.c.h.b16 %v4799
    %v5091 = vunpack.c.l.b16 %v4800
    %v5092 = vunpack.c.h.b16 %v4800
    %v5093 = vunpack.c.l.b16 %v4801
    %v5094 = vunpack.c.h.b16 %v4801
    %v5095 = vunpack.c.l.b16 %v4802
    %v5096 = vunpack.c.h.b16 %v4802
    %v5097 = vunpack.c.l.b16 %v4803
    %v5098 = vunpack.c.h.b16 %v4803
    %v5099 = vunpack.c.l.b16 %v4804
    %v5100 = vunpack.c.h.b16 %v4804
    %v5101 = vunpack.c.l.b16 %v4805
    %v5102 = vunpack.c.h.b16 %v4805
    %v5103 = vunpack.c.l.b16 %v4806
    %v5104 = vunpack.c.h.b16 %v4806
    %v5105 = vunpack.c.l.b16 %v4807
    %v5106 = vunpack.c.h.b16 %v4807
    %v5107 = vunpack.c.l.b16 %v4808
    %v5108 = vunpack.c.h.b16 %v4808
    %v5109 = vunpack.c.l.b16 %v4809
    %v5110 = vunpack.c.h.b16 %v4809
    %v5111 = vunpack.c.l.b16 %v4810
    %v5112 = vunpack.c.h.b16 %v4810
    %v5113 = vunpack.c.l.b16 %v4811
    %v5114 = vunpack.c.h.b16 %v4811
    %v5115 = vunpack.c.l.b16 %v4812
    %v5116 = vunpack.c.h.b16 %v4812
    %v5117 = vunpack.c.l.b16 %v4813
    %v5118 = vunpack.c.h.b16 %v4813
    %v5119 = vunpack.c.l.b16 %v4814
    %v5120 = vunpack.c.h.b16 %v4814
    %v5121 = vunpack.c.l.b16 %v4815
    %v5122 = vunpack.c.h.b16 %v4815
    %v5123 = vunpack.c.l.b16 %v4816
    %v5124 = vunpack.c.h.b16 %v4816
    %v5125 = vunpack.c.l.b16 %v4817
    %v5126 = vunpack.c.h.b16 %v4817
    %v5127 = vunpack.c.l.b16 %v4818
    %v5128 = vunpack.c.h.b16 %v4818
    %v5129 = vunpack.c.l.b16 %v4819
    %v5130 = vunpack.c.h.b16 %v4819
    %v5131 = vunpack.c.l.b16 %v4820
    %v5132 = vunpack.c.h.b16 %v4820
    %v5133 = vunpack.c.l.b16 %v4821
    %v5134 = vunpack.c.h.b16 %v4821
    %v5135 = vunpack.c.l.b16 %v4822
    %v5136 = vunpack.c.h.b16 %v4822
    %v5137 = vunpack.c.l.b16 %v4823
    %v5138 = vunpack.c.h.b16 %v4823
    %v5139 = vunpack.c.l.b16 %v4824
    %v5140 = vunpack.c.h.b16 %v4824
    %v5141 = vunpack.c.l.b16 %v4825
    %v5142 = vunpack.c.h.b16 %v4825
    %v5143 = vunpack.c.l.b16 %v4826
    %v5144 = vunpack.c.h.b16 %v4826
    %v5145 = vunpack.c.l.b16 %v4827
    %v5146 = vunpack.c.h.b16 %v4827
    %v5147 = vunpack.c.l.b16 %v4828
    %v5148 = vunpack.c.h.b16 %v4828
    %v5149 = vunpack.c.l.b16 %v4829
    %v5150 = vunpack.c.h.b16 %v4829
    %v5151 = vunpack.c.l.b16 %v4830
    %v5152 = vunpack.c.h.b16 %v4830
    %v5153 = vunpack.c.l.b16 %v4831
    %v5154 = vunpack.c.h.b16 %v4831
    %v5155 = vunpack.c.l.b16 %v4832
    %v5156 = vunpack.c.h.b16 %v4832
    %v5157 = vunpack.c.l.b16 %v4833
    %v5158 = vunpack.c.h.b16 %v4833
    %v5159 = vunpack.c.l.b16 %v4834
    %v5160 = vunpack.c.h.b16 %v4834
    %v5161 = vunpack.c.l.b16 %v4835
    %v5162 = vunpack.c.h.b16 %v4835
    %v5163 = vunpack.c.l.b16 %v4836
    %v5164 = vunpack.c.h.b16 %v4836
    %v5165 = vunpack.c.l.b16 %v4837
    %v5166 = vunpack.c.h.b16 %v4837
    %v5167 = vunpack.c.l.b16 %v4838
    %v5168 = vunpack.c.h.b16 %v4838
    %v5169 = vunpack.c.l.b16 %v4839
    %v5170 = vunpack.c.h.b16 %v4839
    %v5171 = vunpack.c.l.b16 %v4840
    %v5172 = vunpack.c.h.b16 %v4840
    %v5173 = vunpack.c.l.b16 %v4841
    %v5174 = vunpack.c.h.b16 %v4841
    %v5175 = vunpack.c.l.b16 %v4842
    %v5176 = vunpack.c.h.b16 %v4842
    %v5177 = vunpack.c.l.b16 %v4843
    %v5178 = vunpack.c.h.b16 %v4843
    %v5179 = vunpack.c.l.b16 %v4844
    %v5180 = vunpack.c.h.b16 %v4844
    %v5181 = vunpack.c.l.b16 %v4845
    %v5182 = vunpack.c.h.b16 %v4845
    %v5183 = vunpack.c.l.b16 %v4846
    %v5184 = vunpack.c.h.b16 %v4846
    %v5185 = vunpack.c.l.b16 %v4847
    %v5186 = vunpack.c.h.b16 %v4847
    %v5187 = vunpack.c.l.b16 %v4848
    %v5188 = vunpack.c.h.b16 %v4848
    %v5189 = vunpack.c.l.b16 %v4849
    %v5190 = vunpack.c.h.b16 %v4849
    %v5191 = vunpack.c.l.b16 %v4850
    %v5192 = vunpack.c.h.b16 %v4850
    %v5193 = vunpack.c.l.b16 %v4851
    %v5194 = vunpack.c.h.b16 %v4851
    %v5195 = vunpack.c.l.b16 %v4852
    %v5196 = vunpack.c.h.b16 %v4852
    %v5197 = vunpack.c.l.b16 %v4853
    %v5198 = vunpack.c.h.b16 %v4853
    %v5199 = vunpack.c.l.b16 %v4854
    %v5200 = vunpack.c.h.b16 %v4854
    %v5201 = vunpack.c.l.b16 %v4855
    %v5202 = vunpack.c.h.b16 %v4855
    %v5203 = vunpack.c.l.b16 %v4856
    %v5204 = vunpack.c.h.b16 %v4856
    %v5205 = vunpack.c.l.b16 %v4857
    %v5206 = vunpack.c.h.b16 %v4857
    %v5207 = vunpack.c.l.b16 %v4858
    %v5208 = vunpack.c.h.b16 %v4858
    %v5209 = vunpack.c.l.b16 %v4859
    %v5210 = vunpack.c.h.b16 %v4859
    %v5211 = vunpack.c.l.b16 %v4860
    %v5212 = vunpack.c.h.b16 %v4860
    %v5213 = vunpack.c.l.b16 %v4861
    %v5214 = vunpack.c.h.b16 %v4861
    %v5215 = vunpack.c.l.b16 %v4862
    %v5216 = vunpack.c.h.b16 %v4862
    %v5217 = vunpack.c.l.b16 %v4863
    %v5218 = vunpack.c.h.b16 %v4863
    %v5219 = vunpack.c.l.b16 %v4864
    %v5220 = vunpack.c.h.b16 %v4864
    %v5221 = vunpack.c.l.b16 %v4865
    %v5222 = vunpack.c.h.b16 %v4865
    %v5223 = vunpack.c.l.b16 %v4866
    %v5224 = vunpack.c.h.b16 %v4866
    %v5225 = vunpack.c.l.b16 %v4867
    %v5226 = vunpack.c.h.b16 %v4867
    %v5227 = vunpack.c.l.b16 %v4868
    %v5228 = vunpack.c.h.b16 %v4868
    %v5229 = vunpack.c.l.b16 %v4869
    %v5230 = vunpack.c.h.b16 %v4869
    %v5231 = vunpack.c.l.b16 %v4870
    %v5232 = vunpack.c.h.b16 %v4870
    %v5233 = vunpack.c.l.b16 %v4871
    %v5234 = vunpack.c.h.b16 %v4871
    %v5235 = vunpack.c.l.b16 %v4872
    %v5236 = vunpack.c.h.b16 %v4872
    %v5237 = vunpack.c.l.b16 %v4873
    %v5238 = vunpack.c.h.b16 %v4873
    %v5239 = vunpack.c.l.b16 %v4874
    %v5240 = vunpack.c.h.b16 %v4874
    %v5241 = vunpack.c.l.b16 %v4875
    %v5242 = vunpack.c.h.b16 %v4875
    %v5243 = vunpack.c.l.b16 %v4876
    %v5244 = vunpack.c.h.b16 %v4876
    %v5245 = vunpack.c.l.b16 %v4877
    %v5246 = vunpack.c.h.b16 %v4877
    %v5247 = vunpack.c.l.b16 %v4878
    %v5248 = vunpack.c.h.b16 %v4878
    %v5249 = vunpack.c.l.b16 %v4879
    %v5250 = vunpack.c.h.b16 %v4879
    %v5251 = vunpack.c.l.b16 %v4880
    %v5252 = vunpack.c.h.b16 %v4880
    %v5253 = vunpack.c.l.b16 %v4881
    %v5254 = vunpack.c.h.b16 %v4881
    %v5255 = vunpack.c.l.b16 %v4882
    %v5256 = vunpack.c.h.b16 %v4882
    %v5257 = vunpack.c.l.b16 %v4883
    %v5258 = vunpack.c.h.b16 %v4883
    %v5259 = vunpack.c.l.b16 %v4884
    %v5260 = vunpack.c.h.b16 %v4884
    %v5261 = vunpack.c.l.b16 %v4885
    %v5262 = vunpack.c.h.b16 %v4885
    %v5263 = vunpack.c.l.b16 %v4886
    %v5264 = vunpack.c.h.b16 %v4886
    %v5265 = vunpack.c.l.b16 %v4887
    %v5266 = vunpack.c.h.b16 %v4887
    %v5267 = vunpack.c.l.b16 %v4888
    %v5268 = vunpack.c.h.b16 %v4888
    %v5269 = vunpack.c.l.b16 %v4889
    %v5270 = vunpack.c.h.b16 %v4889
    %v5271 = vunpack.c.l.b16 %v4890
    %v5272 = vunpack.c.h.b16 %v4890
    %v5273 = vunpack.c.l.b16 %v4891
    %v5274 = vunpack.c.h.b16 %v4891
    %v5275 = vunpack.c.l.b16 %v4892
    %v5276 = vunpack.c.h.b16 %v4892
    %v5277 = vunpack.c.l.b16 %v4893
    %v5278 = vunpack.c.h.b16 %v4893
    %v5279 = vunpack.c.l.b16 %v4894
    %v5280 = vunpack.c.h.b16 %v4894
    %v5281 = vunpack.c.l.b16 %v4895
    %v5282 = vunpack.c.h.b16 %v4895
    %v5283 = vunpack.c.l.b16 %v4896
    %v5284 = vunpack.c.h.b16 %v4896
    %v5285 = vunpack.c.l.b16 %v4897
    %v5286 = vunpack.c.h.b16 %v4897
    %v5287 = vunpack.c.l.b16 %v4898
    %v5288 = vunpack.c.h.b16 %v4898
    %v5289 = vunpack.c.l.b16 %v4899
    %v5290 = vunpack.c.h.b16 %v4899
    %v5291 = vunpack.c.l.b16 %v4900
    %v5292 = vunpack.c.h.b16 %v4900
    %v5293 = vunpack.c.l.b16 %v4901
    %v5294 = vunpack.c.h.b16 %v4901
    %v5295 = vunpack.c.l.b16 %v4902
    %v5296 = vunpack.c.h.b16 %v4902
    %v5297 = vunpack.c.l.b16 %v4903
    %v5298 = vunpack.c.h.b16 %v4903
    %v5299 = vunpack.c.l.b16 %v4904
    %v5300 = vunpack.c.h.b16 %v4904
    %v5301 = vpack.c.b16 %v5047, %v5045
    %v5302 = vpack.c.b16 %v5048, %v5046
    %v5303 = vpack.c.b16 %v5051, %v5049
    %v5304 = vpack.c.b16 %v5052, %v5050
    %v5305 = vpack.c.b16 %v5055, %v5053
    %v5306 = vpack.c.b16 %v5056, %v5054
    %v5307 = vpack.c.b16 %v5059, %v5057
    %v5308 = vpack.c.b16 %v5060, %v5058
    %v5309 = vpack.c.b16 %v5063, %v5061
    %v5310 = vpack.c.b16 %v5064, %v5062
    %v5311 = vpack.c.b16 %v5067, %v5065
    %v5312 = vpack.c.b16 %v5068, %v5066
    %v5313 = vpack.c.b16 %v5071, %v5069
    %v5314 = vpack.c.b16 %v5072, %v5070
    %v5315 = vpack.c.b16 %v5075, %v5073
    %v5316 = vpack.c.b16 %v5076, %v5074
    %v5317 = vpack.c.b16 %v5079, %v5077
    %v5318 = vpack.c.b16 %v5080, %v5078
    %v5319 = vpack.c.b16 %v5083, %v5081
    %v5320 = vpack.c.b16 %v5084, %v5082
    %v5321 = vpack.c.b16 %v5087, %v5085
    %v5322 = vpack.c.b16 %v5088, %v5086
    %v5323 = vpack.c.b16 %v5091, %v5089
    %v5324 = vpack.c.b16 %v5092, %v5090
    %v5325 = vpack.c.b16 %v5095, %v5093
    %v5326 = vpack.c.b16 %v5096, %v5094
    %v5327 = vpack.c.b16 %v5099, %v5097
    %v5328 = vpack.c.b16 %v5100, %v5098
    %v5329 = vpack.c.b16 %v5103, %v5101
    %v5330 = vpack.c.b16 %v5104, %v5102
    %v5331 = vpack.c.b16 %v5107, %v5105
    %v5332 = vpack.c.b16 %v5108, %v5106
    %v5333 = vpack.c.b16 %v5111, %v5109
    %v5334 = vpack.c.b16 %v5112, %v5110
    %v5335 = vpack.c.b16 %v5115, %v5113
    %v5336 = vpack.c.b16 %v5116, %v5114
    %v5337 = vpack.c.b16 %v5119, %v5117
    %v5338 = vpack.c.b16 %v5120, %v5118
    %v5339 = vpack.c.b16 %v5123, %v5121
    %v5340 = vpack.c.b16 %v5124, %v5122
    %v5341 = vpack.c.b16 %v5127, %v5125
    %v5342 = vpack.c.b16 %v5128, %v5126
    %v5343 = vpack.c.b16 %v5131, %v5129
    %v5344 = vpack.c.b16 %v5132, %v5130
    %v5345 = vpack.c.b16 %v5135, %v5133
    %v5346 = vpack.c.b16 %v5136, %v5134
    %v5347 = vpack.c.b16 %v5139, %v5137
    %v5348 = vpack.c.b16 %v5140, %v5138
    %v5349 = vpack.c.b16 %v5143, %v5141
    %v5350 = vpack.c.b16 %v5144, %v5142
    %v5351 = vpack.c.b16 %v5147, %v5145
    %v5352 = vpack.c.b16 %v5148, %v5146
    %v5353 = vpack.c.b16 %v5151, %v5149
    %v5354 = vpack.c.b16 %v5152, %v5150
    %v5355 = vpack.c.b16 %v5155, %v5153
    %v5356 = vpack.c.b16 %v5156, %v5154
    %v5357 = vpack.c.b16 %v5159, %v5157
    %v5358 = vpack.c.b16 %v5160, %v5158
    %v5359 = vpack.c.b16 %v5163, %v5161
    %v5360 = vpack.c.b16 %v5164, %v5162
    %v5361 = vpack.c.b16 %v5167, %v5165
    %v5362 = vpack.c.b16 %v5168, %v5166
    %v5363 = vpack.c.b16 %v5171, %v5169
    %v5364 = vpack.c.b16 %v5172, %v5170
    %v5365 = vpack.c.b16 %v5175, %v5173
    %v5366 = vpack.c.b16 %v5176, %v5174
    %v5367 = vpack.c.b16 %v5179, %v5177
    %v5368 = vpack.c.b16 %v5180, %v5178
    %v5369 = vpack.c.b16 %v5183, %v5181
    %v5370 = vpack.c.b16 %v5184, %v5182
    %v5371 = vpack.c.b16 %v5187, %v5185
    %v5372 = vpack.c.b16 %v5188, %v5186
    %v5373 = vpack.c.b16 %v5191, %v5189
    %v5374 = vpack.c.b16 %v5192, %v5190
    %v5375 = vpack.c.b16 %v5195, %v5193
    %v5376 = vpack.c.b16 %v5196, %v5194
    %v5377 = vpack.c.b16 %v5199, %v5197
    %v5378 = vpack.c.b16 %v5200, %v5198
    %v5379 = vpack.c.b16 %v5203, %v5201
    %v5380 = vpack.c.b16 %v5204, %v5202
    %v5381 = vpack.c.b16 %v5207, %v5205
    %v5382 = vpack.c.b16 %v5208, %v5206
    %v5383 = vpack.c.b16 %v5211, %v5209
    %v5384 = vpack.c.b16 %v5212, %v5210
    %v5385 = vpack.c.b16 %v5215, %v5213
    %v5386 = vpack.c.b16 %v5216, %v5214
    %v5387 = vpack.c.b16 %v5219, %v5217
    %v5388 = vpack.c.b16 %v5220, %v5218
    %v5389 = vpack.c.b16 %v5223, %v5221
    %v5390 = vpack.c.b16 %v5224, %v5222
    %v5391 = vpack.c.b16 %v5227, %v5225
    %v5392 = vpack.c.b16 %v5228, %v5226
    %v5393 = vpack.c.b16 %v5231, %v5229
    %v5394 = vpack.c.b16 %v5232, %v5230
    %v5395 = vpack.c.b16 %v5235, %v5233
    %v5396 = vpack.c.b16 %v5236, %v5234
    %v5397 = vpack.c.b16 %v5239, %v5237
    %v5398 = vpack.c.b16 %v5240, %v5238
    %v5399 = vpack.c.b16 %v5243, %v5241
    %v5400 = vpack.c.b16 %v5244, %v5242
    %v5401 = vpack.c.b16 %v5247, %v5245
    %v5402 = vpack.c.b16 %v5248, %v5246
    %v5403 = vpack.c.b16 %v5251, %v5249
    %v5404 = vpack.c.b16 %v5252, %v5250
    %v5405 = vpack.c.b16 %v5255, %v5253
    %v5406 = vpack.c.b16 %v5256, %v5254
    %v5407 = vpack.c.b16 %v5259, %v5257
    %v5408 = vpack.c.b16 %v5260, %v5258
    %v5409 = vpack.c.b16 %v5263, %v5261
    %v5410 = vpack.c.b16 %v5264, %v5262
    %v5411 = vpack.c.b16 %v5267, %v5265
    %v5412 = vpack.c.b16 %v5268, %v5266
    %v5413 = vpack.c.b16 %v5271, %v5269
    %v5414 = vpack.c.b16 %v5272, %v5270
    %v5415 = vpack.c.b16 %v5275, %v5273
    %v5416 = vpack.c.b16 %v5276, %v5274
    %v5417 = vpack.c.b16 %v5279, %v5277
    %v5418 = vpack.c.b16 %v5280, %v5278
    %v5419 = vpack.c.b16 %v5283, %v5281
    %v5420 = vpack.c.b16 %v5284, %v5282
    %v5421 = vpack.c.b16 %v5287, %v5285
    %v5422 = vpack.c.b16 %v5288, %v5286
    %v5423 = vpack.c.b16 %v5291, %v5289
    %v5424 = vpack.c.b16 %v5292, %v5290
    %v5425 = vpack.c.b16 %v5295, %v5293
    %v5426 = vpack.c.b16 %v5296, %v5294
    %v5427 = vpack.c.b16 %v5299, %v5297
    %v5428 = vpack.c.b16 %v5300, %v5298
    %5557 = vmatprep.subr.bf16.mxu0 %v5302
    %5558 = vmatpush1.bf16.msra.mxu0 %v5301
    %5559 = vmatprep.subr.bf16.mxu0 %v5304
    %5560 = vmatpush1.bf16.msra.mxu0 %v5303
    %5561 = vmatprep.subr.bf16.mxu0 %v5306
    %5562 = vmatpush1.bf16.msra.mxu0 %v5305
    %5563 = vmatprep.subr.bf16.mxu0 %v5308
    %5564 = vmatpush1.bf16.msra.mxu0 %v5307
    %5565 = vmatprep.subr.bf16.mxu0 %v5310
    %5566 = vmatpush1.bf16.msra.mxu0 %v5309
    %5567 = vmatprep.subr.bf16.mxu0 %v5312
    %5568 = vmatpush1.bf16.msra.mxu0 %v5311
    %5569 = vmatprep.subr.bf16.mxu0 %v5314
    %5570 = vmatpush1.bf16.msra.mxu0 %v5313
    %5571 = vmatprep.subr.bf16.mxu0 %v5316
    %5572 = vmatpush1.bf16.msra.mxu0 %v5315
    %5573 = vmatprep.subr.bf16.mxu0 %v5318
    %5574 = vmatpush1.bf16.msra.mxu0 %v5317
    %5575 = vmatprep.subr.bf16.mxu0 %v5320
    %5576 = vmatpush1.bf16.msra.mxu0 %v5319
    %5577 = vmatprep.subr.bf16.mxu0 %v5322
    %5578 = vmatpush1.bf16.msra.mxu0 %v5321
    %5579 = vmatprep.subr.bf16.mxu0 %v5324
    %5580 = vmatpush1.bf16.msra.mxu0 %v5323
    %5581 = vmatprep.subr.bf16.mxu0 %v5326
    %5582 = vmatpush1.bf16.msra.mxu0 %v5325
    %5583 = vmatprep.subr.bf16.mxu0 %v5328
    %5584 = vmatpush1.bf16.msra.mxu0 %v5327
    %5585 = vmatprep.subr.bf16.mxu0 %v5330
    %5586 = vmatpush1.bf16.msra.mxu0 %v5329
    %5587 = vmatprep.subr.bf16.mxu0 %v5332
    %5588 = vmatpush1.bf16.msra.mxu0 %v5331
    %5589 = vmatprep.mubr.bf16.mxu0 %v4770
    %5590 = vmatmul.mubr.bf16.gmra.mrb[0].mxu0 %v4769
    %v5591 = vpop.f32.mrb[0].mxu0
    %v5592 = vadd.f32 %v4910, %v5591
    %v5593 = vpop.f32.mrb[0].mxu0
    %v5594 = vadd.f32 %v4914, %v5593
    %v5595 = vpop.f32.mrb[0].mxu0
    %v5596 = vadd.f32 %v4910, %v5595
    %v5597 = vpop.f32.mrb[0].mxu0
    %v5598 = vadd.f32 %v4914, %v5597
    %5599 = vdwg.mxu0
    %5600 = vmatprep.subr.bf16.mxu0 %v5334
    %5601 = vmatpush1.bf16.msra.mxu0 %v5333
    %5602 = vmatprep.subr.bf16.mxu0 %v5336
    %5603 = vmatpush1.bf16.msra.mxu0 %v5335
    %5604 = vmatprep.subr.bf16.mxu0 %v5338
    %5605 = vmatpush1.bf16.msra.mxu0 %v5337
    %5606 = vmatprep.subr.bf16.mxu0 %v5340
    %5607 = vmatpush1.bf16.msra.mxu0 %v5339
    %5608 = vmatprep.subr.bf16.mxu0 %v5342
    %5609 = vmatpush1.bf16.msra.mxu0 %v5341
    %5610 = vmatprep.subr.bf16.mxu0 %v5344
    %5611 = vmatpush1.bf16.msra.mxu0 %v5343
    %5612 = vmatprep.subr.bf16.mxu0 %v5346
    %5613 = vmatpush1.bf16.msra.mxu0 %v5345
    %5614 = vmatprep.subr.bf16.mxu0 %v5348
    %5615 = vmatpush1.bf16.msra.mxu0 %v5347
    %5616 = vmatprep.subr.bf16.mxu0 %v5350
    %5617 = vmatpush1.bf16.msra.mxu0 %v5349
    %5618 = vmatprep.subr.bf16.mxu0 %v5352
    %5619 = vmatpush1.bf16.msra.mxu0 %v5351
    %5620 = vmatprep.subr.bf16.mxu0 %v5354
    %5621 = vmatpush1.bf16.msra.mxu0 %v5353
    %5622 = vmatprep.subr.bf16.mxu0 %v5356
    %5623 = vmatpush1.bf16.msra.mxu0 %v5355
    %5624 = vmatprep.subr.bf16.mxu0 %v5358
    %5625 = vmatpush1.bf16.msra.mxu0 %v5357
    %5626 = vmatprep.subr.bf16.mxu0 %v5360
    %5627 = vmatpush1.bf16.msra.mxu0 %v5359
    %5628 = vmatprep.subr.bf16.mxu0 %v5362
    %5629 = vmatpush1.bf16.msra.mxu0 %v5361
    %5630 = vmatprep.subr.bf16.mxu0 %v5364
    %5631 = vmatpush1.bf16.msra.mxu0 %v5363
    %5632 = vmatprep.mubr.bf16.mxu0 %v4772
    %5633 = vmatmul.mubr.bf16.gmra.mrb[0].mxu0 %v4771
    %v5634 = vpop.f32.mrb[0].mxu0
    %v5635 = vadd.f32 %v5592, %v5634
    %v5636 = vpop.f32.mrb[0].mxu0
    %v5637 = vadd.f32 %v5594, %v5636
    %v5638 = vpop.f32.mrb[0].mxu0
    %v5639 = vadd.f32 %v5596, %v5638
    %v5640 = vpop.f32.mrb[0].mxu0
    %v5641 = vadd.f32 %v5598, %v5640
    %5642 = vdwg.mxu0
    %5643 = vmatprep.subr.bf16.mxu0 %v5366
    %5644 = vmatpush1.bf16.msra.mxu0 %v5365
    %5645 = vmatprep.subr.bf16.mxu0 %v5368
    %5646 = vmatpush1.bf16.msra.mxu0 %v5367
    %5647 = vmatprep.subr.bf16.mxu0 %v5370
    %5648 = vmatpush1.bf16.msra.mxu0 %v5369
    %5649 = vmatprep.subr.bf16.mxu0 %v5372
    %5650 = vmatpush1.bf16.msra.mxu0 %v5371
    %5651 = vmatprep.subr.bf16.mxu0 %v5374
    %5652 = vmatpush1.bf16.msra.mxu0 %v5373
    %5653 = vmatprep.subr.bf16.mxu0 %v5376
    %5654 = vmatpush1.bf16.msra.mxu0 %v5375
    %5655 = vmatprep.subr.bf16.mxu0 %v5378
    %5656 = vmatpush1.bf16.msra.mxu0 %v5377
    %5657 = vmatprep.subr.bf16.mxu0 %v5380
    %5658 = vmatpush1.bf16.msra.mxu0 %v5379
    %5659 = vmatprep.subr.bf16.mxu0 %v5382
    %5660 = vmatpush1.bf16.msra.mxu0 %v5381
    %5661 = vmatprep.subr.bf16.mxu0 %v5384
    %5662 = vmatpush1.bf16.msra.mxu0 %v5383
    %5663 = vmatprep.subr.bf16.mxu0 %v5386
    %5664 = vmatpush1.bf16.msra.mxu0 %v5385
    %5665 = vmatprep.subr.bf16.mxu0 %v5388
    %5666 = vmatpush1.bf16.msra.mxu0 %v5387
    %5667 = vmatprep.subr.bf16.mxu0 %v5390
    %5668 = vmatpush1.bf16.msra.mxu0 %v5389
    %5669 = vmatprep.subr.bf16.mxu0 %v5392
    %5670 = vmatpush1.bf16.msra.mxu0 %v5391
    %5671 = vmatprep.subr.bf16.mxu0 %v5394
    %5672 = vmatpush1.bf16.msra.mxu0 %v5393
    %5673 = vmatprep.subr.bf16.mxu0 %v5396
    %5674 = vmatpush1.bf16.msra.mxu0 %v5395
    %5675 = vmatprep.mubr.bf16.mxu0 %v4774
    %5676 = vmatmul.mubr.bf16.gmra.mrb[0].mxu0 %v4773
    %v5677 = vpop.f32.mrb[0].mxu0
    %v5678 = vadd.f32 %v5635, %v5677
    %v5679 = vpop.f32.mrb[0].mxu0
    %v5680 = vadd.f32 %v5637, %v5679
    %v5681 = vpop.f32.mrb[0].mxu0
    %v5682 = vadd.f32 %v5639, %v5681
    %v5683 = vpop.f32.mrb[0].mxu0
    %v5684 = vadd.f32 %v5641, %v5683
    %5685 = vdwg.mxu0
    %5686 = vmatprep.subr.bf16.mxu0 %v5398
    %5687 = vmatpush1.bf16.msra.mxu0 %v5397
    %5688 = vmatprep.subr.bf16.mxu0 %v5400
    %5689 = vmatpush1.bf16.msra.mxu0 %v5399
    %5690 = vmatprep.subr.bf16.mxu0 %v5402
    %5691 = vmatpush1.bf16.msra.mxu0 %v5401
    %5692 = vmatprep.subr.bf16.mxu0 %v5404
    %5693 = vmatpush1.bf16.msra.mxu0 %v5403
    %5694 = vmatprep.subr.bf16.mxu0 %v5406
    %5695 = vmatpush1.bf16.msra.mxu0 %v5405
    %5696 = vmatprep.subr.bf16.mxu0 %v5408
    %5697 = vmatpush1.bf16.msra.mxu0 %v5407
    %5698 = vmatprep.subr.bf16.mxu0 %v5410
    %5699 = vmatpush1.bf16.msra.mxu0 %v5409
    %5700 = vmatprep.subr.bf16.mxu0 %v5412
    %5701 = vmatpush1.bf16.msra.mxu0 %v5411
    %5702 = vmatprep.subr.bf16.mxu0 %v5414
    %5703 = vmatpush1.bf16.msra.mxu0 %v5413
    %5704 = vmatprep.subr.bf16.mxu0 %v5416
    %5705 = vmatpush1.bf16.msra.mxu0 %v5415
    %5706 = vmatprep.subr.bf16.mxu0 %v5418
    %5707 = vmatpush1.bf16.msra.mxu0 %v5417
    %5708 = vmatprep.subr.bf16.mxu0 %v5420
    %5709 = vmatpush1.bf16.msra.mxu0 %v5419
    %5710 = vmatprep.subr.bf16.mxu0 %v5422
    %5711 = vmatpush1.bf16.msra.mxu0 %v5421
    %5712 = vmatprep.subr.bf16.mxu0 %v5424
    %5713 = vmatpush1.bf16.msra.mxu0 %v5423
    %5714 = vmatprep.subr.bf16.mxu0 %v5426
    %5715 = vmatpush1.bf16.msra.mxu0 %v5425
    %5716 = vmatprep.subr.bf16.mxu0 %v5428
    %5717 = vmatpush1.bf16.msra.mxu0 %v5427
    %5718 = vmatprep.mubr.bf16.mxu0 %v4776
    %5719 = vmatmul.mubr.bf16.gmra.mrb[0].mxu0 %v4775
    %v5720 = vpop.f32.mrb[0].mxu0
    %v5721 = vadd.f32 %v5678, %v5720
    %v5722 = vpop.f32.mrb[0].mxu0
    %v5723 = vadd.f32 %v5680, %v5722
    %v5724 = vpop.f32.mrb[0].mxu0
    %v5725 = vadd.f32 %v5682, %v5724
    %v5726 = vpop.f32.mrb[0].mxu0
    %v5727 = vadd.f32 %v5684, %v5726
    %5728 = vdwg.mxu0
    %v5729 = vmax.f32 %v5721, 0.0
    %v5730 = vmax.f32 %v5723, 0.0
    %v5731 = vmax.f32 %v5725, 0.0
    %v5732 = vmax.f32 %v5727, 0.0
    %v5733 = vpack.c.bf16 %v5731, %v5729
    %v5734 = vpack.c.bf16 %v5732, %v5730
    %v5735 = vld [vmem:[%s7] sm:$0xf]
    %v5736 = vld [vmem:[%s7 + $0x4] sm:$0xf]
    %v5737 = vld [vmem:[%s7 + $0x8] sm:$0xf]
    %v5738 = vld [vmem:[%s7 + $0xc] sm:$0xf]
    %v5739 = vld [vmem:[%s7 + $0x10] sm:$0xf]
    %v5740 = vld [vmem:[%s7 + $0x14] sm:$0xf]
    %v5741 = vld [vmem:[%s7 + $0x18] sm:$0xf]
    %v5742 = vld [vmem:[%s7 + $0x1c] sm:$0xf]
    %v5743 = vld [vmem:[%s7 + $0x20] sm:$0xf]
    %v5744 = vld [vmem:[%s7 + $0x24] sm:$0xf]
    %v5745 = vld [vmem:[%s7 + $0x28] sm:$0xf]
    %v5746 = vld [vmem:[%s7 + $0x2c] sm:$0xf]
    %v5747 = vld [vmem:[%s7 + $0x30] sm:$0xf]
    %v5748 = vld [vmem:[%s7 + $0x34] sm:$0xf]
    %v5749 = vld [vmem:[%s7 + $0x38] sm:$0xf]
    %v5750 = vld [vmem:[%s7 + $0x3c] sm:$0xf]
    %v5751 = vld [vmem:[%s7 + $0x40] sm:$0xf]
    %v5752 = vld [vmem:[%s7 + $0x44] sm:$0xf]
    %v5753 = vld [vmem:[%s7 + $0x48] sm:$0xf]
    %v5754 = vld [vmem:[%s7 + $0x4c] sm:$0xf]
    %v5755 = vld [vmem:[%s7 + $0x50] sm:$0xf]
    %v5756 = vld [vmem:[%s7 + $0x54] sm:$0xf]
    %v5757 = vld [vmem:[%s7 + $0x58] sm:$0xf]
    %v5758 = vld [vmem:[%s7 + $0x5c] sm:$0xf]
    %v5759 = vld [vmem:[%s7 + $0x60] sm:$0xf]
    %v5760 = vld [vmem:[%s7 + $0x64] sm:$0xf]
    %v5761 = vld [vmem:[%s7 + $0x68] sm:$0xf]
    %v5762 = vld [vmem:[%s7 + $0x6c] sm:$0xf]
    %v5763 = vld [vmem:[%s7 + $0x70] sm:$0xf]
    %v5764 = vld [vmem:[%s7 + $0x74] sm:$0xf]
    %v5765 = vld [vmem:[%s7 + $0x78] sm:$0xf]
    %v5766 = vld [vmem:[%s7 + $0x7c] sm:$0xf]
    %v5767 = vld [vmem:[#allocation13] sm:$0x1]
    %v5769 = vlaneseq
    %v5770 = vshrl.u32 %v5769, 7
    %v5771 = vsub.s32 0, %v5770
    %v5772 = vrot.slane %v5767, %v5771
    %v5806 = vunpack.c.l.b16 %v5735
    %v5807 = vunpack.c.l.b16 %v5736
    %v5808 = vunpack.c.l.b16 %v5737
    %v5809 = vunpack.c.l.b16 %v5738
    %v5810 = vunpack.c.l.b16 %v5739
    %v5811 = vunpack.c.l.b16 %v5740
    %v5812 = vunpack.c.l.b16 %v5741
    %v5813 = vunpack.c.l.b16 %v5742
    %v5814 = vunpack.c.l.b16 %v5743
    %v5815 = vunpack.c.l.b16 %v5744
    %v5816 = vunpack.c.l.b16 %v5745
    %v5817 = vunpack.c.l.b16 %v5746
    %v5818 = vunpack.c.l.b16 %v5747
    %v5819 = vunpack.c.l.b16 %v5748
    %v5820 = vunpack.c.l.b16 %v5749
    %v5821 = vunpack.c.l.b16 %v5750
    %v5822 = vunpack.c.l.b16 %v5751
    %v5823 = vunpack.c.l.b16 %v5752
    %v5824 = vunpack.c.l.b16 %v5753
    %v5825 = vunpack.c.l.b16 %v5754
    %v5826 = vunpack.c.l.b16 %v5755
    %v5827 = vunpack.c.l.b16 %v5756
    %v5828 = vunpack.c.l.b16 %v5757
    %v5829 = vunpack.c.l.b16 %v5758
    %v5830 = vunpack.c.l.b16 %v5759
    %v5831 = vunpack.c.l.b16 %v5760
    %v5832 = vunpack.c.l.b16 %v5761
    %v5833 = vunpack.c.l.b16 %v5762
    %v5834 = vunpack.c.l.b16 %v5763
    %v5835 = vunpack.c.l.b16 %v5764
    %v5836 = vunpack.c.l.b16 %v5765
    %v5837 = vunpack.c.l.b16 %v5766
    %v5838 = vpack.c.b16 %v5807, %v5806
    %v5839 = vpack.c.b16 %v5809, %v5808
    %v5840 = vpack.c.b16 %v5811, %v5810
    %v5841 = vpack.c.b16 %v5813, %v5812
    %v5842 = vpack.c.b16 %v5815, %v5814
    %v5843 = vpack.c.b16 %v5817, %v5816
    %v5844 = vpack.c.b16 %v5819, %v5818
    %v5845 = vpack.c.b16 %v5821, %v5820
    %v5846 = vpack.c.b16 %v5823, %v5822
    %v5847 = vpack.c.b16 %v5825, %v5824
    %v5848 = vpack.c.b16 %v5827, %v5826
    %v5849 = vpack.c.b16 %v5829, %v5828
    %v5850 = vpack.c.b16 %v5831, %v5830
    %v5851 = vpack.c.b16 %v5833, %v5832
    %v5852 = vpack.c.b16 %v5835, %v5834
    %v5853 = vpack.c.b16 %v5837, %v5836
    %5870 = vmatprep.subr.bf16.mxu0 0
    %5871 = vmatpush1.bf16.msra.mxu0 %v5838
    %5872 = vmatprep.subr.bf16.mxu0 0
    %5873 = vmatpush1.bf16.msra.mxu0 %v5839
    %5874 = vmatprep.subr.bf16.mxu0 0
    %5875 = vmatpush1.bf16.msra.mxu0 %v5840
    %5876 = vmatprep.subr.bf16.mxu0 0
    %5877 = vmatpush1.bf16.msra.mxu0 %v5841
    %5878 = vmatprep.subr.bf16.mxu0 0
    %5879 = vmatpush1.bf16.msra.mxu0 %v5842
    %5880 = vmatprep.subr.bf16.mxu0 0
    %5881 = vmatpush1.bf16.msra.mxu0 %v5843
    %5882 = vmatprep.subr.bf16.mxu0 0
    %5883 = vmatpush1.bf16.msra.mxu0 %v5844
    %5884 = vmatprep.subr.bf16.mxu0 0
    %5885 = vmatpush1.bf16.msra.mxu0 %v5845
    %5886 = vmatprep.subr.bf16.mxu0 0
    %5887 = vmatpush1.bf16.msra.mxu0 %v5846
    %5888 = vmatprep.subr.bf16.mxu0 0
    %5889 = vmatpush1.bf16.msra.mxu0 %v5847
    %5890 = vmatprep.subr.bf16.mxu0 0
    %5891 = vmatpush1.bf16.msra.mxu0 %v5848
    %5892 = vmatprep.subr.bf16.mxu0 0
    %5893 = vmatpush1.bf16.msra.mxu0 %v5849
    %5894 = vmatprep.subr.bf16.mxu0 0
    %5895 = vmatpush1.bf16.msra.mxu0 %v5850
    %5896 = vmatprep.subr.bf16.mxu0 0
    %5897 = vmatpush1.bf16.msra.mxu0 %v5851
    %5898 = vmatprep.subr.bf16.mxu0 0
    %5899 = vmatpush1.bf16.msra.mxu0 %v5852
    %5900 = vmatprep.subr.bf16.mxu0 0
    %5901 = vmatpush1.bf16.msra.mxu0 %v5853
    %5902 = vmatprep.mubr.bf16.mxu0 %v5734
    %5903 = vmatmul.mubr.bf16.gmra.mrb[0].mxu0 %v5733
    %v5904 = vpop.f32.mrb[0].mxu0
    %v5905 = vadd.f32 %v5772, %v5904
    %v5906 = vpop.f32.mrb[0].mxu0
    %v5907 = vpop.f32.mrb[0].mxu0
    %v5908 = vadd.f32 %v5772, %v5907
    %v5909 = vpop.f32.mrb[0].mxu0
    %5910 = vdwg.mxu0
    %v5911 = vmax.f32 %v5905, 0.0
    %v5912 = vmax.f32 %v5908, 0.0
    %v5913 = vpack.c.bf16 %v5912, %v5911
    %v5914 = vld [vmem:[%s9] sm:$0xf]
    %v5915 = vld [vmem:[%s9 + $0x4] sm:$0xf]
    %v5916 = vld [vmem:[%s9 + $0x8] sm:$0xf]
    %v5917 = vld [vmem:[%s9 + $0xc] sm:$0xf]
    %v5918 = vld [vmem:[%s9 + $0x10] sm:$0xf]
    %v5919 = vld [vmem:[%s9 + $0x14] sm:$0xf]
    %v5920 = vld [vmem:[%s9 + $0x18] sm:$0xf]
    %v5921 = vld [vmem:[%s9 + $0x1c] sm:$0xf]
    %v5922 = vld [vmem:[#allocation15] sm:$0x1]
    %v5924 = vlaneseq
    %v5925 = vshrl.u32 %v5924, 7
    %v5926 = vsub.s32 0, %v5925
    %v5927 = vrot.slane %v5922, %v5926
    %v5937 = vunpack.c.l.b16 %v5914
    %v5938 = vunpack.c.l.b16 %v5915
    %v5939 = vunpack.c.l.b16 %v5916
    %v5940 = vunpack.c.l.b16 %v5917
    %v5941 = vunpack.c.l.b16 %v5918
    %v5942 = vunpack.c.l.b16 %v5919
    %v5943 = vunpack.c.l.b16 %v5920
    %v5944 = vunpack.c.l.b16 %v5921
    %v5945 = vpack.c.b16 %v5938, %v5937
    %v5946 = vpack.c.b16 %v5940, %v5939
    %v5947 = vpack.c.b16 %v5942, %v5941
    %v5948 = vpack.c.b16 %v5944, %v5943
    %vm5953 = vcmask 523264
    %v5955 = vsel %vm5953, %v5913, 0
    %5957 = vmatprep.subr.bf16.mxu0 0
    %5958 = vmatpush1.bf16.msra.mxu0 %v5945
    %5959 = vmatprep.subr.bf16.mxu0 0
    %5960 = vmatpush1.bf16.msra.mxu0 %v5946
    %5961 = vmatprep.subr.bf16.mxu0 0
    %5962 = vmatpush1.bf16.msra.mxu0 %v5947
    %5963 = vmatprep.subr.bf16.mxu0 0
    %5964 = vmatpush1.bf16.msra.mxu0 %v5948
    %5965 = vmatprep.subr.bf16.mxu0 0
    %5966 = vmatpush1.bf16.msra.mxu0 0
    %5967 = vmatprep.subr.bf16.mxu0 0
    %5968 = vmatpush1.bf16.msra.mxu0 0
    %5969 = vmatprep.subr.bf16.mxu0 0
    %5970 = vmatpush1.bf16.msra.mxu0 0
    %5971 = vmatprep.subr.bf16.mxu0 0
    %5972 = vmatpush1.bf16.msra.mxu0 0
    %5973 = vmatprep.subr.bf16.mxu0 0
    %5974 = vmatpush1.bf16.msra.mxu0 0
    %5975 = vmatprep.subr.bf16.mxu0 0
    %5976 = vmatpush1.bf16.msra.mxu0 0
    %5977 = vmatprep.subr.bf16.mxu0 0
    %5978 = vmatpush1.bf16.msra.mxu0 0
    %5979 = vmatprep.subr.bf16.mxu0 0
    %5980 = vmatpush1.bf16.msra.mxu0 0
    %5981 = vmatprep.subr.bf16.mxu0 0
    %5982 = vmatpush1.bf16.msra.mxu0 0
    %5983 = vmatprep.subr.bf16.mxu0 0
    %5984 = vmatpush1.bf16.msra.mxu0 0
    %5985 = vmatprep.subr.bf16.mxu0 0
    %5986 = vmatpush1.bf16.msra.mxu0 0
    %5987 = vmatprep.subr.bf16.mxu0 0
    %5988 = vmatpush1.bf16.msra.mxu0 0
    %5989 = vmatprep.mubr.bf16.mxu0 0
    %5990 = vmatmul.mubr.bf16.gmra.mrb[0].mxu0 %v5955
    %v5991 = vpop.f32.mrb[0].mxu0
    %v5992 = vadd.f32 %v5927, %v5991
    %v5993 = vpop.f32.mrb[0].mxu0
    %v5994 = vpop.f32.mrb[0].mxu0
    %v5995 = vadd.f32 %v5927, %v5994
    %v5996 = vpop.f32.mrb[0].mxu0
    %5997 = vdwg.mxu0
    %v5998 = vmax.f32 %v5992, 0.0
    %v5999 = vmax.f32 %v5995, 0.0
    %v6000 = vpack.c.bf16 %v5999, %v5998
    %v6001 = vld [vmem:[%s11] sm:$0xf]
    %v6002 = vld [vmem:[%s11 + $0x4] sm:$0xf]
    %v6003 = vld [vmem:[#allocation16] sm:$0x1]
    %v6005 = vlaneseq
    %v6006 = vshrl.u32 %v6005, 7
    %v6007 = vsub.s32 0, %v6006
    %v6008 = vrot.slane %v6003, %v6007
    %v6012 = vunpack.c.l.b16 %v6001
    %v6013 = vunpack.c.l.b16 %v6002
    %v6014 = vpack.c.b16 %v6013, %v6012
    %vm6016 = vcmask 130048
    %v6018 = vsel %vm6016, %v6000, 0
    %6020 = vmatprep.subr.bf16.mxu0 0
    %6021 = vmatpush1.bf16.msra.mxu0 %v6014
    %6022 = vmatprep.subr.bf16.mxu0 0
    %6023 = vmatpush1.bf16.msra.mxu0 0
    %6024 = vmatprep.subr.bf16.mxu0 0
    %6025 = vmatpush1.bf16.msra.mxu0 0
    %6026 = vmatprep.subr.bf16.mxu0 0
    %6027 = vmatpush1.bf16.msra.mxu0 0
    %6028 = vmatprep.subr.bf16.mxu0 0
    %6029 = vmatpush1.bf16.msra.mxu0 0
    %6030 = vmatprep.subr.bf16.mxu0 0
    %6031 = vmatpush1.bf16.msra.mxu0 0
    %6032 = vmatprep.subr.bf16.mxu0 0
    %6033 = vmatpush1.bf16.msra.mxu0 0
    %6034 = vmatprep.subr.bf16.mxu0 0
    %6035 = vmatpush1.bf16.msra.mxu0 0
    %6036 = vmatprep.subr.bf16.mxu0 0
    %6037 = vmatpush1.bf16.msra.mxu0 0
    %6038 = vmatprep.subr.bf16.mxu0 0
    %6039 = vmatpush1.bf16.msra.mxu0 0
    %6040 = vmatprep.subr.bf16.mxu0 0
    %6041 = vmatpush1.bf16.msra.mxu0 0
    %6042 = vmatprep.subr.bf16.mxu0 0
    %6043 = vmatpush1.bf16.msra.mxu0 0
    %6044 = vmatprep.subr.bf16.mxu0 0
    %6045 = vmatpush1.bf16.msra.mxu0 0
    %6046 = vmatprep.subr.bf16.mxu0 0
    %6047 = vmatpush1.bf16.msra.mxu0 0
    %6048 = vmatprep.subr.bf16.mxu0 0
    %6049 = vmatpush1.bf16.msra.mxu0 0
    %6050 = vmatprep.subr.bf16.mxu0 0
    %6051 = vmatpush1.bf16.msra.mxu0 0
    %6052 = vmatprep.mubr.bf16.mxu0 0
    %6053 = vmatmul.mubr.bf16.gmra.mrb[0].mxu0 %v6018
    %v6054 = vpop.f32.mrb[0].mxu0
    %v6055 = vadd.f32 %v6008, %v6054
    %v6056 = vpop.f32.mrb[0].mxu0
    %v6057 = vpop.f32.mrb[0].mxu0
    %v6058 = vadd.f32 %v6008, %v6057
    %v6059 = vpop.f32.mrb[0].mxu0
    %6060 = vdwg.mxu0
    %vm6061 = vcmask 64512
    %6062 = vst.msk [vmem:[%s13] sm:$0xff] %vm6061, %v6055
    %6063 = vst.msk [vmem:[%s13 + $0x8] sm:$0xff] %vm6061, %v6058
    // Predicated region
    $region94: #{tpu_custom_call.1} parent=1 // pred_check
      _
    $region95: #{tpu_custom_call.1} parent=1 // pred_check_branch
      %6065 = sbr.rel (0) target = $region97
    $region96: #{tpu_custom_call.1} parent=1 // pred_region
      _
    $region97: #{tpu_custom_call.1} parent=1 // pred_fallthru
      _
    // Predicated region
    $region98: #{tpu_custom_call.1} parent=1 // pred_check
      _
    $region99: #{tpu_custom_call.1} parent=1 // pred_check_branch
      %6067 = sbr.rel (0) target = $region101
    $region100: #{tpu_custom_call.1} parent=1 // pred_region
      _
    $region101: #{tpu_custom_call.1} parent=1 // pred_fallthru
      _
    %6068 = vsyncpa [#allocation3], 1
    %6069 = vsyncpa [#allocation5], 1
    %6070 = vsyncpa [#allocation8], 1
    %6071 = vsyncpa [#allocation11], 1
    %6072 = vsyncpa [#allocation14], 1
    %6073 = vsyncpa [#allocation17], 1

</llo_original>
